<compile_context>
chip_gen: v7x
topology: tpu7x:2x2x1
jax: 0.10.0
libtpu: 0.0.40
codegen_flags: <defaults>
</compile_context>

<pallas_src>
import jax
import jax.numpy as jnp
from jax.experimental import pallas as pl
from jax.experimental.pallas import tpu as pltpu
from typing import Any, NamedTuple

B = 2
H = 16
W = 16
BW = B * W            # slab width: batch packed along lanes -> (H, B*W) = (16, 32)
N_BLOCKS = 2          # PLPhasenetU(n=N_BLOCKS)
LEAKY_SLOPE = 0.01    # torch.nn.LeakyReLU default
BN_EPS = 1e-5         # torch.nn.BatchNorm2d default (weight=1, bias=0, batch stats)
INV_HW = 1.0 / float(H * W)


class _Refs(NamedTuple):
    otf_rr: Any   # (H, 2*BW)   [otf_r | otf_r]
    otf_in: Any   # (H, 2*BW)   [-otf_i | otf_i]
    otfsq2: Any   # (H, 2*BW)   [|otf|^2 | |otf|^2]
    fh_ri: Any    # (2H, H)     [fh_r ; fh_i]            (row FFT of real input)
    fh2: Any      # (2H, 2H)    [[fh_r, -fh_i],[ fh_i, fh_r]]   (row FFT, complex)
    fh2c: Any     # (2H, 2H)    [[fh_r,  fh_i],[-fh_i, fh_r]]   (row iFFT)
    fw2: Any      # (2BW, 2BW)  [[fwb_r, fwb_i],[-fwb_i, fwb_r]] (col FFT, batch block-diag)
    fw2c: Any     # (2BW, 2BW)  [[fwb_r, -fwb_i],[fwb_i, fwb_r]] (col iFFT)


# ----------------------------------------------------------------------------
# in-kernel math helpers
#   real slab : (H, BW)
#   Vpack     : (2H, BW)   rows [0,H) = real, [H,2H) = imag
#   Hpack     : (H, 2*BW)  cols [0,BW) = real, [BW,2BW) = imag
# ----------------------------------------------------------------------------
def _dot(a, b):
    return jnp.dot(a, b, preferred_element_type=jnp.float32)


def _v_to_h(v):
    return jnp.concatenate([v[:H, :], v[H:, :]], axis=-1)


def _h_to_v(h):
    return jnp.concatenate([h[:, :BW], h[:, BW:]], axis=0)


def _h_swap(h):
    return jnp.concatenate([h[:, BW:], h[:, :BW]], axis=-1)


def _fft2_real(x, refs):
    """fft2 of a real slab: one (2H,H)@(H,BW) matmul + one (H,2BW)@(2BW,2BW)."""
    v = _dot(refs.fh_ri[...], x)            # Vpack (2H, BW)
    return _dot(_v_to_h(v), refs.fw2[...])  # Hpack (H, 2BW)


def _fft2_c(pr, pi, refs):
    """fft2 of a complex slab: two fused block matmuls."""
    v = _dot(refs.fh2[...], jnp.concatenate([pr, pi], axis=0))
    return _dot(_v_to_h(v), refs.fw2[...])


def _ifft2_to_ri(hp, refs):
    """ifft2 of an Hpack slab: two fused block matmuls; returns (real, imag)."""
    h2 = _dot(hp, refs.fw2c[...])                      # inverse column DFT
    v = _dot(refs.fh2c[...], _h_to_v(h2)) * INV_HW     # inverse row DFT + 1/(H*W)
    return v[:H, :], v[H:, :]


def _mul_otf(hp, refs, conj):
    """Elementwise complex multiply of an Hpack slab by otf (or conj(otf))."""
    direct = hp * refs.otf_rr[...]
    cross = _h_swap(hp) * refs.otf_in[...]
    return direct - cross if conj else direct + cross


def _scale_by_image_max(v):
    """Divide each batch image (columns b*W..(b+1)*W-1) by its own max."""
    col = jax.lax.broadcasted_iota(jnp.int32, v.shape, 1)
    inv = None
    for b in range(B):
        img = v[:, b * W:(b + 1) * W]
        m = jnp.max(jnp.max(img, axis=1, keepdims=True), axis=0, keepdims=True)
        r = 1.0 / m                          # scalar reciprocal, then multiply slab
        inv = r if inv is None else jnp.where(col < b * W, inv, r)
    return v * inv


def _abs_angle_over_pi(re, im):
    """|atan2(im, re)| / pi using only mul/add/div/where/abs (Cephes atanf poly)."""
    ax = jnp.abs(re)
    ay = jnp.abs(im)
    mx = jnp.maximum(ax, ay)
    mn = jnp.minimum(ax, ay)
    a = mn / jnp.where(mx == 0.0, 1.0, mx)             # in [0, 1]
    mid = a > 0.4142135623730951                       # tan(pi/8)
    xr = jnp.where(mid, (a - 1.0) / (a + 1.0), a)      # |xr| <= tan(pi/8)
    y0 = jnp.where(mid, 0.25 * jnp.pi, 0.0)
    zz = xr * xr
    p = (((8.05374449538e-2 * zz - 1.38776856032e-1) * zz + 1.99777106478e-1) * zz
         - 3.33329491539e-1)
    r = y0 + (p * zz * xr + xr)                        # atan(a) in [0, pi/4]
    r = jnp.where(ay > ax, 0.5 * jnp.pi - r, r)        # atan2(ay, ax) in [0, pi/2]
    r = jnp.where(re < 0.0, jnp.pi - r, r)             # |atan2(im, re)| in [0, pi]
    r = jnp.where(mx == 0.0, 0.0, r)                   # angle(0) = 0
    return r * (1.0 / jnp.pi)


def _back_proj_phase(holo, refs):
    """|angle(ifft2(fft2(holo) * conj(otf)))| / pi  (phase_clipped=True path)."""
    hp = _fft2_real(holo, refs)
    hp = _mul_otf(hp, refs, conj=True)
    zr, zi = _ifft2_to_ri(hp, refs)
    return _abs_angle_over_pi(zr, zi)


def _forward_proj(obj, refs):
    """holo = |ifft2(fft2(exp(i*(-pi+2*pi*obj))) * otf)|^2, scaled by per-image max."""
    theta = (2.0 * jnp.pi) * obj - jnp.pi
    hp = _fft2_c(jnp.cos(theta), jnp.sin(theta), refs)
    hp = _mul_otf(hp, refs, conj=False)
    zr, zi = _ifft2_to_ri(hp, refs)
    holo = zr * zr + zi * zi
    return _scale_by_image_max(holo)


def _phi_bisect(phi_tilde, k1, k0, rho1):
    """30-iteration elementwise bisection of K0 - K1/(exp(y)-1) + rho1*(y - phi_tilde).

    The root function is multiplied through by (1 - exp(-y)) > 0 (y in [1e-5,100]),
    which preserves its sign exactly:
        h(y) = (K0 + rho1*(y - phi_tilde)) * (1 - exp(-y)) - K1*exp(-y)
    so each iteration needs only ONE exp and no division, and exp never overflows.
    Fully unrolled at trace time (static 30-iteration loop, matching the reference).
    """
    pmin = jnp.full_like(phi_tilde, 1e-5)
    pmax = jnp.full_like(phi_tilde, 100.0)
    pave = 0.5 * (pmin + pmax)
    for _ in range(30):
        e = jnp.exp(-pave)
        t = k0 + rho1 * (pave - phi_tilde)
        h = t - (t + k1) * e                 # == t*(1-e) - k1*e
        pmin = jnp.where(h < 0.0, pave, pmin)
        pmax = jnp.where(h > 0.0, pave, pmax)
        pave = 0.5 * (pmin + pmax)
    return pave


def _x_update(phi, z, u1, u2, rho1, rho2, refs):
    x1 = phi + u1
    x2 = z + u2
    # back_proj output goes through |angle|/pi (nonlinear), so the fft2/ifft2
    # round trip here cannot be algebraically folded away.
    temp = _back_proj_phase(x1, refs)
    n = rho1 * temp + rho2 * x2
    # TODO(synk): batch_FT2d / batch_iFT2d are undefined in the source module;
    #             assumed to be fft2 / ifft2.
    nf = _fft2_real(n, refs)
    d2 = rho2 + rho1 * refs.otfsq2[...]
    zr, zi = _ifft2_to_ri(nf / d2, refs)     # exact divide (matches torch n / d)
    mag = jnp.sqrt(zr * zr + zi * zi)
    return _scale_by_image_max(mag)


# ----------------------------------------------------------------------------
# single fused kernel: whole PLPhasenetU forward
# ----------------------------------------------------------------------------
def _plphasenet_kernel(k1_ref, k0_ref, otf_rr_ref, otf_in_ref, otfsq2_ref,
                       fh_ri_ref, fh2_ref, fh2c_ref, fw2_ref, fw2c_ref,
                       rho1_ref, rho2_ref, out_ref):
    refs = _Refs(otf_rr_ref, otf_in_ref, otfsq2_ref,
                 fh_ri_ref, fh2_ref, fh2c_ref, fw2_ref, fw2c_ref)
    k1 = k1_ref[...]
    k0 = k0_ref[...]

    # ---- PLPhasenetU.forward ----
    x = _back_proj_phase(k1, refs)
    phi = k1                      # K1.clone(); overwritten in the first block
    z = x                         # x.clone();  overwritten in the first block
    u1 = jnp.zeros_like(k1)
    u2 = jnp.zeros_like(x)
    # forward projection of the current x; cached and reused by Phi_update
    fp_x = _forward_proj(x, refs)

    for i in range(N_BLOCKS):
        rho1 = rho1_ref[i]
        rho2 = rho2_ref[i]
        # Z_update: z = denoiser(x - u2)
        # TODO(synk): ResUNet denoiser definition is not provided in the source
        #             module; identity placeholder.
        z = x - u2
        # Phi_update (forward_proj(x) is the cached value: x unchanged since then)
        phi_tilde = fp_x - u1
        phi = _phi_bisect(phi_tilde, k1, k0, rho1)
        # X_update
        x = _x_update(phi, z, u1, u2, rho1, rho2, refs)
        # dual updates (forward projection of the new x cached for the next block)
        fp_x = _forward_proj(x, refs)
        u1 = u1 + phi - fp_x
        u2 = u2 + z - x

    # ---- BatchNorm2d(1): training-mode batch statistics, weight=1, bias=0 ----
    cnt = float(B * H * W)
    s = jnp.sum(jnp.sum(x, axis=1, keepdims=True), axis=0, keepdims=True)
    mean = s * (1.0 / cnt)
    xc = x - mean
    sv = jnp.sum(jnp.sum(xc * xc, axis=1, keepdims=True), axis=0, keepdims=True)
    var = sv * (1.0 / cnt)
    xn = xc * jax.lax.rsqrt(var + BN_EPS)
    # LeakyReLU
    out_ref[...] = jnp.where(xn >= 0.0, xn, LEAKY_SLOPE * xn)


# ----------------------------------------------------------------------------
# wrapper
# ----------------------------------------------------------------------------
def _dft_mats(n):
    k = jnp.arange(n, dtype=jnp.float32)
    ang = (-2.0 * jnp.pi / float(n)) * jnp.outer(k, k)
    return jnp.cos(ang), jnp.sin(ang)


_VMEM_SPEC = pl.BlockSpec(memory_space=pltpu.MemorySpace.VMEM)
_SMEM_SPEC = pl.BlockSpec(memory_space=pltpu.MemorySpace.SMEM)


def _to_slab(t):
    """[B,1,H,W] -> [H, B*W]  (batch packed along lanes)."""
    return jnp.transpose(t.reshape(B, H, W), (1, 0, 2)).reshape(H, BW)


def _from_slab(s):
    """[H, B*W] -> [B,1,H,W]."""
    return jnp.transpose(s.reshape(H, B, W), (1, 0, 2)).reshape(B, 1, H, W)


def plphasenet_forward(K1, K0, otf_re4, otf_im4, rho1s, rho2s):
    """K1, K0, otf re/im: [B,1,H,W] float32; rho1s/rho2s: [N_BLOCKS] float32."""
    k1 = _to_slab(K1)
    k0 = _to_slab(K0)
    otf_r = _to_slab(otf_re4)
    otf_i = _to_slab(otf_im4)

    # pre-packed otf operands for the lane-packed complex elementwise multiply
    otf_rr = jnp.concatenate([otf_r, otf_r], axis=-1)
    otf_in = jnp.concatenate([-otf_i, otf_i], axis=-1)
    sq = otf_r * otf_r + otf_i * otf_i
    otfsq2 = jnp.concatenate([sq, sq], axis=-1)

    # fused block DFT matrices (built once, outside the kernel)
    fh_r, fh_i = _dft_mats(H)
    fw_r, fw_i = _dft_mats(W)
    eye_b = jnp.eye(B, dtype=jnp.float32)
    fwb_r = jnp.kron(eye_b, fw_r)       # column DFT is block-diagonal over batch
    fwb_i = jnp.kron(eye_b, fw_i)
    fh_ri = jnp.concatenate([fh_r, fh_i], axis=0)
    fh2 = jnp.block([[fh_r, -fh_i], [fh_i, fh_r]])
    fh2c = jnp.block([[fh_r, fh_i], [-fh_i, fh_r]])
    fw2 = jnp.block([[fwb_r, fwb_i], [-fwb_i, fwb_r]])
    fw2c = jnp.block([[fwb_r, -fwb_i], [fwb_i, fwb_r]])

    out = pl.pallas_call(
        _plphasenet_kernel,
        in_specs=[_VMEM_SPEC] * 10 + [_SMEM_SPEC, _SMEM_SPEC],
        out_specs=_VMEM_SPEC,
        out_shape=jax.ShapeDtypeStruct((H, BW), jnp.float32),
    )(k1, k0, otf_rr, otf_in, otfsq2, fh_ri, fh2, fh2c, fw2, fw2c, rho1s, rho2s)
    return _from_slab(out)


# ----------------------------------------------------------------------------
# main
# ----------------------------------------------------------------------------
if __name__ == "__main__":
    key = jax.random.PRNGKey(0)
    kk1, kk0, kotf, kpar = jax.random.split(key, 4)

    K1 = jax.random.uniform(kk1, (B, 1, H, W), jnp.float32, 0.0, 4.0)
    K0 = jax.random.uniform(kk0, (B, 1, H, W), jnp.float32, 0.0, 4.0)
    # synthetic unit-modulus OTF (complex64 carried as re/im float32 planes)
    otf_phase = jax.random.uniform(kotf, (B, 1, H, W), jnp.float32, -jnp.pi, jnp.pi)
    otf_re = jnp.cos(otf_phase)
    otf_im = jnp.sin(otf_phase)

    # per-block parameters rho1, rho2 ~ N(0,1) (torch.nn.init.normal_)
    k_r1, k_r2 = jax.random.split(kpar)
    rho1s = jax.random.normal(k_r1, (N_BLOCKS,), jnp.float32)
    rho2s = jax.random.normal(k_r2, (N_BLOCKS,), jnp.float32)

    fwd = jax.jit(plphasenet_forward)
    out = jax.block_until_ready(fwd(K1, K0, otf_re, otf_im, rho1s, rho2s))
    assert out.shape == (B, 1, H, W) and out.dtype == jnp.float32
    print("KERNEL_OK")
</pallas_src>

<mosaic_0001>
module attributes {stable_mosaic.version = 11 : i64} {
  func.func @_plphasenet_kernel(%arg0: memref<16x32xf32, #tpu.memory_space<vmem>>, %arg1: memref<16x32xf32, #tpu.memory_space<vmem>>, %arg2: memref<16x64xf32, #tpu.memory_space<vmem>>, %arg3: memref<16x64xf32, #tpu.memory_space<vmem>>, %arg4: memref<16x64xf32, #tpu.memory_space<vmem>>, %arg5: memref<32x16xf32, #tpu.memory_space<vmem>>, %arg6: memref<32x32xf32, #tpu.memory_space<vmem>>, %arg7: memref<32x32xf32, #tpu.memory_space<vmem>>, %arg8: memref<64x64xf32, #tpu.memory_space<vmem>>, %arg9: memref<64x64xf32, #tpu.memory_space<vmem>>, %arg10: memref<2xf32, #tpu.memory_space<smem>>, %arg11: memref<2xf32, #tpu.memory_space<smem>>, %arg12: memref<16x32xf32, #tpu.memory_space<vmem>>) attributes {dimension_semantics = [], scalar_prefetch = 0 : i64, scratch_operands = 0 : i64, tpu.core_type = #tpu.core_type<tc>} {
    %c0 = arith.constant 0 : index
    %c0_0 = arith.constant 0 : index
    %0 = vector.load %arg0[%c0, %c0_0] : memref<16x32xf32, #tpu.memory_space<vmem>>, vector<16x32xf32>
    %c0_1 = arith.constant 0 : index
    %c0_2 = arith.constant 0 : index
    %1 = vector.load %arg1[%c0_1, %c0_2] : memref<16x32xf32, #tpu.memory_space<vmem>>, vector<16x32xf32>
    %c0_3 = arith.constant 0 : index
    %c0_4 = arith.constant 0 : index
    %2 = vector.load %arg5[%c0_3, %c0_4] : memref<32x16xf32, #tpu.memory_space<vmem>>, vector<32x16xf32>
    %cst = arith.constant dense<0.000000e+00> : vector<32x32xf32>
    %3 = tpu.matmul %2, %0, %cst {dimension_numbers = #tpu.dot_dimension_numbers<[1], [0], [0], [1], [0, 0, 1, 1], [], []>} : vector<32x16xf32>, vector<16x32xf32>, vector<32x32xf32> -> vector<32x32xf32>
    %4 = vector.extract_strided_slice %3 {offsets = [0, 0], sizes = [16, 32], strides = [1, 1]} : vector<32x32xf32> to vector<16x32xf32>
    %5 = vector.extract_strided_slice %3 {offsets = [16, 0], sizes = [16, 32], strides = [1, 1]} : vector<32x32xf32> to vector<16x32xf32>
    %6 = tpu.concatenate %4, %5 in 1 : vector<16x32xf32>, vector<16x32xf32> -> vector<16x64xf32>
    %c0_5 = arith.constant 0 : index
    %c0_6 = arith.constant 0 : index
    %7 = vector.load %arg8[%c0_5, %c0_6] : memref<64x64xf32, #tpu.memory_space<vmem>>, vector<64x64xf32>
    %cst_7 = arith.constant dense<0.000000e+00> : vector<16x64xf32>
    %8 = tpu.matmul %6, %7, %cst_7 {dimension_numbers = #tpu.dot_dimension_numbers<[1], [0], [0], [1], [0, 0, 1, 1], [], []>} : vector<16x64xf32>, vector<64x64xf32>, vector<16x64xf32> -> vector<16x64xf32>
    %c0_8 = arith.constant 0 : index
    %c0_9 = arith.constant 0 : index
    %9 = vector.load %arg2[%c0_8, %c0_9] : memref<16x64xf32, #tpu.memory_space<vmem>>, vector<16x64xf32>
    %10 = arith.mulf %8, %9 : vector<16x64xf32>
    %11 = vector.extract_strided_slice %8 {offsets = [0, 32], sizes = [16, 32], strides = [1, 1]} : vector<16x64xf32> to vector<16x32xf32>
    %12 = vector.extract_strided_slice %8 {offsets = [0, 0], sizes = [16, 32], strides = [1, 1]} : vector<16x64xf32> to vector<16x32xf32>
    %13 = tpu.concatenate %11, %12 in 1 : vector<16x32xf32>, vector<16x32xf32> -> vector<16x64xf32>
    %c0_10 = arith.constant 0 : index
    %c0_11 = arith.constant 0 : index
    %14 = vector.load %arg3[%c0_10, %c0_11] : memref<16x64xf32, #tpu.memory_space<vmem>>, vector<16x64xf32>
    %15 = arith.mulf %13, %14 : vector<16x64xf32>
    %16 = arith.subf %10, %15 : vector<16x64xf32>
    %c0_12 = arith.constant 0 : index
    %c0_13 = arith.constant 0 : index
    %17 = vector.load %arg9[%c0_12, %c0_13] : memref<64x64xf32, #tpu.memory_space<vmem>>, vector<64x64xf32>
    %cst_14 = arith.constant dense<0.000000e+00> : vector<16x64xf32>
    %18 = tpu.matmul %16, %17, %cst_14 {dimension_numbers = #tpu.dot_dimension_numbers<[1], [0], [0], [1], [0, 0, 1, 1], [], []>} : vector<16x64xf32>, vector<64x64xf32>, vector<16x64xf32> -> vector<16x64xf32>
    %c0_15 = arith.constant 0 : index
    %c0_16 = arith.constant 0 : index
    %19 = vector.load %arg7[%c0_15, %c0_16] : memref<32x32xf32, #tpu.memory_space<vmem>>, vector<32x32xf32>
    %20 = vector.extract_strided_slice %18 {offsets = [0, 0], sizes = [16, 32], strides = [1, 1]} : vector<16x64xf32> to vector<16x32xf32>
    %21 = vector.extract_strided_slice %18 {offsets = [0, 32], sizes = [16, 32], strides = [1, 1]} : vector<16x64xf32> to vector<16x32xf32>
    %22 = tpu.concatenate %20, %21 in 0 : vector<16x32xf32>, vector<16x32xf32> -> vector<32x32xf32>
    %cst_17 = arith.constant dense<0.000000e+00> : vector<32x32xf32>
    %23 = tpu.matmul %19, %22, %cst_17 {dimension_numbers = #tpu.dot_dimension_numbers<[1], [0], [0], [1], [0, 0, 1, 1], [], []>} : vector<32x32xf32>, vector<32x32xf32>, vector<32x32xf32> -> vector<32x32xf32>
    %cst_18 = arith.constant 3.906250e-03 : f32
    %24 = vector.broadcast %cst_18 : f32 to vector<32x32xf32>
    %25 = arith.mulf %23, %24 : vector<32x32xf32>
    %26 = vector.extract_strided_slice %25 {offsets = [0, 0], sizes = [16, 32], strides = [1, 1]} : vector<32x32xf32> to vector<16x32xf32>
    %27 = vector.extract_strided_slice %25 {offsets = [16, 0], sizes = [16, 32], strides = [1, 1]} : vector<32x32xf32> to vector<16x32xf32>
    %28 = math.absf %26 : vector<16x32xf32>
    %29 = math.absf %27 : vector<16x32xf32>
    %30 = arith.maximumf %28, %29 : vector<16x32xf32>
    %31 = arith.minimumf %28, %29 : vector<16x32xf32>
    %cst_19 = arith.constant 0.000000e+00 : f32
    %32 = vector.broadcast %cst_19 : f32 to vector<16x32xf32>
    %33 = arith.cmpf oeq, %30, %32 : vector<16x32xf32>
    %cst_20 = arith.constant 1.000000e+00 : f32
    %34 = vector.broadcast %cst_20 : f32 to vector<16x32xf32>
    %35 = arith.select %33, %34, %30 : vector<16x32xi1>, vector<16x32xf32>
    %36 = arith.divf %31, %35 : vector<16x32xf32>
    %cst_21 = arith.constant 0.414213568 : f32
    %37 = vector.broadcast %cst_21 : f32 to vector<16x32xf32>
    %38 = arith.cmpf ogt, %36, %37 : vector<16x32xf32>
    %cst_22 = arith.constant 1.000000e+00 : f32
    %39 = vector.broadcast %cst_22 : f32 to vector<16x32xf32>
    %40 = arith.subf %36, %39 : vector<16x32xf32>
    %cst_23 = arith.constant 1.000000e+00 : f32
    %41 = vector.broadcast %cst_23 : f32 to vector<16x32xf32>
    %42 = arith.addf %36, %41 : vector<16x32xf32>
    %43 = arith.divf %40, %42 : vector<16x32xf32>
    %44 = arith.select %38, %43, %36 : vector<16x32xi1>, vector<16x32xf32>
    %cst_24 = arith.constant 0.785398185 : f32
    %cst_25 = arith.constant 0.000000e+00 : f32
    %45 = vector.broadcast %cst_24 : f32 to vector<16x32xf32>
    %46 = vector.broadcast %cst_25 : f32 to vector<16x32xf32>
    %47 = arith.select %38, %45, %46 : vector<16x32xi1>, vector<16x32xf32>
    %48 = arith.mulf %44, %44 : vector<16x32xf32>
    %cst_26 = arith.constant 0.0805374458 : f32
    %49 = vector.broadcast %cst_26 : f32 to vector<16x32xf32>
    %50 = arith.mulf %49, %48 : vector<16x32xf32>
    %cst_27 = arith.constant 0.138776854 : f32
    %51 = vector.broadcast %cst_27 : f32 to vector<16x32xf32>
    %52 = arith.subf %50, %51 : vector<16x32xf32>
    %53 = arith.mulf %52, %48 : vector<16x32xf32>
    %cst_28 = arith.constant 0.199777111 : f32
    %54 = vector.broadcast %cst_28 : f32 to vector<16x32xf32>
    %55 = arith.addf %53, %54 : vector<16x32xf32>
    %56 = arith.mulf %55, %48 : vector<16x32xf32>
    %cst_29 = arith.constant 0.333329499 : f32
    %57 = vector.broadcast %cst_29 : f32 to vector<16x32xf32>
    %58 = arith.subf %56, %57 : vector<16x32xf32>
    %59 = arith.mulf %58, %48 : vector<16x32xf32>
    %60 = arith.mulf %59, %44 : vector<16x32xf32>
    %61 = arith.addf %60, %44 : vector<16x32xf32>
    %62 = arith.addf %47, %61 : vector<16x32xf32>
    %63 = arith.cmpf ogt, %29, %28 : vector<16x32xf32>
    %cst_30 = arith.constant 1.57079637 : f32
    %64 = vector.broadcast %cst_30 : f32 to vector<16x32xf32>
    %65 = arith.subf %64, %62 : vector<16x32xf32>
    %66 = arith.select %63, %65, %62 : vector<16x32xi1>, vector<16x32xf32>
    %cst_31 = arith.constant 0.000000e+00 : f32
    %67 = vector.broadcast %cst_31 : f32 to vector<16x32xf32>
    %68 = arith.cmpf olt, %26, %67 : vector<16x32xf32>
    %cst_32 = arith.constant 3.14159274 : f32
    %69 = vector.broadcast %cst_32 : f32 to vector<16x32xf32>
    %70 = arith.subf %69, %66 : vector<16x32xf32>
    %71 = arith.select %68, %70, %66 : vector<16x32xi1>, vector<16x32xf32>
    %cst_33 = arith.constant 0.000000e+00 : f32
    %72 = vector.broadcast %cst_33 : f32 to vector<16x32xf32>
    %73 = arith.cmpf oeq, %30, %72 : vector<16x32xf32>
    %cst_34 = arith.constant 0.000000e+00 : f32
    %74 = vector.broadcast %cst_34 : f32 to vector<16x32xf32>
    %75 = arith.select %73, %74, %71 : vector<16x32xi1>, vector<16x32xf32>
    %cst_35 = arith.constant 0.318309873 : f32
    %76 = vector.broadcast %cst_35 : f32 to vector<16x32xf32>
    %77 = arith.mulf %75, %76 : vector<16x32xf32>
    %cst_36 = arith.constant 0.000000e+00 : f32
    %78 = vector.broadcast %cst_36 : f32 to vector<16x32xf32>
    %cst_37 = arith.constant 0.000000e+00 : f32
    %79 = vector.broadcast %cst_37 : f32 to vector<16x32xf32>
    %cst_38 = arith.constant 6.28318548 : f32
    %80 = vector.broadcast %cst_38 : f32 to vector<16x32xf32>
    %81 = arith.mulf %80, %77 : vector<16x32xf32>
    %cst_39 = arith.constant 3.14159274 : f32
    %82 = vector.broadcast %cst_39 : f32 to vector<16x32xf32>
    %83 = arith.subf %81, %82 : vector<16x32xf32>
    %84 = math.cos %83 : vector<16x32xf32>
    %85 = math.sin %83 : vector<16x32xf32>
    %c0_40 = arith.constant 0 : index
    %c0_41 = arith.constant 0 : index
    %86 = vector.load %arg6[%c0_40, %c0_41] : memref<32x32xf32, #tpu.memory_space<vmem>>, vector<32x32xf32>
    %87 = tpu.concatenate %84, %85 in 0 : vector<16x32xf32>, vector<16x32xf32> -> vector<32x32xf32>
    %cst_42 = arith.constant dense<0.000000e+00> : vector<32x32xf32>
    %88 = tpu.matmul %86, %87, %cst_42 {dimension_numbers = #tpu.dot_dimension_numbers<[1], [0], [0], [1], [0, 0, 1, 1], [], []>} : vector<32x32xf32>, vector<32x32xf32>, vector<32x32xf32> -> vector<32x32xf32>
    %89 = vector.extract_strided_slice %88 {offsets = [0, 0], sizes = [16, 32], strides = [1, 1]} : vector<32x32xf32> to vector<16x32xf32>
    %90 = vector.extract_strided_slice %88 {offsets = [16, 0], sizes = [16, 32], strides = [1, 1]} : vector<32x32xf32> to vector<16x32xf32>
    %91 = tpu.concatenate %89, %90 in 1 : vector<16x32xf32>, vector<16x32xf32> -> vector<16x64xf32>
    %c0_43 = arith.constant 0 : index
    %c0_44 = arith.constant 0 : index
    %92 = vector.load %arg8[%c0_43, %c0_44] : memref<64x64xf32, #tpu.memory_space<vmem>>, vector<64x64xf32>
    %cst_45 = arith.constant dense<0.000000e+00> : vector<16x64xf32>
    %93 = tpu.matmul %91, %92, %cst_45 {dimension_numbers = #tpu.dot_dimension_numbers<[1], [0], [0], [1], [0, 0, 1, 1], [], []>} : vector<16x64xf32>, vector<64x64xf32>, vector<16x64xf32> -> vector<16x64xf32>
    %c0_46 = arith.constant 0 : index
    %c0_47 = arith.constant 0 : index
    %94 = vector.load %arg2[%c0_46, %c0_47] : memref<16x64xf32, #tpu.memory_space<vmem>>, vector<16x64xf32>
    %95 = arith.mulf %93, %94 : vector<16x64xf32>
    %96 = vector.extract_strided_slice %93 {offsets = [0, 32], sizes = [16, 32], strides = [1, 1]} : vector<16x64xf32> to vector<16x32xf32>
    %97 = vector.extract_strided_slice %93 {offsets = [0, 0], sizes = [16, 32], strides = [1, 1]} : vector<16x64xf32> to vector<16x32xf32>
    %98 = tpu.concatenate %96, %97 in 1 : vector<16x32xf32>, vector<16x32xf32> -> vector<16x64xf32>
    %c0_48 = arith.constant 0 : index
    %c0_49 = arith.constant 0 : index
    %99 = vector.load %arg3[%c0_48, %c0_49] : memref<16x64xf32, #tpu.memory_space<vmem>>, vector<16x64xf32>
    %100 = arith.mulf %98, %99 : vector<16x64xf32>
    %101 = arith.addf %95, %100 : vector<16x64xf32>
    %c0_50 = arith.constant 0 : index
    %c0_51 = arith.constant 0 : index
    %102 = vector.load %arg9[%c0_50, %c0_51] : memref<64x64xf32, #tpu.memory_space<vmem>>, vector<64x64xf32>
    %cst_52 = arith.constant dense<0.000000e+00> : vector<16x64xf32>
    %103 = tpu.matmul %101, %102, %cst_52 {dimension_numbers = #tpu.dot_dimension_numbers<[1], [0], [0], [1], [0, 0, 1, 1], [], []>} : vector<16x64xf32>, vector<64x64xf32>, vector<16x64xf32> -> vector<16x64xf32>
    %c0_53 = arith.constant 0 : index
    %c0_54 = arith.constant 0 : index
    %104 = vector.load %arg7[%c0_53, %c0_54] : memref<32x32xf32, #tpu.memory_space<vmem>>, vector<32x32xf32>
    %105 = vector.extract_strided_slice %103 {offsets = [0, 0], sizes = [16, 32], strides = [1, 1]} : vector<16x64xf32> to vector<16x32xf32>
    %106 = vector.extract_strided_slice %103 {offsets = [0, 32], sizes = [16, 32], strides = [1, 1]} : vector<16x64xf32> to vector<16x32xf32>
    %107 = tpu.concatenate %105, %106 in 0 : vector<16x32xf32>, vector<16x32xf32> -> vector<32x32xf32>
    %cst_55 = arith.constant dense<0.000000e+00> : vector<32x32xf32>
    %108 = tpu.matmul %104, %107, %cst_55 {dimension_numbers = #tpu.dot_dimension_numbers<[1], [0], [0], [1], [0, 0, 1, 1], [], []>} : vector<32x32xf32>, vector<32x32xf32>, vector<32x32xf32> -> vector<32x32xf32>
    %cst_56 = arith.constant 3.906250e-03 : f32
    %109 = vector.broadcast %cst_56 : f32 to vector<32x32xf32>
    %110 = arith.mulf %108, %109 : vector<32x32xf32>
    %111 = vector.extract_strided_slice %110 {offsets = [0, 0], sizes = [16, 32], strides = [1, 1]} : vector<32x32xf32> to vector<16x32xf32>
    %112 = vector.extract_strided_slice %110 {offsets = [16, 0], sizes = [16, 32], strides = [1, 1]} : vector<32x32xf32> to vector<16x32xf32>
    %113 = arith.mulf %111, %111 : vector<16x32xf32>
    %114 = arith.mulf %112, %112 : vector<16x32xf32>
    %115 = arith.addf %113, %114 : vector<16x32xf32>
    %116 = tpu.iota {dimensions = array<i32: 1>} : vector<16x32xi32>
    %117 = vector.extract_strided_slice %115 {offsets = [0, 0], sizes = [16, 16], strides = [1, 1]} : vector<16x32xf32> to vector<16x16xf32>
    %cst_57 = arith.constant dense<0xFF800000> : vector<16xf32>
    %118 = vector.multi_reduction <maximumf>, %117, %cst_57 [1] : vector<16x16xf32> to vector<16xf32>
    %119 = vector.shape_cast %118 : vector<16xf32> to vector<16x1xf32>
    %cst_58 = arith.constant dense<0xFF800000> : vector<1xf32>
    %120 = vector.multi_reduction <maximumf>, %119, %cst_58 [0] : vector<16x1xf32> to vector<1xf32>
    %121 = vector.shape_cast %120 : vector<1xf32> to vector<1x1xf32>
    %cst_59 = arith.constant 1.000000e+00 : f32
    %122 = vector.broadcast %cst_59 : f32 to vector<1x1xf32>
    %123 = arith.divf %122, %121 : vector<1x1xf32>
    %124 = vector.extract_strided_slice %115 {offsets = [0, 16], sizes = [16, 16], strides = [1, 1]} : vector<16x32xf32> to vector<16x16xf32>
    %cst_60 = arith.constant dense<0xFF800000> : vector<16xf32>
    %125 = vector.multi_reduction <maximumf>, %124, %cst_60 [1] : vector<16x16xf32> to vector<16xf32>
    %126 = vector.shape_cast %125 : vector<16xf32> to vector<16x1xf32>
    %cst_61 = arith.constant dense<0xFF800000> : vector<1xf32>
    %127 = vector.multi_reduction <maximumf>, %126, %cst_61 [0] : vector<16x1xf32> to vector<1xf32>
    %128 = vector.shape_cast %127 : vector<1xf32> to vector<1x1xf32>
    %cst_62 = arith.constant 1.000000e+00 : f32
    %129 = vector.broadcast %cst_62 : f32 to vector<1x1xf32>
    %130 = arith.divf %129, %128 : vector<1x1xf32>
    %c16_i32 = arith.constant 16 : i32
    %131 = vector.broadcast %c16_i32 : i32 to vector<16x32xi32>
    %132 = arith.cmpi slt, %116, %131 : vector<16x32xi32>
    %133 = vector.shape_cast %123 : vector<1x1xf32> to vector<1x1xf32>
    %134 = vector.broadcast %133 : vector<1x1xf32> to vector<16x32xf32>
    %135 = vector.shape_cast %130 : vector<1x1xf32> to vector<1x1xf32>
    %136 = vector.broadcast %135 : vector<1x1xf32> to vector<16x32xf32>
    %137 = arith.select %132, %134, %136 : vector<16x32xi1>, vector<16x32xf32>
    %138 = arith.mulf %115, %137 : vector<16x32xf32>
    %c0_63 = arith.constant 0 : index
    %139 = memref.load %arg10[%c0_63] : memref<2xf32, #tpu.memory_space<smem>>
    %c0_64 = arith.constant 0 : index
    %140 = memref.load %arg11[%c0_64] : memref<2xf32, #tpu.memory_space<smem>>
    %141 = arith.subf %77, %79 : vector<16x32xf32>
    %142 = arith.subf %138, %78 : vector<16x32xf32>
    %cst_65 = arith.constant 9.99999974E-6 : f32
    %143 = vector.broadcast %cst_65 : f32 to vector<16x32xf32>
    %cst_66 = arith.constant 1.000000e+02 : f32
    %144 = vector.broadcast %cst_66 : f32 to vector<16x32xf32>
    %145 = arith.addf %143, %144 : vector<16x32xf32>
    %cst_67 = arith.constant 5.000000e-01 : f32
    %146 = vector.broadcast %cst_67 : f32 to vector<16x32xf32>
    %147 = arith.mulf %146, %145 : vector<16x32xf32>
    %cst_68 = arith.constant 0.000000e+00 : f32
    %148 = vector.broadcast %cst_68 : f32 to vector<16x32xf32>
    %149 = arith.subf %148, %147 : vector<16x32xf32>
    %150 = math.exp %149 : vector<16x32xf32>
    %151 = arith.subf %147, %142 : vector<16x32xf32>
    %152 = vector.broadcast %139 : f32 to vector<16x32xf32>
    %153 = arith.mulf %152, %151 : vector<16x32xf32>
    %154 = arith.addf %1, %153 : vector<16x32xf32>
    %155 = arith.addf %154, %0 : vector<16x32xf32>
    %156 = arith.mulf %155, %150 : vector<16x32xf32>
    %157 = arith.subf %154, %156 : vector<16x32xf32>
    %cst_69 = arith.constant 0.000000e+00 : f32
    %158 = vector.broadcast %cst_69 : f32 to vector<16x32xf32>
    %159 = arith.cmpf olt, %157, %158 : vector<16x32xf32>
    %160 = arith.select %159, %147, %143 : vector<16x32xi1>, vector<16x32xf32>
    %cst_70 = arith.constant 0.000000e+00 : f32
    %161 = vector.broadcast %cst_70 : f32 to vector<16x32xf32>
    %162 = arith.cmpf ogt, %157, %161 : vector<16x32xf32>
    %163 = arith.select %162, %147, %144 : vector<16x32xi1>, vector<16x32xf32>
    %164 = arith.addf %160, %163 : vector<16x32xf32>
    %cst_71 = arith.constant 5.000000e-01 : f32
    %165 = vector.broadcast %cst_71 : f32 to vector<16x32xf32>
    %166 = arith.mulf %165, %164 : vector<16x32xf32>
    %cst_72 = arith.constant 0.000000e+00 : f32
    %167 = vector.broadcast %cst_72 : f32 to vector<16x32xf32>
    %168 = arith.subf %167, %166 : vector<16x32xf32>
    %169 = math.exp %168 : vector<16x32xf32>
    %170 = arith.subf %166, %142 : vector<16x32xf32>
    %171 = vector.broadcast %139 : f32 to vector<16x32xf32>
    %172 = arith.mulf %171, %170 : vector<16x32xf32>
    %173 = arith.addf %1, %172 : vector<16x32xf32>
    %174 = arith.addf %173, %0 : vector<16x32xf32>
    %175 = arith.mulf %174, %169 : vector<16x32xf32>
    %176 = arith.subf %173, %175 : vector<16x32xf32>
    %cst_73 = arith.constant 0.000000e+00 : f32
    %177 = vector.broadcast %cst_73 : f32 to vector<16x32xf32>
    %178 = arith.cmpf olt, %176, %177 : vector<16x32xf32>
    %179 = arith.select %178, %166, %160 : vector<16x32xi1>, vector<16x32xf32>
    %cst_74 = arith.constant 0.000000e+00 : f32
    %180 = vector.broadcast %cst_74 : f32 to vector<16x32xf32>
    %181 = arith.cmpf ogt, %176, %180 : vector<16x32xf32>
    %182 = arith.select %181, %166, %163 : vector<16x32xi1>, vector<16x32xf32>
    %183 = arith.addf %179, %182 : vector<16x32xf32>
    %cst_75 = arith.constant 5.000000e-01 : f32
    %184 = vector.broadcast %cst_75 : f32 to vector<16x32xf32>
    %185 = arith.mulf %184, %183 : vector<16x32xf32>
    %cst_76 = arith.constant 0.000000e+00 : f32
    %186 = vector.broadcast %cst_76 : f32 to vector<16x32xf32>
    %187 = arith.subf %186, %185 : vector<16x32xf32>
    %188 = math.exp %187 : vector<16x32xf32>
    %189 = arith.subf %185, %142 : vector<16x32xf32>
    %190 = vector.broadcast %139 : f32 to vector<16x32xf32>
    %191 = arith.mulf %190, %189 : vector<16x32xf32>
    %192 = arith.addf %1, %191 : vector<16x32xf32>
    %193 = arith.addf %192, %0 : vector<16x32xf32>
    %194 = arith.mulf %193, %188 : vector<16x32xf32>
    %195 = arith.subf %192, %194 : vector<16x32xf32>
    %cst_77 = arith.constant 0.000000e+00 : f32
    %196 = vector.broadcast %cst_77 : f32 to vector<16x32xf32>
    %197 = arith.cmpf olt, %195, %196 : vector<16x32xf32>
    %198 = arith.select %197, %185, %179 : vector<16x32xi1>, vector<16x32xf32>
    %cst_78 = arith.constant 0.000000e+00 : f32
    %199 = vector.broadcast %cst_78 : f32 to vector<16x32xf32>
    %200 = arith.cmpf ogt, %195, %199 : vector<16x32xf32>
    %201 = arith.select %200, %185, %182 : vector<16x32xi1>, vector<16x32xf32>
    %202 = arith.addf %198, %201 : vector<16x32xf32>
    %cst_79 = arith.constant 5.000000e-01 : f32
    %203 = vector.broadcast %cst_79 : f32 to vector<16x32xf32>
    %204 = arith.mulf %203, %202 : vector<16x32xf32>
    %cst_80 = arith.constant 0.000000e+00 : f32
    %205 = vector.broadcast %cst_80 : f32 to vector<16x32xf32>
    %206 = arith.subf %205, %204 : vector<16x32xf32>
    %207 = math.exp %206 : vector<16x32xf32>
    %208 = arith.subf %204, %142 : vector<16x32xf32>
    %209 = vector.broadcast %139 : f32 to vector<16x32xf32>
    %210 = arith.mulf %209, %208 : vector<16x32xf32>
    %211 = arith.addf %1, %210 : vector<16x32xf32>
    %212 = arith.addf %211, %0 : vector<16x32xf32>
    %213 = arith.mulf %212, %207 : vector<16x32xf32>
    %214 = arith.subf %211, %213 : vector<16x32xf32>
    %cst_81 = arith.constant 0.000000e+00 : f32
    %215 = vector.broadcast %cst_81 : f32 to vector<16x32xf32>
    %216 = arith.cmpf olt, %214, %215 : vector<16x32xf32>
    %217 = arith.select %216, %204, %198 : vector<16x32xi1>, vector<16x32xf32>
    %cst_82 = arith.constant 0.000000e+00 : f32
    %218 = vector.broadcast %cst_82 : f32 to vector<16x32xf32>
    %219 = arith.cmpf ogt, %214, %218 : vector<16x32xf32>
    %220 = arith.select %219, %204, %201 : vector<16x32xi1>, vector<16x32xf32>
    %221 = arith.addf %217, %220 : vector<16x32xf32>
    %cst_83 = arith.constant 5.000000e-01 : f32
    %222 = vector.broadcast %cst_83 : f32 to vector<16x32xf32>
    %223 = arith.mulf %222, %221 : vector<16x32xf32>
    %cst_84 = arith.constant 0.000000e+00 : f32
    %224 = vector.broadcast %cst_84 : f32 to vector<16x32xf32>
    %225 = arith.subf %224, %223 : vector<16x32xf32>
    %226 = math.exp %225 : vector<16x32xf32>
    %227 = arith.subf %223, %142 : vector<16x32xf32>
    %228 = vector.broadcast %139 : f32 to vector<16x32xf32>
    %229 = arith.mulf %228, %227 : vector<16x32xf32>
    %230 = arith.addf %1, %229 : vector<16x32xf32>
    %231 = arith.addf %230, %0 : vector<16x32xf32>
    %232 = arith.mulf %231, %226 : vector<16x32xf32>
    %233 = arith.subf %230, %232 : vector<16x32xf32>
    %cst_85 = arith.constant 0.000000e+00 : f32
    %234 = vector.broadcast %cst_85 : f32 to vector<16x32xf32>
    %235 = arith.cmpf olt, %233, %234 : vector<16x32xf32>
    %236 = arith.select %235, %223, %217 : vector<16x32xi1>, vector<16x32xf32>
    %cst_86 = arith.constant 0.000000e+00 : f32
    %237 = vector.broadcast %cst_86 : f32 to vector<16x32xf32>
    %238 = arith.cmpf ogt, %233, %237 : vector<16x32xf32>
    %239 = arith.select %238, %223, %220 : vector<16x32xi1>, vector<16x32xf32>
    %240 = arith.addf %236, %239 : vector<16x32xf32>
    %cst_87 = arith.constant 5.000000e-01 : f32
    %241 = vector.broadcast %cst_87 : f32 to vector<16x32xf32>
    %242 = arith.mulf %241, %240 : vector<16x32xf32>
    %cst_88 = arith.constant 0.000000e+00 : f32
    %243 = vector.broadcast %cst_88 : f32 to vector<16x32xf32>
    %244 = arith.subf %243, %242 : vector<16x32xf32>
    %245 = math.exp %244 : vector<16x32xf32>
    %246 = arith.subf %242, %142 : vector<16x32xf32>
    %247 = vector.broadcast %139 : f32 to vector<16x32xf32>
    %248 = arith.mulf %247, %246 : vector<16x32xf32>
    %249 = arith.addf %1, %248 : vector<16x32xf32>
    %250 = arith.addf %249, %0 : vector<16x32xf32>
    %251 = arith.mulf %250, %245 : vector<16x32xf32>
    %252 = arith.subf %249, %251 : vector<16x32xf32>
    %cst_89 = arith.constant 0.000000e+00 : f32
    %253 = vector.broadcast %cst_89 : f32 to vector<16x32xf32>
    %254 = arith.cmpf olt, %252, %253 : vector<16x32xf32>
    %255 = arith.select %254, %242, %236 : vector<16x32xi1>, vector<16x32xf32>
    %cst_90 = arith.constant 0.000000e+00 : f32
    %256 = vector.broadcast %cst_90 : f32 to vector<16x32xf32>
    %257 = arith.cmpf ogt, %252, %256 : vector<16x32xf32>
    %258 = arith.select %257, %242, %239 : vector<16x32xi1>, vector<16x32xf32>
    %259 = arith.addf %255, %258 : vector<16x32xf32>
    %cst_91 = arith.constant 5.000000e-01 : f32
    %260 = vector.broadcast %cst_91 : f32 to vector<16x32xf32>
    %261 = arith.mulf %260, %259 : vector<16x32xf32>
    %cst_92 = arith.constant 0.000000e+00 : f32
    %262 = vector.broadcast %cst_92 : f32 to vector<16x32xf32>
    %263 = arith.subf %262, %261 : vector<16x32xf32>
    %264 = math.exp %263 : vector<16x32xf32>
    %265 = arith.subf %261, %142 : vector<16x32xf32>
    %266 = vector.broadcast %139 : f32 to vector<16x32xf32>
    %267 = arith.mulf %266, %265 : vector<16x32xf32>
    %268 = arith.addf %1, %267 : vector<16x32xf32>
    %269 = arith.addf %268, %0 : vector<16x32xf32>
    %270 = arith.mulf %269, %264 : vector<16x32xf32>
    %271 = arith.subf %268, %270 : vector<16x32xf32>
    %cst_93 = arith.constant 0.000000e+00 : f32
    %272 = vector.broadcast %cst_93 : f32 to vector<16x32xf32>
    %273 = arith.cmpf olt, %271, %272 : vector<16x32xf32>
    %274 = arith.select %273, %261, %255 : vector<16x32xi1>, vector<16x32xf32>
    %cst_94 = arith.constant 0.000000e+00 : f32
    %275 = vector.broadcast %cst_94 : f32 to vector<16x32xf32>
    %276 = arith.cmpf ogt, %271, %275 : vector<16x32xf32>
    %277 = arith.select %276, %261, %258 : vector<16x32xi1>, vector<16x32xf32>
    %278 = arith.addf %274, %277 : vector<16x32xf32>
    %cst_95 = arith.constant 5.000000e-01 : f32
    %279 = vector.broadcast %cst_95 : f32 to vector<16x32xf32>
    %280 = arith.mulf %279, %278 : vector<16x32xf32>
    %cst_96 = arith.constant 0.000000e+00 : f32
    %281 = vector.broadcast %cst_96 : f32 to vector<16x32xf32>
    %282 = arith.subf %281, %280 : vector<16x32xf32>
    %283 = math.exp %282 : vector<16x32xf32>
    %284 = arith.subf %280, %142 : vector<16x32xf32>
    %285 = vector.broadcast %139 : f32 to vector<16x32xf32>
    %286 = arith.mulf %285, %284 : vector<16x32xf32>
    %287 = arith.addf %1, %286 : vector<16x32xf32>
    %288 = arith.addf %287, %0 : vector<16x32xf32>
    %289 = arith.mulf %288, %283 : vector<16x32xf32>
    %290 = arith.subf %287, %289 : vector<16x32xf32>
    %cst_97 = arith.constant 0.000000e+00 : f32
    %291 = vector.broadcast %cst_97 : f32 to vector<16x32xf32>
    %292 = arith.cmpf olt, %290, %291 : vector<16x32xf32>
    %293 = arith.select %292, %280, %274 : vector<16x32xi1>, vector<16x32xf32>
    %cst_98 = arith.constant 0.000000e+00 : f32
    %294 = vector.broadcast %cst_98 : f32 to vector<16x32xf32>
    %295 = arith.cmpf ogt, %290, %294 : vector<16x32xf32>
    %296 = arith.select %295, %280, %277 : vector<16x32xi1>, vector<16x32xf32>
    %297 = arith.addf %293, %296 : vector<16x32xf32>
    %cst_99 = arith.constant 5.000000e-01 : f32
    %298 = vector.broadcast %cst_99 : f32 to vector<16x32xf32>
    %299 = arith.mulf %298, %297 : vector<16x32xf32>
    %cst_100 = arith.constant 0.000000e+00 : f32
    %300 = vector.broadcast %cst_100 : f32 to vector<16x32xf32>
    %301 = arith.subf %300, %299 : vector<16x32xf32>
    %302 = math.exp %301 : vector<16x32xf32>
    %303 = arith.subf %299, %142 : vector<16x32xf32>
    %304 = vector.broadcast %139 : f32 to vector<16x32xf32>
    %305 = arith.mulf %304, %303 : vector<16x32xf32>
    %306 = arith.addf %1, %305 : vector<16x32xf32>
    %307 = arith.addf %306, %0 : vector<16x32xf32>
    %308 = arith.mulf %307, %302 : vector<16x32xf32>
    %309 = arith.subf %306, %308 : vector<16x32xf32>
    %cst_101 = arith.constant 0.000000e+00 : f32
    %310 = vector.broadcast %cst_101 : f32 to vector<16x32xf32>
    %311 = arith.cmpf olt, %309, %310 : vector<16x32xf32>
    %312 = arith.select %311, %299, %293 : vector<16x32xi1>, vector<16x32xf32>
    %cst_102 = arith.constant 0.000000e+00 : f32
    %313 = vector.broadcast %cst_102 : f32 to vector<16x32xf32>
    %314 = arith.cmpf ogt, %309, %313 : vector<16x32xf32>
    %315 = arith.select %314, %299, %296 : vector<16x32xi1>, vector<16x32xf32>
    %316 = arith.addf %312, %315 : vector<16x32xf32>
    %cst_103 = arith.constant 5.000000e-01 : f32
    %317 = vector.broadcast %cst_103 : f32 to vector<16x32xf32>
    %318 = arith.mulf %317, %316 : vector<16x32xf32>
    %cst_104 = arith.constant 0.000000e+00 : f32
    %319 = vector.broadcast %cst_104 : f32 to vector<16x32xf32>
    %320 = arith.subf %319, %318 : vector<16x32xf32>
    %321 = math.exp %320 : vector<16x32xf32>
    %322 = arith.subf %318, %142 : vector<16x32xf32>
    %323 = vector.broadcast %139 : f32 to vector<16x32xf32>
    %324 = arith.mulf %323, %322 : vector<16x32xf32>
    %325 = arith.addf %1, %324 : vector<16x32xf32>
    %326 = arith.addf %325, %0 : vector<16x32xf32>
    %327 = arith.mulf %326, %321 : vector<16x32xf32>
    %328 = arith.subf %325, %327 : vector<16x32xf32>
    %cst_105 = arith.constant 0.000000e+00 : f32
    %329 = vector.broadcast %cst_105 : f32 to vector<16x32xf32>
    %330 = arith.cmpf olt, %328, %329 : vector<16x32xf32>
    %331 = arith.select %330, %318, %312 : vector<16x32xi1>, vector<16x32xf32>
    %cst_106 = arith.constant 0.000000e+00 : f32
    %332 = vector.broadcast %cst_106 : f32 to vector<16x32xf32>
    %333 = arith.cmpf ogt, %328, %332 : vector<16x32xf32>
    %334 = arith.select %333, %318, %315 : vector<16x32xi1>, vector<16x32xf32>
    %335 = arith.addf %331, %334 : vector<16x32xf32>
    %cst_107 = arith.constant 5.000000e-01 : f32
    %336 = vector.broadcast %cst_107 : f32 to vector<16x32xf32>
    %337 = arith.mulf %336, %335 : vector<16x32xf32>
    %cst_108 = arith.constant 0.000000e+00 : f32
    %338 = vector.broadcast %cst_108 : f32 to vector<16x32xf32>
    %339 = arith.subf %338, %337 : vector<16x32xf32>
    %340 = math.exp %339 : vector<16x32xf32>
    %341 = arith.subf %337, %142 : vector<16x32xf32>
    %342 = vector.broadcast %139 : f32 to vector<16x32xf32>
    %343 = arith.mulf %342, %341 : vector<16x32xf32>
    %344 = arith.addf %1, %343 : vector<16x32xf32>
    %345 = arith.addf %344, %0 : vector<16x32xf32>
    %346 = arith.mulf %345, %340 : vector<16x32xf32>
    %347 = arith.subf %344, %346 : vector<16x32xf32>
    %cst_109 = arith.constant 0.000000e+00 : f32
    %348 = vector.broadcast %cst_109 : f32 to vector<16x32xf32>
    %349 = arith.cmpf olt, %347, %348 : vector<16x32xf32>
    %350 = arith.select %349, %337, %331 : vector<16x32xi1>, vector<16x32xf32>
    %cst_110 = arith.constant 0.000000e+00 : f32
    %351 = vector.broadcast %cst_110 : f32 to vector<16x32xf32>
    %352 = arith.cmpf ogt, %347, %351 : vector<16x32xf32>
    %353 = arith.select %352, %337, %334 : vector<16x32xi1>, vector<16x32xf32>
    %354 = arith.addf %350, %353 : vector<16x32xf32>
    %cst_111 = arith.constant 5.000000e-01 : f32
    %355 = vector.broadcast %cst_111 : f32 to vector<16x32xf32>
    %356 = arith.mulf %355, %354 : vector<16x32xf32>
    %cst_112 = arith.constant 0.000000e+00 : f32
    %357 = vector.broadcast %cst_112 : f32 to vector<16x32xf32>
    %358 = arith.subf %357, %356 : vector<16x32xf32>
    %359 = math.exp %358 : vector<16x32xf32>
    %360 = arith.subf %356, %142 : vector<16x32xf32>
    %361 = vector.broadcast %139 : f32 to vector<16x32xf32>
    %362 = arith.mulf %361, %360 : vector<16x32xf32>
    %363 = arith.addf %1, %362 : vector<16x32xf32>
    %364 = arith.addf %363, %0 : vector<16x32xf32>
    %365 = arith.mulf %364, %359 : vector<16x32xf32>
    %366 = arith.subf %363, %365 : vector<16x32xf32>
    %cst_113 = arith.constant 0.000000e+00 : f32
    %367 = vector.broadcast %cst_113 : f32 to vector<16x32xf32>
    %368 = arith.cmpf olt, %366, %367 : vector<16x32xf32>
    %369 = arith.select %368, %356, %350 : vector<16x32xi1>, vector<16x32xf32>
    %cst_114 = arith.constant 0.000000e+00 : f32
    %370 = vector.broadcast %cst_114 : f32 to vector<16x32xf32>
    %371 = arith.cmpf ogt, %366, %370 : vector<16x32xf32>
    %372 = arith.select %371, %356, %353 : vector<16x32xi1>, vector<16x32xf32>
    %373 = arith.addf %369, %372 : vector<16x32xf32>
    %cst_115 = arith.constant 5.000000e-01 : f32
    %374 = vector.broadcast %cst_115 : f32 to vector<16x32xf32>
    %375 = arith.mulf %374, %373 : vector<16x32xf32>
    %cst_116 = arith.constant 0.000000e+00 : f32
    %376 = vector.broadcast %cst_116 : f32 to vector<16x32xf32>
    %377 = arith.subf %376, %375 : vector<16x32xf32>
    %378 = math.exp %377 : vector<16x32xf32>
    %379 = arith.subf %375, %142 : vector<16x32xf32>
    %380 = vector.broadcast %139 : f32 to vector<16x32xf32>
    %381 = arith.mulf %380, %379 : vector<16x32xf32>
    %382 = arith.addf %1, %381 : vector<16x32xf32>
    %383 = arith.addf %382, %0 : vector<16x32xf32>
    %384 = arith.mulf %383, %378 : vector<16x32xf32>
    %385 = arith.subf %382, %384 : vector<16x32xf32>
    %cst_117 = arith.constant 0.000000e+00 : f32
    %386 = vector.broadcast %cst_117 : f32 to vector<16x32xf32>
    %387 = arith.cmpf olt, %385, %386 : vector<16x32xf32>
    %388 = arith.select %387, %375, %369 : vector<16x32xi1>, vector<16x32xf32>
    %cst_118 = arith.constant 0.000000e+00 : f32
    %389 = vector.broadcast %cst_118 : f32 to vector<16x32xf32>
    %390 = arith.cmpf ogt, %385, %389 : vector<16x32xf32>
    %391 = arith.select %390, %375, %372 : vector<16x32xi1>, vector<16x32xf32>
    %392 = arith.addf %388, %391 : vector<16x32xf32>
    %cst_119 = arith.constant 5.000000e-01 : f32
    %393 = vector.broadcast %cst_119 : f32 to vector<16x32xf32>
    %394 = arith.mulf %393, %392 : vector<16x32xf32>
    %cst_120 = arith.constant 0.000000e+00 : f32
    %395 = vector.broadcast %cst_120 : f32 to vector<16x32xf32>
    %396 = arith.subf %395, %394 : vector<16x32xf32>
    %397 = math.exp %396 : vector<16x32xf32>
    %398 = arith.subf %394, %142 : vector<16x32xf32>
    %399 = vector.broadcast %139 : f32 to vector<16x32xf32>
    %400 = arith.mulf %399, %398 : vector<16x32xf32>
    %401 = arith.addf %1, %400 : vector<16x32xf32>
    %402 = arith.addf %401, %0 : vector<16x32xf32>
    %403 = arith.mulf %402, %397 : vector<16x32xf32>
    %404 = arith.subf %401, %403 : vector<16x32xf32>
    %cst_121 = arith.constant 0.000000e+00 : f32
    %405 = vector.broadcast %cst_121 : f32 to vector<16x32xf32>
    %406 = arith.cmpf olt, %404, %405 : vector<16x32xf32>
    %407 = arith.select %406, %394, %388 : vector<16x32xi1>, vector<16x32xf32>
    %cst_122 = arith.constant 0.000000e+00 : f32
    %408 = vector.broadcast %cst_122 : f32 to vector<16x32xf32>
    %409 = arith.cmpf ogt, %404, %408 : vector<16x32xf32>
    %410 = arith.select %409, %394, %391 : vector<16x32xi1>, vector<16x32xf32>
    %411 = arith.addf %407, %410 : vector<16x32xf32>
    %cst_123 = arith.constant 5.000000e-01 : f32
    %412 = vector.broadcast %cst_123 : f32 to vector<16x32xf32>
    %413 = arith.mulf %412, %411 : vector<16x32xf32>
    %cst_124 = arith.constant 0.000000e+00 : f32
    %414 = vector.broadcast %cst_124 : f32 to vector<16x32xf32>
    %415 = arith.subf %414, %413 : vector<16x32xf32>
    %416 = math.exp %415 : vector<16x32xf32>
    %417 = arith.subf %413, %142 : vector<16x32xf32>
    %418 = vector.broadcast %139 : f32 to vector<16x32xf32>
    %419 = arith.mulf %418, %417 : vector<16x32xf32>
    %420 = arith.addf %1, %419 : vector<16x32xf32>
    %421 = arith.addf %420, %0 : vector<16x32xf32>
    %422 = arith.mulf %421, %416 : vector<16x32xf32>
    %423 = arith.subf %420, %422 : vector<16x32xf32>
    %cst_125 = arith.constant 0.000000e+00 : f32
    %424 = vector.broadcast %cst_125 : f32 to vector<16x32xf32>
    %425 = arith.cmpf olt, %423, %424 : vector<16x32xf32>
    %426 = arith.select %425, %413, %407 : vector<16x32xi1>, vector<16x32xf32>
    %cst_126 = arith.constant 0.000000e+00 : f32
    %427 = vector.broadcast %cst_126 : f32 to vector<16x32xf32>
    %428 = arith.cmpf ogt, %423, %427 : vector<16x32xf32>
    %429 = arith.select %428, %413, %410 : vector<16x32xi1>, vector<16x32xf32>
    %430 = arith.addf %426, %429 : vector<16x32xf32>
    %cst_127 = arith.constant 5.000000e-01 : f32
    %431 = vector.broadcast %cst_127 : f32 to vector<16x32xf32>
    %432 = arith.mulf %431, %430 : vector<16x32xf32>
    %cst_128 = arith.constant 0.000000e+00 : f32
    %433 = vector.broadcast %cst_128 : f32 to vector<16x32xf32>
    %434 = arith.subf %433, %432 : vector<16x32xf32>
    %435 = math.exp %434 : vector<16x32xf32>
    %436 = arith.subf %432, %142 : vector<16x32xf32>
    %437 = vector.broadcast %139 : f32 to vector<16x32xf32>
    %438 = arith.mulf %437, %436 : vector<16x32xf32>
    %439 = arith.addf %1, %438 : vector<16x32xf32>
    %440 = arith.addf %439, %0 : vector<16x32xf32>
    %441 = arith.mulf %440, %435 : vector<16x32xf32>
    %442 = arith.subf %439, %441 : vector<16x32xf32>
    %cst_129 = arith.constant 0.000000e+00 : f32
    %443 = vector.broadcast %cst_129 : f32 to vector<16x32xf32>
    %444 = arith.cmpf olt, %442, %443 : vector<16x32xf32>
    %445 = arith.select %444, %432, %426 : vector<16x32xi1>, vector<16x32xf32>
    %cst_130 = arith.constant 0.000000e+00 : f32
    %446 = vector.broadcast %cst_130 : f32 to vector<16x32xf32>
    %447 = arith.cmpf ogt, %442, %446 : vector<16x32xf32>
    %448 = arith.select %447, %432, %429 : vector<16x32xi1>, vector<16x32xf32>
    %449 = arith.addf %445, %448 : vector<16x32xf32>
    %cst_131 = arith.constant 5.000000e-01 : f32
    %450 = vector.broadcast %cst_131 : f32 to vector<16x32xf32>
    %451 = arith.mulf %450, %449 : vector<16x32xf32>
    %cst_132 = arith.constant 0.000000e+00 : f32
    %452 = vector.broadcast %cst_132 : f32 to vector<16x32xf32>
    %453 = arith.subf %452, %451 : vector<16x32xf32>
    %454 = math.exp %453 : vector<16x32xf32>
    %455 = arith.subf %451, %142 : vector<16x32xf32>
    %456 = vector.broadcast %139 : f32 to vector<16x32xf32>
    %457 = arith.mulf %456, %455 : vector<16x32xf32>
    %458 = arith.addf %1, %457 : vector<16x32xf32>
    %459 = arith.addf %458, %0 : vector<16x32xf32>
    %460 = arith.mulf %459, %454 : vector<16x32xf32>
    %461 = arith.subf %458, %460 : vector<16x32xf32>
    %cst_133 = arith.constant 0.000000e+00 : f32
    %462 = vector.broadcast %cst_133 : f32 to vector<16x32xf32>
    %463 = arith.cmpf olt, %461, %462 : vector<16x32xf32>
    %464 = arith.select %463, %451, %445 : vector<16x32xi1>, vector<16x32xf32>
    %cst_134 = arith.constant 0.000000e+00 : f32
    %465 = vector.broadcast %cst_134 : f32 to vector<16x32xf32>
    %466 = arith.cmpf ogt, %461, %465 : vector<16x32xf32>
    %467 = arith.select %466, %451, %448 : vector<16x32xi1>, vector<16x32xf32>
    %468 = arith.addf %464, %467 : vector<16x32xf32>
    %cst_135 = arith.constant 5.000000e-01 : f32
    %469 = vector.broadcast %cst_135 : f32 to vector<16x32xf32>
    %470 = arith.mulf %469, %468 : vector<16x32xf32>
    %cst_136 = arith.constant 0.000000e+00 : f32
    %471 = vector.broadcast %cst_136 : f32 to vector<16x32xf32>
    %472 = arith.subf %471, %470 : vector<16x32xf32>
    %473 = math.exp %472 : vector<16x32xf32>
    %474 = arith.subf %470, %142 : vector<16x32xf32>
    %475 = vector.broadcast %139 : f32 to vector<16x32xf32>
    %476 = arith.mulf %475, %474 : vector<16x32xf32>
    %477 = arith.addf %1, %476 : vector<16x32xf32>
    %478 = arith.addf %477, %0 : vector<16x32xf32>
    %479 = arith.mulf %478, %473 : vector<16x32xf32>
    %480 = arith.subf %477, %479 : vector<16x32xf32>
    %cst_137 = arith.constant 0.000000e+00 : f32
    %481 = vector.broadcast %cst_137 : f32 to vector<16x32xf32>
    %482 = arith.cmpf olt, %480, %481 : vector<16x32xf32>
    %483 = arith.select %482, %470, %464 : vector<16x32xi1>, vector<16x32xf32>
    %cst_138 = arith.constant 0.000000e+00 : f32
    %484 = vector.broadcast %cst_138 : f32 to vector<16x32xf32>
    %485 = arith.cmpf ogt, %480, %484 : vector<16x32xf32>
    %486 = arith.select %485, %470, %467 : vector<16x32xi1>, vector<16x32xf32>
    %487 = arith.addf %483, %486 : vector<16x32xf32>
    %cst_139 = arith.constant 5.000000e-01 : f32
    %488 = vector.broadcast %cst_139 : f32 to vector<16x32xf32>
    %489 = arith.mulf %488, %487 : vector<16x32xf32>
    %cst_140 = arith.constant 0.000000e+00 : f32
    %490 = vector.broadcast %cst_140 : f32 to vector<16x32xf32>
    %491 = arith.subf %490, %489 : vector<16x32xf32>
    %492 = math.exp %491 : vector<16x32xf32>
    %493 = arith.subf %489, %142 : vector<16x32xf32>
    %494 = vector.broadcast %139 : f32 to vector<16x32xf32>
    %495 = arith.mulf %494, %493 : vector<16x32xf32>
    %496 = arith.addf %1, %495 : vector<16x32xf32>
    %497 = arith.addf %496, %0 : vector<16x32xf32>
    %498 = arith.mulf %497, %492 : vector<16x32xf32>
    %499 = arith.subf %496, %498 : vector<16x32xf32>
    %cst_141 = arith.constant 0.000000e+00 : f32
    %500 = vector.broadcast %cst_141 : f32 to vector<16x32xf32>
    %501 = arith.cmpf olt, %499, %500 : vector<16x32xf32>
    %502 = arith.select %501, %489, %483 : vector<16x32xi1>, vector<16x32xf32>
    %cst_142 = arith.constant 0.000000e+00 : f32
    %503 = vector.broadcast %cst_142 : f32 to vector<16x32xf32>
    %504 = arith.cmpf ogt, %499, %503 : vector<16x32xf32>
    %505 = arith.select %504, %489, %486 : vector<16x32xi1>, vector<16x32xf32>
    %506 = arith.addf %502, %505 : vector<16x32xf32>
    %cst_143 = arith.constant 5.000000e-01 : f32
    %507 = vector.broadcast %cst_143 : f32 to vector<16x32xf32>
    %508 = arith.mulf %507, %506 : vector<16x32xf32>
    %cst_144 = arith.constant 0.000000e+00 : f32
    %509 = vector.broadcast %cst_144 : f32 to vector<16x32xf32>
    %510 = arith.subf %509, %508 : vector<16x32xf32>
    %511 = math.exp %510 : vector<16x32xf32>
    %512 = arith.subf %508, %142 : vector<16x32xf32>
    %513 = vector.broadcast %139 : f32 to vector<16x32xf32>
    %514 = arith.mulf %513, %512 : vector<16x32xf32>
    %515 = arith.addf %1, %514 : vector<16x32xf32>
    %516 = arith.addf %515, %0 : vector<16x32xf32>
    %517 = arith.mulf %516, %511 : vector<16x32xf32>
    %518 = arith.subf %515, %517 : vector<16x32xf32>
    %cst_145 = arith.constant 0.000000e+00 : f32
    %519 = vector.broadcast %cst_145 : f32 to vector<16x32xf32>
    %520 = arith.cmpf olt, %518, %519 : vector<16x32xf32>
    %521 = arith.select %520, %508, %502 : vector<16x32xi1>, vector<16x32xf32>
    %cst_146 = arith.constant 0.000000e+00 : f32
    %522 = vector.broadcast %cst_146 : f32 to vector<16x32xf32>
    %523 = arith.cmpf ogt, %518, %522 : vector<16x32xf32>
    %524 = arith.select %523, %508, %505 : vector<16x32xi1>, vector<16x32xf32>
    %525 = arith.addf %521, %524 : vector<16x32xf32>
    %cst_147 = arith.constant 5.000000e-01 : f32
    %526 = vector.broadcast %cst_147 : f32 to vector<16x32xf32>
    %527 = arith.mulf %526, %525 : vector<16x32xf32>
    %cst_148 = arith.constant 0.000000e+00 : f32
    %528 = vector.broadcast %cst_148 : f32 to vector<16x32xf32>
    %529 = arith.subf %528, %527 : vector<16x32xf32>
    %530 = math.exp %529 : vector<16x32xf32>
    %531 = arith.subf %527, %142 : vector<16x32xf32>
    %532 = vector.broadcast %139 : f32 to vector<16x32xf32>
    %533 = arith.mulf %532, %531 : vector<16x32xf32>
    %534 = arith.addf %1, %533 : vector<16x32xf32>
    %535 = arith.addf %534, %0 : vector<16x32xf32>
    %536 = arith.mulf %535, %530 : vector<16x32xf32>
    %537 = arith.subf %534, %536 : vector<16x32xf32>
    %cst_149 = arith.constant 0.000000e+00 : f32
    %538 = vector.broadcast %cst_149 : f32 to vector<16x32xf32>
    %539 = arith.cmpf olt, %537, %538 : vector<16x32xf32>
    %540 = arith.select %539, %527, %521 : vector<16x32xi1>, vector<16x32xf32>
    %cst_150 = arith.constant 0.000000e+00 : f32
    %541 = vector.broadcast %cst_150 : f32 to vector<16x32xf32>
    %542 = arith.cmpf ogt, %537, %541 : vector<16x32xf32>
    %543 = arith.select %542, %527, %524 : vector<16x32xi1>, vector<16x32xf32>
    %544 = arith.addf %540, %543 : vector<16x32xf32>
    %cst_151 = arith.constant 5.000000e-01 : f32
    %545 = vector.broadcast %cst_151 : f32 to vector<16x32xf32>
    %546 = arith.mulf %545, %544 : vector<16x32xf32>
    %cst_152 = arith.constant 0.000000e+00 : f32
    %547 = vector.broadcast %cst_152 : f32 to vector<16x32xf32>
    %548 = arith.subf %547, %546 : vector<16x32xf32>
    %549 = math.exp %548 : vector<16x32xf32>
    %550 = arith.subf %546, %142 : vector<16x32xf32>
    %551 = vector.broadcast %139 : f32 to vector<16x32xf32>
    %552 = arith.mulf %551, %550 : vector<16x32xf32>
    %553 = arith.addf %1, %552 : vector<16x32xf32>
    %554 = arith.addf %553, %0 : vector<16x32xf32>
    %555 = arith.mulf %554, %549 : vector<16x32xf32>
    %556 = arith.subf %553, %555 : vector<16x32xf32>
    %cst_153 = arith.constant 0.000000e+00 : f32
    %557 = vector.broadcast %cst_153 : f32 to vector<16x32xf32>
    %558 = arith.cmpf olt, %556, %557 : vector<16x32xf32>
    %559 = arith.select %558, %546, %540 : vector<16x32xi1>, vector<16x32xf32>
    %cst_154 = arith.constant 0.000000e+00 : f32
    %560 = vector.broadcast %cst_154 : f32 to vector<16x32xf32>
    %561 = arith.cmpf ogt, %556, %560 : vector<16x32xf32>
    %562 = arith.select %561, %546, %543 : vector<16x32xi1>, vector<16x32xf32>
    %563 = arith.addf %559, %562 : vector<16x32xf32>
    %cst_155 = arith.constant 5.000000e-01 : f32
    %564 = vector.broadcast %cst_155 : f32 to vector<16x32xf32>
    %565 = arith.mulf %564, %563 : vector<16x32xf32>
    %cst_156 = arith.constant 0.000000e+00 : f32
    %566 = vector.broadcast %cst_156 : f32 to vector<16x32xf32>
    %567 = arith.subf %566, %565 : vector<16x32xf32>
    %568 = math.exp %567 : vector<16x32xf32>
    %569 = arith.subf %565, %142 : vector<16x32xf32>
    %570 = vector.broadcast %139 : f32 to vector<16x32xf32>
    %571 = arith.mulf %570, %569 : vector<16x32xf32>
    %572 = arith.addf %1, %571 : vector<16x32xf32>
    %573 = arith.addf %572, %0 : vector<16x32xf32>
    %574 = arith.mulf %573, %568 : vector<16x32xf32>
    %575 = arith.subf %572, %574 : vector<16x32xf32>
    %cst_157 = arith.constant 0.000000e+00 : f32
    %576 = vector.broadcast %cst_157 : f32 to vector<16x32xf32>
    %577 = arith.cmpf olt, %575, %576 : vector<16x32xf32>
    %578 = arith.select %577, %565, %559 : vector<16x32xi1>, vector<16x32xf32>
    %cst_158 = arith.constant 0.000000e+00 : f32
    %579 = vector.broadcast %cst_158 : f32 to vector<16x32xf32>
    %580 = arith.cmpf ogt, %575, %579 : vector<16x32xf32>
    %581 = arith.select %580, %565, %562 : vector<16x32xi1>, vector<16x32xf32>
    %582 = arith.addf %578, %581 : vector<16x32xf32>
    %cst_159 = arith.constant 5.000000e-01 : f32
    %583 = vector.broadcast %cst_159 : f32 to vector<16x32xf32>
    %584 = arith.mulf %583, %582 : vector<16x32xf32>
    %cst_160 = arith.constant 0.000000e+00 : f32
    %585 = vector.broadcast %cst_160 : f32 to vector<16x32xf32>
    %586 = arith.subf %585, %584 : vector<16x32xf32>
    %587 = math.exp %586 : vector<16x32xf32>
    %588 = arith.subf %584, %142 : vector<16x32xf32>
    %589 = vector.broadcast %139 : f32 to vector<16x32xf32>
    %590 = arith.mulf %589, %588 : vector<16x32xf32>
    %591 = arith.addf %1, %590 : vector<16x32xf32>
    %592 = arith.addf %591, %0 : vector<16x32xf32>
    %593 = arith.mulf %592, %587 : vector<16x32xf32>
    %594 = arith.subf %591, %593 : vector<16x32xf32>
    %cst_161 = arith.constant 0.000000e+00 : f32
    %595 = vector.broadcast %cst_161 : f32 to vector<16x32xf32>
    %596 = arith.cmpf olt, %594, %595 : vector<16x32xf32>
    %597 = arith.select %596, %584, %578 : vector<16x32xi1>, vector<16x32xf32>
    %cst_162 = arith.constant 0.000000e+00 : f32
    %598 = vector.broadcast %cst_162 : f32 to vector<16x32xf32>
    %599 = arith.cmpf ogt, %594, %598 : vector<16x32xf32>
    %600 = arith.select %599, %584, %581 : vector<16x32xi1>, vector<16x32xf32>
    %601 = arith.addf %597, %600 : vector<16x32xf32>
    %cst_163 = arith.constant 5.000000e-01 : f32
    %602 = vector.broadcast %cst_163 : f32 to vector<16x32xf32>
    %603 = arith.mulf %602, %601 : vector<16x32xf32>
    %cst_164 = arith.constant 0.000000e+00 : f32
    %604 = vector.broadcast %cst_164 : f32 to vector<16x32xf32>
    %605 = arith.subf %604, %603 : vector<16x32xf32>
    %606 = math.exp %605 : vector<16x32xf32>
    %607 = arith.subf %603, %142 : vector<16x32xf32>
    %608 = vector.broadcast %139 : f32 to vector<16x32xf32>
    %609 = arith.mulf %608, %607 : vector<16x32xf32>
    %610 = arith.addf %1, %609 : vector<16x32xf32>
    %611 = arith.addf %610, %0 : vector<16x32xf32>
    %612 = arith.mulf %611, %606 : vector<16x32xf32>
    %613 = arith.subf %610, %612 : vector<16x32xf32>
    %cst_165 = arith.constant 0.000000e+00 : f32
    %614 = vector.broadcast %cst_165 : f32 to vector<16x32xf32>
    %615 = arith.cmpf olt, %613, %614 : vector<16x32xf32>
    %616 = arith.select %615, %603, %597 : vector<16x32xi1>, vector<16x32xf32>
    %cst_166 = arith.constant 0.000000e+00 : f32
    %617 = vector.broadcast %cst_166 : f32 to vector<16x32xf32>
    %618 = arith.cmpf ogt, %613, %617 : vector<16x32xf32>
    %619 = arith.select %618, %603, %600 : vector<16x32xi1>, vector<16x32xf32>
    %620 = arith.addf %616, %619 : vector<16x32xf32>
    %cst_167 = arith.constant 5.000000e-01 : f32
    %621 = vector.broadcast %cst_167 : f32 to vector<16x32xf32>
    %622 = arith.mulf %621, %620 : vector<16x32xf32>
    %cst_168 = arith.constant 0.000000e+00 : f32
    %623 = vector.broadcast %cst_168 : f32 to vector<16x32xf32>
    %624 = arith.subf %623, %622 : vector<16x32xf32>
    %625 = math.exp %624 : vector<16x32xf32>
    %626 = arith.subf %622, %142 : vector<16x32xf32>
    %627 = vector.broadcast %139 : f32 to vector<16x32xf32>
    %628 = arith.mulf %627, %626 : vector<16x32xf32>
    %629 = arith.addf %1, %628 : vector<16x32xf32>
    %630 = arith.addf %629, %0 : vector<16x32xf32>
    %631 = arith.mulf %630, %625 : vector<16x32xf32>
    %632 = arith.subf %629, %631 : vector<16x32xf32>
    %cst_169 = arith.constant 0.000000e+00 : f32
    %633 = vector.broadcast %cst_169 : f32 to vector<16x32xf32>
    %634 = arith.cmpf olt, %632, %633 : vector<16x32xf32>
    %635 = arith.select %634, %622, %616 : vector<16x32xi1>, vector<16x32xf32>
    %cst_170 = arith.constant 0.000000e+00 : f32
    %636 = vector.broadcast %cst_170 : f32 to vector<16x32xf32>
    %637 = arith.cmpf ogt, %632, %636 : vector<16x32xf32>
    %638 = arith.select %637, %622, %619 : vector<16x32xi1>, vector<16x32xf32>
    %639 = arith.addf %635, %638 : vector<16x32xf32>
    %cst_171 = arith.constant 5.000000e-01 : f32
    %640 = vector.broadcast %cst_171 : f32 to vector<16x32xf32>
    %641 = arith.mulf %640, %639 : vector<16x32xf32>
    %cst_172 = arith.constant 0.000000e+00 : f32
    %642 = vector.broadcast %cst_172 : f32 to vector<16x32xf32>
    %643 = arith.subf %642, %641 : vector<16x32xf32>
    %644 = math.exp %643 : vector<16x32xf32>
    %645 = arith.subf %641, %142 : vector<16x32xf32>
    %646 = vector.broadcast %139 : f32 to vector<16x32xf32>
    %647 = arith.mulf %646, %645 : vector<16x32xf32>
    %648 = arith.addf %1, %647 : vector<16x32xf32>
    %649 = arith.addf %648, %0 : vector<16x32xf32>
    %650 = arith.mulf %649, %644 : vector<16x32xf32>
    %651 = arith.subf %648, %650 : vector<16x32xf32>
    %cst_173 = arith.constant 0.000000e+00 : f32
    %652 = vector.broadcast %cst_173 : f32 to vector<16x32xf32>
    %653 = arith.cmpf olt, %651, %652 : vector<16x32xf32>
    %654 = arith.select %653, %641, %635 : vector<16x32xi1>, vector<16x32xf32>
    %cst_174 = arith.constant 0.000000e+00 : f32
    %655 = vector.broadcast %cst_174 : f32 to vector<16x32xf32>
    %656 = arith.cmpf ogt, %651, %655 : vector<16x32xf32>
    %657 = arith.select %656, %641, %638 : vector<16x32xi1>, vector<16x32xf32>
    %658 = arith.addf %654, %657 : vector<16x32xf32>
    %cst_175 = arith.constant 5.000000e-01 : f32
    %659 = vector.broadcast %cst_175 : f32 to vector<16x32xf32>
    %660 = arith.mulf %659, %658 : vector<16x32xf32>
    %cst_176 = arith.constant 0.000000e+00 : f32
    %661 = vector.broadcast %cst_176 : f32 to vector<16x32xf32>
    %662 = arith.subf %661, %660 : vector<16x32xf32>
    %663 = math.exp %662 : vector<16x32xf32>
    %664 = arith.subf %660, %142 : vector<16x32xf32>
    %665 = vector.broadcast %139 : f32 to vector<16x32xf32>
    %666 = arith.mulf %665, %664 : vector<16x32xf32>
    %667 = arith.addf %1, %666 : vector<16x32xf32>
    %668 = arith.addf %667, %0 : vector<16x32xf32>
    %669 = arith.mulf %668, %663 : vector<16x32xf32>
    %670 = arith.subf %667, %669 : vector<16x32xf32>
    %cst_177 = arith.constant 0.000000e+00 : f32
    %671 = vector.broadcast %cst_177 : f32 to vector<16x32xf32>
    %672 = arith.cmpf olt, %670, %671 : vector<16x32xf32>
    %673 = arith.select %672, %660, %654 : vector<16x32xi1>, vector<16x32xf32>
    %cst_178 = arith.constant 0.000000e+00 : f32
    %674 = vector.broadcast %cst_178 : f32 to vector<16x32xf32>
    %675 = arith.cmpf ogt, %670, %674 : vector<16x32xf32>
    %676 = arith.select %675, %660, %657 : vector<16x32xi1>, vector<16x32xf32>
    %677 = arith.addf %673, %676 : vector<16x32xf32>
    %cst_179 = arith.constant 5.000000e-01 : f32
    %678 = vector.broadcast %cst_179 : f32 to vector<16x32xf32>
    %679 = arith.mulf %678, %677 : vector<16x32xf32>
    %cst_180 = arith.constant 0.000000e+00 : f32
    %680 = vector.broadcast %cst_180 : f32 to vector<16x32xf32>
    %681 = arith.subf %680, %679 : vector<16x32xf32>
    %682 = math.exp %681 : vector<16x32xf32>
    %683 = arith.subf %679, %142 : vector<16x32xf32>
    %684 = vector.broadcast %139 : f32 to vector<16x32xf32>
    %685 = arith.mulf %684, %683 : vector<16x32xf32>
    %686 = arith.addf %1, %685 : vector<16x32xf32>
    %687 = arith.addf %686, %0 : vector<16x32xf32>
    %688 = arith.mulf %687, %682 : vector<16x32xf32>
    %689 = arith.subf %686, %688 : vector<16x32xf32>
    %cst_181 = arith.constant 0.000000e+00 : f32
    %690 = vector.broadcast %cst_181 : f32 to vector<16x32xf32>
    %691 = arith.cmpf olt, %689, %690 : vector<16x32xf32>
    %692 = arith.select %691, %679, %673 : vector<16x32xi1>, vector<16x32xf32>
    %cst_182 = arith.constant 0.000000e+00 : f32
    %693 = vector.broadcast %cst_182 : f32 to vector<16x32xf32>
    %694 = arith.cmpf ogt, %689, %693 : vector<16x32xf32>
    %695 = arith.select %694, %679, %676 : vector<16x32xi1>, vector<16x32xf32>
    %696 = arith.addf %692, %695 : vector<16x32xf32>
    %cst_183 = arith.constant 5.000000e-01 : f32
    %697 = vector.broadcast %cst_183 : f32 to vector<16x32xf32>
    %698 = arith.mulf %697, %696 : vector<16x32xf32>
    %cst_184 = arith.constant 0.000000e+00 : f32
    %699 = vector.broadcast %cst_184 : f32 to vector<16x32xf32>
    %700 = arith.subf %699, %698 : vector<16x32xf32>
    %701 = math.exp %700 : vector<16x32xf32>
    %702 = arith.subf %698, %142 : vector<16x32xf32>
    %703 = vector.broadcast %139 : f32 to vector<16x32xf32>
    %704 = arith.mulf %703, %702 : vector<16x32xf32>
    %705 = arith.addf %1, %704 : vector<16x32xf32>
    %706 = arith.addf %705, %0 : vector<16x32xf32>
    %707 = arith.mulf %706, %701 : vector<16x32xf32>
    %708 = arith.subf %705, %707 : vector<16x32xf32>
    %cst_185 = arith.constant 0.000000e+00 : f32
    %709 = vector.broadcast %cst_185 : f32 to vector<16x32xf32>
    %710 = arith.cmpf olt, %708, %709 : vector<16x32xf32>
    %711 = arith.select %710, %698, %692 : vector<16x32xi1>, vector<16x32xf32>
    %cst_186 = arith.constant 0.000000e+00 : f32
    %712 = vector.broadcast %cst_186 : f32 to vector<16x32xf32>
    %713 = arith.cmpf ogt, %708, %712 : vector<16x32xf32>
    %714 = arith.select %713, %698, %695 : vector<16x32xi1>, vector<16x32xf32>
    %715 = arith.addf %711, %714 : vector<16x32xf32>
    %cst_187 = arith.constant 5.000000e-01 : f32
    %716 = vector.broadcast %cst_187 : f32 to vector<16x32xf32>
    %717 = arith.mulf %716, %715 : vector<16x32xf32>
    %718 = arith.addf %717, %78 : vector<16x32xf32>
    %719 = arith.addf %141, %79 : vector<16x32xf32>
    %c0_188 = arith.constant 0 : index
    %c0_189 = arith.constant 0 : index
    %720 = vector.load %arg5[%c0_188, %c0_189] : memref<32x16xf32, #tpu.memory_space<vmem>>, vector<32x16xf32>
    %cst_190 = arith.constant dense<0.000000e+00> : vector<32x32xf32>
    %721 = tpu.matmul %720, %718, %cst_190 {dimension_numbers = #tpu.dot_dimension_numbers<[1], [0], [0], [1], [0, 0, 1, 1], [], []>} : vector<32x16xf32>, vector<16x32xf32>, vector<32x32xf32> -> vector<32x32xf32>
    %722 = vector.extract_strided_slice %721 {offsets = [0, 0], sizes = [16, 32], strides = [1, 1]} : vector<32x32xf32> to vector<16x32xf32>
    %723 = vector.extract_strided_slice %721 {offsets = [16, 0], sizes = [16, 32], strides = [1, 1]} : vector<32x32xf32> to vector<16x32xf32>
    %724 = tpu.concatenate %722, %723 in 1 : vector<16x32xf32>, vector<16x32xf32> -> vector<16x64xf32>
    %c0_191 = arith.constant 0 : index
    %c0_192 = arith.constant 0 : index
    %725 = vector.load %arg8[%c0_191, %c0_192] : memref<64x64xf32, #tpu.memory_space<vmem>>, vector<64x64xf32>
    %cst_193 = arith.constant dense<0.000000e+00> : vector<16x64xf32>
    %726 = tpu.matmul %724, %725, %cst_193 {dimension_numbers = #tpu.dot_dimension_numbers<[1], [0], [0], [1], [0, 0, 1, 1], [], []>} : vector<16x64xf32>, vector<64x64xf32>, vector<16x64xf32> -> vector<16x64xf32>
    %c0_194 = arith.constant 0 : index
    %c0_195 = arith.constant 0 : index
    %727 = vector.load %arg2[%c0_194, %c0_195] : memref<16x64xf32, #tpu.memory_space<vmem>>, vector<16x64xf32>
    %728 = arith.mulf %726, %727 : vector<16x64xf32>
    %729 = vector.extract_strided_slice %726 {offsets = [0, 32], sizes = [16, 32], strides = [1, 1]} : vector<16x64xf32> to vector<16x32xf32>
    %730 = vector.extract_strided_slice %726 {offsets = [0, 0], sizes = [16, 32], strides = [1, 1]} : vector<16x64xf32> to vector<16x32xf32>
    %731 = tpu.concatenate %729, %730 in 1 : vector<16x32xf32>, vector<16x32xf32> -> vector<16x64xf32>
    %c0_196 = arith.constant 0 : index
    %c0_197 = arith.constant 0 : index
    %732 = vector.load %arg3[%c0_196, %c0_197] : memref<16x64xf32, #tpu.memory_space<vmem>>, vector<16x64xf32>
    %733 = arith.mulf %731, %732 : vector<16x64xf32>
    %734 = arith.subf %728, %733 : vector<16x64xf32>
    %c0_198 = arith.constant 0 : index
    %c0_199 = arith.constant 0 : index
    %735 = vector.load %arg9[%c0_198, %c0_199] : memref<64x64xf32, #tpu.memory_space<vmem>>, vector<64x64xf32>
    %cst_200 = arith.constant dense<0.000000e+00> : vector<16x64xf32>
    %736 = tpu.matmul %734, %735, %cst_200 {dimension_numbers = #tpu.dot_dimension_numbers<[1], [0], [0], [1], [0, 0, 1, 1], [], []>} : vector<16x64xf32>, vector<64x64xf32>, vector<16x64xf32> -> vector<16x64xf32>
    %c0_201 = arith.constant 0 : index
    %c0_202 = arith.constant 0 : index
    %737 = vector.load %arg7[%c0_201, %c0_202] : memref<32x32xf32, #tpu.memory_space<vmem>>, vector<32x32xf32>
    %738 = vector.extract_strided_slice %736 {offsets = [0, 0], sizes = [16, 32], strides = [1, 1]} : vector<16x64xf32> to vector<16x32xf32>
    %739 = vector.extract_strided_slice %736 {offsets = [0, 32], sizes = [16, 32], strides = [1, 1]} : vector<16x64xf32> to vector<16x32xf32>
    %740 = tpu.concatenate %738, %739 in 0 : vector<16x32xf32>, vector<16x32xf32> -> vector<32x32xf32>
    %cst_203 = arith.constant dense<0.000000e+00> : vector<32x32xf32>
    %741 = tpu.matmul %737, %740, %cst_203 {dimension_numbers = #tpu.dot_dimension_numbers<[1], [0], [0], [1], [0, 0, 1, 1], [], []>} : vector<32x32xf32>, vector<32x32xf32>, vector<32x32xf32> -> vector<32x32xf32>
    %cst_204 = arith.constant 3.906250e-03 : f32
    %742 = vector.broadcast %cst_204 : f32 to vector<32x32xf32>
    %743 = arith.mulf %741, %742 : vector<32x32xf32>
    %744 = vector.extract_strided_slice %743 {offsets = [0, 0], sizes = [16, 32], strides = [1, 1]} : vector<32x32xf32> to vector<16x32xf32>
    %745 = vector.extract_strided_slice %743 {offsets = [16, 0], sizes = [16, 32], strides = [1, 1]} : vector<32x32xf32> to vector<16x32xf32>
    %746 = math.absf %744 : vector<16x32xf32>
    %747 = math.absf %745 : vector<16x32xf32>
    %748 = arith.maximumf %746, %747 : vector<16x32xf32>
    %749 = arith.minimumf %746, %747 : vector<16x32xf32>
    %cst_205 = arith.constant 0.000000e+00 : f32
    %750 = vector.broadcast %cst_205 : f32 to vector<16x32xf32>
    %751 = arith.cmpf oeq, %748, %750 : vector<16x32xf32>
    %cst_206 = arith.constant 1.000000e+00 : f32
    %752 = vector.broadcast %cst_206 : f32 to vector<16x32xf32>
    %753 = arith.select %751, %752, %748 : vector<16x32xi1>, vector<16x32xf32>
    %754 = arith.divf %749, %753 : vector<16x32xf32>
    %cst_207 = arith.constant 0.414213568 : f32
    %755 = vector.broadcast %cst_207 : f32 to vector<16x32xf32>
    %756 = arith.cmpf ogt, %754, %755 : vector<16x32xf32>
    %cst_208 = arith.constant 1.000000e+00 : f32
    %757 = vector.broadcast %cst_208 : f32 to vector<16x32xf32>
    %758 = arith.subf %754, %757 : vector<16x32xf32>
    %cst_209 = arith.constant 1.000000e+00 : f32
    %759 = vector.broadcast %cst_209 : f32 to vector<16x32xf32>
    %760 = arith.addf %754, %759 : vector<16x32xf32>
    %761 = arith.divf %758, %760 : vector<16x32xf32>
    %762 = arith.select %756, %761, %754 : vector<16x32xi1>, vector<16x32xf32>
    %cst_210 = arith.constant 0.785398185 : f32
    %cst_211 = arith.constant 0.000000e+00 : f32
    %763 = vector.broadcast %cst_210 : f32 to vector<16x32xf32>
    %764 = vector.broadcast %cst_211 : f32 to vector<16x32xf32>
    %765 = arith.select %756, %763, %764 : vector<16x32xi1>, vector<16x32xf32>
    %766 = arith.mulf %762, %762 : vector<16x32xf32>
    %cst_212 = arith.constant 0.0805374458 : f32
    %767 = vector.broadcast %cst_212 : f32 to vector<16x32xf32>
    %768 = arith.mulf %767, %766 : vector<16x32xf32>
    %cst_213 = arith.constant 0.138776854 : f32
    %769 = vector.broadcast %cst_213 : f32 to vector<16x32xf32>
    %770 = arith.subf %768, %769 : vector<16x32xf32>
    %771 = arith.mulf %770, %766 : vector<16x32xf32>
    %cst_214 = arith.constant 0.199777111 : f32
    %772 = vector.broadcast %cst_214 : f32 to vector<16x32xf32>
    %773 = arith.addf %771, %772 : vector<16x32xf32>
    %774 = arith.mulf %773, %766 : vector<16x32xf32>
    %cst_215 = arith.constant 0.333329499 : f32
    %775 = vector.broadcast %cst_215 : f32 to vector<16x32xf32>
    %776 = arith.subf %774, %775 : vector<16x32xf32>
    %777 = arith.mulf %776, %766 : vector<16x32xf32>
    %778 = arith.mulf %777, %762 : vector<16x32xf32>
    %779 = arith.addf %778, %762 : vector<16x32xf32>
    %780 = arith.addf %765, %779 : vector<16x32xf32>
    %781 = arith.cmpf ogt, %747, %746 : vector<16x32xf32>
    %cst_216 = arith.constant 1.57079637 : f32
    %782 = vector.broadcast %cst_216 : f32 to vector<16x32xf32>
    %783 = arith.subf %782, %780 : vector<16x32xf32>
    %784 = arith.select %781, %783, %780 : vector<16x32xi1>, vector<16x32xf32>
    %cst_217 = arith.constant 0.000000e+00 : f32
    %785 = vector.broadcast %cst_217 : f32 to vector<16x32xf32>
    %786 = arith.cmpf olt, %744, %785 : vector<16x32xf32>
    %cst_218 = arith.constant 3.14159274 : f32
    %787 = vector.broadcast %cst_218 : f32 to vector<16x32xf32>
    %788 = arith.subf %787, %784 : vector<16x32xf32>
    %789 = arith.select %786, %788, %784 : vector<16x32xi1>, vector<16x32xf32>
    %cst_219 = arith.constant 0.000000e+00 : f32
    %790 = vector.broadcast %cst_219 : f32 to vector<16x32xf32>
    %791 = arith.cmpf oeq, %748, %790 : vector<16x32xf32>
    %cst_220 = arith.constant 0.000000e+00 : f32
    %792 = vector.broadcast %cst_220 : f32 to vector<16x32xf32>
    %793 = arith.select %791, %792, %789 : vector<16x32xi1>, vector<16x32xf32>
    %cst_221 = arith.constant 0.318309873 : f32
    %794 = vector.broadcast %cst_221 : f32 to vector<16x32xf32>
    %795 = arith.mulf %793, %794 : vector<16x32xf32>
    %796 = vector.broadcast %139 : f32 to vector<16x32xf32>
    %797 = arith.mulf %796, %795 : vector<16x32xf32>
    %798 = vector.broadcast %140 : f32 to vector<16x32xf32>
    %799 = arith.mulf %798, %719 : vector<16x32xf32>
    %800 = arith.addf %797, %799 : vector<16x32xf32>
    %c0_222 = arith.constant 0 : index
    %c0_223 = arith.constant 0 : index
    %801 = vector.load %arg5[%c0_222, %c0_223] : memref<32x16xf32, #tpu.memory_space<vmem>>, vector<32x16xf32>
    %cst_224 = arith.constant dense<0.000000e+00> : vector<32x32xf32>
    %802 = tpu.matmul %801, %800, %cst_224 {dimension_numbers = #tpu.dot_dimension_numbers<[1], [0], [0], [1], [0, 0, 1, 1], [], []>} : vector<32x16xf32>, vector<16x32xf32>, vector<32x32xf32> -> vector<32x32xf32>
    %803 = vector.extract_strided_slice %802 {offsets = [0, 0], sizes = [16, 32], strides = [1, 1]} : vector<32x32xf32> to vector<16x32xf32>
    %804 = vector.extract_strided_slice %802 {offsets = [16, 0], sizes = [16, 32], strides = [1, 1]} : vector<32x32xf32> to vector<16x32xf32>
    %805 = tpu.concatenate %803, %804 in 1 : vector<16x32xf32>, vector<16x32xf32> -> vector<16x64xf32>
    %c0_225 = arith.constant 0 : index
    %c0_226 = arith.constant 0 : index
    %806 = vector.load %arg8[%c0_225, %c0_226] : memref<64x64xf32, #tpu.memory_space<vmem>>, vector<64x64xf32>
    %cst_227 = arith.constant dense<0.000000e+00> : vector<16x64xf32>
    %807 = tpu.matmul %805, %806, %cst_227 {dimension_numbers = #tpu.dot_dimension_numbers<[1], [0], [0], [1], [0, 0, 1, 1], [], []>} : vector<16x64xf32>, vector<64x64xf32>, vector<16x64xf32> -> vector<16x64xf32>
    %c0_228 = arith.constant 0 : index
    %c0_229 = arith.constant 0 : index
    %808 = vector.load %arg4[%c0_228, %c0_229] : memref<16x64xf32, #tpu.memory_space<vmem>>, vector<16x64xf32>
    %809 = vector.broadcast %139 : f32 to vector<16x64xf32>
    %810 = arith.mulf %809, %808 : vector<16x64xf32>
    %811 = vector.broadcast %140 : f32 to vector<16x64xf32>
    %812 = arith.addf %811, %810 : vector<16x64xf32>
    %813 = arith.divf %807, %812 : vector<16x64xf32>
    %c0_230 = arith.constant 0 : index
    %c0_231 = arith.constant 0 : index
    %814 = vector.load %arg9[%c0_230, %c0_231] : memref<64x64xf32, #tpu.memory_space<vmem>>, vector<64x64xf32>
    %cst_232 = arith.constant dense<0.000000e+00> : vector<16x64xf32>
    %815 = tpu.matmul %813, %814, %cst_232 {dimension_numbers = #tpu.dot_dimension_numbers<[1], [0], [0], [1], [0, 0, 1, 1], [], []>} : vector<16x64xf32>, vector<64x64xf32>, vector<16x64xf32> -> vector<16x64xf32>
    %c0_233 = arith.constant 0 : index
    %c0_234 = arith.constant 0 : index
    %816 = vector.load %arg7[%c0_233, %c0_234] : memref<32x32xf32, #tpu.memory_space<vmem>>, vector<32x32xf32>
    %817 = vector.extract_strided_slice %815 {offsets = [0, 0], sizes = [16, 32], strides = [1, 1]} : vector<16x64xf32> to vector<16x32xf32>
    %818 = vector.extract_strided_slice %815 {offsets = [0, 32], sizes = [16, 32], strides = [1, 1]} : vector<16x64xf32> to vector<16x32xf32>
    %819 = tpu.concatenate %817, %818 in 0 : vector<16x32xf32>, vector<16x32xf32> -> vector<32x32xf32>
    %cst_235 = arith.constant dense<0.000000e+00> : vector<32x32xf32>
    %820 = tpu.matmul %816, %819, %cst_235 {dimension_numbers = #tpu.dot_dimension_numbers<[1], [0], [0], [1], [0, 0, 1, 1], [], []>} : vector<32x32xf32>, vector<32x32xf32>, vector<32x32xf32> -> vector<32x32xf32>
    %cst_236 = arith.constant 3.906250e-03 : f32
    %821 = vector.broadcast %cst_236 : f32 to vector<32x32xf32>
    %822 = arith.mulf %820, %821 : vector<32x32xf32>
    %823 = vector.extract_strided_slice %822 {offsets = [0, 0], sizes = [16, 32], strides = [1, 1]} : vector<32x32xf32> to vector<16x32xf32>
    %824 = vector.extract_strided_slice %822 {offsets = [16, 0], sizes = [16, 32], strides = [1, 1]} : vector<32x32xf32> to vector<16x32xf32>
    %825 = arith.mulf %823, %823 : vector<16x32xf32>
    %826 = arith.mulf %824, %824 : vector<16x32xf32>
    %827 = arith.addf %825, %826 : vector<16x32xf32>
    %828 = math.sqrt %827 : vector<16x32xf32>
    %829 = tpu.iota {dimensions = array<i32: 1>} : vector<16x32xi32>
    %830 = vector.extract_strided_slice %828 {offsets = [0, 0], sizes = [16, 16], strides = [1, 1]} : vector<16x32xf32> to vector<16x16xf32>
    %cst_237 = arith.constant dense<0xFF800000> : vector<16xf32>
    %831 = vector.multi_reduction <maximumf>, %830, %cst_237 [1] : vector<16x16xf32> to vector<16xf32>
    %832 = vector.shape_cast %831 : vector<16xf32> to vector<16x1xf32>
    %cst_238 = arith.constant dense<0xFF800000> : vector<1xf32>
    %833 = vector.multi_reduction <maximumf>, %832, %cst_238 [0] : vector<16x1xf32> to vector<1xf32>
    %834 = vector.shape_cast %833 : vector<1xf32> to vector<1x1xf32>
    %cst_239 = arith.constant 1.000000e+00 : f32
    %835 = vector.broadcast %cst_239 : f32 to vector<1x1xf32>
    %836 = arith.divf %835, %834 : vector<1x1xf32>
    %837 = vector.extract_strided_slice %828 {offsets = [0, 16], sizes = [16, 16], strides = [1, 1]} : vector<16x32xf32> to vector<16x16xf32>
    %cst_240 = arith.constant dense<0xFF800000> : vector<16xf32>
    %838 = vector.multi_reduction <maximumf>, %837, %cst_240 [1] : vector<16x16xf32> to vector<16xf32>
    %839 = vector.shape_cast %838 : vector<16xf32> to vector<16x1xf32>
    %cst_241 = arith.constant dense<0xFF800000> : vector<1xf32>
    %840 = vector.multi_reduction <maximumf>, %839, %cst_241 [0] : vector<16x1xf32> to vector<1xf32>
    %841 = vector.shape_cast %840 : vector<1xf32> to vector<1x1xf32>
    %cst_242 = arith.constant 1.000000e+00 : f32
    %842 = vector.broadcast %cst_242 : f32 to vector<1x1xf32>
    %843 = arith.divf %842, %841 : vector<1x1xf32>
    %c16_i32_243 = arith.constant 16 : i32
    %844 = vector.broadcast %c16_i32_243 : i32 to vector<16x32xi32>
    %845 = arith.cmpi slt, %829, %844 : vector<16x32xi32>
    %846 = vector.shape_cast %836 : vector<1x1xf32> to vector<1x1xf32>
    %847 = vector.broadcast %846 : vector<1x1xf32> to vector<16x32xf32>
    %848 = vector.shape_cast %843 : vector<1x1xf32> to vector<1x1xf32>
    %849 = vector.broadcast %848 : vector<1x1xf32> to vector<16x32xf32>
    %850 = arith.select %845, %847, %849 : vector<16x32xi1>, vector<16x32xf32>
    %851 = arith.mulf %828, %850 : vector<16x32xf32>
    %cst_244 = arith.constant 6.28318548 : f32
    %852 = vector.broadcast %cst_244 : f32 to vector<16x32xf32>
    %853 = arith.mulf %852, %851 : vector<16x32xf32>
    %cst_245 = arith.constant 3.14159274 : f32
    %854 = vector.broadcast %cst_245 : f32 to vector<16x32xf32>
    %855 = arith.subf %853, %854 : vector<16x32xf32>
    %856 = math.cos %855 : vector<16x32xf32>
    %857 = math.sin %855 : vector<16x32xf32>
    %c0_246 = arith.constant 0 : index
    %c0_247 = arith.constant 0 : index
    %858 = vector.load %arg6[%c0_246, %c0_247] : memref<32x32xf32, #tpu.memory_space<vmem>>, vector<32x32xf32>
    %859 = tpu.concatenate %856, %857 in 0 : vector<16x32xf32>, vector<16x32xf32> -> vector<32x32xf32>
    %cst_248 = arith.constant dense<0.000000e+00> : vector<32x32xf32>
    %860 = tpu.matmul %858, %859, %cst_248 {dimension_numbers = #tpu.dot_dimension_numbers<[1], [0], [0], [1], [0, 0, 1, 1], [], []>} : vector<32x32xf32>, vector<32x32xf32>, vector<32x32xf32> -> vector<32x32xf32>
    %861 = vector.extract_strided_slice %860 {offsets = [0, 0], sizes = [16, 32], strides = [1, 1]} : vector<32x32xf32> to vector<16x32xf32>
    %862 = vector.extract_strided_slice %860 {offsets = [16, 0], sizes = [16, 32], strides = [1, 1]} : vector<32x32xf32> to vector<16x32xf32>
    %863 = tpu.concatenate %861, %862 in 1 : vector<16x32xf32>, vector<16x32xf32> -> vector<16x64xf32>
    %c0_249 = arith.constant 0 : index
    %c0_250 = arith.constant 0 : index
    %864 = vector.load %arg8[%c0_249, %c0_250] : memref<64x64xf32, #tpu.memory_space<vmem>>, vector<64x64xf32>
    %cst_251 = arith.constant dense<0.000000e+00> : vector<16x64xf32>
    %865 = tpu.matmul %863, %864, %cst_251 {dimension_numbers = #tpu.dot_dimension_numbers<[1], [0], [0], [1], [0, 0, 1, 1], [], []>} : vector<16x64xf32>, vector<64x64xf32>, vector<16x64xf32> -> vector<16x64xf32>
    %c0_252 = arith.constant 0 : index
    %c0_253 = arith.constant 0 : index
    %866 = vector.load %arg2[%c0_252, %c0_253] : memref<16x64xf32, #tpu.memory_space<vmem>>, vector<16x64xf32>
    %867 = arith.mulf %865, %866 : vector<16x64xf32>
    %868 = vector.extract_strided_slice %865 {offsets = [0, 32], sizes = [16, 32], strides = [1, 1]} : vector<16x64xf32> to vector<16x32xf32>
    %869 = vector.extract_strided_slice %865 {offsets = [0, 0], sizes = [16, 32], strides = [1, 1]} : vector<16x64xf32> to vector<16x32xf32>
    %870 = tpu.concatenate %868, %869 in 1 : vector<16x32xf32>, vector<16x32xf32> -> vector<16x64xf32>
    %c0_254 = arith.constant 0 : index
    %c0_255 = arith.constant 0 : index
    %871 = vector.load %arg3[%c0_254, %c0_255] : memref<16x64xf32, #tpu.memory_space<vmem>>, vector<16x64xf32>
    %872 = arith.mulf %870, %871 : vector<16x64xf32>
    %873 = arith.addf %867, %872 : vector<16x64xf32>
    %c0_256 = arith.constant 0 : index
    %c0_257 = arith.constant 0 : index
    %874 = vector.load %arg9[%c0_256, %c0_257] : memref<64x64xf32, #tpu.memory_space<vmem>>, vector<64x64xf32>
    %cst_258 = arith.constant dense<0.000000e+00> : vector<16x64xf32>
    %875 = tpu.matmul %873, %874, %cst_258 {dimension_numbers = #tpu.dot_dimension_numbers<[1], [0], [0], [1], [0, 0, 1, 1], [], []>} : vector<16x64xf32>, vector<64x64xf32>, vector<16x64xf32> -> vector<16x64xf32>
    %c0_259 = arith.constant 0 : index
    %c0_260 = arith.constant 0 : index
    %876 = vector.load %arg7[%c0_259, %c0_260] : memref<32x32xf32, #tpu.memory_space<vmem>>, vector<32x32xf32>
    %877 = vector.extract_strided_slice %875 {offsets = [0, 0], sizes = [16, 32], strides = [1, 1]} : vector<16x64xf32> to vector<16x32xf32>
    %878 = vector.extract_strided_slice %875 {offsets = [0, 32], sizes = [16, 32], strides = [1, 1]} : vector<16x64xf32> to vector<16x32xf32>
    %879 = tpu.concatenate %877, %878 in 0 : vector<16x32xf32>, vector<16x32xf32> -> vector<32x32xf32>
    %cst_261 = arith.constant dense<0.000000e+00> : vector<32x32xf32>
    %880 = tpu.matmul %876, %879, %cst_261 {dimension_numbers = #tpu.dot_dimension_numbers<[1], [0], [0], [1], [0, 0, 1, 1], [], []>} : vector<32x32xf32>, vector<32x32xf32>, vector<32x32xf32> -> vector<32x32xf32>
    %cst_262 = arith.constant 3.906250e-03 : f32
    %881 = vector.broadcast %cst_262 : f32 to vector<32x32xf32>
    %882 = arith.mulf %880, %881 : vector<32x32xf32>
    %883 = vector.extract_strided_slice %882 {offsets = [0, 0], sizes = [16, 32], strides = [1, 1]} : vector<32x32xf32> to vector<16x32xf32>
    %884 = vector.extract_strided_slice %882 {offsets = [16, 0], sizes = [16, 32], strides = [1, 1]} : vector<32x32xf32> to vector<16x32xf32>
    %885 = arith.mulf %883, %883 : vector<16x32xf32>
    %886 = arith.mulf %884, %884 : vector<16x32xf32>
    %887 = arith.addf %885, %886 : vector<16x32xf32>
    %888 = tpu.iota {dimensions = array<i32: 1>} : vector<16x32xi32>
    %889 = vector.extract_strided_slice %887 {offsets = [0, 0], sizes = [16, 16], strides = [1, 1]} : vector<16x32xf32> to vector<16x16xf32>
    %cst_263 = arith.constant dense<0xFF800000> : vector<16xf32>
    %890 = vector.multi_reduction <maximumf>, %889, %cst_263 [1] : vector<16x16xf32> to vector<16xf32>
    %891 = vector.shape_cast %890 : vector<16xf32> to vector<16x1xf32>
    %cst_264 = arith.constant dense<0xFF800000> : vector<1xf32>
    %892 = vector.multi_reduction <maximumf>, %891, %cst_264 [0] : vector<16x1xf32> to vector<1xf32>
    %893 = vector.shape_cast %892 : vector<1xf32> to vector<1x1xf32>
    %cst_265 = arith.constant 1.000000e+00 : f32
    %894 = vector.broadcast %cst_265 : f32 to vector<1x1xf32>
    %895 = arith.divf %894, %893 : vector<1x1xf32>
    %896 = vector.extract_strided_slice %887 {offsets = [0, 16], sizes = [16, 16], strides = [1, 1]} : vector<16x32xf32> to vector<16x16xf32>
    %cst_266 = arith.constant dense<0xFF800000> : vector<16xf32>
    %897 = vector.multi_reduction <maximumf>, %896, %cst_266 [1] : vector<16x16xf32> to vector<16xf32>
    %898 = vector.shape_cast %897 : vector<16xf32> to vector<16x1xf32>
    %cst_267 = arith.constant dense<0xFF800000> : vector<1xf32>
    %899 = vector.multi_reduction <maximumf>, %898, %cst_267 [0] : vector<16x1xf32> to vector<1xf32>
    %900 = vector.shape_cast %899 : vector<1xf32> to vector<1x1xf32>
    %cst_268 = arith.constant 1.000000e+00 : f32
    %901 = vector.broadcast %cst_268 : f32 to vector<1x1xf32>
    %902 = arith.divf %901, %900 : vector<1x1xf32>
    %c16_i32_269 = arith.constant 16 : i32
    %903 = vector.broadcast %c16_i32_269 : i32 to vector<16x32xi32>
    %904 = arith.cmpi slt, %888, %903 : vector<16x32xi32>
    %905 = vector.shape_cast %895 : vector<1x1xf32> to vector<1x1xf32>
    %906 = vector.broadcast %905 : vector<1x1xf32> to vector<16x32xf32>
    %907 = vector.shape_cast %902 : vector<1x1xf32> to vector<1x1xf32>
    %908 = vector.broadcast %907 : vector<1x1xf32> to vector<16x32xf32>
    %909 = arith.select %904, %906, %908 : vector<16x32xi1>, vector<16x32xf32>
    %910 = arith.mulf %887, %909 : vector<16x32xf32>
    %911 = arith.addf %78, %717 : vector<16x32xf32>
    %912 = arith.subf %911, %910 : vector<16x32xf32>
    %913 = arith.addf %79, %141 : vector<16x32xf32>
    %914 = arith.subf %913, %851 : vector<16x32xf32>
    %c1 = arith.constant 1 : index
    %915 = memref.load %arg10[%c1] : memref<2xf32, #tpu.memory_space<smem>>
    %c1_270 = arith.constant 1 : index
    %916 = memref.load %arg11[%c1_270] : memref<2xf32, #tpu.memory_space<smem>>
    %917 = arith.subf %851, %914 : vector<16x32xf32>
    %918 = arith.subf %910, %912 : vector<16x32xf32>
    %cst_271 = arith.constant 9.99999974E-6 : f32
    %919 = vector.broadcast %cst_271 : f32 to vector<16x32xf32>
    %cst_272 = arith.constant 1.000000e+02 : f32
    %920 = vector.broadcast %cst_272 : f32 to vector<16x32xf32>
    %921 = arith.addf %919, %920 : vector<16x32xf32>
    %cst_273 = arith.constant 5.000000e-01 : f32
    %922 = vector.broadcast %cst_273 : f32 to vector<16x32xf32>
    %923 = arith.mulf %922, %921 : vector<16x32xf32>
    %cst_274 = arith.constant 0.000000e+00 : f32
    %924 = vector.broadcast %cst_274 : f32 to vector<16x32xf32>
    %925 = arith.subf %924, %923 : vector<16x32xf32>
    %926 = math.exp %925 : vector<16x32xf32>
    %927 = arith.subf %923, %918 : vector<16x32xf32>
    %928 = vector.broadcast %915 : f32 to vector<16x32xf32>
    %929 = arith.mulf %928, %927 : vector<16x32xf32>
    %930 = arith.addf %1, %929 : vector<16x32xf32>
    %931 = arith.addf %930, %0 : vector<16x32xf32>
    %932 = arith.mulf %931, %926 : vector<16x32xf32>
    %933 = arith.subf %930, %932 : vector<16x32xf32>
    %cst_275 = arith.constant 0.000000e+00 : f32
    %934 = vector.broadcast %cst_275 : f32 to vector<16x32xf32>
    %935 = arith.cmpf olt, %933, %934 : vector<16x32xf32>
    %936 = arith.select %935, %923, %919 : vector<16x32xi1>, vector<16x32xf32>
    %cst_276 = arith.constant 0.000000e+00 : f32
    %937 = vector.broadcast %cst_276 : f32 to vector<16x32xf32>
    %938 = arith.cmpf ogt, %933, %937 : vector<16x32xf32>
    %939 = arith.select %938, %923, %920 : vector<16x32xi1>, vector<16x32xf32>
    %940 = arith.addf %936, %939 : vector<16x32xf32>
    %cst_277 = arith.constant 5.000000e-01 : f32
    %941 = vector.broadcast %cst_277 : f32 to vector<16x32xf32>
    %942 = arith.mulf %941, %940 : vector<16x32xf32>
    %cst_278 = arith.constant 0.000000e+00 : f32
    %943 = vector.broadcast %cst_278 : f32 to vector<16x32xf32>
    %944 = arith.subf %943, %942 : vector<16x32xf32>
    %945 = math.exp %944 : vector<16x32xf32>
    %946 = arith.subf %942, %918 : vector<16x32xf32>
    %947 = vector.broadcast %915 : f32 to vector<16x32xf32>
    %948 = arith.mulf %947, %946 : vector<16x32xf32>
    %949 = arith.addf %1, %948 : vector<16x32xf32>
    %950 = arith.addf %949, %0 : vector<16x32xf32>
    %951 = arith.mulf %950, %945 : vector<16x32xf32>
    %952 = arith.subf %949, %951 : vector<16x32xf32>
    %cst_279 = arith.constant 0.000000e+00 : f32
    %953 = vector.broadcast %cst_279 : f32 to vector<16x32xf32>
    %954 = arith.cmpf olt, %952, %953 : vector<16x32xf32>
    %955 = arith.select %954, %942, %936 : vector<16x32xi1>, vector<16x32xf32>
    %cst_280 = arith.constant 0.000000e+00 : f32
    %956 = vector.broadcast %cst_280 : f32 to vector<16x32xf32>
    %957 = arith.cmpf ogt, %952, %956 : vector<16x32xf32>
    %958 = arith.select %957, %942, %939 : vector<16x32xi1>, vector<16x32xf32>
    %959 = arith.addf %955, %958 : vector<16x32xf32>
    %cst_281 = arith.constant 5.000000e-01 : f32
    %960 = vector.broadcast %cst_281 : f32 to vector<16x32xf32>
    %961 = arith.mulf %960, %959 : vector<16x32xf32>
    %cst_282 = arith.constant 0.000000e+00 : f32
    %962 = vector.broadcast %cst_282 : f32 to vector<16x32xf32>
    %963 = arith.subf %962, %961 : vector<16x32xf32>
    %964 = math.exp %963 : vector<16x32xf32>
    %965 = arith.subf %961, %918 : vector<16x32xf32>
    %966 = vector.broadcast %915 : f32 to vector<16x32xf32>
    %967 = arith.mulf %966, %965 : vector<16x32xf32>
    %968 = arith.addf %1, %967 : vector<16x32xf32>
    %969 = arith.addf %968, %0 : vector<16x32xf32>
    %970 = arith.mulf %969, %964 : vector<16x32xf32>
    %971 = arith.subf %968, %970 : vector<16x32xf32>
    %cst_283 = arith.constant 0.000000e+00 : f32
    %972 = vector.broadcast %cst_283 : f32 to vector<16x32xf32>
    %973 = arith.cmpf olt, %971, %972 : vector<16x32xf32>
    %974 = arith.select %973, %961, %955 : vector<16x32xi1>, vector<16x32xf32>
    %cst_284 = arith.constant 0.000000e+00 : f32
    %975 = vector.broadcast %cst_284 : f32 to vector<16x32xf32>
    %976 = arith.cmpf ogt, %971, %975 : vector<16x32xf32>
    %977 = arith.select %976, %961, %958 : vector<16x32xi1>, vector<16x32xf32>
    %978 = arith.addf %974, %977 : vector<16x32xf32>
    %cst_285 = arith.constant 5.000000e-01 : f32
    %979 = vector.broadcast %cst_285 : f32 to vector<16x32xf32>
    %980 = arith.mulf %979, %978 : vector<16x32xf32>
    %cst_286 = arith.constant 0.000000e+00 : f32
    %981 = vector.broadcast %cst_286 : f32 to vector<16x32xf32>
    %982 = arith.subf %981, %980 : vector<16x32xf32>
    %983 = math.exp %982 : vector<16x32xf32>
    %984 = arith.subf %980, %918 : vector<16x32xf32>
    %985 = vector.broadcast %915 : f32 to vector<16x32xf32>
    %986 = arith.mulf %985, %984 : vector<16x32xf32>
    %987 = arith.addf %1, %986 : vector<16x32xf32>
    %988 = arith.addf %987, %0 : vector<16x32xf32>
    %989 = arith.mulf %988, %983 : vector<16x32xf32>
    %990 = arith.subf %987, %989 : vector<16x32xf32>
    %cst_287 = arith.constant 0.000000e+00 : f32
    %991 = vector.broadcast %cst_287 : f32 to vector<16x32xf32>
    %992 = arith.cmpf olt, %990, %991 : vector<16x32xf32>
    %993 = arith.select %992, %980, %974 : vector<16x32xi1>, vector<16x32xf32>
    %cst_288 = arith.constant 0.000000e+00 : f32
    %994 = vector.broadcast %cst_288 : f32 to vector<16x32xf32>
    %995 = arith.cmpf ogt, %990, %994 : vector<16x32xf32>
    %996 = arith.select %995, %980, %977 : vector<16x32xi1>, vector<16x32xf32>
    %997 = arith.addf %993, %996 : vector<16x32xf32>
    %cst_289 = arith.constant 5.000000e-01 : f32
    %998 = vector.broadcast %cst_289 : f32 to vector<16x32xf32>
    %999 = arith.mulf %998, %997 : vector<16x32xf32>
    %cst_290 = arith.constant 0.000000e+00 : f32
    %1000 = vector.broadcast %cst_290 : f32 to vector<16x32xf32>
    %1001 = arith.subf %1000, %999 : vector<16x32xf32>
    %1002 = math.exp %1001 : vector<16x32xf32>
    %1003 = arith.subf %999, %918 : vector<16x32xf32>
    %1004 = vector.broadcast %915 : f32 to vector<16x32xf32>
    %1005 = arith.mulf %1004, %1003 : vector<16x32xf32>
    %1006 = arith.addf %1, %1005 : vector<16x32xf32>
    %1007 = arith.addf %1006, %0 : vector<16x32xf32>
    %1008 = arith.mulf %1007, %1002 : vector<16x32xf32>
    %1009 = arith.subf %1006, %1008 : vector<16x32xf32>
    %cst_291 = arith.constant 0.000000e+00 : f32
    %1010 = vector.broadcast %cst_291 : f32 to vector<16x32xf32>
    %1011 = arith.cmpf olt, %1009, %1010 : vector<16x32xf32>
    %1012 = arith.select %1011, %999, %993 : vector<16x32xi1>, vector<16x32xf32>
    %cst_292 = arith.constant 0.000000e+00 : f32
    %1013 = vector.broadcast %cst_292 : f32 to vector<16x32xf32>
    %1014 = arith.cmpf ogt, %1009, %1013 : vector<16x32xf32>
    %1015 = arith.select %1014, %999, %996 : vector<16x32xi1>, vector<16x32xf32>
    %1016 = arith.addf %1012, %1015 : vector<16x32xf32>
    %cst_293 = arith.constant 5.000000e-01 : f32
    %1017 = vector.broadcast %cst_293 : f32 to vector<16x32xf32>
    %1018 = arith.mulf %1017, %1016 : vector<16x32xf32>
    %cst_294 = arith.constant 0.000000e+00 : f32
    %1019 = vector.broadcast %cst_294 : f32 to vector<16x32xf32>
    %1020 = arith.subf %1019, %1018 : vector<16x32xf32>
    %1021 = math.exp %1020 : vector<16x32xf32>
    %1022 = arith.subf %1018, %918 : vector<16x32xf32>
    %1023 = vector.broadcast %915 : f32 to vector<16x32xf32>
    %1024 = arith.mulf %1023, %1022 : vector<16x32xf32>
    %1025 = arith.addf %1, %1024 : vector<16x32xf32>
    %1026 = arith.addf %1025, %0 : vector<16x32xf32>
    %1027 = arith.mulf %1026, %1021 : vector<16x32xf32>
    %1028 = arith.subf %1025, %1027 : vector<16x32xf32>
    %cst_295 = arith.constant 0.000000e+00 : f32
    %1029 = vector.broadcast %cst_295 : f32 to vector<16x32xf32>
    %1030 = arith.cmpf olt, %1028, %1029 : vector<16x32xf32>
    %1031 = arith.select %1030, %1018, %1012 : vector<16x32xi1>, vector<16x32xf32>
    %cst_296 = arith.constant 0.000000e+00 : f32
    %1032 = vector.broadcast %cst_296 : f32 to vector<16x32xf32>
    %1033 = arith.cmpf ogt, %1028, %1032 : vector<16x32xf32>
    %1034 = arith.select %1033, %1018, %1015 : vector<16x32xi1>, vector<16x32xf32>
    %1035 = arith.addf %1031, %1034 : vector<16x32xf32>
    %cst_297 = arith.constant 5.000000e-01 : f32
    %1036 = vector.broadcast %cst_297 : f32 to vector<16x32xf32>
    %1037 = arith.mulf %1036, %1035 : vector<16x32xf32>
    %cst_298 = arith.constant 0.000000e+00 : f32
    %1038 = vector.broadcast %cst_298 : f32 to vector<16x32xf32>
    %1039 = arith.subf %1038, %1037 : vector<16x32xf32>
    %1040 = math.exp %1039 : vector<16x32xf32>
    %1041 = arith.subf %1037, %918 : vector<16x32xf32>
    %1042 = vector.broadcast %915 : f32 to vector<16x32xf32>
    %1043 = arith.mulf %1042, %1041 : vector<16x32xf32>
    %1044 = arith.addf %1, %1043 : vector<16x32xf32>
    %1045 = arith.addf %1044, %0 : vector<16x32xf32>
    %1046 = arith.mulf %1045, %1040 : vector<16x32xf32>
    %1047 = arith.subf %1044, %1046 : vector<16x32xf32>
    %cst_299 = arith.constant 0.000000e+00 : f32
    %1048 = vector.broadcast %cst_299 : f32 to vector<16x32xf32>
    %1049 = arith.cmpf olt, %1047, %1048 : vector<16x32xf32>
    %1050 = arith.select %1049, %1037, %1031 : vector<16x32xi1>, vector<16x32xf32>
    %cst_300 = arith.constant 0.000000e+00 : f32
    %1051 = vector.broadcast %cst_300 : f32 to vector<16x32xf32>
    %1052 = arith.cmpf ogt, %1047, %1051 : vector<16x32xf32>
    %1053 = arith.select %1052, %1037, %1034 : vector<16x32xi1>, vector<16x32xf32>
    %1054 = arith.addf %1050, %1053 : vector<16x32xf32>
    %cst_301 = arith.constant 5.000000e-01 : f32
    %1055 = vector.broadcast %cst_301 : f32 to vector<16x32xf32>
    %1056 = arith.mulf %1055, %1054 : vector<16x32xf32>
    %cst_302 = arith.constant 0.000000e+00 : f32
    %1057 = vector.broadcast %cst_302 : f32 to vector<16x32xf32>
    %1058 = arith.subf %1057, %1056 : vector<16x32xf32>
    %1059 = math.exp %1058 : vector<16x32xf32>
    %1060 = arith.subf %1056, %918 : vector<16x32xf32>
    %1061 = vector.broadcast %915 : f32 to vector<16x32xf32>
    %1062 = arith.mulf %1061, %1060 : vector<16x32xf32>
    %1063 = arith.addf %1, %1062 : vector<16x32xf32>
    %1064 = arith.addf %1063, %0 : vector<16x32xf32>
    %1065 = arith.mulf %1064, %1059 : vector<16x32xf32>
    %1066 = arith.subf %1063, %1065 : vector<16x32xf32>
    %cst_303 = arith.constant 0.000000e+00 : f32
    %1067 = vector.broadcast %cst_303 : f32 to vector<16x32xf32>
    %1068 = arith.cmpf olt, %1066, %1067 : vector<16x32xf32>
    %1069 = arith.select %1068, %1056, %1050 : vector<16x32xi1>, vector<16x32xf32>
    %cst_304 = arith.constant 0.000000e+00 : f32
    %1070 = vector.broadcast %cst_304 : f32 to vector<16x32xf32>
    %1071 = arith.cmpf ogt, %1066, %1070 : vector<16x32xf32>
    %1072 = arith.select %1071, %1056, %1053 : vector<16x32xi1>, vector<16x32xf32>
    %1073 = arith.addf %1069, %1072 : vector<16x32xf32>
    %cst_305 = arith.constant 5.000000e-01 : f32
    %1074 = vector.broadcast %cst_305 : f32 to vector<16x32xf32>
    %1075 = arith.mulf %1074, %1073 : vector<16x32xf32>
    %cst_306 = arith.constant 0.000000e+00 : f32
    %1076 = vector.broadcast %cst_306 : f32 to vector<16x32xf32>
    %1077 = arith.subf %1076, %1075 : vector<16x32xf32>
    %1078 = math.exp %1077 : vector<16x32xf32>
    %1079 = arith.subf %1075, %918 : vector<16x32xf32>
    %1080 = vector.broadcast %915 : f32 to vector<16x32xf32>
    %1081 = arith.mulf %1080, %1079 : vector<16x32xf32>
    %1082 = arith.addf %1, %1081 : vector<16x32xf32>
    %1083 = arith.addf %1082, %0 : vector<16x32xf32>
    %1084 = arith.mulf %1083, %1078 : vector<16x32xf32>
    %1085 = arith.subf %1082, %1084 : vector<16x32xf32>
    %cst_307 = arith.constant 0.000000e+00 : f32
    %1086 = vector.broadcast %cst_307 : f32 to vector<16x32xf32>
    %1087 = arith.cmpf olt, %1085, %1086 : vector<16x32xf32>
    %1088 = arith.select %1087, %1075, %1069 : vector<16x32xi1>, vector<16x32xf32>
    %cst_308 = arith.constant 0.000000e+00 : f32
    %1089 = vector.broadcast %cst_308 : f32 to vector<16x32xf32>
    %1090 = arith.cmpf ogt, %1085, %1089 : vector<16x32xf32>
    %1091 = arith.select %1090, %1075, %1072 : vector<16x32xi1>, vector<16x32xf32>
    %1092 = arith.addf %1088, %1091 : vector<16x32xf32>
    %cst_309 = arith.constant 5.000000e-01 : f32
    %1093 = vector.broadcast %cst_309 : f32 to vector<16x32xf32>
    %1094 = arith.mulf %1093, %1092 : vector<16x32xf32>
    %cst_310 = arith.constant 0.000000e+00 : f32
    %1095 = vector.broadcast %cst_310 : f32 to vector<16x32xf32>
    %1096 = arith.subf %1095, %1094 : vector<16x32xf32>
    %1097 = math.exp %1096 : vector<16x32xf32>
    %1098 = arith.subf %1094, %918 : vector<16x32xf32>
    %1099 = vector.broadcast %915 : f32 to vector<16x32xf32>
    %1100 = arith.mulf %1099, %1098 : vector<16x32xf32>
    %1101 = arith.addf %1, %1100 : vector<16x32xf32>
    %1102 = arith.addf %1101, %0 : vector<16x32xf32>
    %1103 = arith.mulf %1102, %1097 : vector<16x32xf32>
    %1104 = arith.subf %1101, %1103 : vector<16x32xf32>
    %cst_311 = arith.constant 0.000000e+00 : f32
    %1105 = vector.broadcast %cst_311 : f32 to vector<16x32xf32>
    %1106 = arith.cmpf olt, %1104, %1105 : vector<16x32xf32>
    %1107 = arith.select %1106, %1094, %1088 : vector<16x32xi1>, vector<16x32xf32>
    %cst_312 = arith.constant 0.000000e+00 : f32
    %1108 = vector.broadcast %cst_312 : f32 to vector<16x32xf32>
    %1109 = arith.cmpf ogt, %1104, %1108 : vector<16x32xf32>
    %1110 = arith.select %1109, %1094, %1091 : vector<16x32xi1>, vector<16x32xf32>
    %1111 = arith.addf %1107, %1110 : vector<16x32xf32>
    %cst_313 = arith.constant 5.000000e-01 : f32
    %1112 = vector.broadcast %cst_313 : f32 to vector<16x32xf32>
    %1113 = arith.mulf %1112, %1111 : vector<16x32xf32>
    %cst_314 = arith.constant 0.000000e+00 : f32
    %1114 = vector.broadcast %cst_314 : f32 to vector<16x32xf32>
    %1115 = arith.subf %1114, %1113 : vector<16x32xf32>
    %1116 = math.exp %1115 : vector<16x32xf32>
    %1117 = arith.subf %1113, %918 : vector<16x32xf32>
    %1118 = vector.broadcast %915 : f32 to vector<16x32xf32>
    %1119 = arith.mulf %1118, %1117 : vector<16x32xf32>
    %1120 = arith.addf %1, %1119 : vector<16x32xf32>
    %1121 = arith.addf %1120, %0 : vector<16x32xf32>
    %1122 = arith.mulf %1121, %1116 : vector<16x32xf32>
    %1123 = arith.subf %1120, %1122 : vector<16x32xf32>
    %cst_315 = arith.constant 0.000000e+00 : f32
    %1124 = vector.broadcast %cst_315 : f32 to vector<16x32xf32>
    %1125 = arith.cmpf olt, %1123, %1124 : vector<16x32xf32>
    %1126 = arith.select %1125, %1113, %1107 : vector<16x32xi1>, vector<16x32xf32>
    %cst_316 = arith.constant 0.000000e+00 : f32
    %1127 = vector.broadcast %cst_316 : f32 to vector<16x32xf32>
    %1128 = arith.cmpf ogt, %1123, %1127 : vector<16x32xf32>
    %1129 = arith.select %1128, %1113, %1110 : vector<16x32xi1>, vector<16x32xf32>
    %1130 = arith.addf %1126, %1129 : vector<16x32xf32>
    %cst_317 = arith.constant 5.000000e-01 : f32
    %1131 = vector.broadcast %cst_317 : f32 to vector<16x32xf32>
    %1132 = arith.mulf %1131, %1130 : vector<16x32xf32>
    %cst_318 = arith.constant 0.000000e+00 : f32
    %1133 = vector.broadcast %cst_318 : f32 to vector<16x32xf32>
    %1134 = arith.subf %1133, %1132 : vector<16x32xf32>
    %1135 = math.exp %1134 : vector<16x32xf32>
    %1136 = arith.subf %1132, %918 : vector<16x32xf32>
    %1137 = vector.broadcast %915 : f32 to vector<16x32xf32>
    %1138 = arith.mulf %1137, %1136 : vector<16x32xf32>
    %1139 = arith.addf %1, %1138 : vector<16x32xf32>
    %1140 = arith.addf %1139, %0 : vector<16x32xf32>
    %1141 = arith.mulf %1140, %1135 : vector<16x32xf32>
    %1142 = arith.subf %1139, %1141 : vector<16x32xf32>
    %cst_319 = arith.constant 0.000000e+00 : f32
    %1143 = vector.broadcast %cst_319 : f32 to vector<16x32xf32>
    %1144 = arith.cmpf olt, %1142, %1143 : vector<16x32xf32>
    %1145 = arith.select %1144, %1132, %1126 : vector<16x32xi1>, vector<16x32xf32>
    %cst_320 = arith.constant 0.000000e+00 : f32
    %1146 = vector.broadcast %cst_320 : f32 to vector<16x32xf32>
    %1147 = arith.cmpf ogt, %1142, %1146 : vector<16x32xf32>
    %1148 = arith.select %1147, %1132, %1129 : vector<16x32xi1>, vector<16x32xf32>
    %1149 = arith.addf %1145, %1148 : vector<16x32xf32>
    %cst_321 = arith.constant 5.000000e-01 : f32
    %1150 = vector.broadcast %cst_321 : f32 to vector<16x32xf32>
    %1151 = arith.mulf %1150, %1149 : vector<16x32xf32>
    %cst_322 = arith.constant 0.000000e+00 : f32
    %1152 = vector.broadcast %cst_322 : f32 to vector<16x32xf32>
    %1153 = arith.subf %1152, %1151 : vector<16x32xf32>
    %1154 = math.exp %1153 : vector<16x32xf32>
    %1155 = arith.subf %1151, %918 : vector<16x32xf32>
    %1156 = vector.broadcast %915 : f32 to vector<16x32xf32>
    %1157 = arith.mulf %1156, %1155 : vector<16x32xf32>
    %1158 = arith.addf %1, %1157 : vector<16x32xf32>
    %1159 = arith.addf %1158, %0 : vector<16x32xf32>
    %1160 = arith.mulf %1159, %1154 : vector<16x32xf32>
    %1161 = arith.subf %1158, %1160 : vector<16x32xf32>
    %cst_323 = arith.constant 0.000000e+00 : f32
    %1162 = vector.broadcast %cst_323 : f32 to vector<16x32xf32>
    %1163 = arith.cmpf olt, %1161, %1162 : vector<16x32xf32>
    %1164 = arith.select %1163, %1151, %1145 : vector<16x32xi1>, vector<16x32xf32>
    %cst_324 = arith.constant 0.000000e+00 : f32
    %1165 = vector.broadcast %cst_324 : f32 to vector<16x32xf32>
    %1166 = arith.cmpf ogt, %1161, %1165 : vector<16x32xf32>
    %1167 = arith.select %1166, %1151, %1148 : vector<16x32xi1>, vector<16x32xf32>
    %1168 = arith.addf %1164, %1167 : vector<16x32xf32>
    %cst_325 = arith.constant 5.000000e-01 : f32
    %1169 = vector.broadcast %cst_325 : f32 to vector<16x32xf32>
    %1170 = arith.mulf %1169, %1168 : vector<16x32xf32>
    %cst_326 = arith.constant 0.000000e+00 : f32
    %1171 = vector.broadcast %cst_326 : f32 to vector<16x32xf32>
    %1172 = arith.subf %1171, %1170 : vector<16x32xf32>
    %1173 = math.exp %1172 : vector<16x32xf32>
    %1174 = arith.subf %1170, %918 : vector<16x32xf32>
    %1175 = vector.broadcast %915 : f32 to vector<16x32xf32>
    %1176 = arith.mulf %1175, %1174 : vector<16x32xf32>
    %1177 = arith.addf %1, %1176 : vector<16x32xf32>
    %1178 = arith.addf %1177, %0 : vector<16x32xf32>
    %1179 = arith.mulf %1178, %1173 : vector<16x32xf32>
    %1180 = arith.subf %1177, %1179 : vector<16x32xf32>
    %cst_327 = arith.constant 0.000000e+00 : f32
    %1181 = vector.broadcast %cst_327 : f32 to vector<16x32xf32>
    %1182 = arith.cmpf olt, %1180, %1181 : vector<16x32xf32>
    %1183 = arith.select %1182, %1170, %1164 : vector<16x32xi1>, vector<16x32xf32>
    %cst_328 = arith.constant 0.000000e+00 : f32
    %1184 = vector.broadcast %cst_328 : f32 to vector<16x32xf32>
    %1185 = arith.cmpf ogt, %1180, %1184 : vector<16x32xf32>
    %1186 = arith.select %1185, %1170, %1167 : vector<16x32xi1>, vector<16x32xf32>
    %1187 = arith.addf %1183, %1186 : vector<16x32xf32>
    %cst_329 = arith.constant 5.000000e-01 : f32
    %1188 = vector.broadcast %cst_329 : f32 to vector<16x32xf32>
    %1189 = arith.mulf %1188, %1187 : vector<16x32xf32>
    %cst_330 = arith.constant 0.000000e+00 : f32
    %1190 = vector.broadcast %cst_330 : f32 to vector<16x32xf32>
    %1191 = arith.subf %1190, %1189 : vector<16x32xf32>
    %1192 = math.exp %1191 : vector<16x32xf32>
    %1193 = arith.subf %1189, %918 : vector<16x32xf32>
    %1194 = vector.broadcast %915 : f32 to vector<16x32xf32>
    %1195 = arith.mulf %1194, %1193 : vector<16x32xf32>
    %1196 = arith.addf %1, %1195 : vector<16x32xf32>
    %1197 = arith.addf %1196, %0 : vector<16x32xf32>
    %1198 = arith.mulf %1197, %1192 : vector<16x32xf32>
    %1199 = arith.subf %1196, %1198 : vector<16x32xf32>
    %cst_331 = arith.constant 0.000000e+00 : f32
    %1200 = vector.broadcast %cst_331 : f32 to vector<16x32xf32>
    %1201 = arith.cmpf olt, %1199, %1200 : vector<16x32xf32>
    %1202 = arith.select %1201, %1189, %1183 : vector<16x32xi1>, vector<16x32xf32>
    %cst_332 = arith.constant 0.000000e+00 : f32
    %1203 = vector.broadcast %cst_332 : f32 to vector<16x32xf32>
    %1204 = arith.cmpf ogt, %1199, %1203 : vector<16x32xf32>
    %1205 = arith.select %1204, %1189, %1186 : vector<16x32xi1>, vector<16x32xf32>
    %1206 = arith.addf %1202, %1205 : vector<16x32xf32>
    %cst_333 = arith.constant 5.000000e-01 : f32
    %1207 = vector.broadcast %cst_333 : f32 to vector<16x32xf32>
    %1208 = arith.mulf %1207, %1206 : vector<16x32xf32>
    %cst_334 = arith.constant 0.000000e+00 : f32
    %1209 = vector.broadcast %cst_334 : f32 to vector<16x32xf32>
    %1210 = arith.subf %1209, %1208 : vector<16x32xf32>
    %1211 = math.exp %1210 : vector<16x32xf32>
    %1212 = arith.subf %1208, %918 : vector<16x32xf32>
    %1213 = vector.broadcast %915 : f32 to vector<16x32xf32>
    %1214 = arith.mulf %1213, %1212 : vector<16x32xf32>
    %1215 = arith.addf %1, %1214 : vector<16x32xf32>
    %1216 = arith.addf %1215, %0 : vector<16x32xf32>
    %1217 = arith.mulf %1216, %1211 : vector<16x32xf32>
    %1218 = arith.subf %1215, %1217 : vector<16x32xf32>
    %cst_335 = arith.constant 0.000000e+00 : f32
    %1219 = vector.broadcast %cst_335 : f32 to vector<16x32xf32>
    %1220 = arith.cmpf olt, %1218, %1219 : vector<16x32xf32>
    %1221 = arith.select %1220, %1208, %1202 : vector<16x32xi1>, vector<16x32xf32>
    %cst_336 = arith.constant 0.000000e+00 : f32
    %1222 = vector.broadcast %cst_336 : f32 to vector<16x32xf32>
    %1223 = arith.cmpf ogt, %1218, %1222 : vector<16x32xf32>
    %1224 = arith.select %1223, %1208, %1205 : vector<16x32xi1>, vector<16x32xf32>
    %1225 = arith.addf %1221, %1224 : vector<16x32xf32>
    %cst_337 = arith.constant 5.000000e-01 : f32
    %1226 = vector.broadcast %cst_337 : f32 to vector<16x32xf32>
    %1227 = arith.mulf %1226, %1225 : vector<16x32xf32>
    %cst_338 = arith.constant 0.000000e+00 : f32
    %1228 = vector.broadcast %cst_338 : f32 to vector<16x32xf32>
    %1229 = arith.subf %1228, %1227 : vector<16x32xf32>
    %1230 = math.exp %1229 : vector<16x32xf32>
    %1231 = arith.subf %1227, %918 : vector<16x32xf32>
    %1232 = vector.broadcast %915 : f32 to vector<16x32xf32>
    %1233 = arith.mulf %1232, %1231 : vector<16x32xf32>
    %1234 = arith.addf %1, %1233 : vector<16x32xf32>
    %1235 = arith.addf %1234, %0 : vector<16x32xf32>
    %1236 = arith.mulf %1235, %1230 : vector<16x32xf32>
    %1237 = arith.subf %1234, %1236 : vector<16x32xf32>
    %cst_339 = arith.constant 0.000000e+00 : f32
    %1238 = vector.broadcast %cst_339 : f32 to vector<16x32xf32>
    %1239 = arith.cmpf olt, %1237, %1238 : vector<16x32xf32>
    %1240 = arith.select %1239, %1227, %1221 : vector<16x32xi1>, vector<16x32xf32>
    %cst_340 = arith.constant 0.000000e+00 : f32
    %1241 = vector.broadcast %cst_340 : f32 to vector<16x32xf32>
    %1242 = arith.cmpf ogt, %1237, %1241 : vector<16x32xf32>
    %1243 = arith.select %1242, %1227, %1224 : vector<16x32xi1>, vector<16x32xf32>
    %1244 = arith.addf %1240, %1243 : vector<16x32xf32>
    %cst_341 = arith.constant 5.000000e-01 : f32
    %1245 = vector.broadcast %cst_341 : f32 to vector<16x32xf32>
    %1246 = arith.mulf %1245, %1244 : vector<16x32xf32>
    %cst_342 = arith.constant 0.000000e+00 : f32
    %1247 = vector.broadcast %cst_342 : f32 to vector<16x32xf32>
    %1248 = arith.subf %1247, %1246 : vector<16x32xf32>
    %1249 = math.exp %1248 : vector<16x32xf32>
    %1250 = arith.subf %1246, %918 : vector<16x32xf32>
    %1251 = vector.broadcast %915 : f32 to vector<16x32xf32>
    %1252 = arith.mulf %1251, %1250 : vector<16x32xf32>
    %1253 = arith.addf %1, %1252 : vector<16x32xf32>
    %1254 = arith.addf %1253, %0 : vector<16x32xf32>
    %1255 = arith.mulf %1254, %1249 : vector<16x32xf32>
    %1256 = arith.subf %1253, %1255 : vector<16x32xf32>
    %cst_343 = arith.constant 0.000000e+00 : f32
    %1257 = vector.broadcast %cst_343 : f32 to vector<16x32xf32>
    %1258 = arith.cmpf olt, %1256, %1257 : vector<16x32xf32>
    %1259 = arith.select %1258, %1246, %1240 : vector<16x32xi1>, vector<16x32xf32>
    %cst_344 = arith.constant 0.000000e+00 : f32
    %1260 = vector.broadcast %cst_344 : f32 to vector<16x32xf32>
    %1261 = arith.cmpf ogt, %1256, %1260 : vector<16x32xf32>
    %1262 = arith.select %1261, %1246, %1243 : vector<16x32xi1>, vector<16x32xf32>
    %1263 = arith.addf %1259, %1262 : vector<16x32xf32>
    %cst_345 = arith.constant 5.000000e-01 : f32
    %1264 = vector.broadcast %cst_345 : f32 to vector<16x32xf32>
    %1265 = arith.mulf %1264, %1263 : vector<16x32xf32>
    %cst_346 = arith.constant 0.000000e+00 : f32
    %1266 = vector.broadcast %cst_346 : f32 to vector<16x32xf32>
    %1267 = arith.subf %1266, %1265 : vector<16x32xf32>
    %1268 = math.exp %1267 : vector<16x32xf32>
    %1269 = arith.subf %1265, %918 : vector<16x32xf32>
    %1270 = vector.broadcast %915 : f32 to vector<16x32xf32>
    %1271 = arith.mulf %1270, %1269 : vector<16x32xf32>
    %1272 = arith.addf %1, %1271 : vector<16x32xf32>
    %1273 = arith.addf %1272, %0 : vector<16x32xf32>
    %1274 = arith.mulf %1273, %1268 : vector<16x32xf32>
    %1275 = arith.subf %1272, %1274 : vector<16x32xf32>
    %cst_347 = arith.constant 0.000000e+00 : f32
    %1276 = vector.broadcast %cst_347 : f32 to vector<16x32xf32>
    %1277 = arith.cmpf olt, %1275, %1276 : vector<16x32xf32>
    %1278 = arith.select %1277, %1265, %1259 : vector<16x32xi1>, vector<16x32xf32>
    %cst_348 = arith.constant 0.000000e+00 : f32
    %1279 = vector.broadcast %cst_348 : f32 to vector<16x32xf32>
    %1280 = arith.cmpf ogt, %1275, %1279 : vector<16x32xf32>
    %1281 = arith.select %1280, %1265, %1262 : vector<16x32xi1>, vector<16x32xf32>
    %1282 = arith.addf %1278, %1281 : vector<16x32xf32>
    %cst_349 = arith.constant 5.000000e-01 : f32
    %1283 = vector.broadcast %cst_349 : f32 to vector<16x32xf32>
    %1284 = arith.mulf %1283, %1282 : vector<16x32xf32>
    %cst_350 = arith.constant 0.000000e+00 : f32
    %1285 = vector.broadcast %cst_350 : f32 to vector<16x32xf32>
    %1286 = arith.subf %1285, %1284 : vector<16x32xf32>
    %1287 = math.exp %1286 : vector<16x32xf32>
    %1288 = arith.subf %1284, %918 : vector<16x32xf32>
    %1289 = vector.broadcast %915 : f32 to vector<16x32xf32>
    %1290 = arith.mulf %1289, %1288 : vector<16x32xf32>
    %1291 = arith.addf %1, %1290 : vector<16x32xf32>
    %1292 = arith.addf %1291, %0 : vector<16x32xf32>
    %1293 = arith.mulf %1292, %1287 : vector<16x32xf32>
    %1294 = arith.subf %1291, %1293 : vector<16x32xf32>
    %cst_351 = arith.constant 0.000000e+00 : f32
    %1295 = vector.broadcast %cst_351 : f32 to vector<16x32xf32>
    %1296 = arith.cmpf olt, %1294, %1295 : vector<16x32xf32>
    %1297 = arith.select %1296, %1284, %1278 : vector<16x32xi1>, vector<16x32xf32>
    %cst_352 = arith.constant 0.000000e+00 : f32
    %1298 = vector.broadcast %cst_352 : f32 to vector<16x32xf32>
    %1299 = arith.cmpf ogt, %1294, %1298 : vector<16x32xf32>
    %1300 = arith.select %1299, %1284, %1281 : vector<16x32xi1>, vector<16x32xf32>
    %1301 = arith.addf %1297, %1300 : vector<16x32xf32>
    %cst_353 = arith.constant 5.000000e-01 : f32
    %1302 = vector.broadcast %cst_353 : f32 to vector<16x32xf32>
    %1303 = arith.mulf %1302, %1301 : vector<16x32xf32>
    %cst_354 = arith.constant 0.000000e+00 : f32
    %1304 = vector.broadcast %cst_354 : f32 to vector<16x32xf32>
    %1305 = arith.subf %1304, %1303 : vector<16x32xf32>
    %1306 = math.exp %1305 : vector<16x32xf32>
    %1307 = arith.subf %1303, %918 : vector<16x32xf32>
    %1308 = vector.broadcast %915 : f32 to vector<16x32xf32>
    %1309 = arith.mulf %1308, %1307 : vector<16x32xf32>
    %1310 = arith.addf %1, %1309 : vector<16x32xf32>
    %1311 = arith.addf %1310, %0 : vector<16x32xf32>
    %1312 = arith.mulf %1311, %1306 : vector<16x32xf32>
    %1313 = arith.subf %1310, %1312 : vector<16x32xf32>
    %cst_355 = arith.constant 0.000000e+00 : f32
    %1314 = vector.broadcast %cst_355 : f32 to vector<16x32xf32>
    %1315 = arith.cmpf olt, %1313, %1314 : vector<16x32xf32>
    %1316 = arith.select %1315, %1303, %1297 : vector<16x32xi1>, vector<16x32xf32>
    %cst_356 = arith.constant 0.000000e+00 : f32
    %1317 = vector.broadcast %cst_356 : f32 to vector<16x32xf32>
    %1318 = arith.cmpf ogt, %1313, %1317 : vector<16x32xf32>
    %1319 = arith.select %1318, %1303, %1300 : vector<16x32xi1>, vector<16x32xf32>
    %1320 = arith.addf %1316, %1319 : vector<16x32xf32>
    %cst_357 = arith.constant 5.000000e-01 : f32
    %1321 = vector.broadcast %cst_357 : f32 to vector<16x32xf32>
    %1322 = arith.mulf %1321, %1320 : vector<16x32xf32>
    %cst_358 = arith.constant 0.000000e+00 : f32
    %1323 = vector.broadcast %cst_358 : f32 to vector<16x32xf32>
    %1324 = arith.subf %1323, %1322 : vector<16x32xf32>
    %1325 = math.exp %1324 : vector<16x32xf32>
    %1326 = arith.subf %1322, %918 : vector<16x32xf32>
    %1327 = vector.broadcast %915 : f32 to vector<16x32xf32>
    %1328 = arith.mulf %1327, %1326 : vector<16x32xf32>
    %1329 = arith.addf %1, %1328 : vector<16x32xf32>
    %1330 = arith.addf %1329, %0 : vector<16x32xf32>
    %1331 = arith.mulf %1330, %1325 : vector<16x32xf32>
    %1332 = arith.subf %1329, %1331 : vector<16x32xf32>
    %cst_359 = arith.constant 0.000000e+00 : f32
    %1333 = vector.broadcast %cst_359 : f32 to vector<16x32xf32>
    %1334 = arith.cmpf olt, %1332, %1333 : vector<16x32xf32>
    %1335 = arith.select %1334, %1322, %1316 : vector<16x32xi1>, vector<16x32xf32>
    %cst_360 = arith.constant 0.000000e+00 : f32
    %1336 = vector.broadcast %cst_360 : f32 to vector<16x32xf32>
    %1337 = arith.cmpf ogt, %1332, %1336 : vector<16x32xf32>
    %1338 = arith.select %1337, %1322, %1319 : vector<16x32xi1>, vector<16x32xf32>
    %1339 = arith.addf %1335, %1338 : vector<16x32xf32>
    %cst_361 = arith.constant 5.000000e-01 : f32
    %1340 = vector.broadcast %cst_361 : f32 to vector<16x32xf32>
    %1341 = arith.mulf %1340, %1339 : vector<16x32xf32>
    %cst_362 = arith.constant 0.000000e+00 : f32
    %1342 = vector.broadcast %cst_362 : f32 to vector<16x32xf32>
    %1343 = arith.subf %1342, %1341 : vector<16x32xf32>
    %1344 = math.exp %1343 : vector<16x32xf32>
    %1345 = arith.subf %1341, %918 : vector<16x32xf32>
    %1346 = vector.broadcast %915 : f32 to vector<16x32xf32>
    %1347 = arith.mulf %1346, %1345 : vector<16x32xf32>
    %1348 = arith.addf %1, %1347 : vector<16x32xf32>
    %1349 = arith.addf %1348, %0 : vector<16x32xf32>
    %1350 = arith.mulf %1349, %1344 : vector<16x32xf32>
    %1351 = arith.subf %1348, %1350 : vector<16x32xf32>
    %cst_363 = arith.constant 0.000000e+00 : f32
    %1352 = vector.broadcast %cst_363 : f32 to vector<16x32xf32>
    %1353 = arith.cmpf olt, %1351, %1352 : vector<16x32xf32>
    %1354 = arith.select %1353, %1341, %1335 : vector<16x32xi1>, vector<16x32xf32>
    %cst_364 = arith.constant 0.000000e+00 : f32
    %1355 = vector.broadcast %cst_364 : f32 to vector<16x32xf32>
    %1356 = arith.cmpf ogt, %1351, %1355 : vector<16x32xf32>
    %1357 = arith.select %1356, %1341, %1338 : vector<16x32xi1>, vector<16x32xf32>
    %1358 = arith.addf %1354, %1357 : vector<16x32xf32>
    %cst_365 = arith.constant 5.000000e-01 : f32
    %1359 = vector.broadcast %cst_365 : f32 to vector<16x32xf32>
    %1360 = arith.mulf %1359, %1358 : vector<16x32xf32>
    %cst_366 = arith.constant 0.000000e+00 : f32
    %1361 = vector.broadcast %cst_366 : f32 to vector<16x32xf32>
    %1362 = arith.subf %1361, %1360 : vector<16x32xf32>
    %1363 = math.exp %1362 : vector<16x32xf32>
    %1364 = arith.subf %1360, %918 : vector<16x32xf32>
    %1365 = vector.broadcast %915 : f32 to vector<16x32xf32>
    %1366 = arith.mulf %1365, %1364 : vector<16x32xf32>
    %1367 = arith.addf %1, %1366 : vector<16x32xf32>
    %1368 = arith.addf %1367, %0 : vector<16x32xf32>
    %1369 = arith.mulf %1368, %1363 : vector<16x32xf32>
    %1370 = arith.subf %1367, %1369 : vector<16x32xf32>
    %cst_367 = arith.constant 0.000000e+00 : f32
    %1371 = vector.broadcast %cst_367 : f32 to vector<16x32xf32>
    %1372 = arith.cmpf olt, %1370, %1371 : vector<16x32xf32>
    %1373 = arith.select %1372, %1360, %1354 : vector<16x32xi1>, vector<16x32xf32>
    %cst_368 = arith.constant 0.000000e+00 : f32
    %1374 = vector.broadcast %cst_368 : f32 to vector<16x32xf32>
    %1375 = arith.cmpf ogt, %1370, %1374 : vector<16x32xf32>
    %1376 = arith.select %1375, %1360, %1357 : vector<16x32xi1>, vector<16x32xf32>
    %1377 = arith.addf %1373, %1376 : vector<16x32xf32>
    %cst_369 = arith.constant 5.000000e-01 : f32
    %1378 = vector.broadcast %cst_369 : f32 to vector<16x32xf32>
    %1379 = arith.mulf %1378, %1377 : vector<16x32xf32>
    %cst_370 = arith.constant 0.000000e+00 : f32
    %1380 = vector.broadcast %cst_370 : f32 to vector<16x32xf32>
    %1381 = arith.subf %1380, %1379 : vector<16x32xf32>
    %1382 = math.exp %1381 : vector<16x32xf32>
    %1383 = arith.subf %1379, %918 : vector<16x32xf32>
    %1384 = vector.broadcast %915 : f32 to vector<16x32xf32>
    %1385 = arith.mulf %1384, %1383 : vector<16x32xf32>
    %1386 = arith.addf %1, %1385 : vector<16x32xf32>
    %1387 = arith.addf %1386, %0 : vector<16x32xf32>
    %1388 = arith.mulf %1387, %1382 : vector<16x32xf32>
    %1389 = arith.subf %1386, %1388 : vector<16x32xf32>
    %cst_371 = arith.constant 0.000000e+00 : f32
    %1390 = vector.broadcast %cst_371 : f32 to vector<16x32xf32>
    %1391 = arith.cmpf olt, %1389, %1390 : vector<16x32xf32>
    %1392 = arith.select %1391, %1379, %1373 : vector<16x32xi1>, vector<16x32xf32>
    %cst_372 = arith.constant 0.000000e+00 : f32
    %1393 = vector.broadcast %cst_372 : f32 to vector<16x32xf32>
    %1394 = arith.cmpf ogt, %1389, %1393 : vector<16x32xf32>
    %1395 = arith.select %1394, %1379, %1376 : vector<16x32xi1>, vector<16x32xf32>
    %1396 = arith.addf %1392, %1395 : vector<16x32xf32>
    %cst_373 = arith.constant 5.000000e-01 : f32
    %1397 = vector.broadcast %cst_373 : f32 to vector<16x32xf32>
    %1398 = arith.mulf %1397, %1396 : vector<16x32xf32>
    %cst_374 = arith.constant 0.000000e+00 : f32
    %1399 = vector.broadcast %cst_374 : f32 to vector<16x32xf32>
    %1400 = arith.subf %1399, %1398 : vector<16x32xf32>
    %1401 = math.exp %1400 : vector<16x32xf32>
    %1402 = arith.subf %1398, %918 : vector<16x32xf32>
    %1403 = vector.broadcast %915 : f32 to vector<16x32xf32>
    %1404 = arith.mulf %1403, %1402 : vector<16x32xf32>
    %1405 = arith.addf %1, %1404 : vector<16x32xf32>
    %1406 = arith.addf %1405, %0 : vector<16x32xf32>
    %1407 = arith.mulf %1406, %1401 : vector<16x32xf32>
    %1408 = arith.subf %1405, %1407 : vector<16x32xf32>
    %cst_375 = arith.constant 0.000000e+00 : f32
    %1409 = vector.broadcast %cst_375 : f32 to vector<16x32xf32>
    %1410 = arith.cmpf olt, %1408, %1409 : vector<16x32xf32>
    %1411 = arith.select %1410, %1398, %1392 : vector<16x32xi1>, vector<16x32xf32>
    %cst_376 = arith.constant 0.000000e+00 : f32
    %1412 = vector.broadcast %cst_376 : f32 to vector<16x32xf32>
    %1413 = arith.cmpf ogt, %1408, %1412 : vector<16x32xf32>
    %1414 = arith.select %1413, %1398, %1395 : vector<16x32xi1>, vector<16x32xf32>
    %1415 = arith.addf %1411, %1414 : vector<16x32xf32>
    %cst_377 = arith.constant 5.000000e-01 : f32
    %1416 = vector.broadcast %cst_377 : f32 to vector<16x32xf32>
    %1417 = arith.mulf %1416, %1415 : vector<16x32xf32>
    %cst_378 = arith.constant 0.000000e+00 : f32
    %1418 = vector.broadcast %cst_378 : f32 to vector<16x32xf32>
    %1419 = arith.subf %1418, %1417 : vector<16x32xf32>
    %1420 = math.exp %1419 : vector<16x32xf32>
    %1421 = arith.subf %1417, %918 : vector<16x32xf32>
    %1422 = vector.broadcast %915 : f32 to vector<16x32xf32>
    %1423 = arith.mulf %1422, %1421 : vector<16x32xf32>
    %1424 = arith.addf %1, %1423 : vector<16x32xf32>
    %1425 = arith.addf %1424, %0 : vector<16x32xf32>
    %1426 = arith.mulf %1425, %1420 : vector<16x32xf32>
    %1427 = arith.subf %1424, %1426 : vector<16x32xf32>
    %cst_379 = arith.constant 0.000000e+00 : f32
    %1428 = vector.broadcast %cst_379 : f32 to vector<16x32xf32>
    %1429 = arith.cmpf olt, %1427, %1428 : vector<16x32xf32>
    %1430 = arith.select %1429, %1417, %1411 : vector<16x32xi1>, vector<16x32xf32>
    %cst_380 = arith.constant 0.000000e+00 : f32
    %1431 = vector.broadcast %cst_380 : f32 to vector<16x32xf32>
    %1432 = arith.cmpf ogt, %1427, %1431 : vector<16x32xf32>
    %1433 = arith.select %1432, %1417, %1414 : vector<16x32xi1>, vector<16x32xf32>
    %1434 = arith.addf %1430, %1433 : vector<16x32xf32>
    %cst_381 = arith.constant 5.000000e-01 : f32
    %1435 = vector.broadcast %cst_381 : f32 to vector<16x32xf32>
    %1436 = arith.mulf %1435, %1434 : vector<16x32xf32>
    %cst_382 = arith.constant 0.000000e+00 : f32
    %1437 = vector.broadcast %cst_382 : f32 to vector<16x32xf32>
    %1438 = arith.subf %1437, %1436 : vector<16x32xf32>
    %1439 = math.exp %1438 : vector<16x32xf32>
    %1440 = arith.subf %1436, %918 : vector<16x32xf32>
    %1441 = vector.broadcast %915 : f32 to vector<16x32xf32>
    %1442 = arith.mulf %1441, %1440 : vector<16x32xf32>
    %1443 = arith.addf %1, %1442 : vector<16x32xf32>
    %1444 = arith.addf %1443, %0 : vector<16x32xf32>
    %1445 = arith.mulf %1444, %1439 : vector<16x32xf32>
    %1446 = arith.subf %1443, %1445 : vector<16x32xf32>
    %cst_383 = arith.constant 0.000000e+00 : f32
    %1447 = vector.broadcast %cst_383 : f32 to vector<16x32xf32>
    %1448 = arith.cmpf olt, %1446, %1447 : vector<16x32xf32>
    %1449 = arith.select %1448, %1436, %1430 : vector<16x32xi1>, vector<16x32xf32>
    %cst_384 = arith.constant 0.000000e+00 : f32
    %1450 = vector.broadcast %cst_384 : f32 to vector<16x32xf32>
    %1451 = arith.cmpf ogt, %1446, %1450 : vector<16x32xf32>
    %1452 = arith.select %1451, %1436, %1433 : vector<16x32xi1>, vector<16x32xf32>
    %1453 = arith.addf %1449, %1452 : vector<16x32xf32>
    %cst_385 = arith.constant 5.000000e-01 : f32
    %1454 = vector.broadcast %cst_385 : f32 to vector<16x32xf32>
    %1455 = arith.mulf %1454, %1453 : vector<16x32xf32>
    %cst_386 = arith.constant 0.000000e+00 : f32
    %1456 = vector.broadcast %cst_386 : f32 to vector<16x32xf32>
    %1457 = arith.subf %1456, %1455 : vector<16x32xf32>
    %1458 = math.exp %1457 : vector<16x32xf32>
    %1459 = arith.subf %1455, %918 : vector<16x32xf32>
    %1460 = vector.broadcast %915 : f32 to vector<16x32xf32>
    %1461 = arith.mulf %1460, %1459 : vector<16x32xf32>
    %1462 = arith.addf %1, %1461 : vector<16x32xf32>
    %1463 = arith.addf %1462, %0 : vector<16x32xf32>
    %1464 = arith.mulf %1463, %1458 : vector<16x32xf32>
    %1465 = arith.subf %1462, %1464 : vector<16x32xf32>
    %cst_387 = arith.constant 0.000000e+00 : f32
    %1466 = vector.broadcast %cst_387 : f32 to vector<16x32xf32>
    %1467 = arith.cmpf olt, %1465, %1466 : vector<16x32xf32>
    %1468 = arith.select %1467, %1455, %1449 : vector<16x32xi1>, vector<16x32xf32>
    %cst_388 = arith.constant 0.000000e+00 : f32
    %1469 = vector.broadcast %cst_388 : f32 to vector<16x32xf32>
    %1470 = arith.cmpf ogt, %1465, %1469 : vector<16x32xf32>
    %1471 = arith.select %1470, %1455, %1452 : vector<16x32xi1>, vector<16x32xf32>
    %1472 = arith.addf %1468, %1471 : vector<16x32xf32>
    %cst_389 = arith.constant 5.000000e-01 : f32
    %1473 = vector.broadcast %cst_389 : f32 to vector<16x32xf32>
    %1474 = arith.mulf %1473, %1472 : vector<16x32xf32>
    %cst_390 = arith.constant 0.000000e+00 : f32
    %1475 = vector.broadcast %cst_390 : f32 to vector<16x32xf32>
    %1476 = arith.subf %1475, %1474 : vector<16x32xf32>
    %1477 = math.exp %1476 : vector<16x32xf32>
    %1478 = arith.subf %1474, %918 : vector<16x32xf32>
    %1479 = vector.broadcast %915 : f32 to vector<16x32xf32>
    %1480 = arith.mulf %1479, %1478 : vector<16x32xf32>
    %1481 = arith.addf %1, %1480 : vector<16x32xf32>
    %1482 = arith.addf %1481, %0 : vector<16x32xf32>
    %1483 = arith.mulf %1482, %1477 : vector<16x32xf32>
    %1484 = arith.subf %1481, %1483 : vector<16x32xf32>
    %cst_391 = arith.constant 0.000000e+00 : f32
    %1485 = vector.broadcast %cst_391 : f32 to vector<16x32xf32>
    %1486 = arith.cmpf olt, %1484, %1485 : vector<16x32xf32>
    %1487 = arith.select %1486, %1474, %1468 : vector<16x32xi1>, vector<16x32xf32>
    %cst_392 = arith.constant 0.000000e+00 : f32
    %1488 = vector.broadcast %cst_392 : f32 to vector<16x32xf32>
    %1489 = arith.cmpf ogt, %1484, %1488 : vector<16x32xf32>
    %1490 = arith.select %1489, %1474, %1471 : vector<16x32xi1>, vector<16x32xf32>
    %1491 = arith.addf %1487, %1490 : vector<16x32xf32>
    %cst_393 = arith.constant 5.000000e-01 : f32
    %1492 = vector.broadcast %cst_393 : f32 to vector<16x32xf32>
    %1493 = arith.mulf %1492, %1491 : vector<16x32xf32>
    %1494 = arith.addf %1493, %912 : vector<16x32xf32>
    %1495 = arith.addf %917, %914 : vector<16x32xf32>
    %c0_394 = arith.constant 0 : index
    %c0_395 = arith.constant 0 : index
    %1496 = vector.load %arg5[%c0_394, %c0_395] : memref<32x16xf32, #tpu.memory_space<vmem>>, vector<32x16xf32>
    %cst_396 = arith.constant dense<0.000000e+00> : vector<32x32xf32>
    %1497 = tpu.matmul %1496, %1494, %cst_396 {dimension_numbers = #tpu.dot_dimension_numbers<[1], [0], [0], [1], [0, 0, 1, 1], [], []>} : vector<32x16xf32>, vector<16x32xf32>, vector<32x32xf32> -> vector<32x32xf32>
    %1498 = vector.extract_strided_slice %1497 {offsets = [0, 0], sizes = [16, 32], strides = [1, 1]} : vector<32x32xf32> to vector<16x32xf32>
    %1499 = vector.extract_strided_slice %1497 {offsets = [16, 0], sizes = [16, 32], strides = [1, 1]} : vector<32x32xf32> to vector<16x32xf32>
    %1500 = tpu.concatenate %1498, %1499 in 1 : vector<16x32xf32>, vector<16x32xf32> -> vector<16x64xf32>
    %c0_397 = arith.constant 0 : index
    %c0_398 = arith.constant 0 : index
    %1501 = vector.load %arg8[%c0_397, %c0_398] : memref<64x64xf32, #tpu.memory_space<vmem>>, vector<64x64xf32>
    %cst_399 = arith.constant dense<0.000000e+00> : vector<16x64xf32>
    %1502 = tpu.matmul %1500, %1501, %cst_399 {dimension_numbers = #tpu.dot_dimension_numbers<[1], [0], [0], [1], [0, 0, 1, 1], [], []>} : vector<16x64xf32>, vector<64x64xf32>, vector<16x64xf32> -> vector<16x64xf32>
    %c0_400 = arith.constant 0 : index
    %c0_401 = arith.constant 0 : index
    %1503 = vector.load %arg2[%c0_400, %c0_401] : memref<16x64xf32, #tpu.memory_space<vmem>>, vector<16x64xf32>
    %1504 = arith.mulf %1502, %1503 : vector<16x64xf32>
    %1505 = vector.extract_strided_slice %1502 {offsets = [0, 32], sizes = [16, 32], strides = [1, 1]} : vector<16x64xf32> to vector<16x32xf32>
    %1506 = vector.extract_strided_slice %1502 {offsets = [0, 0], sizes = [16, 32], strides = [1, 1]} : vector<16x64xf32> to vector<16x32xf32>
    %1507 = tpu.concatenate %1505, %1506 in 1 : vector<16x32xf32>, vector<16x32xf32> -> vector<16x64xf32>
    %c0_402 = arith.constant 0 : index
    %c0_403 = arith.constant 0 : index
    %1508 = vector.load %arg3[%c0_402, %c0_403] : memref<16x64xf32, #tpu.memory_space<vmem>>, vector<16x64xf32>
    %1509 = arith.mulf %1507, %1508 : vector<16x64xf32>
    %1510 = arith.subf %1504, %1509 : vector<16x64xf32>
    %c0_404 = arith.constant 0 : index
    %c0_405 = arith.constant 0 : index
    %1511 = vector.load %arg9[%c0_404, %c0_405] : memref<64x64xf32, #tpu.memory_space<vmem>>, vector<64x64xf32>
    %cst_406 = arith.constant dense<0.000000e+00> : vector<16x64xf32>
    %1512 = tpu.matmul %1510, %1511, %cst_406 {dimension_numbers = #tpu.dot_dimension_numbers<[1], [0], [0], [1], [0, 0, 1, 1], [], []>} : vector<16x64xf32>, vector<64x64xf32>, vector<16x64xf32> -> vector<16x64xf32>
    %c0_407 = arith.constant 0 : index
    %c0_408 = arith.constant 0 : index
    %1513 = vector.load %arg7[%c0_407, %c0_408] : memref<32x32xf32, #tpu.memory_space<vmem>>, vector<32x32xf32>
    %1514 = vector.extract_strided_slice %1512 {offsets = [0, 0], sizes = [16, 32], strides = [1, 1]} : vector<16x64xf32> to vector<16x32xf32>
    %1515 = vector.extract_strided_slice %1512 {offsets = [0, 32], sizes = [16, 32], strides = [1, 1]} : vector<16x64xf32> to vector<16x32xf32>
    %1516 = tpu.concatenate %1514, %1515 in 0 : vector<16x32xf32>, vector<16x32xf32> -> vector<32x32xf32>
    %cst_409 = arith.constant dense<0.000000e+00> : vector<32x32xf32>
    %1517 = tpu.matmul %1513, %1516, %cst_409 {dimension_numbers = #tpu.dot_dimension_numbers<[1], [0], [0], [1], [0, 0, 1, 1], [], []>} : vector<32x32xf32>, vector<32x32xf32>, vector<32x32xf32> -> vector<32x32xf32>
    %cst_410 = arith.constant 3.906250e-03 : f32
    %1518 = vector.broadcast %cst_410 : f32 to vector<32x32xf32>
    %1519 = arith.mulf %1517, %1518 : vector<32x32xf32>
    %1520 = vector.extract_strided_slice %1519 {offsets = [0, 0], sizes = [16, 32], strides = [1, 1]} : vector<32x32xf32> to vector<16x32xf32>
    %1521 = vector.extract_strided_slice %1519 {offsets = [16, 0], sizes = [16, 32], strides = [1, 1]} : vector<32x32xf32> to vector<16x32xf32>
    %1522 = math.absf %1520 : vector<16x32xf32>
    %1523 = math.absf %1521 : vector<16x32xf32>
    %1524 = arith.maximumf %1522, %1523 : vector<16x32xf32>
    %1525 = arith.minimumf %1522, %1523 : vector<16x32xf32>
    %cst_411 = arith.constant 0.000000e+00 : f32
    %1526 = vector.broadcast %cst_411 : f32 to vector<16x32xf32>
    %1527 = arith.cmpf oeq, %1524, %1526 : vector<16x32xf32>
    %cst_412 = arith.constant 1.000000e+00 : f32
    %1528 = vector.broadcast %cst_412 : f32 to vector<16x32xf32>
    %1529 = arith.select %1527, %1528, %1524 : vector<16x32xi1>, vector<16x32xf32>
    %1530 = arith.divf %1525, %1529 : vector<16x32xf32>
    %cst_413 = arith.constant 0.414213568 : f32
    %1531 = vector.broadcast %cst_413 : f32 to vector<16x32xf32>
    %1532 = arith.cmpf ogt, %1530, %1531 : vector<16x32xf32>
    %cst_414 = arith.constant 1.000000e+00 : f32
    %1533 = vector.broadcast %cst_414 : f32 to vector<16x32xf32>
    %1534 = arith.subf %1530, %1533 : vector<16x32xf32>
    %cst_415 = arith.constant 1.000000e+00 : f32
    %1535 = vector.broadcast %cst_415 : f32 to vector<16x32xf32>
    %1536 = arith.addf %1530, %1535 : vector<16x32xf32>
    %1537 = arith.divf %1534, %1536 : vector<16x32xf32>
    %1538 = arith.select %1532, %1537, %1530 : vector<16x32xi1>, vector<16x32xf32>
    %cst_416 = arith.constant 0.785398185 : f32
    %cst_417 = arith.constant 0.000000e+00 : f32
    %1539 = vector.broadcast %cst_416 : f32 to vector<16x32xf32>
    %1540 = vector.broadcast %cst_417 : f32 to vector<16x32xf32>
    %1541 = arith.select %1532, %1539, %1540 : vector<16x32xi1>, vector<16x32xf32>
    %1542 = arith.mulf %1538, %1538 : vector<16x32xf32>
    %cst_418 = arith.constant 0.0805374458 : f32
    %1543 = vector.broadcast %cst_418 : f32 to vector<16x32xf32>
    %1544 = arith.mulf %1543, %1542 : vector<16x32xf32>
    %cst_419 = arith.constant 0.138776854 : f32
    %1545 = vector.broadcast %cst_419 : f32 to vector<16x32xf32>
    %1546 = arith.subf %1544, %1545 : vector<16x32xf32>
    %1547 = arith.mulf %1546, %1542 : vector<16x32xf32>
    %cst_420 = arith.constant 0.199777111 : f32
    %1548 = vector.broadcast %cst_420 : f32 to vector<16x32xf32>
    %1549 = arith.addf %1547, %1548 : vector<16x32xf32>
    %1550 = arith.mulf %1549, %1542 : vector<16x32xf32>
    %cst_421 = arith.constant 0.333329499 : f32
    %1551 = vector.broadcast %cst_421 : f32 to vector<16x32xf32>
    %1552 = arith.subf %1550, %1551 : vector<16x32xf32>
    %1553 = arith.mulf %1552, %1542 : vector<16x32xf32>
    %1554 = arith.mulf %1553, %1538 : vector<16x32xf32>
    %1555 = arith.addf %1554, %1538 : vector<16x32xf32>
    %1556 = arith.addf %1541, %1555 : vector<16x32xf32>
    %1557 = arith.cmpf ogt, %1523, %1522 : vector<16x32xf32>
    %cst_422 = arith.constant 1.57079637 : f32
    %1558 = vector.broadcast %cst_422 : f32 to vector<16x32xf32>
    %1559 = arith.subf %1558, %1556 : vector<16x32xf32>
    %1560 = arith.select %1557, %1559, %1556 : vector<16x32xi1>, vector<16x32xf32>
    %cst_423 = arith.constant 0.000000e+00 : f32
    %1561 = vector.broadcast %cst_423 : f32 to vector<16x32xf32>
    %1562 = arith.cmpf olt, %1520, %1561 : vector<16x32xf32>
    %cst_424 = arith.constant 3.14159274 : f32
    %1563 = vector.broadcast %cst_424 : f32 to vector<16x32xf32>
    %1564 = arith.subf %1563, %1560 : vector<16x32xf32>
    %1565 = arith.select %1562, %1564, %1560 : vector<16x32xi1>, vector<16x32xf32>
    %cst_425 = arith.constant 0.000000e+00 : f32
    %1566 = vector.broadcast %cst_425 : f32 to vector<16x32xf32>
    %1567 = arith.cmpf oeq, %1524, %1566 : vector<16x32xf32>
    %cst_426 = arith.constant 0.000000e+00 : f32
    %1568 = vector.broadcast %cst_426 : f32 to vector<16x32xf32>
    %1569 = arith.select %1567, %1568, %1565 : vector<16x32xi1>, vector<16x32xf32>
    %cst_427 = arith.constant 0.318309873 : f32
    %1570 = vector.broadcast %cst_427 : f32 to vector<16x32xf32>
    %1571 = arith.mulf %1569, %1570 : vector<16x32xf32>
    %1572 = vector.broadcast %915 : f32 to vector<16x32xf32>
    %1573 = arith.mulf %1572, %1571 : vector<16x32xf32>
    %1574 = vector.broadcast %916 : f32 to vector<16x32xf32>
    %1575 = arith.mulf %1574, %1495 : vector<16x32xf32>
    %1576 = arith.addf %1573, %1575 : vector<16x32xf32>
    %c0_428 = arith.constant 0 : index
    %c0_429 = arith.constant 0 : index
    %1577 = vector.load %arg5[%c0_428, %c0_429] : memref<32x16xf32, #tpu.memory_space<vmem>>, vector<32x16xf32>
    %cst_430 = arith.constant dense<0.000000e+00> : vector<32x32xf32>
    %1578 = tpu.matmul %1577, %1576, %cst_430 {dimension_numbers = #tpu.dot_dimension_numbers<[1], [0], [0], [1], [0, 0, 1, 1], [], []>} : vector<32x16xf32>, vector<16x32xf32>, vector<32x32xf32> -> vector<32x32xf32>
    %1579 = vector.extract_strided_slice %1578 {offsets = [0, 0], sizes = [16, 32], strides = [1, 1]} : vector<32x32xf32> to vector<16x32xf32>
    %1580 = vector.extract_strided_slice %1578 {offsets = [16, 0], sizes = [16, 32], strides = [1, 1]} : vector<32x32xf32> to vector<16x32xf32>
    %1581 = tpu.concatenate %1579, %1580 in 1 : vector<16x32xf32>, vector<16x32xf32> -> vector<16x64xf32>
    %c0_431 = arith.constant 0 : index
    %c0_432 = arith.constant 0 : index
    %1582 = vector.load %arg8[%c0_431, %c0_432] : memref<64x64xf32, #tpu.memory_space<vmem>>, vector<64x64xf32>
    %cst_433 = arith.constant dense<0.000000e+00> : vector<16x64xf32>
    %1583 = tpu.matmul %1581, %1582, %cst_433 {dimension_numbers = #tpu.dot_dimension_numbers<[1], [0], [0], [1], [0, 0, 1, 1], [], []>} : vector<16x64xf32>, vector<64x64xf32>, vector<16x64xf32> -> vector<16x64xf32>
    %c0_434 = arith.constant 0 : index
    %c0_435 = arith.constant 0 : index
    %1584 = vector.load %arg4[%c0_434, %c0_435] : memref<16x64xf32, #tpu.memory_space<vmem>>, vector<16x64xf32>
    %1585 = vector.broadcast %915 : f32 to vector<16x64xf32>
    %1586 = arith.mulf %1585, %1584 : vector<16x64xf32>
    %1587 = vector.broadcast %916 : f32 to vector<16x64xf32>
    %1588 = arith.addf %1587, %1586 : vector<16x64xf32>
    %1589 = arith.divf %1583, %1588 : vector<16x64xf32>
    %c0_436 = arith.constant 0 : index
    %c0_437 = arith.constant 0 : index
    %1590 = vector.load %arg9[%c0_436, %c0_437] : memref<64x64xf32, #tpu.memory_space<vmem>>, vector<64x64xf32>
    %cst_438 = arith.constant dense<0.000000e+00> : vector<16x64xf32>
    %1591 = tpu.matmul %1589, %1590, %cst_438 {dimension_numbers = #tpu.dot_dimension_numbers<[1], [0], [0], [1], [0, 0, 1, 1], [], []>} : vector<16x64xf32>, vector<64x64xf32>, vector<16x64xf32> -> vector<16x64xf32>
    %c0_439 = arith.constant 0 : index
    %c0_440 = arith.constant 0 : index
    %1592 = vector.load %arg7[%c0_439, %c0_440] : memref<32x32xf32, #tpu.memory_space<vmem>>, vector<32x32xf32>
    %1593 = vector.extract_strided_slice %1591 {offsets = [0, 0], sizes = [16, 32], strides = [1, 1]} : vector<16x64xf32> to vector<16x32xf32>
    %1594 = vector.extract_strided_slice %1591 {offsets = [0, 32], sizes = [16, 32], strides = [1, 1]} : vector<16x64xf32> to vector<16x32xf32>
    %1595 = tpu.concatenate %1593, %1594 in 0 : vector<16x32xf32>, vector<16x32xf32> -> vector<32x32xf32>
    %cst_441 = arith.constant dense<0.000000e+00> : vector<32x32xf32>
    %1596 = tpu.matmul %1592, %1595, %cst_441 {dimension_numbers = #tpu.dot_dimension_numbers<[1], [0], [0], [1], [0, 0, 1, 1], [], []>} : vector<32x32xf32>, vector<32x32xf32>, vector<32x32xf32> -> vector<32x32xf32>
    %cst_442 = arith.constant 3.906250e-03 : f32
    %1597 = vector.broadcast %cst_442 : f32 to vector<32x32xf32>
    %1598 = arith.mulf %1596, %1597 : vector<32x32xf32>
    %1599 = vector.extract_strided_slice %1598 {offsets = [0, 0], sizes = [16, 32], strides = [1, 1]} : vector<32x32xf32> to vector<16x32xf32>
    %1600 = vector.extract_strided_slice %1598 {offsets = [16, 0], sizes = [16, 32], strides = [1, 1]} : vector<32x32xf32> to vector<16x32xf32>
    %1601 = arith.mulf %1599, %1599 : vector<16x32xf32>
    %1602 = arith.mulf %1600, %1600 : vector<16x32xf32>
    %1603 = arith.addf %1601, %1602 : vector<16x32xf32>
    %1604 = math.sqrt %1603 : vector<16x32xf32>
    %1605 = tpu.iota {dimensions = array<i32: 1>} : vector<16x32xi32>
    %1606 = vector.extract_strided_slice %1604 {offsets = [0, 0], sizes = [16, 16], strides = [1, 1]} : vector<16x32xf32> to vector<16x16xf32>
    %cst_443 = arith.constant dense<0xFF800000> : vector<16xf32>
    %1607 = vector.multi_reduction <maximumf>, %1606, %cst_443 [1] : vector<16x16xf32> to vector<16xf32>
    %1608 = vector.shape_cast %1607 : vector<16xf32> to vector<16x1xf32>
    %cst_444 = arith.constant dense<0xFF800000> : vector<1xf32>
    %1609 = vector.multi_reduction <maximumf>, %1608, %cst_444 [0] : vector<16x1xf32> to vector<1xf32>
    %1610 = vector.shape_cast %1609 : vector<1xf32> to vector<1x1xf32>
    %cst_445 = arith.constant 1.000000e+00 : f32
    %1611 = vector.broadcast %cst_445 : f32 to vector<1x1xf32>
    %1612 = arith.divf %1611, %1610 : vector<1x1xf32>
    %1613 = vector.extract_strided_slice %1604 {offsets = [0, 16], sizes = [16, 16], strides = [1, 1]} : vector<16x32xf32> to vector<16x16xf32>
    %cst_446 = arith.constant dense<0xFF800000> : vector<16xf32>
    %1614 = vector.multi_reduction <maximumf>, %1613, %cst_446 [1] : vector<16x16xf32> to vector<16xf32>
    %1615 = vector.shape_cast %1614 : vector<16xf32> to vector<16x1xf32>
    %cst_447 = arith.constant dense<0xFF800000> : vector<1xf32>
    %1616 = vector.multi_reduction <maximumf>, %1615, %cst_447 [0] : vector<16x1xf32> to vector<1xf32>
    %1617 = vector.shape_cast %1616 : vector<1xf32> to vector<1x1xf32>
    %cst_448 = arith.constant 1.000000e+00 : f32
    %1618 = vector.broadcast %cst_448 : f32 to vector<1x1xf32>
    %1619 = arith.divf %1618, %1617 : vector<1x1xf32>
    %c16_i32_449 = arith.constant 16 : i32
    %1620 = vector.broadcast %c16_i32_449 : i32 to vector<16x32xi32>
    %1621 = arith.cmpi slt, %1605, %1620 : vector<16x32xi32>
    %1622 = vector.shape_cast %1612 : vector<1x1xf32> to vector<1x1xf32>
    %1623 = vector.broadcast %1622 : vector<1x1xf32> to vector<16x32xf32>
    %1624 = vector.shape_cast %1619 : vector<1x1xf32> to vector<1x1xf32>
    %1625 = vector.broadcast %1624 : vector<1x1xf32> to vector<16x32xf32>
    %1626 = arith.select %1621, %1623, %1625 : vector<16x32xi1>, vector<16x32xf32>
    %1627 = arith.mulf %1604, %1626 : vector<16x32xf32>
    %cst_450 = arith.constant dense<0.000000e+00> : vector<16xf32>
    %1628 = vector.multi_reduction <add>, %1627, %cst_450 [1] : vector<16x32xf32> to vector<16xf32>
    %1629 = vector.shape_cast %1628 : vector<16xf32> to vector<16x1xf32>
    %cst_451 = arith.constant dense<0.000000e+00> : vector<1xf32>
    %1630 = vector.multi_reduction <add>, %1629, %cst_451 [0] : vector<16x1xf32> to vector<1xf32>
    %1631 = vector.shape_cast %1630 : vector<1xf32> to vector<1x1xf32>
    %cst_452 = arith.constant 0.001953125 : f32
    %1632 = vector.broadcast %cst_452 : f32 to vector<1x1xf32>
    %1633 = arith.mulf %1631, %1632 : vector<1x1xf32>
    %1634 = vector.broadcast %1633 : vector<1x1xf32> to vector<16x32xf32>
    %1635 = arith.subf %1627, %1634 : vector<16x32xf32>
    %1636 = arith.mulf %1635, %1635 : vector<16x32xf32>
    %cst_453 = arith.constant dense<0.000000e+00> : vector<16xf32>
    %1637 = vector.multi_reduction <add>, %1636, %cst_453 [1] : vector<16x32xf32> to vector<16xf32>
    %1638 = vector.shape_cast %1637 : vector<16xf32> to vector<16x1xf32>
    %cst_454 = arith.constant dense<0.000000e+00> : vector<1xf32>
    %1639 = vector.multi_reduction <add>, %1638, %cst_454 [0] : vector<16x1xf32> to vector<1xf32>
    %1640 = vector.shape_cast %1639 : vector<1xf32> to vector<1x1xf32>
    %cst_455 = arith.constant 0.001953125 : f32
    %1641 = vector.broadcast %cst_455 : f32 to vector<1x1xf32>
    %1642 = arith.mulf %1640, %1641 : vector<1x1xf32>
    %cst_456 = arith.constant 9.99999974E-6 : f32
    %1643 = vector.broadcast %cst_456 : f32 to vector<1x1xf32>
    %1644 = arith.addf %1642, %1643 : vector<1x1xf32>
    %1645 = math.rsqrt %1644 : vector<1x1xf32>
    %1646 = vector.broadcast %1645 : vector<1x1xf32> to vector<16x32xf32>
    %1647 = arith.mulf %1635, %1646 : vector<16x32xf32>
    %cst_457 = arith.constant 0.000000e+00 : f32
    %1648 = vector.broadcast %cst_457 : f32 to vector<16x32xf32>
    %1649 = arith.cmpf oge, %1647, %1648 : vector<16x32xf32>
    %cst_458 = arith.constant 0.00999999977 : f32
    %1650 = vector.broadcast %cst_458 : f32 to vector<16x32xf32>
    %1651 = arith.mulf %1650, %1647 : vector<16x32xf32>
    %1652 = arith.select %1649, %1647, %1651 : vector<16x32xi1>, vector<16x32xf32>
    %c0_459 = arith.constant 0 : index
    %c0_460 = arith.constant 0 : index
    %1653 = vector.load %arg12[%c0_459, %c0_460] : memref<16x32xf32, #tpu.memory_space<vmem>>, vector<16x32xf32>
    tpu.vector_store %arg12[%c0_459, %c0_460], %1652 {strides = array<i32>} : memref<16x32xf32, #tpu.memory_space<vmem>>, vector<16x32xf32>,
    return
  }
}

</mosaic_0001>

<llo_original>
// kernel: neg.8
$region0: #{neg.8}
  #allocation0 [shape = 's32[1]{0}', space=sflag, size = 0x4, scoped, tag = 'scoped memory for neg.8']
  %s0 = inlined_call_operand.vmem [shape: f32[32,32], index: 0, kind: input, shape index: {}]
  %s1 = inlined_call_operand.vmem [shape: f32[32,32], index: 1, kind: output, shape index: {}]
  %v2 = vld [vmem:[%s0] sm:$0xff]
  %3 = xla_tuple %v2
  %4 = xla_tuple %3
  %v5 = vxor.u32 %v2, 2147483648
  %6 = xla_tuple %v5
  %7 = vst [vmem:[%s1] sm:$0xff] %v5
  %s8 = scalar_lea.vmem %s0, 8
  %v9 = vld [vmem:[%s8] sm:$0xff]
  %10 = xla_tuple %v9
  %11 = xla_tuple %10
  %v12 = vxor.u32 %v9, 2147483648
  %13 = xla_tuple %v12
  %s14 = scalar_lea.vmem %s1, 8
  %15 = vst [vmem:[%s14] sm:$0xff] %v12
  %s16 = scalar_lea.vmem %s0, 16
  %v17 = vld [vmem:[%s16] sm:$0xff]
  %18 = xla_tuple %v17
  %19 = xla_tuple %18
  %v20 = vxor.u32 %v17, 2147483648
  %21 = xla_tuple %v20
  %s22 = scalar_lea.vmem %s1, 16
  %23 = vst [vmem:[%s22] sm:$0xff] %v20
  %s24 = scalar_lea.vmem %s0, 24
  %v25 = vld [vmem:[%s24] sm:$0xff]
  %26 = xla_tuple %v25
  %27 = xla_tuple %26
  %v28 = vxor.u32 %v25, 2147483648
  %29 = xla_tuple %v28
  %s30 = scalar_lea.vmem %s1, 24
  %31 = vst [vmem:[%s30] sm:$0xff] %v28

// kernel: plphasenet_forward.1
$region0: #{plphasenet_forward.1}
  #allocation0 [shape = 'u32[]', space=smem, size = 0x4, offset = 0x4, fixed_abs, tag = 'smem constant byte address 0x4 - core index']
  #allocation1 [shape = 'u32[144,128]{1,0:T(1,128)}', space=vmem, size = 0x12000, scoped, tag = 'internal scratch']
  %s0 = inlined_call_operand.vmem [shape: f32[16,32], index: 0, kind: input, shape index: {}]
  %s1 = inlined_call_operand.vmem [shape: f32[16,32], index: 1, kind: input, shape index: {}]
  %s2 = inlined_call_operand.vmem [shape: f32[16,64], index: 2, kind: input, shape index: {}]
  %s3 = inlined_call_operand.vmem [shape: f32[16,64], index: 3, kind: input, shape index: {}]
  %s4 = inlined_call_operand.vmem [shape: f32[16,64], index: 4, kind: input, shape index: {}]
  %s5 = inlined_call_operand.vmem [shape: f32[32,16], index: 5, kind: input, shape index: {}]
  %s6 = inlined_call_operand.vmem [shape: f32[32,32], index: 6, kind: input, shape index: {}]
  %s7 = inlined_call_operand.vmem [shape: f32[32,32], index: 7, kind: input, shape index: {}]
  %s8 = inlined_call_operand.vmem [shape: f32[64,64], index: 8, kind: input, shape index: {}]
  %s9 = inlined_call_operand.vmem [shape: f32[64,64], index: 9, kind: input, shape index: {}]
  %s10 = inlined_call_operand.vmem [shape: f32[2], index: 10, kind: input, shape index: {}]
  %s11 = inlined_call_operand.vmem [shape: f32[2], index: 11, kind: input, shape index: {}]
  %s12 = inlined_call_operand.vmem [shape: f32[16,32], index: 12, kind: output, shape index: {}]
  %s13 = sld [smem:[#allocation0]]
  $region66: #{plphasenet_forward.1} parent=0
    _
  %s15 = ssub.s32 1, %s13
  %s16 = scalar_select 0, %s15, %s13
  $region1: #{plphasenet_forward.1} parent=0
    #allocation2 [shape = 'u8[512]{0}', space=smem, size = 0x200, scoped, tag = 'input window, operand 10, single buffered']
    #allocation3 [shape = 's32[1]{0}', space=sflag, size = 0x4, scoped, tag = 'scoped memory for plphasenet_forward.1']
    #allocation4 [shape = 'u8[512]{0}', space=smem, size = 0x200, scoped, tag = 'input window, operand 11, single buffered']
    #allocation5 [shape = 's32[1]{0}', space=sflag, size = 0x4, scoped, tag = 'scoped memory for plphasenet_forward.1']
    %17 = vsyncpa [#allocation3], 0
    %18 = vsyncpa [#allocation5], 0
    // Predicated region
    $region2: #{plphasenet_forward.1} parent=1 // pred_check
      _
    $region3: #{plphasenet_forward.1} parent=1 // pred_check_branch
      %20 = sbr.rel (0) target = $region5
    $region4: #{plphasenet_forward.1} parent=1 // pred_region
      _
    $region5: #{plphasenet_forward.1} parent=1 // pred_fallthru
      _
    // Predicated region
    $region6: #{plphasenet_forward.1} parent=1 // pred_check
      _
    $region7: #{plphasenet_forward.1} parent=1 // pred_check_branch
      %22 = sbr.rel (0) target = $region9
    $region8: #{plphasenet_forward.1} parent=1 // pred_region
      _
    $region9: #{plphasenet_forward.1} parent=1 // pred_fallthru
      _
    // Predicated region
    $region10: #{plphasenet_forward.1} parent=1 // pred_check
      _
    $region11: #{plphasenet_forward.1} parent=1 // pred_check_branch
      %24 = sbr.rel (0) target = $region13
    $region12: #{plphasenet_forward.1} parent=1 // pred_region
      _
    $region13: #{plphasenet_forward.1} parent=1 // pred_fallthru
      _
    // Predicated region
    $region14: #{plphasenet_forward.1} parent=1 // pred_check
      _
    $region15: #{plphasenet_forward.1} parent=1 // pred_check_branch
      %26 = sbr.rel (0) target = $region17
    $region16: #{plphasenet_forward.1} parent=1 // pred_region
      _
    $region17: #{plphasenet_forward.1} parent=1 // pred_fallthru
      _
    // Predicated region
    $region18: #{plphasenet_forward.1} parent=1 // pred_check
      _
    $region19: #{plphasenet_forward.1} parent=1 // pred_check_branch
      %28 = sbr.rel (0) target = $region21
    $region20: #{plphasenet_forward.1} parent=1 // pred_region
      _
    $region21: #{plphasenet_forward.1} parent=1 // pred_fallthru
      _
    // Predicated region
    $region22: #{plphasenet_forward.1} parent=1 // pred_check
      _
    $region23: #{plphasenet_forward.1} parent=1 // pred_check_branch
      %30 = sbr.rel (0) target = $region25
    $region24: #{plphasenet_forward.1} parent=1 // pred_region
      _
    $region25: #{plphasenet_forward.1} parent=1 // pred_fallthru
      _
    // Predicated region
    $region26: #{plphasenet_forward.1} parent=1 // pred_check
      _
    $region27: #{plphasenet_forward.1} parent=1 // pred_check_branch
      %32 = sbr.rel (0) target = $region29
    $region28: #{plphasenet_forward.1} parent=1 // pred_region
      _
    $region29: #{plphasenet_forward.1} parent=1 // pred_fallthru
      _
    // Predicated region
    $region30: #{plphasenet_forward.1} parent=1 // pred_check
      _
    $region31: #{plphasenet_forward.1} parent=1 // pred_check_branch
      %34 = sbr.rel (0) target = $region33
    $region32: #{plphasenet_forward.1} parent=1 // pred_region
      _
    $region33: #{plphasenet_forward.1} parent=1 // pred_fallthru
      _
    // Predicated region
    $region34: #{plphasenet_forward.1} parent=1 // pred_check
      _
    $region35: #{plphasenet_forward.1} parent=1 // pred_check_branch
      %36 = sbr.rel (0) target = $region37
    $region36: #{plphasenet_forward.1} parent=1 // pred_region
      _
    $region37: #{plphasenet_forward.1} parent=1 // pred_fallthru
      _
    // Predicated region
    $region38: #{plphasenet_forward.1} parent=1 // pred_check
      _
    $region39: #{plphasenet_forward.1} parent=1 // pred_check_branch
      %38 = sbr.rel (0) target = $region41
    $region40: #{plphasenet_forward.1} parent=1 // pred_region
      _
    $region41: #{plphasenet_forward.1} parent=1 // pred_fallthru
      _
    // Predicated region
    $region42: #{plphasenet_forward.1} parent=1 // pred_check
      _
    $region43: #{plphasenet_forward.1} parent=1 // pred_check_branch
      %40 = sbr.rel (0) target = $region45
    $region44: #{plphasenet_forward.1} parent=1 // pred_region
      %s42 = ssub.s32 16, 16
      %43 = vsyncadd [#allocation3], %s42
      %s45 = sshll.u32 %s10, 4
      %s46 = int_to_ptr.vmem [resolvable:$true] %s45
      %48 = dma.vmem_to_smem %s46, 16, [#allocation2], [#allocation3]
    $region45: #{plphasenet_forward.1} parent=1 // pred_fallthru
      _
    // Predicated region
    $region46: #{plphasenet_forward.1} parent=1 // pred_check
      _
    $region47: #{plphasenet_forward.1} parent=1 // pred_check_branch
      %50 = sbr.rel (0) target = $region49
    $region48: #{plphasenet_forward.1} parent=1 // pred_region
      %s52 = ssub.s32 16, 16
      %53 = vsyncadd [#allocation5], %s52
      %s55 = sshll.u32 %s11, 4
      %s56 = int_to_ptr.vmem [resolvable:$true] %s55
      %58 = dma.vmem_to_smem %s56, 16, [#allocation4], [#allocation5]
    $region49: #{plphasenet_forward.1} parent=1 // pred_fallthru
      _
    // Predicated region
    $region50: #{plphasenet_forward.1} parent=1 // pred_check
      _
    $region51: #{plphasenet_forward.1} parent=1 // pred_check_branch
      %60 = sbr.rel (0) target = $region53
    $region52: #{plphasenet_forward.1} parent=1 // pred_region
      %61 = dma.done [#allocation3], 16
    $region53: #{plphasenet_forward.1} parent=1 // pred_fallthru
      _
    // Predicated region
    $region54: #{plphasenet_forward.1} parent=1 // pred_check
      _
    $region55: #{plphasenet_forward.1} parent=1 // pred_check_branch
      %63 = sbr.rel (0) target = $region57
    $region56: #{plphasenet_forward.1} parent=1 // pred_region
      %64 = dma.done [#allocation5], 16
    $region57: #{plphasenet_forward.1} parent=1 // pred_fallthru
      _
    %65 = sfence
    %v66 = vld [vmem:[%s0] sm:$0xff]
    %v67 = vld [vmem:[%s0 + $0x8] sm:$0xff]
    %v68 = vld [vmem:[%s1] sm:$0xff]
    %v69 = vld [vmem:[%s1 + $0x8] sm:$0xff]
    %v70 = vld [vmem:[%s5] sm:$0xff]
    %v71 = vld [vmem:[%s5 + $0x8] sm:$0xff]
    %v72 = vld [vmem:[%s5 + $0x10] sm:$0xff]
    %v73 = vld [vmem:[%s5 + $0x18] sm:$0xff]
    %vm74 = vcmask 130048
    %v76 = vsel %vm74, %v70, 0
    %v79 = vsel %vm74, %v71, 0
    %v82 = vsel %vm74, %v72, 0
    %v85 = vsel %vm74, %v73, 0
    %87 = vmatprep.subr.mxu0 0.0
    %88 = vmatpush1.msra.mxu0 %v66
    %89 = vmatprep.subr.mxu0 0.0
    %90 = vmatpush1.msra.mxu0 %v67
    %91 = vmatprep.subr.mxu0 0.0
    %92 = vmatpush1.msra.mxu0 0.0
    %93 = vmatprep.subr.mxu0 0.0
    %94 = vmatpush1.msra.mxu0 0.0
    %95 = vmatprep.subr.mxu0 0.0
    %96 = vmatpush1.msra.mxu0 0.0
    %97 = vmatprep.subr.mxu0 0.0
    %98 = vmatpush1.msra.mxu0 0.0
    %99 = vmatprep.subr.mxu0 0.0
    %100 = vmatpush1.msra.mxu0 0.0
    %101 = vmatprep.subr.mxu0 0.0
    %102 = vmatpush1.msra.mxu0 0.0
    %103 = vmatprep.subr.mxu0 0.0
    %104 = vmatpush1.msra.mxu0 0.0
    %105 = vmatprep.subr.mxu0 0.0
    %106 = vmatpush1.msra.mxu0 0.0
    %107 = vmatprep.subr.mxu0 0.0
    %108 = vmatpush1.msra.mxu0 0.0
    %109 = vmatprep.subr.mxu0 0.0
    %110 = vmatpush1.msra.mxu0 0.0
    %111 = vmatprep.subr.mxu0 0.0
    %112 = vmatpush1.msra.mxu0 0.0
    %113 = vmatprep.subr.mxu0 0.0
    %114 = vmatpush1.msra.mxu0 0.0
    %115 = vmatprep.subr.mxu0 0.0
    %116 = vmatpush1.msra.mxu0 0.0
    %117 = vmatprep.subr.mxu0 0.0
    %118 = vmatpush1.msra.mxu0 0.0
    %119 = vmatprep.subr.mxu0 0.0
    %120 = vmatpush1.msra.mxu0 0.0
    %121 = vmatprep.subr.mxu0 0.0
    %122 = vmatpush1.msra.mxu0 0.0
    %123 = vmatprep.subr.mxu0 0.0
    %124 = vmatpush1.msra.mxu0 0.0
    %125 = vmatprep.subr.mxu0 0.0
    %126 = vmatpush1.msra.mxu0 0.0
    %127 = vmatprep.subr.mxu0 0.0
    %128 = vmatpush1.msra.mxu0 0.0
    %129 = vmatprep.subr.mxu0 0.0
    %130 = vmatpush1.msra.mxu0 0.0
    %131 = vmatprep.subr.mxu0 0.0
    %132 = vmatpush1.msra.mxu0 0.0
    %133 = vmatprep.subr.mxu0 0.0
    %134 = vmatpush1.msra.mxu0 0.0
    %135 = vmatprep.subr.mxu0 0.0
    %136 = vmatpush1.msra.mxu0 0.0
    %137 = vmatprep.subr.mxu0 0.0
    %138 = vmatpush1.msra.mxu0 0.0
    %139 = vmatprep.subr.mxu0 0.0
    %140 = vmatpush1.msra.mxu0 0.0
    %141 = vmatprep.subr.mxu0 0.0
    %142 = vmatpush1.msra.mxu0 0.0
    %143 = vmatprep.subr.mxu0 0.0
    %144 = vmatpush1.msra.mxu0 0.0
    %145 = vmatprep.subr.mxu0 0.0
    %146 = vmatpush1.msra.mxu0 0.0
    %147 = vmatprep.subr.mxu0 0.0
    %148 = vmatpush1.msra.mxu0 0.0
    %149 = vmatprep.subr.mxu0 0.0
    %150 = vmatpush1.msra.mxu0 0.0
    %151 = vmatprep.mubr.f32.mxu0 0.0
    %152 = vmatmul.mubr.f32.gmra.mrb[0].mxu0 %v76
    %v153 = vpop.f32.mrb[0].mxu0
    %v154 = vadd.f32 0.0, %v153
    %v155 = vpop.f32.mrb[0].mxu0
    %156 = vmatprep.mubr.f32.mxu0 0.0
    %157 = vmatmul.mubr.f32.gmra.mrb[0].mxu0 %v79
    %v158 = vpop.f32.mrb[0].mxu0
    %v159 = vadd.f32 0.0, %v158
    %v160 = vpop.f32.mrb[0].mxu0
    %161 = vmatprep.mubr.f32.mxu0 0.0
    %162 = vmatmul.mubr.f32.gmra.mrb[0].mxu0 %v82
    %v163 = vpop.f32.mrb[0].mxu0
    %v164 = vadd.f32 0.0, %v163
    %v165 = vpop.f32.mrb[0].mxu0
    %166 = vmatprep.mubr.f32.mxu0 0.0
    %167 = vmatmul.mubr.f32.gmra.mrb[0].mxu0 %v85
    %v168 = vpop.f32.mrb[0].mxu0
    %v169 = vadd.f32 0.0, %v168
    %v170 = vpop.f32.mrb[0].mxu0
    %171 = vdwg.mxu0
    %174 = vrot.lane.b32.xlu0 %v164, 32
    %v175 = vpop.permute.xlu0 %174
    %176 = vrot.lane.b32.xlu0 %v169, 32
    %v177 = vpop.permute.xlu0 %176
    %vm180 = vcmask 261120
    %v181 = vsel %vm180, %v154, %v175
    %v182 = vsel %vm180, %v159, %v177
    %v183 = vld [vmem:[%s8] sm:$0xff]
    %v184 = vld [vmem:[%s8 + $0x8] sm:$0xff]
    %v185 = vld [vmem:[%s8 + $0x10] sm:$0xff]
    %v186 = vld [vmem:[%s8 + $0x18] sm:$0xff]
    %v187 = vld [vmem:[%s8 + $0x20] sm:$0xff]
    %v188 = vld [vmem:[%s8 + $0x28] sm:$0xff]
    %v189 = vld [vmem:[%s8 + $0x30] sm:$0xff]
    %v190 = vld [vmem:[%s8 + $0x38] sm:$0xff]
    %vm191 = vcmask 523264
    %v193 = vsel %vm191, %v181, 0
    %v196 = vsel %vm191, %v182, 0
    %198 = vmatprep.subr.mxu0 0.0
    %199 = vmatpush1.msra.mxu0 %v183
    %200 = vmatprep.subr.mxu0 0.0
    %201 = vmatpush1.msra.mxu0 %v184
    %202 = vmatprep.subr.mxu0 0.0
    %203 = vmatpush1.msra.mxu0 %v185
    %204 = vmatprep.subr.mxu0 0.0
    %205 = vmatpush1.msra.mxu0 %v186
    %206 = vmatprep.subr.mxu0 0.0
    %207 = vmatpush1.msra.mxu0 %v187
    %208 = vmatprep.subr.mxu0 0.0
    %209 = vmatpush1.msra.mxu0 %v188
    %210 = vmatprep.subr.mxu0 0.0
    %211 = vmatpush1.msra.mxu0 %v189
    %212 = vmatprep.subr.mxu0 0.0
    %213 = vmatpush1.msra.mxu0 %v190
    %214 = vmatprep.subr.mxu0 0.0
    %215 = vmatpush1.msra.mxu0 0.0
    %216 = vmatprep.subr.mxu0 0.0
    %217 = vmatpush1.msra.mxu0 0.0
    %218 = vmatprep.subr.mxu0 0.0
    %219 = vmatpush1.msra.mxu0 0.0
    %220 = vmatprep.subr.mxu0 0.0
    %221 = vmatpush1.msra.mxu0 0.0
    %222 = vmatprep.subr.mxu0 0.0
    %223 = vmatpush1.msra.mxu0 0.0
    %224 = vmatprep.subr.mxu0 0.0
    %225 = vmatpush1.msra.mxu0 0.0
    %226 = vmatprep.subr.mxu0 0.0
    %227 = vmatpush1.msra.mxu0 0.0
    %228 = vmatprep.subr.mxu0 0.0
    %229 = vmatpush1.msra.mxu0 0.0
    %230 = vmatprep.subr.mxu0 0.0
    %231 = vmatpush1.msra.mxu0 0.0
    %232 = vmatprep.subr.mxu0 0.0
    %233 = vmatpush1.msra.mxu0 0.0
    %234 = vmatprep.subr.mxu0 0.0
    %235 = vmatpush1.msra.mxu0 0.0
    %236 = vmatprep.subr.mxu0 0.0
    %237 = vmatpush1.msra.mxu0 0.0
    %238 = vmatprep.subr.mxu0 0.0
    %239 = vmatpush1.msra.mxu0 0.0
    %240 = vmatprep.subr.mxu0 0.0
    %241 = vmatpush1.msra.mxu0 0.0
    %242 = vmatprep.subr.mxu0 0.0
    %243 = vmatpush1.msra.mxu0 0.0
    %244 = vmatprep.subr.mxu0 0.0
    %245 = vmatpush1.msra.mxu0 0.0
    %246 = vmatprep.subr.mxu0 0.0
    %247 = vmatpush1.msra.mxu0 0.0
    %248 = vmatprep.subr.mxu0 0.0
    %249 = vmatpush1.msra.mxu0 0.0
    %250 = vmatprep.subr.mxu0 0.0
    %251 = vmatpush1.msra.mxu0 0.0
    %252 = vmatprep.subr.mxu0 0.0
    %253 = vmatpush1.msra.mxu0 0.0
    %254 = vmatprep.subr.mxu0 0.0
    %255 = vmatpush1.msra.mxu0 0.0
    %256 = vmatprep.subr.mxu0 0.0
    %257 = vmatpush1.msra.mxu0 0.0
    %258 = vmatprep.subr.mxu0 0.0
    %259 = vmatpush1.msra.mxu0 0.0
    %260 = vmatprep.subr.mxu0 0.0
    %261 = vmatpush1.msra.mxu0 0.0
    %262 = vmatprep.mubr.f32.mxu0 0.0
    %263 = vmatmul.mubr.f32.gmra.mrb[0].mxu0 %v193
    %v264 = vpop.f32.mrb[0].mxu0
    %v265 = vadd.f32 0.0, %v264
    %v266 = vpop.f32.mrb[0].mxu0
    %267 = vmatprep.mubr.f32.mxu0 0.0
    %268 = vmatmul.mubr.f32.gmra.mrb[0].mxu0 %v196
    %v269 = vpop.f32.mrb[0].mxu0
    %v270 = vadd.f32 0.0, %v269
    %v271 = vpop.f32.mrb[0].mxu0
    %272 = vdwg.mxu0
    %v273 = vld [vmem:[%s2] sm:$0xff]
    %v274 = vld [vmem:[%s2 + $0x8] sm:$0xff]
    %v275 = vmul.f32 %v265, %v273
    %v276 = vmul.f32 %v270, %v274
    %279 = vrot.lane.b32.xlu0 %v265, 96
    %v280 = vpop.permute.xlu0 %279
    %281 = vrot.lane.b32.xlu0 %v270, 96
    %v282 = vpop.permute.xlu0 %281
    %285 = vrot.lane.b32.xlu0 %v265, 32
    %v286 = vpop.permute.xlu0 %285
    %287 = vrot.lane.b32.xlu0 %v270, 32
    %v288 = vpop.permute.xlu0 %287
    %v291 = vsel %vm180, %v280, %v286
    %v292 = vsel %vm180, %v282, %v288
    %v293 = vld [vmem:[%s3] sm:$0xff]
    %v294 = vld [vmem:[%s3 + $0x8] sm:$0xff]
    %v295 = vmul.f32 %v291, %v293
    %v296 = vmul.f32 %v292, %v294
    %v297 = vsub.f32 %v275, %v295
    %v298 = vsub.f32 %v276, %v296
    %v299 = vld [vmem:[%s9] sm:$0xff]
    %v300 = vld [vmem:[%s9 + $0x8] sm:$0xff]
    %v301 = vld [vmem:[%s9 + $0x10] sm:$0xff]
    %v302 = vld [vmem:[%s9 + $0x18] sm:$0xff]
    %v303 = vld [vmem:[%s9 + $0x20] sm:$0xff]
    %v304 = vld [vmem:[%s9 + $0x28] sm:$0xff]
    %v305 = vld [vmem:[%s9 + $0x30] sm:$0xff]
    %v306 = vld [vmem:[%s9 + $0x38] sm:$0xff]
    %v308 = vsel %vm191, %v297, 0
    %v311 = vsel %vm191, %v298, 0
    %313 = vmatprep.subr.mxu0 0.0
    %314 = vmatpush1.msra.mxu0 %v299
    %315 = vmatprep.subr.mxu0 0.0
    %316 = vmatpush1.msra.mxu0 %v300
    %317 = vmatprep.subr.mxu0 0.0
    %318 = vmatpush1.msra.mxu0 %v301
    %319 = vmatprep.subr.mxu0 0.0
    %320 = vmatpush1.msra.mxu0 %v302
    %321 = vmatprep.subr.mxu0 0.0
    %322 = vmatpush1.msra.mxu0 %v303
    %323 = vmatprep.subr.mxu0 0.0
    %324 = vmatpush1.msra.mxu0 %v304
    %325 = vmatprep.subr.mxu0 0.0
    %326 = vmatpush1.msra.mxu0 %v305
    %327 = vmatprep.subr.mxu0 0.0
    %328 = vmatpush1.msra.mxu0 %v306
    %329 = vmatprep.subr.mxu0 0.0
    %330 = vmatpush1.msra.mxu0 0.0
    %331 = vmatprep.subr.mxu0 0.0
    %332 = vmatpush1.msra.mxu0 0.0
    %333 = vmatprep.subr.mxu0 0.0
    %334 = vmatpush1.msra.mxu0 0.0
    %335 = vmatprep.subr.mxu0 0.0
    %336 = vmatpush1.msra.mxu0 0.0
    %337 = vmatprep.subr.mxu0 0.0
    %338 = vmatpush1.msra.mxu0 0.0
    %339 = vmatprep.subr.mxu0 0.0
    %340 = vmatpush1.msra.mxu0 0.0
    %341 = vmatprep.subr.mxu0 0.0
    %342 = vmatpush1.msra.mxu0 0.0
    %343 = vmatprep.subr.mxu0 0.0
    %344 = vmatpush1.msra.mxu0 0.0
    %345 = vmatprep.subr.mxu0 0.0
    %346 = vmatpush1.msra.mxu0 0.0
    %347 = vmatprep.subr.mxu0 0.0
    %348 = vmatpush1.msra.mxu0 0.0
    %349 = vmatprep.subr.mxu0 0.0
    %350 = vmatpush1.msra.mxu0 0.0
    %351 = vmatprep.subr.mxu0 0.0
    %352 = vmatpush1.msra.mxu0 0.0
    %353 = vmatprep.subr.mxu0 0.0
    %354 = vmatpush1.msra.mxu0 0.0
    %355 = vmatprep.subr.mxu0 0.0
    %356 = vmatpush1.msra.mxu0 0.0
    %357 = vmatprep.subr.mxu0 0.0
    %358 = vmatpush1.msra.mxu0 0.0
    %359 = vmatprep.subr.mxu0 0.0
    %360 = vmatpush1.msra.mxu0 0.0
    %361 = vmatprep.subr.mxu0 0.0
    %362 = vmatpush1.msra.mxu0 0.0
    %363 = vmatprep.subr.mxu0 0.0
    %364 = vmatpush1.msra.mxu0 0.0
    %365 = vmatprep.subr.mxu0 0.0
    %366 = vmatpush1.msra.mxu0 0.0
    %367 = vmatprep.subr.mxu0 0.0
    %368 = vmatpush1.msra.mxu0 0.0
    %369 = vmatprep.subr.mxu0 0.0
    %370 = vmatpush1.msra.mxu0 0.0
    %371 = vmatprep.subr.mxu0 0.0
    %372 = vmatpush1.msra.mxu0 0.0
    %373 = vmatprep.subr.mxu0 0.0
    %374 = vmatpush1.msra.mxu0 0.0
    %375 = vmatprep.subr.mxu0 0.0
    %376 = vmatpush1.msra.mxu0 0.0
    %377 = vmatprep.mubr.f32.mxu0 0.0
    %378 = vmatmul.mubr.f32.gmra.mrb[0].mxu0 %v308
    %v379 = vpop.f32.mrb[0].mxu0
    %v380 = vadd.f32 0.0, %v379
    %v381 = vpop.f32.mrb[0].mxu0
    %382 = vmatprep.mubr.f32.mxu0 0.0
    %383 = vmatmul.mubr.f32.gmra.mrb[0].mxu0 %v311
    %v384 = vpop.f32.mrb[0].mxu0
    %v385 = vadd.f32 0.0, %v384
    %v386 = vpop.f32.mrb[0].mxu0
    %387 = vdwg.mxu0
    %v388 = vld [vmem:[%s7] sm:$0xff]
    %v389 = vld [vmem:[%s7 + $0x8] sm:$0xff]
    %v390 = vld [vmem:[%s7 + $0x10] sm:$0xff]
    %v391 = vld [vmem:[%s7 + $0x18] sm:$0xff]
    %394 = vrot.lane.b32.xlu0 %v380, 96
    %v395 = vpop.permute.xlu0 %394
    %396 = vrot.lane.b32.xlu0 %v385, 96
    %v397 = vpop.permute.xlu0 %396
    %v401 = vsel %vm180, %v388, 0
    %v404 = vsel %vm180, %v389, 0
    %v407 = vsel %vm180, %v390, 0
    %v410 = vsel %vm180, %v391, 0
    %412 = vmatprep.subr.mxu0 0.0
    %413 = vmatpush1.msra.mxu0 %v380
    %414 = vmatprep.subr.mxu0 0.0
    %415 = vmatpush1.msra.mxu0 %v385
    %416 = vmatprep.subr.mxu0 0.0
    %417 = vmatpush1.msra.mxu0 %v395
    %418 = vmatprep.subr.mxu0 0.0
    %419 = vmatpush1.msra.mxu0 %v397
    %420 = vmatprep.subr.mxu0 0.0
    %421 = vmatpush1.msra.mxu0 0.0
    %422 = vmatprep.subr.mxu0 0.0
    %423 = vmatpush1.msra.mxu0 0.0
    %424 = vmatprep.subr.mxu0 0.0
    %425 = vmatpush1.msra.mxu0 0.0
    %426 = vmatprep.subr.mxu0 0.0
    %427 = vmatpush1.msra.mxu0 0.0
    %428 = vmatprep.subr.mxu0 0.0
    %429 = vmatpush1.msra.mxu0 0.0
    %430 = vmatprep.subr.mxu0 0.0
    %431 = vmatpush1.msra.mxu0 0.0
    %432 = vmatprep.subr.mxu0 0.0
    %433 = vmatpush1.msra.mxu0 0.0
    %434 = vmatprep.subr.mxu0 0.0
    %435 = vmatpush1.msra.mxu0 0.0
    %436 = vmatprep.subr.mxu0 0.0
    %437 = vmatpush1.msra.mxu0 0.0
    %438 = vmatprep.subr.mxu0 0.0
    %439 = vmatpush1.msra.mxu0 0.0
    %440 = vmatprep.subr.mxu0 0.0
    %441 = vmatpush1.msra.mxu0 0.0
    %442 = vmatprep.subr.mxu0 0.0
    %443 = vmatpush1.msra.mxu0 0.0
    %444 = vmatprep.subr.mxu0 0.0
    %445 = vmatpush1.msra.mxu0 0.0
    %446 = vmatprep.subr.mxu0 0.0
    %447 = vmatpush1.msra.mxu0 0.0
    %448 = vmatprep.subr.mxu0 0.0
    %449 = vmatpush1.msra.mxu0 0.0
    %450 = vmatprep.subr.mxu0 0.0
    %451 = vmatpush1.msra.mxu0 0.0
    %452 = vmatprep.subr.mxu0 0.0
    %453 = vmatpush1.msra.mxu0 0.0
    %454 = vmatprep.subr.mxu0 0.0
    %455 = vmatpush1.msra.mxu0 0.0
    %456 = vmatprep.subr.mxu0 0.0
    %457 = vmatpush1.msra.mxu0 0.0
    %458 = vmatprep.subr.mxu0 0.0
    %459 = vmatpush1.msra.mxu0 0.0
    %460 = vmatprep.subr.mxu0 0.0
    %461 = vmatpush1.msra.mxu0 0.0
    %462 = vmatprep.subr.mxu0 0.0
    %463 = vmatpush1.msra.mxu0 0.0
    %464 = vmatprep.subr.mxu0 0.0
    %465 = vmatpush1.msra.mxu0 0.0
    %466 = vmatprep.subr.mxu0 0.0
    %467 = vmatpush1.msra.mxu0 0.0
    %468 = vmatprep.subr.mxu0 0.0
    %469 = vmatpush1.msra.mxu0 0.0
    %470 = vmatprep.subr.mxu0 0.0
    %471 = vmatpush1.msra.mxu0 0.0
    %472 = vmatprep.subr.mxu0 0.0
    %473 = vmatpush1.msra.mxu0 0.0
    %474 = vmatprep.subr.mxu0 0.0
    %475 = vmatpush1.msra.mxu0 0.0
    %476 = vmatprep.mubr.f32.mxu0 0.0
    %477 = vmatmul.mubr.f32.gmra.mrb[0].mxu0 %v401
    %v478 = vpop.f32.mrb[0].mxu0
    %v479 = vadd.f32 0.0, %v478
    %v480 = vpop.f32.mrb[0].mxu0
    %481 = vmatprep.mubr.f32.mxu0 0.0
    %482 = vmatmul.mubr.f32.gmra.mrb[0].mxu0 %v404
    %v483 = vpop.f32.mrb[0].mxu0
    %v484 = vadd.f32 0.0, %v483
    %v485 = vpop.f32.mrb[0].mxu0
    %486 = vmatprep.mubr.f32.mxu0 0.0
    %487 = vmatmul.mubr.f32.gmra.mrb[0].mxu0 %v407
    %v488 = vpop.f32.mrb[0].mxu0
    %v489 = vadd.f32 0.0, %v488
    %v490 = vpop.f32.mrb[0].mxu0
    %491 = vmatprep.mubr.f32.mxu0 0.0
    %492 = vmatmul.mubr.f32.gmra.mrb[0].mxu0 %v410
    %v493 = vpop.f32.mrb[0].mxu0
    %v494 = vadd.f32 0.0, %v493
    %v495 = vpop.f32.mrb[0].mxu0
    %496 = vdwg.mxu0
    %v497 = vmul.f32 %v479, 0.00390625
    %v498 = vmul.f32 %v484, 0.00390625
    %v499 = vmul.f32 %v489, 0.00390625
    %v500 = vmul.f32 %v494, 0.00390625
    %v501 = vand.u32 2147483647, %v497
    %v502 = vand.u32 2147483647, %v498
    %v503 = vand.u32 2147483647, %v499
    %v504 = vand.u32 2147483647, %v500
    %v505 = vmax.f32 %v501, %v503
    %v506 = vmax.f32 %v502, %v504
    %v507 = vmin.f32 %v501, %v503
    %v508 = vmin.f32 %v502, %v504
    %vm509 = vcmp.eq.f32.partialorder %v505, 0.0
    %vm510 = vcmp.eq.f32.partialorder %v506, 0.0
    %v511 = vsel %vm509, 1.0, %v505
    %v512 = vsel %vm510, 1.0, %v506
    %v513 = vrcp.pop %v511
    %v514 = vmul.f32 %v507, %v513
    %v515 = vrcp.pop %v512
    %v516 = vmul.f32 %v508, %v515
    %vm517 = vcmp.gt.f32.partialorder %v514, 0.41421357
    %vm518 = vcmp.gt.f32.partialorder %v516, 0.41421357
    %v519 = vsub.f32 %v514, 1.0
    %v520 = vsub.f32 %v516, 1.0
    %v521 = vadd.f32 %v514, 1.0
    %v522 = vadd.f32 %v516, 1.0
    %v523 = vrcp.pop %v521
    %v524 = vmul.f32 %v519, %v523
    %v525 = vrcp.pop %v522
    %v526 = vmul.f32 %v520, %v525
    %v527 = vsel %vm517, %v524, %v514
    %v528 = vsel %vm518, %v526, %v516
    %v529 = vsel %vm517, 0.7853982, 0.0
    %v530 = vsel %vm518, 0.7853982, 0.0
    %v531 = vmul.f32 %v527, %v527
    %v532 = vmul.f32 %v528, %v528
    %v533 = vmul.f32 %v531, 0.080537446
    %v534 = vmul.f32 %v532, 0.080537446
    %v535 = vsub.f32 %v533, 0.13877685
    %v536 = vsub.f32 %v534, 0.13877685
    %v537 = vmul.f32 %v535, %v531
    %v538 = vmul.f32 %v536, %v532
    %v539 = vadd.f32 %v537, 0.19977711
    %v540 = vadd.f32 %v538, 0.19977711
    %v541 = vmul.f32 %v539, %v531
    %v542 = vmul.f32 %v540, %v532
    %v543 = vsub.f32 %v541, 0.3333295
    %v544 = vsub.f32 %v542, 0.3333295
    %v545 = vmul.f32 %v543, %v531
    %v546 = vmul.f32 %v544, %v532
    %v547 = vmul.f32 %v545, %v527
    %v548 = vmul.f32 %v546, %v528
    %v549 = vadd.f32 %v547, %v527
    %v550 = vadd.f32 %v548, %v528
    %v551 = vadd.f32 %v529, %v549
    %v552 = vadd.f32 %v530, %v550
    %vm553 = vcmp.gt.f32.partialorder %v503, %v501
    %vm554 = vcmp.gt.f32.partialorder %v504, %v502
    %v555 = vsub.f32 1.5707964, %v551
    %v556 = vsub.f32 1.5707964, %v552
    %v557 = vsel %vm553, %v555, %v551
    %v558 = vsel %vm554, %v556, %v552
    %vm559 = vcmp.lt.f32.partialorder %v497, 0.0
    %vm560 = vcmp.lt.f32.partialorder %v498, 0.0
    %v561 = vsub.f32 3.1415927, %v557
    %v562 = vsub.f32 3.1415927, %v558
    %v563 = vsel %vm559, %v561, %v557
    %v564 = vsel %vm560, %v562, %v558
    %v565 = vsel %vm509, 0.0, %v563
    %v566 = vsel %vm510, 0.0, %v564
    %v567 = vmul.f32 %v565, 0.31830987
    %v568 = vmul.f32 %v566, 0.31830987
    %v569 = vmul.f32 %v567, 6.2831855
    %v570 = vmul.f32 %v568, 6.2831855
    %v571 = vsub.f32 %v569, 3.1415927
    %v572 = vsub.f32 %v570, 3.1415927
    %v573 = vand.u32 2147483647, %v571
    %vm574 = vcmp.le.f32.partialorder %v573, 0.7853982
    %vm575 = vcmp.lt.s32.totalorder %v571, 0
    %v576 = vand.u32 %v571, 2139095040
    %v577 = vshrl.u32 %v576, 23
    %v578 = vsub.s32 %v577, 127
    %v579 = vand.u32 2147483647, %v571
    %v580 = vand.u32 %v579, 8388607
    %v581 = vor.u32 %v580, 8388608
    %v582 = vsub.s32 0, %v581
    %v583 = vadd.s32 %v578, 1
    %vm584 = vcmp.gt.s32.totalorder %v583, 0
    %v585 = vsel %vm584, %v583, 0
    %v586 = vshrl.u32 %v585, 5
    %v587 = vand.u32 %v585, 31
    %v588 = vsub.s32 32, %v587
    %v589 = vshrl.u32 683565275, %v588
    %v590 = vshll.u32 683565275, %v587
    %v591 = vshrl.u32 2475754826, %v588
    %v592 = vor.u32 %v590, %v591
    %v593 = vshll.u32 2475754826, %v587
    %v594 = vshrl.u32 2131351028, %v588
    %v595 = vor.u32 %v593, %v594
    %v596 = vshll.u32 2131351028, %v587
    %v597 = vshrl.u32 2102212464, %v588
    %v598 = vor.u32 %v596, %v597
    %v599 = vshll.u32 2102212464, %v587
    %v600 = vshrl.u32 920167782, %v588
    %v601 = vor.u32 %v599, %v600
    %v602 = vshll.u32 920167782, %v587
    %v603 = vshrl.u32 1326507024, %v588
    %v604 = vor.u32 %v602, %v603
    %vm605 = vcmp.lt.s32.totalorder %v586, 1
    %vm606 = vcmp.lt.s32.totalorder %v586, 2
    %vm607 = vcmp.lt.s32.totalorder %v586, 3
    %vm608 = vcmp.lt.s32.totalorder %v586, 4
    %v609 = vsel %vm605, %v589, %v592
    %v610 = vsel %vm608, %v598, 2102212464
    %v611 = vsel %vm607, %v595, %v610
    %v612 = vsel %vm606, %v609, %v611
    %v613 = vsel %vm605, %v592, %v595
    %v614 = vsel %vm608, %v601, 920167782
    %v615 = vsel %vm607, %v598, %v614
    %v616 = vsel %vm606, %v613, %v615
    %v617 = vsel %vm605, %v595, %v598
    %v618 = vsel %vm608, %v604, 1326507024
    %v619 = vsel %vm607, %v601, %v618
    %v620 = vsel %vm606, %v617, %v619
    %v621 = vshll.u32 %v581, 8
    %v622 = vmul.u32.u64.compose %v621, %v620
    %v623 = vextract.low.u32 %v622
    %v624 = vextract.high.u32 %v622
    %v625 = vmul.u32.u64.compose %v621, %v616
    %v626 = vextract.low.u32 %v625
    %v627 = vextract.high.u32 %v625
    %v628 = vmul.u32 %v621, %v612
    %v629 = vadd.s32 %v624, %v626
    %vm630 = vc.u32 %v624, %v626
    %v631 = vadd.s32 %v627, 1
    %v632 = vsel %vm630, %v631, %v627
    %v633 = vadd.s32 %v628, %v632
    %v634 = vadd.s32 %v633, 536870912
    %v635 = vshrl.u32 %v634, 30
    %v636 = vshll.u32 %v635, 30
    %v637 = vsub.s32 %v633, %v636
    %vm638 = vcmp.lt.s32.totalorder %v637, 0
    %v639 = vsub.s32 0, %v637
    %v640 = vsel %vm638, %v639, %v637
    %v641 = vclz %v640
    %v642 = vsub.s32 %v641, 2
    %vm643 = vcmp.gt.s32.totalorder 0, %v642
    %v644 = vsel %vm643, 0, %v642
    %v645 = vsub.s32 32, %v644
    %v646 = vshll.u32 %v637, %v644
    %v647 = vshrl.u32 %v629, %v645
    %v648 = vor.u32 %v646, %v647
    %v649 = vsub.s32 4294967266, %v644
    %v650 = vadd.s32 %v649, 127
    %v651 = vshll.u32 %v650, 23
    %v652 = vor.u32 4788187, %v651
    %v653 = vand.u32 2147483647, %v652
    %v655 = vcvt.s32.f32 %v648
    %v656 = vmul.f32 %v655, %v653
    %v657 = vxor.u32 %v656, 2147483648
    %v658 = vsel %vm575, %v657, %v656
    %v659 = vsub.s32 4, %v635
    %v660 = vsel %vm575, %v659, %v635
    %v661 = vsel %vm574, %v571, %v658
    %v662 = vsel %vm574, 0, %v660
    %v663 = vcosq.f32.pop %v661
    %v664 = vsinq.f32.pop %v661
    %vm665 = vweird.f32 %v571
    %v666 = vand.u32 %v662, 3
    %vm667 = vcmp.lt.s32.totalorder %v666, 2
    %vm668 = vcmp.eq.s32.totalorder %v666, 0
    %v669 = vxor.u32 %v664, 2147483648
    %v670 = vsel %vm668, %v663, %v669
    %vm671 = vcmp.eq.s32.totalorder %v666, 2
    %v672 = vxor.u32 %v663, 2147483648
    %v673 = vsel %vm671, %v672, %v664
    %v674 = vsel %vm667, %v670, %v673
    %v675 = vsel %vm665, nan, %v674
    %v676 = vand.u32 2147483647, %v572
    %vm677 = vcmp.le.f32.partialorder %v676, 0.7853982
    %vm678 = vcmp.lt.s32.totalorder %v572, 0
    %v679 = vand.u32 %v572, 2139095040
    %v680 = vshrl.u32 %v679, 23
    %v681 = vsub.s32 %v680, 127
    %v682 = vand.u32 2147483647, %v572
    %v683 = vand.u32 %v682, 8388607
    %v684 = vor.u32 %v683, 8388608
    %v685 = vsub.s32 0, %v684
    %v686 = vadd.s32 %v681, 1
    %vm687 = vcmp.gt.s32.totalorder %v686, 0
    %v688 = vsel %vm687, %v686, 0
    %v689 = vshrl.u32 %v688, 5
    %v690 = vand.u32 %v688, 31
    %v691 = vsub.s32 32, %v690
    %v692 = vshrl.u32 683565275, %v691
    %v693 = vshll.u32 683565275, %v690
    %v694 = vshrl.u32 2475754826, %v691
    %v695 = vor.u32 %v693, %v694
    %v696 = vshll.u32 2475754826, %v690
    %v697 = vshrl.u32 2131351028, %v691
    %v698 = vor.u32 %v696, %v697
    %v699 = vshll.u32 2131351028, %v690
    %v700 = vshrl.u32 2102212464, %v691
    %v701 = vor.u32 %v699, %v700
    %v702 = vshll.u32 2102212464, %v690
    %v703 = vshrl.u32 920167782, %v691
    %v704 = vor.u32 %v702, %v703
    %v705 = vshll.u32 920167782, %v690
    %v706 = vshrl.u32 1326507024, %v691
    %v707 = vor.u32 %v705, %v706
    %vm708 = vcmp.lt.s32.totalorder %v689, 1
    %vm709 = vcmp.lt.s32.totalorder %v689, 2
    %vm710 = vcmp.lt.s32.totalorder %v689, 3
    %vm711 = vcmp.lt.s32.totalorder %v689, 4
    %v712 = vsel %vm708, %v692, %v695
    %v713 = vsel %vm711, %v701, 2102212464
    %v714 = vsel %vm710, %v698, %v713
    %v715 = vsel %vm709, %v712, %v714
    %v716 = vsel %vm708, %v695, %v698
    %v717 = vsel %vm711, %v704, 920167782
    %v718 = vsel %vm710, %v701, %v717
    %v719 = vsel %vm709, %v716, %v718
    %v720 = vsel %vm708, %v698, %v701
    %v721 = vsel %vm711, %v707, 1326507024
    %v722 = vsel %vm710, %v704, %v721
    %v723 = vsel %vm709, %v720, %v722
    %v724 = vshll.u32 %v684, 8
    %v725 = vmul.u32.u64.compose %v724, %v723
    %v726 = vextract.low.u32 %v725
    %v727 = vextract.high.u32 %v725
    %v728 = vmul.u32.u64.compose %v724, %v719
    %v729 = vextract.low.u32 %v728
    %v730 = vextract.high.u32 %v728
    %v731 = vmul.u32 %v724, %v715
    %v732 = vadd.s32 %v727, %v729
    %vm733 = vc.u32 %v727, %v729
    %v734 = vadd.s32 %v730, 1
    %v735 = vsel %vm733, %v734, %v730
    %v736 = vadd.s32 %v731, %v735
    %v737 = vadd.s32 %v736, 536870912
    %v738 = vshrl.u32 %v737, 30
    %v739 = vshll.u32 %v738, 30
    %v740 = vsub.s32 %v736, %v739
    %vm741 = vcmp.lt.s32.totalorder %v740, 0
    %v742 = vsub.s32 0, %v740
    %v743 = vsel %vm741, %v742, %v740
    %v744 = vclz %v743
    %v745 = vsub.s32 %v744, 2
    %vm746 = vcmp.gt.s32.totalorder 0, %v745
    %v747 = vsel %vm746, 0, %v745
    %v748 = vsub.s32 32, %v747
    %v749 = vshll.u32 %v740, %v747
    %v750 = vshrl.u32 %v732, %v748
    %v751 = vor.u32 %v749, %v750
    %v752 = vsub.s32 4294967266, %v747
    %v753 = vadd.s32 %v752, 127
    %v754 = vshll.u32 %v753, 23
    %v755 = vor.u32 4788187, %v754
    %v756 = vand.u32 2147483647, %v755
    %v758 = vcvt.s32.f32 %v751
    %v759 = vmul.f32 %v758, %v756
    %v760 = vxor.u32 %v759, 2147483648
    %v761 = vsel %vm678, %v760, %v759
    %v762 = vsub.s32 4, %v738
    %v763 = vsel %vm678, %v762, %v738
    %v764 = vsel %vm677, %v572, %v761
    %v765 = vsel %vm677, 0, %v763
    %v766 = vcosq.f32.pop %v764
    %v767 = vsinq.f32.pop %v764
    %vm768 = vweird.f32 %v572
    %v769 = vand.u32 %v765, 3
    %vm770 = vcmp.lt.s32.totalorder %v769, 2
    %vm771 = vcmp.eq.s32.totalorder %v769, 0
    %v772 = vxor.u32 %v767, 2147483648
    %v773 = vsel %vm771, %v766, %v772
    %vm774 = vcmp.eq.s32.totalorder %v769, 2
    %v775 = vxor.u32 %v766, 2147483648
    %v776 = vsel %vm774, %v775, %v767
    %v777 = vsel %vm770, %v773, %v776
    %v778 = vsel %vm768, nan, %v777
    %v779 = vand.u32 2147483647, %v571
    %vm780 = vcmp.le.f32.partialorder %v779, 0.7853982
    %vm781 = vcmp.lt.s32.totalorder %v571, 0
    %v782 = vand.u32 %v571, 2139095040
    %v783 = vshrl.u32 %v782, 23
    %v784 = vsub.s32 %v783, 127
    %v785 = vand.u32 2147483647, %v571
    %v786 = vand.u32 %v785, 8388607
    %v787 = vor.u32 %v786, 8388608
    %v788 = vsub.s32 0, %v787
    %v789 = vadd.s32 %v784, 1
    %vm790 = vcmp.gt.s32.totalorder %v789, 0
    %v791 = vsel %vm790, %v789, 0
    %v792 = vshrl.u32 %v791, 5
    %v793 = vand.u32 %v791, 31
    %v794 = vsub.s32 32, %v793
    %v795 = vshrl.u32 683565275, %v794
    %v796 = vshll.u32 683565275, %v793
    %v797 = vshrl.u32 2475754826, %v794
    %v798 = vor.u32 %v796, %v797
    %v799 = vshll.u32 2475754826, %v793
    %v800 = vshrl.u32 2131351028, %v794
    %v801 = vor.u32 %v799, %v800
    %v802 = vshll.u32 2131351028, %v793
    %v803 = vshrl.u32 2102212464, %v794
    %v804 = vor.u32 %v802, %v803
    %v805 = vshll.u32 2102212464, %v793
    %v806 = vshrl.u32 920167782, %v794
    %v807 = vor.u32 %v805, %v806
    %v808 = vshll.u32 920167782, %v793
    %v809 = vshrl.u32 1326507024, %v794
    %v810 = vor.u32 %v808, %v809
    %vm811 = vcmp.lt.s32.totalorder %v792, 1
    %vm812 = vcmp.lt.s32.totalorder %v792, 2
    %vm813 = vcmp.lt.s32.totalorder %v792, 3
    %vm814 = vcmp.lt.s32.totalorder %v792, 4
    %v815 = vsel %vm811, %v795, %v798
    %v816 = vsel %vm814, %v804, 2102212464
    %v817 = vsel %vm813, %v801, %v816
    %v818 = vsel %vm812, %v815, %v817
    %v819 = vsel %vm811, %v798, %v801
    %v820 = vsel %vm814, %v807, 920167782
    %v821 = vsel %vm813, %v804, %v820
    %v822 = vsel %vm812, %v819, %v821
    %v823 = vsel %vm811, %v801, %v804
    %v824 = vsel %vm814, %v810, 1326507024
    %v825 = vsel %vm813, %v807, %v824
    %v826 = vsel %vm812, %v823, %v825
    %v827 = vshll.u32 %v787, 8
    %v828 = vmul.u32.u64.compose %v827, %v826
    %v829 = vextract.low.u32 %v828
    %v830 = vextract.high.u32 %v828
    %v831 = vmul.u32.u64.compose %v827, %v822
    %v832 = vextract.low.u32 %v831
    %v833 = vextract.high.u32 %v831
    %v834 = vmul.u32 %v827, %v818
    %v835 = vadd.s32 %v830, %v832
    %vm836 = vc.u32 %v830, %v832
    %v837 = vadd.s32 %v833, 1
    %v838 = vsel %vm836, %v837, %v833
    %v839 = vadd.s32 %v834, %v838
    %v840 = vadd.s32 %v839, 536870912
    %v841 = vshrl.u32 %v840, 30
    %v842 = vshll.u32 %v841, 30
    %v843 = vsub.s32 %v839, %v842
    %vm844 = vcmp.lt.s32.totalorder %v843, 0
    %v845 = vsub.s32 0, %v843
    %v846 = vsel %vm844, %v845, %v843
    %v847 = vclz %v846
    %v848 = vsub.s32 %v847, 2
    %vm849 = vcmp.gt.s32.totalorder 0, %v848
    %v850 = vsel %vm849, 0, %v848
    %v851 = vsub.s32 32, %v850
    %v852 = vshll.u32 %v843, %v850
    %v853 = vshrl.u32 %v835, %v851
    %v854 = vor.u32 %v852, %v853
    %v855 = vsub.s32 4294967266, %v850
    %v856 = vadd.s32 %v855, 127
    %v857 = vshll.u32 %v856, 23
    %v858 = vor.u32 4788187, %v857
    %v859 = vand.u32 2147483647, %v858
    %v861 = vcvt.s32.f32 %v854
    %v862 = vmul.f32 %v861, %v859
    %v863 = vxor.u32 %v862, 2147483648
    %v864 = vsel %vm781, %v863, %v862
    %v865 = vsub.s32 4, %v841
    %v866 = vsel %vm781, %v865, %v841
    %v867 = vsel %vm780, %v571, %v864
    %v868 = vsel %vm780, 0, %v866
    %v869 = vcosq.f32.pop %v867
    %v870 = vsinq.f32.pop %v867
    %vm871 = vweird.f32 %v571
    %v872 = vadd.s32 %v868, 3
    %v873 = vand.u32 %v872, 3
    %vm874 = vcmp.lt.s32.totalorder %v873, 2
    %vm875 = vcmp.eq.s32.totalorder %v873, 0
    %v876 = vxor.u32 %v870, 2147483648
    %v877 = vsel %vm875, %v869, %v876
    %vm878 = vcmp.eq.s32.totalorder %v873, 2
    %v879 = vxor.u32 %v869, 2147483648
    %v880 = vsel %vm878, %v879, %v870
    %v881 = vsel %vm874, %v877, %v880
    %v882 = vsel %vm871, nan, %v881
    %v883 = vand.u32 2147483647, %v572
    %vm884 = vcmp.le.f32.partialorder %v883, 0.7853982
    %vm885 = vcmp.lt.s32.totalorder %v572, 0
    %v886 = vand.u32 %v572, 2139095040
    %v887 = vshrl.u32 %v886, 23
    %v888 = vsub.s32 %v887, 127
    %v889 = vand.u32 2147483647, %v572
    %v890 = vand.u32 %v889, 8388607
    %v891 = vor.u32 %v890, 8388608
    %v892 = vsub.s32 0, %v891
    %v893 = vadd.s32 %v888, 1
    %vm894 = vcmp.gt.s32.totalorder %v893, 0
    %v895 = vsel %vm894, %v893, 0
    %v896 = vshrl.u32 %v895, 5
    %v897 = vand.u32 %v895, 31
    %v898 = vsub.s32 32, %v897
    %v899 = vshrl.u32 683565275, %v898
    %v900 = vshll.u32 683565275, %v897
    %v901 = vshrl.u32 2475754826, %v898
    %v902 = vor.u32 %v900, %v901
    %v903 = vshll.u32 2475754826, %v897
    %v904 = vshrl.u32 2131351028, %v898
    %v905 = vor.u32 %v903, %v904
    %v906 = vshll.u32 2131351028, %v897
    %v907 = vshrl.u32 2102212464, %v898
    %v908 = vor.u32 %v906, %v907
    %v909 = vshll.u32 2102212464, %v897
    %v910 = vshrl.u32 920167782, %v898
    %v911 = vor.u32 %v909, %v910
    %v912 = vshll.u32 920167782, %v897
    %v913 = vshrl.u32 1326507024, %v898
    %v914 = vor.u32 %v912, %v913
    %vm915 = vcmp.lt.s32.totalorder %v896, 1
    %vm916 = vcmp.lt.s32.totalorder %v896, 2
    %vm917 = vcmp.lt.s32.totalorder %v896, 3
    %vm918 = vcmp.lt.s32.totalorder %v896, 4
    %v919 = vsel %vm915, %v899, %v902
    %v920 = vsel %vm918, %v908, 2102212464
    %v921 = vsel %vm917, %v905, %v920
    %v922 = vsel %vm916, %v919, %v921
    %v923 = vsel %vm915, %v902, %v905
    %v924 = vsel %vm918, %v911, 920167782
    %v925 = vsel %vm917, %v908, %v924
    %v926 = vsel %vm916, %v923, %v925
    %v927 = vsel %vm915, %v905, %v908
    %v928 = vsel %vm918, %v914, 1326507024
    %v929 = vsel %vm917, %v911, %v928
    %v930 = vsel %vm916, %v927, %v929
    %v931 = vshll.u32 %v891, 8
    %v932 = vmul.u32.u64.compose %v931, %v930
    %v933 = vextract.low.u32 %v932
    %v934 = vextract.high.u32 %v932
    %v935 = vmul.u32.u64.compose %v931, %v926
    %v936 = vextract.low.u32 %v935
    %v937 = vextract.high.u32 %v935
    %v938 = vmul.u32 %v931, %v922
    %v939 = vadd.s32 %v934, %v936
    %vm940 = vc.u32 %v934, %v936
    %v941 = vadd.s32 %v937, 1
    %v942 = vsel %vm940, %v941, %v937
    %v943 = vadd.s32 %v938, %v942
    %v944 = vadd.s32 %v943, 536870912
    %v945 = vshrl.u32 %v944, 30
    %v946 = vshll.u32 %v945, 30
    %v947 = vsub.s32 %v943, %v946
    %vm948 = vcmp.lt.s32.totalorder %v947, 0
    %v949 = vsub.s32 0, %v947
    %v950 = vsel %vm948, %v949, %v947
    %v951 = vclz %v950
    %v952 = vsub.s32 %v951, 2
    %vm953 = vcmp.gt.s32.totalorder 0, %v952
    %v954 = vsel %vm953, 0, %v952
    %v955 = vsub.s32 32, %v954
    %v956 = vshll.u32 %v947, %v954
    %v957 = vshrl.u32 %v939, %v955
    %v958 = vor.u32 %v956, %v957
    %v959 = vsub.s32 4294967266, %v954
    %v960 = vadd.s32 %v959, 127
    %v961 = vshll.u32 %v960, 23
    %v962 = vor.u32 4788187, %v961
    %v963 = vand.u32 2147483647, %v962
    %v965 = vcvt.s32.f32 %v958
    %v966 = vmul.f32 %v965, %v963
    %v967 = vxor.u32 %v966, 2147483648
    %v968 = vsel %vm885, %v967, %v966
    %v969 = vsub.s32 4, %v945
    %v970 = vsel %vm885, %v969, %v945
    %v971 = vsel %vm884, %v572, %v968
    %v972 = vsel %vm884, 0, %v970
    %v973 = vcosq.f32.pop %v971
    %v974 = vsinq.f32.pop %v971
    %vm975 = vweird.f32 %v572
    %v976 = vadd.s32 %v972, 3
    %v977 = vand.u32 %v976, 3
    %vm978 = vcmp.lt.s32.totalorder %v977, 2
    %vm979 = vcmp.eq.s32.totalorder %v977, 0
    %v980 = vxor.u32 %v974, 2147483648
    %v981 = vsel %vm979, %v973, %v980
    %vm982 = vcmp.eq.s32.totalorder %v977, 2
    %v983 = vxor.u32 %v973, 2147483648
    %v984 = vsel %vm982, %v983, %v974
    %v985 = vsel %vm978, %v981, %v984
    %v986 = vsel %vm975, nan, %v985
    %v987 = vld [vmem:[%s6] sm:$0xff]
    %v988 = vld [vmem:[%s6 + $0x8] sm:$0xff]
    %v989 = vld [vmem:[%s6 + $0x10] sm:$0xff]
    %v990 = vld [vmem:[%s6 + $0x18] sm:$0xff]
    %v992 = vsel %vm180, %v987, 0
    %v995 = vsel %vm180, %v988, 0
    %v998 = vsel %vm180, %v989, 0
    %v1001 = vsel %vm180, %v990, 0
    %1003 = vmatprep.subr.mxu0 0.0
    %1004 = vmatpush1.msra.mxu0 %v675
    %1005 = vmatprep.subr.mxu0 0.0
    %1006 = vmatpush1.msra.mxu0 %v778
    %1007 = vmatprep.subr.mxu0 0.0
    %1008 = vmatpush1.msra.mxu0 %v882
    %1009 = vmatprep.subr.mxu0 0.0
    %1010 = vmatpush1.msra.mxu0 %v986
    %1011 = vmatprep.subr.mxu0 0.0
    %1012 = vmatpush1.msra.mxu0 0.0
    %1013 = vmatprep.subr.mxu0 0.0
    %1014 = vmatpush1.msra.mxu0 0.0
    %1015 = vmatprep.subr.mxu0 0.0
    %1016 = vmatpush1.msra.mxu0 0.0
    %1017 = vmatprep.subr.mxu0 0.0
    %1018 = vmatpush1.msra.mxu0 0.0
    %1019 = vmatprep.subr.mxu0 0.0
    %1020 = vmatpush1.msra.mxu0 0.0
    %1021 = vmatprep.subr.mxu0 0.0
    %1022 = vmatpush1.msra.mxu0 0.0
    %1023 = vmatprep.subr.mxu0 0.0
    %1024 = vmatpush1.msra.mxu0 0.0
    %1025 = vmatprep.subr.mxu0 0.0
    %1026 = vmatpush1.msra.mxu0 0.0
    %1027 = vmatprep.subr.mxu0 0.0
    %1028 = vmatpush1.msra.mxu0 0.0
    %1029 = vmatprep.subr.mxu0 0.0
    %1030 = vmatpush1.msra.mxu0 0.0
    %1031 = vmatprep.subr.mxu0 0.0
    %1032 = vmatpush1.msra.mxu0 0.0
    %1033 = vmatprep.subr.mxu0 0.0
    %1034 = vmatpush1.msra.mxu0 0.0
    %1035 = vmatprep.subr.mxu0 0.0
    %1036 = vmatpush1.msra.mxu0 0.0
    %1037 = vmatprep.subr.mxu0 0.0
    %1038 = vmatpush1.msra.mxu0 0.0
    %1039 = vmatprep.subr.mxu0 0.0
    %1040 = vmatpush1.msra.mxu0 0.0
    %1041 = vmatprep.subr.mxu0 0.0
    %1042 = vmatpush1.msra.mxu0 0.0
    %1043 = vmatprep.subr.mxu0 0.0
    %1044 = vmatpush1.msra.mxu0 0.0
    %1045 = vmatprep.subr.mxu0 0.0
    %1046 = vmatpush1.msra.mxu0 0.0
    %1047 = vmatprep.subr.mxu0 0.0
    %1048 = vmatpush1.msra.mxu0 0.0
    %1049 = vmatprep.subr.mxu0 0.0
    %1050 = vmatpush1.msra.mxu0 0.0
    %1051 = vmatprep.subr.mxu0 0.0
    %1052 = vmatpush1.msra.mxu0 0.0
    %1053 = vmatprep.subr.mxu0 0.0
    %1054 = vmatpush1.msra.mxu0 0.0
    %1055 = vmatprep.subr.mxu0 0.0
    %1056 = vmatpush1.msra.mxu0 0.0
    %1057 = vmatprep.subr.mxu0 0.0
    %1058 = vmatpush1.msra.mxu0 0.0
    %1059 = vmatprep.subr.mxu0 0.0
    %1060 = vmatpush1.msra.mxu0 0.0
    %1061 = vmatprep.subr.mxu0 0.0
    %1062 = vmatpush1.msra.mxu0 0.0
    %1063 = vmatprep.subr.mxu0 0.0
    %1064 = vmatpush1.msra.mxu0 0.0
    %1065 = vmatprep.subr.mxu0 0.0
    %1066 = vmatpush1.msra.mxu0 0.0
    %1067 = vmatprep.mubr.f32.mxu0 0.0
    %1068 = vmatmul.mubr.f32.gmra.mrb[0].mxu0 %v992
    %v1069 = vpop.f32.mrb[0].mxu0
    %v1070 = vadd.f32 0.0, %v1069
    %v1071 = vpop.f32.mrb[0].mxu0
    %1072 = vmatprep.mubr.f32.mxu0 0.0
    %1073 = vmatmul.mubr.f32.gmra.mrb[0].mxu0 %v995
    %v1074 = vpop.f32.mrb[0].mxu0
    %v1075 = vadd.f32 0.0, %v1074
    %v1076 = vpop.f32.mrb[0].mxu0
    %1077 = vmatprep.mubr.f32.mxu0 0.0
    %1078 = vmatmul.mubr.f32.gmra.mrb[0].mxu0 %v998
    %v1079 = vpop.f32.mrb[0].mxu0
    %v1080 = vadd.f32 0.0, %v1079
    %v1081 = vpop.f32.mrb[0].mxu0
    %1082 = vmatprep.mubr.f32.mxu0 0.0
    %1083 = vmatmul.mubr.f32.gmra.mrb[0].mxu0 %v1001
    %v1084 = vpop.f32.mrb[0].mxu0
    %v1085 = vadd.f32 0.0, %v1084
    %v1086 = vpop.f32.mrb[0].mxu0
    %1087 = vdwg.mxu0
    %1090 = vrot.lane.b32.xlu0 %v1080, 32
    %v1091 = vpop.permute.xlu0 %1090
    %1092 = vrot.lane.b32.xlu0 %v1085, 32
    %v1093 = vpop.permute.xlu0 %1092
    %v1096 = vsel %vm180, %v1070, %v1091
    %v1097 = vsel %vm180, %v1075, %v1093
    %v1099 = vsel %vm191, %v1096, 0
    %v1102 = vsel %vm191, %v1097, 0
    %1104 = vmatprep.subr.mxu0 0.0
    %1105 = vmatpush1.msra.mxu0 %v183
    %1106 = vmatprep.subr.mxu0 0.0
    %1107 = vmatpush1.msra.mxu0 %v184
    %1108 = vmatprep.subr.mxu0 0.0
    %1109 = vmatpush1.msra.mxu0 %v185
    %1110 = vmatprep.subr.mxu0 0.0
    %1111 = vmatpush1.msra.mxu0 %v186
    %1112 = vmatprep.subr.mxu0 0.0
    %1113 = vmatpush1.msra.mxu0 %v187
    %1114 = vmatprep.subr.mxu0 0.0
    %1115 = vmatpush1.msra.mxu0 %v188
    %1116 = vmatprep.subr.mxu0 0.0
    %1117 = vmatpush1.msra.mxu0 %v189
    %1118 = vmatprep.subr.mxu0 0.0
    %1119 = vmatpush1.msra.mxu0 %v190
    %1120 = vmatprep.subr.mxu0 0.0
    %1121 = vmatpush1.msra.mxu0 0.0
    %1122 = vmatprep.subr.mxu0 0.0
    %1123 = vmatpush1.msra.mxu0 0.0
    %1124 = vmatprep.subr.mxu0 0.0
    %1125 = vmatpush1.msra.mxu0 0.0
    %1126 = vmatprep.subr.mxu0 0.0
    %1127 = vmatpush1.msra.mxu0 0.0
    %1128 = vmatprep.subr.mxu0 0.0
    %1129 = vmatpush1.msra.mxu0 0.0
    %1130 = vmatprep.subr.mxu0 0.0
    %1131 = vmatpush1.msra.mxu0 0.0
    %1132 = vmatprep.subr.mxu0 0.0
    %1133 = vmatpush1.msra.mxu0 0.0
    %1134 = vmatprep.subr.mxu0 0.0
    %1135 = vmatpush1.msra.mxu0 0.0
    %1136 = vmatprep.subr.mxu0 0.0
    %1137 = vmatpush1.msra.mxu0 0.0
    %1138 = vmatprep.subr.mxu0 0.0
    %1139 = vmatpush1.msra.mxu0 0.0
    %1140 = vmatprep.subr.mxu0 0.0
    %1141 = vmatpush1.msra.mxu0 0.0
    %1142 = vmatprep.subr.mxu0 0.0
    %1143 = vmatpush1.msra.mxu0 0.0
    %1144 = vmatprep.subr.mxu0 0.0
    %1145 = vmatpush1.msra.mxu0 0.0
    %1146 = vmatprep.subr.mxu0 0.0
    %1147 = vmatpush1.msra.mxu0 0.0
    %1148 = vmatprep.subr.mxu0 0.0
    %1149 = vmatpush1.msra.mxu0 0.0
    %1150 = vmatprep.subr.mxu0 0.0
    %1151 = vmatpush1.msra.mxu0 0.0
    %1152 = vmatprep.subr.mxu0 0.0
    %1153 = vmatpush1.msra.mxu0 0.0
    %1154 = vmatprep.subr.mxu0 0.0
    %1155 = vmatpush1.msra.mxu0 0.0
    %1156 = vmatprep.subr.mxu0 0.0
    %1157 = vmatpush1.msra.mxu0 0.0
    %1158 = vmatprep.subr.mxu0 0.0
    %1159 = vmatpush1.msra.mxu0 0.0
    %1160 = vmatprep.subr.mxu0 0.0
    %1161 = vmatpush1.msra.mxu0 0.0
    %1162 = vmatprep.subr.mxu0 0.0
    %1163 = vmatpush1.msra.mxu0 0.0
    %1164 = vmatprep.subr.mxu0 0.0
    %1165 = vmatpush1.msra.mxu0 0.0
    %1166 = vmatprep.subr.mxu0 0.0
    %1167 = vmatpush1.msra.mxu0 0.0
    %1168 = vmatprep.mubr.f32.mxu0 0.0
    %1169 = vmatmul.mubr.f32.gmra.mrb[0].mxu0 %v1099
    %v1170 = vpop.f32.mrb[0].mxu0
    %v1171 = vadd.f32 0.0, %v1170
    %v1172 = vpop.f32.mrb[0].mxu0
    %1173 = vmatprep.mubr.f32.mxu0 0.0
    %1174 = vmatmul.mubr.f32.gmra.mrb[0].mxu0 %v1102
    %v1175 = vpop.f32.mrb[0].mxu0
    %v1176 = vadd.f32 0.0, %v1175
    %v1177 = vpop.f32.mrb[0].mxu0
    %1178 = vdwg.mxu0
    %v1179 = vmul.f32 %v1171, %v273
    %v1180 = vmul.f32 %v1176, %v274
    %1183 = vrot.lane.b32.xlu0 %v1171, 96
    %v1184 = vpop.permute.xlu0 %1183
    %1185 = vrot.lane.b32.xlu0 %v1176, 96
    %v1186 = vpop.permute.xlu0 %1185
    %1189 = vrot.lane.b32.xlu0 %v1171, 32
    %v1190 = vpop.permute.xlu0 %1189
    %1191 = vrot.lane.b32.xlu0 %v1176, 32
    %v1192 = vpop.permute.xlu0 %1191
    %v1195 = vsel %vm180, %v1184, %v1190
    %v1196 = vsel %vm180, %v1186, %v1192
    %v1197 = vmul.f32 %v1195, %v293
    %v1198 = vmul.f32 %v1196, %v294
    %v1199 = vadd.f32 %v1179, %v1197
    %v1200 = vadd.f32 %v1180, %v1198
    %v1202 = vsel %vm191, %v1199, 0
    %v1205 = vsel %vm191, %v1200, 0
    %1207 = vmatprep.subr.mxu0 0.0
    %1208 = vmatpush1.msra.mxu0 %v299
    %1209 = vmatprep.subr.mxu0 0.0
    %1210 = vmatpush1.msra.mxu0 %v300
    %1211 = vmatprep.subr.mxu0 0.0
    %1212 = vmatpush1.msra.mxu0 %v301
    %1213 = vmatprep.subr.mxu0 0.0
    %1214 = vmatpush1.msra.mxu0 %v302
    %1215 = vmatprep.subr.mxu0 0.0
    %1216 = vmatpush1.msra.mxu0 %v303
    %1217 = vmatprep.subr.mxu0 0.0
    %1218 = vmatpush1.msra.mxu0 %v304
    %1219 = vmatprep.subr.mxu0 0.0
    %1220 = vmatpush1.msra.mxu0 %v305
    %1221 = vmatprep.subr.mxu0 0.0
    %1222 = vmatpush1.msra.mxu0 %v306
    %1223 = vmatprep.subr.mxu0 0.0
    %1224 = vmatpush1.msra.mxu0 0.0
    %1225 = vmatprep.subr.mxu0 0.0
    %1226 = vmatpush1.msra.mxu0 0.0
    %1227 = vmatprep.subr.mxu0 0.0
    %1228 = vmatpush1.msra.mxu0 0.0
    %1229 = vmatprep.subr.mxu0 0.0
    %1230 = vmatpush1.msra.mxu0 0.0
    %1231 = vmatprep.subr.mxu0 0.0
    %1232 = vmatpush1.msra.mxu0 0.0
    %1233 = vmatprep.subr.mxu0 0.0
    %1234 = vmatpush1.msra.mxu0 0.0
    %1235 = vmatprep.subr.mxu0 0.0
    %1236 = vmatpush1.msra.mxu0 0.0
    %1237 = vmatprep.subr.mxu0 0.0
    %1238 = vmatpush1.msra.mxu0 0.0
    %1239 = vmatprep.subr.mxu0 0.0
    %1240 = vmatpush1.msra.mxu0 0.0
    %1241 = vmatprep.subr.mxu0 0.0
    %1242 = vmatpush1.msra.mxu0 0.0
    %1243 = vmatprep.subr.mxu0 0.0
    %1244 = vmatpush1.msra.mxu0 0.0
    %1245 = vmatprep.subr.mxu0 0.0
    %1246 = vmatpush1.msra.mxu0 0.0
    %1247 = vmatprep.subr.mxu0 0.0
    %1248 = vmatpush1.msra.mxu0 0.0
    %1249 = vmatprep.subr.mxu0 0.0
    %1250 = vmatpush1.msra.mxu0 0.0
    %1251 = vmatprep.subr.mxu0 0.0
    %1252 = vmatpush1.msra.mxu0 0.0
    %1253 = vmatprep.subr.mxu0 0.0
    %1254 = vmatpush1.msra.mxu0 0.0
    %1255 = vmatprep.subr.mxu0 0.0
    %1256 = vmatpush1.msra.mxu0 0.0
    %1257 = vmatprep.subr.mxu0 0.0
    %1258 = vmatpush1.msra.mxu0 0.0
    %1259 = vmatprep.subr.mxu0 0.0
    %1260 = vmatpush1.msra.mxu0 0.0
    %1261 = vmatprep.subr.mxu0 0.0
    %1262 = vmatpush1.msra.mxu0 0.0
    %1263 = vmatprep.subr.mxu0 0.0
    %1264 = vmatpush1.msra.mxu0 0.0
    %1265 = vmatprep.subr.mxu0 0.0
    %1266 = vmatpush1.msra.mxu0 0.0
    %1267 = vmatprep.subr.mxu0 0.0
    %1268 = vmatpush1.msra.mxu0 0.0
    %1269 = vmatprep.subr.mxu0 0.0
    %1270 = vmatpush1.msra.mxu0 0.0
    %1271 = vmatprep.mubr.f32.mxu0 0.0
    %1272 = vmatmul.mubr.f32.gmra.mrb[0].mxu0 %v1202
    %v1273 = vpop.f32.mrb[0].mxu0
    %v1274 = vadd.f32 0.0, %v1273
    %v1275 = vpop.f32.mrb[0].mxu0
    %1276 = vmatprep.mubr.f32.mxu0 0.0
    %1277 = vmatmul.mubr.f32.gmra.mrb[0].mxu0 %v1205
    %v1278 = vpop.f32.mrb[0].mxu0
    %v1279 = vadd.f32 0.0, %v1278
    %v1280 = vpop.f32.mrb[0].mxu0
    %1281 = vdwg.mxu0
    %1284 = vrot.lane.b32.xlu0 %v1274, 96
    %v1285 = vpop.permute.xlu0 %1284
    %1286 = vrot.lane.b32.xlu0 %v1279, 96
    %v1287 = vpop.permute.xlu0 %1286
    %1290 = vmatprep.subr.mxu0 0.0
    %1291 = vmatpush1.msra.mxu0 %v1274
    %1292 = vmatprep.subr.mxu0 0.0
    %1293 = vmatpush1.msra.mxu0 %v1279
    %1294 = vmatprep.subr.mxu0 0.0
    %1295 = vmatpush1.msra.mxu0 %v1285
    %1296 = vmatprep.subr.mxu0 0.0
    %1297 = vmatpush1.msra.mxu0 %v1287
    %1298 = vmatprep.subr.mxu0 0.0
    %1299 = vmatpush1.msra.mxu0 0.0
    %1300 = vmatprep.subr.mxu0 0.0
    %1301 = vmatpush1.msra.mxu0 0.0
    %1302 = vmatprep.subr.mxu0 0.0
    %1303 = vmatpush1.msra.mxu0 0.0
    %1304 = vmatprep.subr.mxu0 0.0
    %1305 = vmatpush1.msra.mxu0 0.0
    %1306 = vmatprep.subr.mxu0 0.0
    %1307 = vmatpush1.msra.mxu0 0.0
    %1308 = vmatprep.subr.mxu0 0.0
    %1309 = vmatpush1.msra.mxu0 0.0
    %1310 = vmatprep.subr.mxu0 0.0
    %1311 = vmatpush1.msra.mxu0 0.0
    %1312 = vmatprep.subr.mxu0 0.0
    %1313 = vmatpush1.msra.mxu0 0.0
    %1314 = vmatprep.subr.mxu0 0.0
    %1315 = vmatpush1.msra.mxu0 0.0
    %1316 = vmatprep.subr.mxu0 0.0
    %1317 = vmatpush1.msra.mxu0 0.0
    %1318 = vmatprep.subr.mxu0 0.0
    %1319 = vmatpush1.msra.mxu0 0.0
    %1320 = vmatprep.subr.mxu0 0.0
    %1321 = vmatpush1.msra.mxu0 0.0
    %1322 = vmatprep.subr.mxu0 0.0
    %1323 = vmatpush1.msra.mxu0 0.0
    %1324 = vmatprep.subr.mxu0 0.0
    %1325 = vmatpush1.msra.mxu0 0.0
    %1326 = vmatprep.subr.mxu0 0.0
    %1327 = vmatpush1.msra.mxu0 0.0
    %1328 = vmatprep.subr.mxu0 0.0
    %1329 = vmatpush1.msra.mxu0 0.0
    %1330 = vmatprep.subr.mxu0 0.0
    %1331 = vmatpush1.msra.mxu0 0.0
    %1332 = vmatprep.subr.mxu0 0.0
    %1333 = vmatpush1.msra.mxu0 0.0
    %1334 = vmatprep.subr.mxu0 0.0
    %1335 = vmatpush1.msra.mxu0 0.0
    %1336 = vmatprep.subr.mxu0 0.0
    %1337 = vmatpush1.msra.mxu0 0.0
    %1338 = vmatprep.subr.mxu0 0.0
    %1339 = vmatpush1.msra.mxu0 0.0
    %1340 = vmatprep.subr.mxu0 0.0
    %1341 = vmatpush1.msra.mxu0 0.0
    %1342 = vmatprep.subr.mxu0 0.0
    %1343 = vmatpush1.msra.mxu0 0.0
    %1344 = vmatprep.subr.mxu0 0.0
    %1345 = vmatpush1.msra.mxu0 0.0
    %1346 = vmatprep.subr.mxu0 0.0
    %1347 = vmatpush1.msra.mxu0 0.0
    %1348 = vmatprep.subr.mxu0 0.0
    %1349 = vmatpush1.msra.mxu0 0.0
    %1350 = vmatprep.subr.mxu0 0.0
    %1351 = vmatpush1.msra.mxu0 0.0
    %1352 = vmatprep.subr.mxu0 0.0
    %1353 = vmatpush1.msra.mxu0 0.0
    %1354 = vmatprep.mubr.f32.mxu0 0.0
    %1355 = vmatmul.mubr.f32.gmra.mrb[0].mxu0 %v401
    %v1356 = vpop.f32.mrb[0].mxu0
    %v1357 = vadd.f32 0.0, %v1356
    %v1358 = vpop.f32.mrb[0].mxu0
    %1359 = vmatprep.mubr.f32.mxu0 0.0
    %1360 = vmatmul.mubr.f32.gmra.mrb[0].mxu0 %v404
    %v1361 = vpop.f32.mrb[0].mxu0
    %v1362 = vadd.f32 0.0, %v1361
    %v1363 = vpop.f32.mrb[0].mxu0
    %1364 = vmatprep.mubr.f32.mxu0 0.0
    %1365 = vmatmul.mubr.f32.gmra.mrb[0].mxu0 %v407
    %v1366 = vpop.f32.mrb[0].mxu0
    %v1367 = vadd.f32 0.0, %v1366
    %v1368 = vpop.f32.mrb[0].mxu0
    %1369 = vmatprep.mubr.f32.mxu0 0.0
    %1370 = vmatmul.mubr.f32.gmra.mrb[0].mxu0 %v410
    %v1371 = vpop.f32.mrb[0].mxu0
    %v1372 = vadd.f32 0.0, %v1371
    %v1373 = vpop.f32.mrb[0].mxu0
    %1374 = vdwg.mxu0
    %v1375 = vmul.f32 %v1357, 0.00390625
    %v1376 = vmul.f32 %v1362, 0.00390625
    %v1377 = vmul.f32 %v1367, 0.00390625
    %v1378 = vmul.f32 %v1372, 0.00390625
    %v1379 = vmul.f32 %v1375, %v1375
    %v1380 = vmul.f32 %v1376, %v1376
    %v1381 = vmul.f32 %v1377, %v1377
    %v1382 = vmul.f32 %v1378, %v1378
    %v1383 = vadd.f32 %v1379, %v1381
    %v1384 = vadd.f32 %v1380, %v1382
    %v1385 = vlaneseq
    %v1386 = vand.u32 %v1385, 127
    %v1387 = vsel %vm74, %v1383, -inf
    %1388 = vmax.xlane.f32.xlu0 %v1387
    %v1389 = vpop.xlane.xlu0 %1388
    %v1390 = vsel %vm74, %v1384, -inf
    %1391 = vmax.xlane.f32.xlu0 %v1390
    %v1392 = vpop.xlane.xlu0 %1391
    %v1393 = vmax.f32 %v1389, %v1392
    %v1394 = vrot.slane %v1393, 4
    %v1395 = vmax.f32 %v1393, %v1394
    %v1396 = vrot.slane %v1395, 2
    %v1397 = vmax.f32 %v1395, %v1396
    %v1398 = vrot.slane %v1397, 1
    %v1399 = vmax.f32 %v1397, %v1398
    %v1400 = vrcp.pop %v1399
    %v1401 = vmul.f32 1.0, %v1400
    %vm1402 = vcmask 261248
    %v1403 = vsel %vm1402, %v1383, -inf
    %1404 = vmax.xlane.f32.xlu0 %v1403
    %v1405 = vpop.xlane.xlu0 %1404
    %v1406 = vsel %vm1402, %v1384, -inf
    %1407 = vmax.xlane.f32.xlu0 %v1406
    %v1408 = vpop.xlane.xlu0 %1407
    %v1409 = vmax.f32 %v1405, %v1408
    %v1410 = vrot.slane %v1409, 4
    %v1411 = vmax.f32 %v1409, %v1410
    %v1412 = vrot.slane %v1411, 2
    %v1413 = vmax.f32 %v1411, %v1412
    %v1414 = vrot.slane %v1413, 1
    %v1415 = vmax.f32 %v1413, %v1414
    %v1416 = vrcp.pop %v1415
    %v1417 = vmul.f32 1.0, %v1416
    %vm1418 = vcmp.lt.s32.totalorder %v1386, 16
    %v1419 = vsel %vm1418, %v1401, %v1417
    %v1420 = vmul.f32 %v1383, %v1419
    %v1421 = vmul.f32 %v1384, %v1419
    %s1422 = sld [smem:[#allocation2]]
    %s1423 = sld [smem:[#allocation4]]
    %v1424 = vsub.f32 50.000004, %v1420
    %v1425 = vsub.f32 50.000004, %v1421
    %v1426 = vstv %s1422
    %v1427 = vmul.f32 %v1426, %v1424
    %v1428 = vmul.f32 %v1426, %v1425
    %v1429 = vadd.f32 %v68, %v1427
    %v1430 = vadd.f32 %v69, %v1428
    %v1431 = vadd.f32 %v1429, %v66
    %v1432 = vadd.f32 %v1430, %v67
    %v1433 = vmul.f32 %v1431, 1.9287424e-22
    %v1434 = vmul.f32 %v1432, 1.9287424e-22
    %v1435 = vsub.f32 %v1429, %v1433
    %v1436 = vsub.f32 %v1430, %v1434
    %vm1437 = vcmp.lt.f32.partialorder %v1435, 0.0
    %vm1438 = vcmp.lt.f32.partialorder %v1436, 0.0
    %v1439 = vsel %vm1437, 50.000004, 1e-05
    %v1440 = vsel %vm1438, 50.000004, 1e-05
    %vm1441 = vcmp.gt.f32.partialorder %v1435, 0.0
    %vm1442 = vcmp.gt.f32.partialorder %v1436, 0.0
    %v1443 = vsel %vm1441, 50.000004, 100.0
    %v1444 = vsel %vm1442, 50.000004, 100.0
    %v1445 = vadd.f32 %v1439, %v1443
    %v1446 = vadd.f32 %v1440, %v1444
    %v1447 = vmul.f32 %v1445, 0.5
    %v1448 = vmul.f32 %v1446, 0.5
    %v1449 = vsub.f32 0.0, %v1447
    %v1450 = vsub.f32 0.0, %v1448
    %v1451 = vmul.f32 %v1449, 1.442695
    %v1452 = vpow.pop %v1451
    %v1453 = vmul.f32 %v1450, 1.442695
    %v1454 = vpow.pop %v1453
    %v1455 = vsub.f32 %v1447, %v1420
    %v1456 = vsub.f32 %v1448, %v1421
    %v1457 = vmul.f32 %v1426, %v1455
    %v1458 = vmul.f32 %v1426, %v1456
    %v1459 = vadd.f32 %v68, %v1457
    %v1460 = vadd.f32 %v69, %v1458
    %v1461 = vadd.f32 %v1459, %v66
    %v1462 = vadd.f32 %v1460, %v67
    %v1463 = vmul.f32 %v1461, %v1452
    %v1464 = vmul.f32 %v1462, %v1454
    %v1465 = vsub.f32 %v1459, %v1463
    %v1466 = vsub.f32 %v1460, %v1464
    %vm1467 = vcmp.lt.f32.partialorder %v1465, 0.0
    %vm1468 = vcmp.lt.f32.partialorder %v1466, 0.0
    %v1469 = vsel %vm1467, %v1447, %v1439
    %v1470 = vsel %vm1468, %v1448, %v1440
    %vm1471 = vcmp.gt.f32.partialorder %v1465, 0.0
    %vm1472 = vcmp.gt.f32.partialorder %v1466, 0.0
    %v1473 = vsel %vm1471, %v1447, %v1443
    %v1474 = vsel %vm1472, %v1448, %v1444
    %v1475 = vadd.f32 %v1469, %v1473
    %v1476 = vadd.f32 %v1470, %v1474
    %v1477 = vmul.f32 %v1475, 0.5
    %v1478 = vmul.f32 %v1476, 0.5
    %v1479 = vsub.f32 0.0, %v1477
    %v1480 = vsub.f32 0.0, %v1478
    %v1481 = vmul.f32 %v1479, 1.442695
    %v1482 = vpow.pop %v1481
    %v1483 = vmul.f32 %v1480, 1.442695
    %v1484 = vpow.pop %v1483
    %v1485 = vsub.f32 %v1477, %v1420
    %v1486 = vsub.f32 %v1478, %v1421
    %v1487 = vmul.f32 %v1426, %v1485
    %v1488 = vmul.f32 %v1426, %v1486
    %v1489 = vadd.f32 %v68, %v1487
    %v1490 = vadd.f32 %v69, %v1488
    %v1491 = vadd.f32 %v1489, %v66
    %v1492 = vadd.f32 %v1490, %v67
    %v1493 = vmul.f32 %v1491, %v1482
    %v1494 = vmul.f32 %v1492, %v1484
    %v1495 = vsub.f32 %v1489, %v1493
    %v1496 = vsub.f32 %v1490, %v1494
    %vm1497 = vcmp.lt.f32.partialorder %v1495, 0.0
    %vm1498 = vcmp.lt.f32.partialorder %v1496, 0.0
    %v1499 = vsel %vm1497, %v1477, %v1469
    %v1500 = vsel %vm1498, %v1478, %v1470
    %vm1501 = vcmp.gt.f32.partialorder %v1495, 0.0
    %vm1502 = vcmp.gt.f32.partialorder %v1496, 0.0
    %v1503 = vsel %vm1501, %v1477, %v1473
    %v1504 = vsel %vm1502, %v1478, %v1474
    %v1505 = vadd.f32 %v1499, %v1503
    %v1506 = vadd.f32 %v1500, %v1504
    %v1507 = vmul.f32 %v1505, 0.5
    %v1508 = vmul.f32 %v1506, 0.5
    %v1509 = vsub.f32 0.0, %v1507
    %v1510 = vsub.f32 0.0, %v1508
    %v1511 = vmul.f32 %v1509, 1.442695
    %v1512 = vpow.pop %v1511
    %v1513 = vmul.f32 %v1510, 1.442695
    %v1514 = vpow.pop %v1513
    %v1515 = vsub.f32 %v1507, %v1420
    %v1516 = vsub.f32 %v1508, %v1421
    %v1517 = vmul.f32 %v1426, %v1515
    %v1518 = vmul.f32 %v1426, %v1516
    %v1519 = vadd.f32 %v68, %v1517
    %v1520 = vadd.f32 %v69, %v1518
    %v1521 = vadd.f32 %v1519, %v66
    %v1522 = vadd.f32 %v1520, %v67
    %v1523 = vmul.f32 %v1521, %v1512
    %v1524 = vmul.f32 %v1522, %v1514
    %v1525 = vsub.f32 %v1519, %v1523
    %v1526 = vsub.f32 %v1520, %v1524
    %vm1527 = vcmp.lt.f32.partialorder %v1525, 0.0
    %vm1528 = vcmp.lt.f32.partialorder %v1526, 0.0
    %v1529 = vsel %vm1527, %v1507, %v1499
    %v1530 = vsel %vm1528, %v1508, %v1500
    %vm1531 = vcmp.gt.f32.partialorder %v1525, 0.0
    %vm1532 = vcmp.gt.f32.partialorder %v1526, 0.0
    %v1533 = vsel %vm1531, %v1507, %v1503
    %v1534 = vsel %vm1532, %v1508, %v1504
    %v1535 = vadd.f32 %v1529, %v1533
    %v1536 = vadd.f32 %v1530, %v1534
    %v1537 = vmul.f32 %v1535, 0.5
    %v1538 = vmul.f32 %v1536, 0.5
    %v1539 = vsub.f32 0.0, %v1537
    %v1540 = vsub.f32 0.0, %v1538
    %v1541 = vmul.f32 %v1539, 1.442695
    %v1542 = vpow.pop %v1541
    %v1543 = vmul.f32 %v1540, 1.442695
    %v1544 = vpow.pop %v1543
    %v1545 = vsub.f32 %v1537, %v1420
    %v1546 = vsub.f32 %v1538, %v1421
    %v1547 = vmul.f32 %v1426, %v1545
    %v1548 = vmul.f32 %v1426, %v1546
    %v1549 = vadd.f32 %v68, %v1547
    %v1550 = vadd.f32 %v69, %v1548
    %v1551 = vadd.f32 %v1549, %v66
    %v1552 = vadd.f32 %v1550, %v67
    %v1553 = vmul.f32 %v1551, %v1542
    %v1554 = vmul.f32 %v1552, %v1544
    %v1555 = vsub.f32 %v1549, %v1553
    %v1556 = vsub.f32 %v1550, %v1554
    %vm1557 = vcmp.lt.f32.partialorder %v1555, 0.0
    %vm1558 = vcmp.lt.f32.partialorder %v1556, 0.0
    %v1559 = vsel %vm1557, %v1537, %v1529
    %v1560 = vsel %vm1558, %v1538, %v1530
    %vm1561 = vcmp.gt.f32.partialorder %v1555, 0.0
    %vm1562 = vcmp.gt.f32.partialorder %v1556, 0.0
    %v1563 = vsel %vm1561, %v1537, %v1533
    %v1564 = vsel %vm1562, %v1538, %v1534
    %v1565 = vadd.f32 %v1559, %v1563
    %v1566 = vadd.f32 %v1560, %v1564
    %v1567 = vmul.f32 %v1565, 0.5
    %v1568 = vmul.f32 %v1566, 0.5
    %v1569 = vsub.f32 0.0, %v1567
    %v1570 = vsub.f32 0.0, %v1568
    %v1571 = vmul.f32 %v1569, 1.442695
    %v1572 = vpow.pop %v1571
    %v1573 = vmul.f32 %v1570, 1.442695
    %v1574 = vpow.pop %v1573
    %v1575 = vsub.f32 %v1567, %v1420
    %v1576 = vsub.f32 %v1568, %v1421
    %v1577 = vmul.f32 %v1426, %v1575
    %v1578 = vmul.f32 %v1426, %v1576
    %v1579 = vadd.f32 %v68, %v1577
    %v1580 = vadd.f32 %v69, %v1578
    %v1581 = vadd.f32 %v1579, %v66
    %v1582 = vadd.f32 %v1580, %v67
    %v1583 = vmul.f32 %v1581, %v1572
    %v1584 = vmul.f32 %v1582, %v1574
    %v1585 = vsub.f32 %v1579, %v1583
    %v1586 = vsub.f32 %v1580, %v1584
    %vm1587 = vcmp.lt.f32.partialorder %v1585, 0.0
    %vm1588 = vcmp.lt.f32.partialorder %v1586, 0.0
    %v1589 = vsel %vm1587, %v1567, %v1559
    %v1590 = vsel %vm1588, %v1568, %v1560
    %vm1591 = vcmp.gt.f32.partialorder %v1585, 0.0
    %vm1592 = vcmp.gt.f32.partialorder %v1586, 0.0
    %v1593 = vsel %vm1591, %v1567, %v1563
    %v1594 = vsel %vm1592, %v1568, %v1564
    %v1595 = vadd.f32 %v1589, %v1593
    %v1596 = vadd.f32 %v1590, %v1594
    %v1597 = vmul.f32 %v1595, 0.5
    %v1598 = vmul.f32 %v1596, 0.5
    %v1599 = vsub.f32 0.0, %v1597
    %v1600 = vsub.f32 0.0, %v1598
    %v1601 = vmul.f32 %v1599, 1.442695
    %v1602 = vpow.pop %v1601
    %v1603 = vmul.f32 %v1600, 1.442695
    %v1604 = vpow.pop %v1603
    %v1605 = vsub.f32 %v1597, %v1420
    %v1606 = vsub.f32 %v1598, %v1421
    %v1607 = vmul.f32 %v1426, %v1605
    %v1608 = vmul.f32 %v1426, %v1606
    %v1609 = vadd.f32 %v68, %v1607
    %v1610 = vadd.f32 %v69, %v1608
    %v1611 = vadd.f32 %v1609, %v66
    %v1612 = vadd.f32 %v1610, %v67
    %v1613 = vmul.f32 %v1611, %v1602
    %v1614 = vmul.f32 %v1612, %v1604
    %v1615 = vsub.f32 %v1609, %v1613
    %v1616 = vsub.f32 %v1610, %v1614
    %vm1617 = vcmp.lt.f32.partialorder %v1615, 0.0
    %vm1618 = vcmp.lt.f32.partialorder %v1616, 0.0
    %v1619 = vsel %vm1617, %v1597, %v1589
    %v1620 = vsel %vm1618, %v1598, %v1590
    %vm1621 = vcmp.gt.f32.partialorder %v1615, 0.0
    %vm1622 = vcmp.gt.f32.partialorder %v1616, 0.0
    %v1623 = vsel %vm1621, %v1597, %v1593
    %v1624 = vsel %vm1622, %v1598, %v1594
    %v1625 = vadd.f32 %v1619, %v1623
    %v1626 = vadd.f32 %v1620, %v1624
    %v1627 = vmul.f32 %v1625, 0.5
    %v1628 = vmul.f32 %v1626, 0.5
    %v1629 = vsub.f32 0.0, %v1627
    %v1630 = vsub.f32 0.0, %v1628
    %v1631 = vmul.f32 %v1629, 1.442695
    %v1632 = vpow.pop %v1631
    %v1633 = vmul.f32 %v1630, 1.442695
    %v1634 = vpow.pop %v1633
    %v1635 = vsub.f32 %v1627, %v1420
    %v1636 = vsub.f32 %v1628, %v1421
    %v1637 = vmul.f32 %v1426, %v1635
    %v1638 = vmul.f32 %v1426, %v1636
    %v1639 = vadd.f32 %v68, %v1637
    %v1640 = vadd.f32 %v69, %v1638
    %v1641 = vadd.f32 %v1639, %v66
    %v1642 = vadd.f32 %v1640, %v67
    %v1643 = vmul.f32 %v1641, %v1632
    %v1644 = vmul.f32 %v1642, %v1634
    %v1645 = vsub.f32 %v1639, %v1643
    %v1646 = vsub.f32 %v1640, %v1644
    %vm1647 = vcmp.lt.f32.partialorder %v1645, 0.0
    %vm1648 = vcmp.lt.f32.partialorder %v1646, 0.0
    %v1649 = vsel %vm1647, %v1627, %v1619
    %v1650 = vsel %vm1648, %v1628, %v1620
    %vm1651 = vcmp.gt.f32.partialorder %v1645, 0.0
    %vm1652 = vcmp.gt.f32.partialorder %v1646, 0.0
    %v1653 = vsel %vm1651, %v1627, %v1623
    %v1654 = vsel %vm1652, %v1628, %v1624
    %v1655 = vadd.f32 %v1649, %v1653
    %v1656 = vadd.f32 %v1650, %v1654
    %v1657 = vmul.f32 %v1655, 0.5
    %v1658 = vmul.f32 %v1656, 0.5
    %v1659 = vsub.f32 0.0, %v1657
    %v1660 = vsub.f32 0.0, %v1658
    %v1661 = vmul.f32 %v1659, 1.442695
    %v1662 = vpow.pop %v1661
    %v1663 = vmul.f32 %v1660, 1.442695
    %v1664 = vpow.pop %v1663
    %v1665 = vsub.f32 %v1657, %v1420
    %v1666 = vsub.f32 %v1658, %v1421
    %v1667 = vmul.f32 %v1426, %v1665
    %v1668 = vmul.f32 %v1426, %v1666
    %v1669 = vadd.f32 %v68, %v1667
    %v1670 = vadd.f32 %v69, %v1668
    %v1671 = vadd.f32 %v1669, %v66
    %v1672 = vadd.f32 %v1670, %v67
    %v1673 = vmul.f32 %v1671, %v1662
    %v1674 = vmul.f32 %v1672, %v1664
    %v1675 = vsub.f32 %v1669, %v1673
    %v1676 = vsub.f32 %v1670, %v1674
    %vm1677 = vcmp.lt.f32.partialorder %v1675, 0.0
    %vm1678 = vcmp.lt.f32.partialorder %v1676, 0.0
    %v1679 = vsel %vm1677, %v1657, %v1649
    %v1680 = vsel %vm1678, %v1658, %v1650
    %vm1681 = vcmp.gt.f32.partialorder %v1675, 0.0
    %vm1682 = vcmp.gt.f32.partialorder %v1676, 0.0
    %v1683 = vsel %vm1681, %v1657, %v1653
    %v1684 = vsel %vm1682, %v1658, %v1654
    %v1685 = vadd.f32 %v1679, %v1683
    %v1686 = vadd.f32 %v1680, %v1684
    %v1687 = vmul.f32 %v1685, 0.5
    %v1688 = vmul.f32 %v1686, 0.5
    %v1689 = vsub.f32 0.0, %v1687
    %v1690 = vsub.f32 0.0, %v1688
    %v1691 = vmul.f32 %v1689, 1.442695
    %v1692 = vpow.pop %v1691
    %v1693 = vmul.f32 %v1690, 1.442695
    %v1694 = vpow.pop %v1693
    %v1695 = vsub.f32 %v1687, %v1420
    %v1696 = vsub.f32 %v1688, %v1421
    %v1697 = vmul.f32 %v1426, %v1695
    %v1698 = vmul.f32 %v1426, %v1696
    %v1699 = vadd.f32 %v68, %v1697
    %v1700 = vadd.f32 %v69, %v1698
    %v1701 = vadd.f32 %v1699, %v66
    %v1702 = vadd.f32 %v1700, %v67
    %v1703 = vmul.f32 %v1701, %v1692
    %v1704 = vmul.f32 %v1702, %v1694
    %v1705 = vsub.f32 %v1699, %v1703
    %v1706 = vsub.f32 %v1700, %v1704
    %vm1707 = vcmp.lt.f32.partialorder %v1705, 0.0
    %vm1708 = vcmp.lt.f32.partialorder %v1706, 0.0
    %v1709 = vsel %vm1707, %v1687, %v1679
    %v1710 = vsel %vm1708, %v1688, %v1680
    %vm1711 = vcmp.gt.f32.partialorder %v1705, 0.0
    %vm1712 = vcmp.gt.f32.partialorder %v1706, 0.0
    %v1713 = vsel %vm1711, %v1687, %v1683
    %v1714 = vsel %vm1712, %v1688, %v1684
    %v1715 = vadd.f32 %v1709, %v1713
    %v1716 = vadd.f32 %v1710, %v1714
    %v1717 = vmul.f32 %v1715, 0.5
    %v1718 = vmul.f32 %v1716, 0.5
    %v1719 = vsub.f32 0.0, %v1717
    %v1720 = vsub.f32 0.0, %v1718
    %v1721 = vmul.f32 %v1719, 1.442695
    %v1722 = vpow.pop %v1721
    %v1723 = vmul.f32 %v1720, 1.442695
    %v1724 = vpow.pop %v1723
    %v1725 = vsub.f32 %v1717, %v1420
    %v1726 = vsub.f32 %v1718, %v1421
    %v1727 = vmul.f32 %v1426, %v1725
    %v1728 = vmul.f32 %v1426, %v1726
    %v1729 = vadd.f32 %v68, %v1727
    %v1730 = vadd.f32 %v69, %v1728
    %v1731 = vadd.f32 %v1729, %v66
    %v1732 = vadd.f32 %v1730, %v67
    %v1733 = vmul.f32 %v1731, %v1722
    %v1734 = vmul.f32 %v1732, %v1724
    %v1735 = vsub.f32 %v1729, %v1733
    %v1736 = vsub.f32 %v1730, %v1734
    %vm1737 = vcmp.lt.f32.partialorder %v1735, 0.0
    %vm1738 = vcmp.lt.f32.partialorder %v1736, 0.0
    %v1739 = vsel %vm1737, %v1717, %v1709
    %v1740 = vsel %vm1738, %v1718, %v1710
    %vm1741 = vcmp.gt.f32.partialorder %v1735, 0.0
    %vm1742 = vcmp.gt.f32.partialorder %v1736, 0.0
    %v1743 = vsel %vm1741, %v1717, %v1713
    %v1744 = vsel %vm1742, %v1718, %v1714
    %v1745 = vadd.f32 %v1739, %v1743
    %v1746 = vadd.f32 %v1740, %v1744
    %v1747 = vmul.f32 %v1745, 0.5
    %v1748 = vmul.f32 %v1746, 0.5
    %v1749 = vsub.f32 0.0, %v1747
    %v1750 = vsub.f32 0.0, %v1748
    %v1751 = vmul.f32 %v1749, 1.442695
    %v1752 = vpow.pop %v1751
    %v1753 = vmul.f32 %v1750, 1.442695
    %v1754 = vpow.pop %v1753
    %v1755 = vsub.f32 %v1747, %v1420
    %v1756 = vsub.f32 %v1748, %v1421
    %v1757 = vmul.f32 %v1426, %v1755
    %v1758 = vmul.f32 %v1426, %v1756
    %v1759 = vadd.f32 %v68, %v1757
    %v1760 = vadd.f32 %v69, %v1758
    %v1761 = vadd.f32 %v1759, %v66
    %v1762 = vadd.f32 %v1760, %v67
    %v1763 = vmul.f32 %v1761, %v1752
    %v1764 = vmul.f32 %v1762, %v1754
    %v1765 = vsub.f32 %v1759, %v1763
    %v1766 = vsub.f32 %v1760, %v1764
    %vm1767 = vcmp.lt.f32.partialorder %v1765, 0.0
    %vm1768 = vcmp.lt.f32.partialorder %v1766, 0.0
    %v1769 = vsel %vm1767, %v1747, %v1739
    %v1770 = vsel %vm1768, %v1748, %v1740
    %vm1771 = vcmp.gt.f32.partialorder %v1765, 0.0
    %vm1772 = vcmp.gt.f32.partialorder %v1766, 0.0
    %v1773 = vsel %vm1771, %v1747, %v1743
    %v1774 = vsel %vm1772, %v1748, %v1744
    %v1775 = vadd.f32 %v1769, %v1773
    %v1776 = vadd.f32 %v1770, %v1774
    %v1777 = vmul.f32 %v1775, 0.5
    %v1778 = vmul.f32 %v1776, 0.5
    %v1779 = vsub.f32 0.0, %v1777
    %v1780 = vsub.f32 0.0, %v1778
    %v1781 = vmul.f32 %v1779, 1.442695
    %v1782 = vpow.pop %v1781
    %v1783 = vmul.f32 %v1780, 1.442695
    %v1784 = vpow.pop %v1783
    %v1785 = vsub.f32 %v1777, %v1420
    %v1786 = vsub.f32 %v1778, %v1421
    %v1787 = vmul.f32 %v1426, %v1785
    %v1788 = vmul.f32 %v1426, %v1786
    %v1789 = vadd.f32 %v68, %v1787
    %v1790 = vadd.f32 %v69, %v1788
    %v1791 = vadd.f32 %v1789, %v66
    %v1792 = vadd.f32 %v1790, %v67
    %v1793 = vmul.f32 %v1791, %v1782
    %v1794 = vmul.f32 %v1792, %v1784
    %v1795 = vsub.f32 %v1789, %v1793
    %v1796 = vsub.f32 %v1790, %v1794
    %vm1797 = vcmp.lt.f32.partialorder %v1795, 0.0
    %vm1798 = vcmp.lt.f32.partialorder %v1796, 0.0
    %v1799 = vsel %vm1797, %v1777, %v1769
    %v1800 = vsel %vm1798, %v1778, %v1770
    %vm1801 = vcmp.gt.f32.partialorder %v1795, 0.0
    %vm1802 = vcmp.gt.f32.partialorder %v1796, 0.0
    %v1803 = vsel %vm1801, %v1777, %v1773
    %v1804 = vsel %vm1802, %v1778, %v1774
    %v1805 = vadd.f32 %v1799, %v1803
    %v1806 = vadd.f32 %v1800, %v1804
    %v1807 = vmul.f32 %v1805, 0.5
    %v1808 = vmul.f32 %v1806, 0.5
    %v1809 = vsub.f32 0.0, %v1807
    %v1810 = vsub.f32 0.0, %v1808
    %v1811 = vmul.f32 %v1809, 1.442695
    %v1812 = vpow.pop %v1811
    %v1813 = vmul.f32 %v1810, 1.442695
    %v1814 = vpow.pop %v1813
    %v1815 = vsub.f32 %v1807, %v1420
    %v1816 = vsub.f32 %v1808, %v1421
    %v1817 = vmul.f32 %v1426, %v1815
    %v1818 = vmul.f32 %v1426, %v1816
    %v1819 = vadd.f32 %v68, %v1817
    %v1820 = vadd.f32 %v69, %v1818
    %v1821 = vadd.f32 %v1819, %v66
    %v1822 = vadd.f32 %v1820, %v67
    %v1823 = vmul.f32 %v1821, %v1812
    %v1824 = vmul.f32 %v1822, %v1814
    %v1825 = vsub.f32 %v1819, %v1823
    %v1826 = vsub.f32 %v1820, %v1824
    %vm1827 = vcmp.lt.f32.partialorder %v1825, 0.0
    %vm1828 = vcmp.lt.f32.partialorder %v1826, 0.0
    %v1829 = vsel %vm1827, %v1807, %v1799
    %v1830 = vsel %vm1828, %v1808, %v1800
    %vm1831 = vcmp.gt.f32.partialorder %v1825, 0.0
    %vm1832 = vcmp.gt.f32.partialorder %v1826, 0.0
    %v1833 = vsel %vm1831, %v1807, %v1803
    %v1834 = vsel %vm1832, %v1808, %v1804
    %v1835 = vadd.f32 %v1829, %v1833
    %v1836 = vadd.f32 %v1830, %v1834
    %v1837 = vmul.f32 %v1835, 0.5
    %v1838 = vmul.f32 %v1836, 0.5
    %v1839 = vsub.f32 0.0, %v1837
    %v1840 = vsub.f32 0.0, %v1838
    %v1841 = vmul.f32 %v1839, 1.442695
    %v1842 = vpow.pop %v1841
    %v1843 = vmul.f32 %v1840, 1.442695
    %v1844 = vpow.pop %v1843
    %v1845 = vsub.f32 %v1837, %v1420
    %v1846 = vsub.f32 %v1838, %v1421
    %v1847 = vmul.f32 %v1426, %v1845
    %v1848 = vmul.f32 %v1426, %v1846
    %v1849 = vadd.f32 %v68, %v1847
    %v1850 = vadd.f32 %v69, %v1848
    %v1851 = vadd.f32 %v1849, %v66
    %v1852 = vadd.f32 %v1850, %v67
    %v1853 = vmul.f32 %v1851, %v1842
    %v1854 = vmul.f32 %v1852, %v1844
    %v1855 = vsub.f32 %v1849, %v1853
    %v1856 = vsub.f32 %v1850, %v1854
    %vm1857 = vcmp.lt.f32.partialorder %v1855, 0.0
    %vm1858 = vcmp.lt.f32.partialorder %v1856, 0.0
    %v1859 = vsel %vm1857, %v1837, %v1829
    %v1860 = vsel %vm1858, %v1838, %v1830
    %vm1861 = vcmp.gt.f32.partialorder %v1855, 0.0
    %vm1862 = vcmp.gt.f32.partialorder %v1856, 0.0
    %v1863 = vsel %vm1861, %v1837, %v1833
    %v1864 = vsel %vm1862, %v1838, %v1834
    %v1865 = vadd.f32 %v1859, %v1863
    %v1866 = vadd.f32 %v1860, %v1864
    %v1867 = vmul.f32 %v1865, 0.5
    %v1868 = vmul.f32 %v1866, 0.5
    %v1869 = vsub.f32 0.0, %v1867
    %v1870 = vsub.f32 0.0, %v1868
    %v1871 = vmul.f32 %v1869, 1.442695
    %v1872 = vpow.pop %v1871
    %v1873 = vmul.f32 %v1870, 1.442695
    %v1874 = vpow.pop %v1873
    %v1875 = vsub.f32 %v1867, %v1420
    %v1876 = vsub.f32 %v1868, %v1421
    %v1877 = vmul.f32 %v1426, %v1875
    %v1878 = vmul.f32 %v1426, %v1876
    %v1879 = vadd.f32 %v68, %v1877
    %v1880 = vadd.f32 %v69, %v1878
    %v1881 = vadd.f32 %v1879, %v66
    %v1882 = vadd.f32 %v1880, %v67
    %v1883 = vmul.f32 %v1881, %v1872
    %v1884 = vmul.f32 %v1882, %v1874
    %v1885 = vsub.f32 %v1879, %v1883
    %v1886 = vsub.f32 %v1880, %v1884
    %vm1887 = vcmp.lt.f32.partialorder %v1885, 0.0
    %vm1888 = vcmp.lt.f32.partialorder %v1886, 0.0
    %v1889 = vsel %vm1887, %v1867, %v1859
    %v1890 = vsel %vm1888, %v1868, %v1860
    %vm1891 = vcmp.gt.f32.partialorder %v1885, 0.0
    %vm1892 = vcmp.gt.f32.partialorder %v1886, 0.0
    %v1893 = vsel %vm1891, %v1867, %v1863
    %v1894 = vsel %vm1892, %v1868, %v1864
    %v1895 = vadd.f32 %v1889, %v1893
    %v1896 = vadd.f32 %v1890, %v1894
    %v1897 = vmul.f32 %v1895, 0.5
    %v1898 = vmul.f32 %v1896, 0.5
    %v1899 = vsub.f32 0.0, %v1897
    %v1900 = vsub.f32 0.0, %v1898
    %v1901 = vmul.f32 %v1899, 1.442695
    %v1902 = vpow.pop %v1901
    %v1903 = vmul.f32 %v1900, 1.442695
    %v1904 = vpow.pop %v1903
    %v1905 = vsub.f32 %v1897, %v1420
    %v1906 = vsub.f32 %v1898, %v1421
    %v1907 = vmul.f32 %v1426, %v1905
    %v1908 = vmul.f32 %v1426, %v1906
    %v1909 = vadd.f32 %v68, %v1907
    %v1910 = vadd.f32 %v69, %v1908
    %v1911 = vadd.f32 %v1909, %v66
    %v1912 = vadd.f32 %v1910, %v67
    %v1913 = vmul.f32 %v1911, %v1902
    %v1914 = vmul.f32 %v1912, %v1904
    %v1915 = vsub.f32 %v1909, %v1913
    %v1916 = vsub.f32 %v1910, %v1914
    %vm1917 = vcmp.lt.f32.partialorder %v1915, 0.0
    %vm1918 = vcmp.lt.f32.partialorder %v1916, 0.0
    %v1919 = vsel %vm1917, %v1897, %v1889
    %v1920 = vsel %vm1918, %v1898, %v1890
    %vm1921 = vcmp.gt.f32.partialorder %v1915, 0.0
    %vm1922 = vcmp.gt.f32.partialorder %v1916, 0.0
    %v1923 = vsel %vm1921, %v1897, %v1893
    %v1924 = vsel %vm1922, %v1898, %v1894
    %v1925 = vadd.f32 %v1919, %v1923
    %v1926 = vadd.f32 %v1920, %v1924
    %v1927 = vmul.f32 %v1925, 0.5
    %v1928 = vmul.f32 %v1926, 0.5
    %v1929 = vsub.f32 0.0, %v1927
    %v1930 = vsub.f32 0.0, %v1928
    %v1931 = vmul.f32 %v1929, 1.442695
    %v1932 = vpow.pop %v1931
    %v1933 = vmul.f32 %v1930, 1.442695
    %v1934 = vpow.pop %v1933
    %v1935 = vsub.f32 %v1927, %v1420
    %v1936 = vsub.f32 %v1928, %v1421
    %v1937 = vmul.f32 %v1426, %v1935
    %v1938 = vmul.f32 %v1426, %v1936
    %v1939 = vadd.f32 %v68, %v1937
    %v1940 = vadd.f32 %v69, %v1938
    %v1941 = vadd.f32 %v1939, %v66
    %v1942 = vadd.f32 %v1940, %v67
    %v1943 = vmul.f32 %v1941, %v1932
    %v1944 = vmul.f32 %v1942, %v1934
    %v1945 = vsub.f32 %v1939, %v1943
    %v1946 = vsub.f32 %v1940, %v1944
    %vm1947 = vcmp.lt.f32.partialorder %v1945, 0.0
    %vm1948 = vcmp.lt.f32.partialorder %v1946, 0.0
    %v1949 = vsel %vm1947, %v1927, %v1919
    %v1950 = vsel %vm1948, %v1928, %v1920
    %vm1951 = vcmp.gt.f32.partialorder %v1945, 0.0
    %vm1952 = vcmp.gt.f32.partialorder %v1946, 0.0
    %v1953 = vsel %vm1951, %v1927, %v1923
    %v1954 = vsel %vm1952, %v1928, %v1924
    %v1955 = vadd.f32 %v1949, %v1953
    %v1956 = vadd.f32 %v1950, %v1954
    %v1957 = vmul.f32 %v1955, 0.5
    %v1958 = vmul.f32 %v1956, 0.5
    %v1959 = vsub.f32 0.0, %v1957
    %v1960 = vsub.f32 0.0, %v1958
    %v1961 = vmul.f32 %v1959, 1.442695
    %v1962 = vpow.pop %v1961
    %v1963 = vmul.f32 %v1960, 1.442695
    %v1964 = vpow.pop %v1963
    %v1965 = vsub.f32 %v1957, %v1420
    %v1966 = vsub.f32 %v1958, %v1421
    %v1967 = vmul.f32 %v1426, %v1965
    %v1968 = vmul.f32 %v1426, %v1966
    %v1969 = vadd.f32 %v68, %v1967
    %v1970 = vadd.f32 %v69, %v1968
    %v1971 = vadd.f32 %v1969, %v66
    %v1972 = vadd.f32 %v1970, %v67
    %v1973 = vmul.f32 %v1971, %v1962
    %v1974 = vmul.f32 %v1972, %v1964
    %v1975 = vsub.f32 %v1969, %v1973
    %v1976 = vsub.f32 %v1970, %v1974
    %vm1977 = vcmp.lt.f32.partialorder %v1975, 0.0
    %vm1978 = vcmp.lt.f32.partialorder %v1976, 0.0
    %v1979 = vsel %vm1977, %v1957, %v1949
    %v1980 = vsel %vm1978, %v1958, %v1950
    %vm1981 = vcmp.gt.f32.partialorder %v1975, 0.0
    %vm1982 = vcmp.gt.f32.partialorder %v1976, 0.0
    %v1983 = vsel %vm1981, %v1957, %v1953
    %v1984 = vsel %vm1982, %v1958, %v1954
    %v1985 = vadd.f32 %v1979, %v1983
    %v1986 = vadd.f32 %v1980, %v1984
    %v1987 = vmul.f32 %v1985, 0.5
    %v1988 = vmul.f32 %v1986, 0.5
    %v1989 = vsub.f32 0.0, %v1987
    %v1990 = vsub.f32 0.0, %v1988
    %v1991 = vmul.f32 %v1989, 1.442695
    %v1992 = vpow.pop %v1991
    %v1993 = vmul.f32 %v1990, 1.442695
    %v1994 = vpow.pop %v1993
    %v1995 = vsub.f32 %v1987, %v1420
    %v1996 = vsub.f32 %v1988, %v1421
    %v1997 = vmul.f32 %v1426, %v1995
    %v1998 = vmul.f32 %v1426, %v1996
    %v1999 = vadd.f32 %v68, %v1997
    %v2000 = vadd.f32 %v69, %v1998
    %v2001 = vadd.f32 %v1999, %v66
    %v2002 = vadd.f32 %v2000, %v67
    %v2003 = vmul.f32 %v2001, %v1992
    %v2004 = vmul.f32 %v2002, %v1994
    %v2005 = vsub.f32 %v1999, %v2003
    %v2006 = vsub.f32 %v2000, %v2004
    %vm2007 = vcmp.lt.f32.partialorder %v2005, 0.0
    %vm2008 = vcmp.lt.f32.partialorder %v2006, 0.0
    %v2009 = vsel %vm2007, %v1987, %v1979
    %v2010 = vsel %vm2008, %v1988, %v1980
    %vm2011 = vcmp.gt.f32.partialorder %v2005, 0.0
    %vm2012 = vcmp.gt.f32.partialorder %v2006, 0.0
    %v2013 = vsel %vm2011, %v1987, %v1983
    %v2014 = vsel %vm2012, %v1988, %v1984
    %v2015 = vadd.f32 %v2009, %v2013
    %v2016 = vadd.f32 %v2010, %v2014
    %v2017 = vmul.f32 %v2015, 0.5
    %v2018 = vmul.f32 %v2016, 0.5
    %v2019 = vsub.f32 0.0, %v2017
    %v2020 = vsub.f32 0.0, %v2018
    %v2021 = vmul.f32 %v2019, 1.442695
    %v2022 = vpow.pop %v2021
    %v2023 = vmul.f32 %v2020, 1.442695
    %v2024 = vpow.pop %v2023
    %v2025 = vsub.f32 %v2017, %v1420
    %v2026 = vsub.f32 %v2018, %v1421
    %v2027 = vmul.f32 %v1426, %v2025
    %v2028 = vmul.f32 %v1426, %v2026
    %v2029 = vadd.f32 %v68, %v2027
    %v2030 = vadd.f32 %v69, %v2028
    %v2031 = vadd.f32 %v2029, %v66
    %v2032 = vadd.f32 %v2030, %v67
    %v2033 = vmul.f32 %v2031, %v2022
    %v2034 = vmul.f32 %v2032, %v2024
    %v2035 = vsub.f32 %v2029, %v2033
    %v2036 = vsub.f32 %v2030, %v2034
    %vm2037 = vcmp.lt.f32.partialorder %v2035, 0.0
    %vm2038 = vcmp.lt.f32.partialorder %v2036, 0.0
    %v2039 = vsel %vm2037, %v2017, %v2009
    %v2040 = vsel %vm2038, %v2018, %v2010
    %vm2041 = vcmp.gt.f32.partialorder %v2035, 0.0
    %vm2042 = vcmp.gt.f32.partialorder %v2036, 0.0
    %v2043 = vsel %vm2041, %v2017, %v2013
    %v2044 = vsel %vm2042, %v2018, %v2014
    %v2045 = vadd.f32 %v2039, %v2043
    %v2046 = vadd.f32 %v2040, %v2044
    %v2047 = vmul.f32 %v2045, 0.5
    %v2048 = vmul.f32 %v2046, 0.5
    %v2049 = vsub.f32 0.0, %v2047
    %v2050 = vsub.f32 0.0, %v2048
    %v2051 = vmul.f32 %v2049, 1.442695
    %v2052 = vpow.pop %v2051
    %v2053 = vmul.f32 %v2050, 1.442695
    %v2054 = vpow.pop %v2053
    %v2055 = vsub.f32 %v2047, %v1420
    %v2056 = vsub.f32 %v2048, %v1421
    %v2057 = vmul.f32 %v1426, %v2055
    %v2058 = vmul.f32 %v1426, %v2056
    %v2059 = vadd.f32 %v68, %v2057
    %v2060 = vadd.f32 %v69, %v2058
    %v2061 = vadd.f32 %v2059, %v66
    %v2062 = vadd.f32 %v2060, %v67
    %v2063 = vmul.f32 %v2061, %v2052
    %v2064 = vmul.f32 %v2062, %v2054
    %v2065 = vsub.f32 %v2059, %v2063
    %v2066 = vsub.f32 %v2060, %v2064
    %vm2067 = vcmp.lt.f32.partialorder %v2065, 0.0
    %vm2068 = vcmp.lt.f32.partialorder %v2066, 0.0
    %v2069 = vsel %vm2067, %v2047, %v2039
    %v2070 = vsel %vm2068, %v2048, %v2040
    %vm2071 = vcmp.gt.f32.partialorder %v2065, 0.0
    %vm2072 = vcmp.gt.f32.partialorder %v2066, 0.0
    %v2073 = vsel %vm2071, %v2047, %v2043
    %v2074 = vsel %vm2072, %v2048, %v2044
    %v2075 = vadd.f32 %v2069, %v2073
    %v2076 = vadd.f32 %v2070, %v2074
    %v2077 = vmul.f32 %v2075, 0.5
    %v2078 = vmul.f32 %v2076, 0.5
    %v2079 = vsub.f32 0.0, %v2077
    %v2080 = vsub.f32 0.0, %v2078
    %v2081 = vmul.f32 %v2079, 1.442695
    %v2082 = vpow.pop %v2081
    %v2083 = vmul.f32 %v2080, 1.442695
    %v2084 = vpow.pop %v2083
    %v2085 = vsub.f32 %v2077, %v1420
    %v2086 = vsub.f32 %v2078, %v1421
    %v2087 = vmul.f32 %v1426, %v2085
    %v2088 = vmul.f32 %v1426, %v2086
    %v2089 = vadd.f32 %v68, %v2087
    %v2090 = vadd.f32 %v69, %v2088
    %v2091 = vadd.f32 %v2089, %v66
    %v2092 = vadd.f32 %v2090, %v67
    %v2093 = vmul.f32 %v2091, %v2082
    %v2094 = vmul.f32 %v2092, %v2084
    %v2095 = vsub.f32 %v2089, %v2093
    %v2096 = vsub.f32 %v2090, %v2094
    %vm2097 = vcmp.lt.f32.partialorder %v2095, 0.0
    %vm2098 = vcmp.lt.f32.partialorder %v2096, 0.0
    %v2099 = vsel %vm2097, %v2077, %v2069
    %v2100 = vsel %vm2098, %v2078, %v2070
    %vm2101 = vcmp.gt.f32.partialorder %v2095, 0.0
    %vm2102 = vcmp.gt.f32.partialorder %v2096, 0.0
    %v2103 = vsel %vm2101, %v2077, %v2073
    %v2104 = vsel %vm2102, %v2078, %v2074
    %v2105 = vadd.f32 %v2099, %v2103
    %v2106 = vadd.f32 %v2100, %v2104
    %v2107 = vmul.f32 %v2105, 0.5
    %v2108 = vmul.f32 %v2106, 0.5
    %v2109 = vsub.f32 0.0, %v2107
    %v2110 = vsub.f32 0.0, %v2108
    %v2111 = vmul.f32 %v2109, 1.442695
    %v2112 = vpow.pop %v2111
    %v2113 = vmul.f32 %v2110, 1.442695
    %v2114 = vpow.pop %v2113
    %v2115 = vsub.f32 %v2107, %v1420
    %v2116 = vsub.f32 %v2108, %v1421
    %v2117 = vmul.f32 %v1426, %v2115
    %v2118 = vmul.f32 %v1426, %v2116
    %v2119 = vadd.f32 %v68, %v2117
    %v2120 = vadd.f32 %v69, %v2118
    %v2121 = vadd.f32 %v2119, %v66
    %v2122 = vadd.f32 %v2120, %v67
    %v2123 = vmul.f32 %v2121, %v2112
    %v2124 = vmul.f32 %v2122, %v2114
    %v2125 = vsub.f32 %v2119, %v2123
    %v2126 = vsub.f32 %v2120, %v2124
    %vm2127 = vcmp.lt.f32.partialorder %v2125, 0.0
    %vm2128 = vcmp.lt.f32.partialorder %v2126, 0.0
    %v2129 = vsel %vm2127, %v2107, %v2099
    %v2130 = vsel %vm2128, %v2108, %v2100
    %vm2131 = vcmp.gt.f32.partialorder %v2125, 0.0
    %vm2132 = vcmp.gt.f32.partialorder %v2126, 0.0
    %v2133 = vsel %vm2131, %v2107, %v2103
    %v2134 = vsel %vm2132, %v2108, %v2104
    %v2135 = vadd.f32 %v2129, %v2133
    %v2136 = vadd.f32 %v2130, %v2134
    %v2137 = vmul.f32 %v2135, 0.5
    %v2138 = vmul.f32 %v2136, 0.5
    %v2139 = vsub.f32 0.0, %v2137
    %v2140 = vsub.f32 0.0, %v2138
    %v2141 = vmul.f32 %v2139, 1.442695
    %v2142 = vpow.pop %v2141
    %v2143 = vmul.f32 %v2140, 1.442695
    %v2144 = vpow.pop %v2143
    %v2145 = vsub.f32 %v2137, %v1420
    %v2146 = vsub.f32 %v2138, %v1421
    %v2147 = vmul.f32 %v1426, %v2145
    %v2148 = vmul.f32 %v1426, %v2146
    %v2149 = vadd.f32 %v68, %v2147
    %v2150 = vadd.f32 %v69, %v2148
    %v2151 = vadd.f32 %v2149, %v66
    %v2152 = vadd.f32 %v2150, %v67
    %v2153 = vmul.f32 %v2151, %v2142
    %v2154 = vmul.f32 %v2152, %v2144
    %v2155 = vsub.f32 %v2149, %v2153
    %v2156 = vsub.f32 %v2150, %v2154
    %vm2157 = vcmp.lt.f32.partialorder %v2155, 0.0
    %vm2158 = vcmp.lt.f32.partialorder %v2156, 0.0
    %v2159 = vsel %vm2157, %v2137, %v2129
    %v2160 = vsel %vm2158, %v2138, %v2130
    %vm2161 = vcmp.gt.f32.partialorder %v2155, 0.0
    %vm2162 = vcmp.gt.f32.partialorder %v2156, 0.0
    %v2163 = vsel %vm2161, %v2137, %v2133
    %v2164 = vsel %vm2162, %v2138, %v2134
    %v2165 = vadd.f32 %v2159, %v2163
    %v2166 = vadd.f32 %v2160, %v2164
    %v2167 = vmul.f32 %v2165, 0.5
    %v2168 = vmul.f32 %v2166, 0.5
    %v2169 = vsub.f32 0.0, %v2167
    %v2170 = vsub.f32 0.0, %v2168
    %v2171 = vmul.f32 %v2169, 1.442695
    %v2172 = vpow.pop %v2171
    %v2173 = vmul.f32 %v2170, 1.442695
    %v2174 = vpow.pop %v2173
    %v2175 = vsub.f32 %v2167, %v1420
    %v2176 = vsub.f32 %v2168, %v1421
    %v2177 = vmul.f32 %v1426, %v2175
    %v2178 = vmul.f32 %v1426, %v2176
    %v2179 = vadd.f32 %v68, %v2177
    %v2180 = vadd.f32 %v69, %v2178
    %v2181 = vadd.f32 %v2179, %v66
    %v2182 = vadd.f32 %v2180, %v67
    %v2183 = vmul.f32 %v2181, %v2172
    %v2184 = vmul.f32 %v2182, %v2174
    %v2185 = vsub.f32 %v2179, %v2183
    %v2186 = vsub.f32 %v2180, %v2184
    %vm2187 = vcmp.lt.f32.partialorder %v2185, 0.0
    %vm2188 = vcmp.lt.f32.partialorder %v2186, 0.0
    %v2189 = vsel %vm2187, %v2167, %v2159
    %v2190 = vsel %vm2188, %v2168, %v2160
    %vm2191 = vcmp.gt.f32.partialorder %v2185, 0.0
    %vm2192 = vcmp.gt.f32.partialorder %v2186, 0.0
    %v2193 = vsel %vm2191, %v2167, %v2163
    %v2194 = vsel %vm2192, %v2168, %v2164
    %v2195 = vadd.f32 %v2189, %v2193
    %v2196 = vadd.f32 %v2190, %v2194
    %v2197 = vmul.f32 %v2195, 0.5
    %v2198 = vmul.f32 %v2196, 0.5
    %v2199 = vsub.f32 0.0, %v2197
    %v2200 = vsub.f32 0.0, %v2198
    %v2201 = vmul.f32 %v2199, 1.442695
    %v2202 = vpow.pop %v2201
    %v2203 = vmul.f32 %v2200, 1.442695
    %v2204 = vpow.pop %v2203
    %v2205 = vsub.f32 %v2197, %v1420
    %v2206 = vsub.f32 %v2198, %v1421
    %v2207 = vmul.f32 %v1426, %v2205
    %v2208 = vmul.f32 %v1426, %v2206
    %v2209 = vadd.f32 %v68, %v2207
    %v2210 = vadd.f32 %v69, %v2208
    %v2211 = vadd.f32 %v2209, %v66
    %v2212 = vadd.f32 %v2210, %v67
    %v2213 = vmul.f32 %v2211, %v2202
    %v2214 = vmul.f32 %v2212, %v2204
    %v2215 = vsub.f32 %v2209, %v2213
    %v2216 = vsub.f32 %v2210, %v2214
    %vm2217 = vcmp.lt.f32.partialorder %v2215, 0.0
    %vm2218 = vcmp.lt.f32.partialorder %v2216, 0.0
    %v2219 = vsel %vm2217, %v2197, %v2189
    %v2220 = vsel %vm2218, %v2198, %v2190
    %vm2221 = vcmp.gt.f32.partialorder %v2215, 0.0
    %vm2222 = vcmp.gt.f32.partialorder %v2216, 0.0
    %v2223 = vsel %vm2221, %v2197, %v2193
    %v2224 = vsel %vm2222, %v2198, %v2194
    %v2225 = vadd.f32 %v2219, %v2223
    %v2226 = vadd.f32 %v2220, %v2224
    %v2227 = vmul.f32 %v2225, 0.5
    %v2228 = vmul.f32 %v2226, 0.5
    %v2229 = vsub.f32 0.0, %v2227
    %v2230 = vsub.f32 0.0, %v2228
    %v2231 = vmul.f32 %v2229, 1.442695
    %v2232 = vpow.pop %v2231
    %v2233 = vmul.f32 %v2230, 1.442695
    %v2234 = vpow.pop %v2233
    %v2235 = vsub.f32 %v2227, %v1420
    %v2236 = vsub.f32 %v2228, %v1421
    %v2237 = vmul.f32 %v1426, %v2235
    %v2238 = vmul.f32 %v1426, %v2236
    %v2239 = vadd.f32 %v68, %v2237
    %v2240 = vadd.f32 %v69, %v2238
    %v2241 = vadd.f32 %v2239, %v66
    %v2242 = vadd.f32 %v2240, %v67
    %v2243 = vmul.f32 %v2241, %v2232
    %v2244 = vmul.f32 %v2242, %v2234
    %v2245 = vsub.f32 %v2239, %v2243
    %v2246 = vsub.f32 %v2240, %v2244
    %vm2247 = vcmp.lt.f32.partialorder %v2245, 0.0
    %vm2248 = vcmp.lt.f32.partialorder %v2246, 0.0
    %v2249 = vsel %vm2247, %v2227, %v2219
    %v2250 = vsel %vm2248, %v2228, %v2220
    %vm2251 = vcmp.gt.f32.partialorder %v2245, 0.0
    %vm2252 = vcmp.gt.f32.partialorder %v2246, 0.0
    %v2253 = vsel %vm2251, %v2227, %v2223
    %v2254 = vsel %vm2252, %v2228, %v2224
    %v2255 = vadd.f32 %v2249, %v2253
    %v2256 = vadd.f32 %v2250, %v2254
    %v2257 = vmul.f32 %v2255, 0.5
    %v2258 = vmul.f32 %v2256, 0.5
    %v2259 = vsub.f32 0.0, %v2257
    %v2260 = vsub.f32 0.0, %v2258
    %v2261 = vmul.f32 %v2259, 1.442695
    %v2262 = vpow.pop %v2261
    %v2263 = vmul.f32 %v2260, 1.442695
    %v2264 = vpow.pop %v2263
    %v2265 = vsub.f32 %v2257, %v1420
    %v2266 = vsub.f32 %v2258, %v1421
    %v2267 = vmul.f32 %v1426, %v2265
    %v2268 = vmul.f32 %v1426, %v2266
    %v2269 = vadd.f32 %v68, %v2267
    %v2270 = vadd.f32 %v69, %v2268
    %v2271 = vadd.f32 %v2269, %v66
    %v2272 = vadd.f32 %v2270, %v67
    %v2273 = vmul.f32 %v2271, %v2262
    %v2274 = vmul.f32 %v2272, %v2264
    %v2275 = vsub.f32 %v2269, %v2273
    %v2276 = vsub.f32 %v2270, %v2274
    %vm2277 = vcmp.lt.f32.partialorder %v2275, 0.0
    %vm2278 = vcmp.lt.f32.partialorder %v2276, 0.0
    %v2279 = vsel %vm2277, %v2257, %v2249
    %v2280 = vsel %vm2278, %v2258, %v2250
    %vm2281 = vcmp.gt.f32.partialorder %v2275, 0.0
    %vm2282 = vcmp.gt.f32.partialorder %v2276, 0.0
    %v2283 = vsel %vm2281, %v2257, %v2253
    %v2284 = vsel %vm2282, %v2258, %v2254
    %v2285 = vadd.f32 %v2279, %v2283
    %v2286 = vadd.f32 %v2280, %v2284
    %v2287 = vmul.f32 %v2285, 0.5
    %v2288 = vmul.f32 %v2286, 0.5
    %v2289 = vsub.f32 0.0, %v2287
    %v2290 = vsub.f32 0.0, %v2288
    %v2291 = vmul.f32 %v2289, 1.442695
    %v2292 = vpow.pop %v2291
    %v2293 = vmul.f32 %v2290, 1.442695
    %v2294 = vpow.pop %v2293
    %v2295 = vsub.f32 %v2287, %v1420
    %v2296 = vsub.f32 %v2288, %v1421
    %v2297 = vmul.f32 %v1426, %v2295
    %v2298 = vmul.f32 %v1426, %v2296
    %v2299 = vadd.f32 %v68, %v2297
    %v2300 = vadd.f32 %v69, %v2298
    %v2301 = vadd.f32 %v2299, %v66
    %v2302 = vadd.f32 %v2300, %v67
    %v2303 = vmul.f32 %v2301, %v2292
    %v2304 = vmul.f32 %v2302, %v2294
    %v2305 = vsub.f32 %v2299, %v2303
    %v2306 = vsub.f32 %v2300, %v2304
    %vm2307 = vcmp.lt.f32.partialorder %v2305, 0.0
    %vm2308 = vcmp.lt.f32.partialorder %v2306, 0.0
    %v2309 = vsel %vm2307, %v2287, %v2279
    %v2310 = vsel %vm2308, %v2288, %v2280
    %vm2311 = vcmp.gt.f32.partialorder %v2305, 0.0
    %vm2312 = vcmp.gt.f32.partialorder %v2306, 0.0
    %v2313 = vsel %vm2311, %v2287, %v2283
    %v2314 = vsel %vm2312, %v2288, %v2284
    %v2315 = vadd.f32 %v2309, %v2313
    %v2316 = vadd.f32 %v2310, %v2314
    %v2317 = vmul.f32 %v2315, 0.5
    %v2318 = vmul.f32 %v2316, 0.5
    %v2319 = vadd.f32 %v2317, 0.0
    %v2320 = vadd.f32 %v2318, 0.0
    %v2321 = vadd.f32 %v567, 0.0
    %v2322 = vadd.f32 %v568, 0.0
    %2323 = vmatprep.subr.mxu0 0.0
    %2324 = vmatpush1.msra.mxu0 %v2319
    %2325 = vmatprep.subr.mxu0 0.0
    %2326 = vmatpush1.msra.mxu0 %v2320
    %2327 = vmatprep.subr.mxu0 0.0
    %2328 = vmatpush1.msra.mxu0 0.0
    %2329 = vmatprep.subr.mxu0 0.0
    %2330 = vmatpush1.msra.mxu0 0.0
    %2331 = vmatprep.subr.mxu0 0.0
    %2332 = vmatpush1.msra.mxu0 0.0
    %2333 = vmatprep.subr.mxu0 0.0
    %2334 = vmatpush1.msra.mxu0 0.0
    %2335 = vmatprep.subr.mxu0 0.0
    %2336 = vmatpush1.msra.mxu0 0.0
    %2337 = vmatprep.subr.mxu0 0.0
    %2338 = vmatpush1.msra.mxu0 0.0
    %2339 = vmatprep.subr.mxu0 0.0
    %2340 = vmatpush1.msra.mxu0 0.0
    %2341 = vmatprep.subr.mxu0 0.0
    %2342 = vmatpush1.msra.mxu0 0.0
    %2343 = vmatprep.subr.mxu0 0.0
    %2344 = vmatpush1.msra.mxu0 0.0
    %2345 = vmatprep.subr.mxu0 0.0
    %2346 = vmatpush1.msra.mxu0 0.0
    %2347 = vmatprep.subr.mxu0 0.0
    %2348 = vmatpush1.msra.mxu0 0.0
    %2349 = vmatprep.subr.mxu0 0.0
    %2350 = vmatpush1.msra.mxu0 0.0
    %2351 = vmatprep.subr.mxu0 0.0
    %2352 = vmatpush1.msra.mxu0 0.0
    %2353 = vmatprep.subr.mxu0 0.0
    %2354 = vmatpush1.msra.mxu0 0.0
    %2355 = vmatprep.subr.mxu0 0.0
    %2356 = vmatpush1.msra.mxu0 0.0
    %2357 = vmatprep.subr.mxu0 0.0
    %2358 = vmatpush1.msra.mxu0 0.0
    %2359 = vmatprep.subr.mxu0 0.0
    %2360 = vmatpush1.msra.mxu0 0.0
    %2361 = vmatprep.subr.mxu0 0.0
    %2362 = vmatpush1.msra.mxu0 0.0
    %2363 = vmatprep.subr.mxu0 0.0
    %2364 = vmatpush1.msra.mxu0 0.0
    %2365 = vmatprep.subr.mxu0 0.0
    %2366 = vmatpush1.msra.mxu0 0.0
    %2367 = vmatprep.subr.mxu0 0.0
    %2368 = vmatpush1.msra.mxu0 0.0
    %2369 = vmatprep.subr.mxu0 0.0
    %2370 = vmatpush1.msra.mxu0 0.0
    %2371 = vmatprep.subr.mxu0 0.0
    %2372 = vmatpush1.msra.mxu0 0.0
    %2373 = vmatprep.subr.mxu0 0.0
    %2374 = vmatpush1.msra.mxu0 0.0
    %2375 = vmatprep.subr.mxu0 0.0
    %2376 = vmatpush1.msra.mxu0 0.0
    %2377 = vmatprep.subr.mxu0 0.0
    %2378 = vmatpush1.msra.mxu0 0.0
    %2379 = vmatprep.subr.mxu0 0.0
    %2380 = vmatpush1.msra.mxu0 0.0
    %2381 = vmatprep.subr.mxu0 0.0
    %2382 = vmatpush1.msra.mxu0 0.0
    %2383 = vmatprep.subr.mxu0 0.0
    %2384 = vmatpush1.msra.mxu0 0.0
    %2385 = vmatprep.subr.mxu0 0.0
    %2386 = vmatpush1.msra.mxu0 0.0
    %2387 = vmatprep.mubr.f32.mxu0 0.0
    %2388 = vmatmul.mubr.f32.gmra.mrb[0].mxu0 %v76
    %v2389 = vpop.f32.mrb[0].mxu0
    %v2390 = vadd.f32 0.0, %v2389
    %v2391 = vpop.f32.mrb[0].mxu0
    %2392 = vmatprep.mubr.f32.mxu0 0.0
    %2393 = vmatmul.mubr.f32.gmra.mrb[0].mxu0 %v79
    %v2394 = vpop.f32.mrb[0].mxu0
    %v2395 = vadd.f32 0.0, %v2394
    %v2396 = vpop.f32.mrb[0].mxu0
    %2397 = vmatprep.mubr.f32.mxu0 0.0
    %2398 = vmatmul.mubr.f32.gmra.mrb[0].mxu0 %v82
    %v2399 = vpop.f32.mrb[0].mxu0
    %v2400 = vadd.f32 0.0, %v2399
    %v2401 = vpop.f32.mrb[0].mxu0
    %2402 = vmatprep.mubr.f32.mxu0 0.0
    %2403 = vmatmul.mubr.f32.gmra.mrb[0].mxu0 %v85
    %v2404 = vpop.f32.mrb[0].mxu0
    %v2405 = vadd.f32 0.0, %v2404
    %v2406 = vpop.f32.mrb[0].mxu0
    %2407 = vdwg.mxu0
    %2410 = vrot.lane.b32.xlu0 %v2400, 32
    %v2411 = vpop.permute.xlu0 %2410
    %2412 = vrot.lane.b32.xlu0 %v2405, 32
    %v2413 = vpop.permute.xlu0 %2412
    %v2416 = vsel %vm180, %v2390, %v2411
    %v2417 = vsel %vm180, %v2395, %v2413
    %v2419 = vsel %vm191, %v2416, 0
    %v2422 = vsel %vm191, %v2417, 0
    %2424 = vmatprep.subr.mxu0 0.0
    %2425 = vmatpush1.msra.mxu0 %v183
    %2426 = vmatprep.subr.mxu0 0.0
    %2427 = vmatpush1.msra.mxu0 %v184
    %2428 = vmatprep.subr.mxu0 0.0
    %2429 = vmatpush1.msra.mxu0 %v185
    %2430 = vmatprep.subr.mxu0 0.0
    %2431 = vmatpush1.msra.mxu0 %v186
    %2432 = vmatprep.subr.mxu0 0.0
    %2433 = vmatpush1.msra.mxu0 %v187
    %2434 = vmatprep.subr.mxu0 0.0
    %2435 = vmatpush1.msra.mxu0 %v188
    %2436 = vmatprep.subr.mxu0 0.0
    %2437 = vmatpush1.msra.mxu0 %v189
    %2438 = vmatprep.subr.mxu0 0.0
    %2439 = vmatpush1.msra.mxu0 %v190
    %2440 = vmatprep.subr.mxu0 0.0
    %2441 = vmatpush1.msra.mxu0 0.0
    %2442 = vmatprep.subr.mxu0 0.0
    %2443 = vmatpush1.msra.mxu0 0.0
    %2444 = vmatprep.subr.mxu0 0.0
    %2445 = vmatpush1.msra.mxu0 0.0
    %2446 = vmatprep.subr.mxu0 0.0
    %2447 = vmatpush1.msra.mxu0 0.0
    %2448 = vmatprep.subr.mxu0 0.0
    %2449 = vmatpush1.msra.mxu0 0.0
    %2450 = vmatprep.subr.mxu0 0.0
    %2451 = vmatpush1.msra.mxu0 0.0
    %2452 = vmatprep.subr.mxu0 0.0
    %2453 = vmatpush1.msra.mxu0 0.0
    %2454 = vmatprep.subr.mxu0 0.0
    %2455 = vmatpush1.msra.mxu0 0.0
    %2456 = vmatprep.subr.mxu0 0.0
    %2457 = vmatpush1.msra.mxu0 0.0
    %2458 = vmatprep.subr.mxu0 0.0
    %2459 = vmatpush1.msra.mxu0 0.0
    %2460 = vmatprep.subr.mxu0 0.0
    %2461 = vmatpush1.msra.mxu0 0.0
    %2462 = vmatprep.subr.mxu0 0.0
    %2463 = vmatpush1.msra.mxu0 0.0
    %2464 = vmatprep.subr.mxu0 0.0
    %2465 = vmatpush1.msra.mxu0 0.0
    %2466 = vmatprep.subr.mxu0 0.0
    %2467 = vmatpush1.msra.mxu0 0.0
    %2468 = vmatprep.subr.mxu0 0.0
    %2469 = vmatpush1.msra.mxu0 0.0
    %2470 = vmatprep.subr.mxu0 0.0
    %2471 = vmatpush1.msra.mxu0 0.0
    %2472 = vmatprep.subr.mxu0 0.0
    %2473 = vmatpush1.msra.mxu0 0.0
    %2474 = vmatprep.subr.mxu0 0.0
    %2475 = vmatpush1.msra.mxu0 0.0
    %2476 = vmatprep.subr.mxu0 0.0
    %2477 = vmatpush1.msra.mxu0 0.0
    %2478 = vmatprep.subr.mxu0 0.0
    %2479 = vmatpush1.msra.mxu0 0.0
    %2480 = vmatprep.subr.mxu0 0.0
    %2481 = vmatpush1.msra.mxu0 0.0
    %2482 = vmatprep.subr.mxu0 0.0
    %2483 = vmatpush1.msra.mxu0 0.0
    %2484 = vmatprep.subr.mxu0 0.0
    %2485 = vmatpush1.msra.mxu0 0.0
    %2486 = vmatprep.subr.mxu0 0.0
    %2487 = vmatpush1.msra.mxu0 0.0
    %2488 = vmatprep.mubr.f32.mxu0 0.0
    %2489 = vmatmul.mubr.f32.gmra.mrb[0].mxu0 %v2419
    %v2490 = vpop.f32.mrb[0].mxu0
    %v2491 = vadd.f32 0.0, %v2490
    %v2492 = vpop.f32.mrb[0].mxu0
    %2493 = vmatprep.mubr.f32.mxu0 0.0
    %2494 = vmatmul.mubr.f32.gmra.mrb[0].mxu0 %v2422
    %v2495 = vpop.f32.mrb[0].mxu0
    %v2496 = vadd.f32 0.0, %v2495
    %v2497 = vpop.f32.mrb[0].mxu0
    %2498 = vdwg.mxu0
    %v2499 = vmul.f32 %v2491, %v273
    %v2500 = vmul.f32 %v2496, %v274
    %2503 = vrot.lane.b32.xlu0 %v2491, 96
    %v2504 = vpop.permute.xlu0 %2503
    %2505 = vrot.lane.b32.xlu0 %v2496, 96
    %v2506 = vpop.permute.xlu0 %2505
    %2509 = vrot.lane.b32.xlu0 %v2491, 32
    %v2510 = vpop.permute.xlu0 %2509
    %2511 = vrot.lane.b32.xlu0 %v2496, 32
    %v2512 = vpop.permute.xlu0 %2511
    %v2515 = vsel %vm180, %v2504, %v2510
    %v2516 = vsel %vm180, %v2506, %v2512
    %v2517 = vmul.f32 %v2515, %v293
    %v2518 = vmul.f32 %v2516, %v294
    %v2519 = vsub.f32 %v2499, %v2517
    %v2520 = vsub.f32 %v2500, %v2518
    %v2522 = vsel %vm191, %v2519, 0
    %v2525 = vsel %vm191, %v2520, 0
    %2527 = vmatprep.subr.mxu0 0.0
    %2528 = vmatpush1.msra.mxu0 %v299
    %2529 = vmatprep.subr.mxu0 0.0
    %2530 = vmatpush1.msra.mxu0 %v300
    %2531 = vmatprep.subr.mxu0 0.0
    %2532 = vmatpush1.msra.mxu0 %v301
    %2533 = vmatprep.subr.mxu0 0.0
    %2534 = vmatpush1.msra.mxu0 %v302
    %2535 = vmatprep.subr.mxu0 0.0
    %2536 = vmatpush1.msra.mxu0 %v303
    %2537 = vmatprep.subr.mxu0 0.0
    %2538 = vmatpush1.msra.mxu0 %v304
    %2539 = vmatprep.subr.mxu0 0.0
    %2540 = vmatpush1.msra.mxu0 %v305
    %2541 = vmatprep.subr.mxu0 0.0
    %2542 = vmatpush1.msra.mxu0 %v306
    %2543 = vmatprep.subr.mxu0 0.0
    %2544 = vmatpush1.msra.mxu0 0.0
    %2545 = vmatprep.subr.mxu0 0.0
    %2546 = vmatpush1.msra.mxu0 0.0
    %2547 = vmatprep.subr.mxu0 0.0
    %2548 = vmatpush1.msra.mxu0 0.0
    %2549 = vmatprep.subr.mxu0 0.0
    %2550 = vmatpush1.msra.mxu0 0.0
    %2551 = vmatprep.subr.mxu0 0.0
    %2552 = vmatpush1.msra.mxu0 0.0
    %2553 = vmatprep.subr.mxu0 0.0
    %2554 = vmatpush1.msra.mxu0 0.0
    %2555 = vmatprep.subr.mxu0 0.0
    %2556 = vmatpush1.msra.mxu0 0.0
    %2557 = vmatprep.subr.mxu0 0.0
    %2558 = vmatpush1.msra.mxu0 0.0
    %2559 = vmatprep.subr.mxu0 0.0
    %2560 = vmatpush1.msra.mxu0 0.0
    %2561 = vmatprep.subr.mxu0 0.0
    %2562 = vmatpush1.msra.mxu0 0.0
    %2563 = vmatprep.subr.mxu0 0.0
    %2564 = vmatpush1.msra.mxu0 0.0
    %2565 = vmatprep.subr.mxu0 0.0
    %2566 = vmatpush1.msra.mxu0 0.0
    %2567 = vmatprep.subr.mxu0 0.0
    %2568 = vmatpush1.msra.mxu0 0.0
    %2569 = vmatprep.subr.mxu0 0.0
    %2570 = vmatpush1.msra.mxu0 0.0
    %2571 = vmatprep.subr.mxu0 0.0
    %2572 = vmatpush1.msra.mxu0 0.0
    %2573 = vmatprep.subr.mxu0 0.0
    %2574 = vmatpush1.msra.mxu0 0.0
    %2575 = vmatprep.subr.mxu0 0.0
    %2576 = vmatpush1.msra.mxu0 0.0
    %2577 = vmatprep.subr.mxu0 0.0
    %2578 = vmatpush1.msra.mxu0 0.0
    %2579 = vmatprep.subr.mxu0 0.0
    %2580 = vmatpush1.msra.mxu0 0.0
    %2581 = vmatprep.subr.mxu0 0.0
    %2582 = vmatpush1.msra.mxu0 0.0
    %2583 = vmatprep.subr.mxu0 0.0
    %2584 = vmatpush1.msra.mxu0 0.0
    %2585 = vmatprep.subr.mxu0 0.0
    %2586 = vmatpush1.msra.mxu0 0.0
    %2587 = vmatprep.subr.mxu0 0.0
    %2588 = vmatpush1.msra.mxu0 0.0
    %2589 = vmatprep.subr.mxu0 0.0
    %2590 = vmatpush1.msra.mxu0 0.0
    %2591 = vmatprep.mubr.f32.mxu0 0.0
    %2592 = vmatmul.mubr.f32.gmra.mrb[0].mxu0 %v2522
    %v2593 = vpop.f32.mrb[0].mxu0
    %v2594 = vadd.f32 0.0, %v2593
    %v2595 = vpop.f32.mrb[0].mxu0
    %2596 = vmatprep.mubr.f32.mxu0 0.0
    %2597 = vmatmul.mubr.f32.gmra.mrb[0].mxu0 %v2525
    %v2598 = vpop.f32.mrb[0].mxu0
    %v2599 = vadd.f32 0.0, %v2598
    %v2600 = vpop.f32.mrb[0].mxu0
    %2601 = vdwg.mxu0
    %2604 = vrot.lane.b32.xlu0 %v2594, 96
    %v2605 = vpop.permute.xlu0 %2604
    %2606 = vrot.lane.b32.xlu0 %v2599, 96
    %v2607 = vpop.permute.xlu0 %2606
    %2610 = vmatprep.subr.mxu0 0.0
    %2611 = vmatpush1.msra.mxu0 %v2594
    %2612 = vmatprep.subr.mxu0 0.0
    %2613 = vmatpush1.msra.mxu0 %v2599
    %2614 = vmatprep.subr.mxu0 0.0
    %2615 = vmatpush1.msra.mxu0 %v2605
    %2616 = vmatprep.subr.mxu0 0.0
    %2617 = vmatpush1.msra.mxu0 %v2607
    %2618 = vmatprep.subr.mxu0 0.0
    %2619 = vmatpush1.msra.mxu0 0.0
    %2620 = vmatprep.subr.mxu0 0.0
    %2621 = vmatpush1.msra.mxu0 0.0
    %2622 = vmatprep.subr.mxu0 0.0
    %2623 = vmatpush1.msra.mxu0 0.0
    %2624 = vmatprep.subr.mxu0 0.0
    %2625 = vmatpush1.msra.mxu0 0.0
    %2626 = vmatprep.subr.mxu0 0.0
    %2627 = vmatpush1.msra.mxu0 0.0
    %2628 = vmatprep.subr.mxu0 0.0
    %2629 = vmatpush1.msra.mxu0 0.0
    %2630 = vmatprep.subr.mxu0 0.0
    %2631 = vmatpush1.msra.mxu0 0.0
    %2632 = vmatprep.subr.mxu0 0.0
    %2633 = vmatpush1.msra.mxu0 0.0
    %2634 = vmatprep.subr.mxu0 0.0
    %2635 = vmatpush1.msra.mxu0 0.0
    %2636 = vmatprep.subr.mxu0 0.0
    %2637 = vmatpush1.msra.mxu0 0.0
    %2638 = vmatprep.subr.mxu0 0.0
    %2639 = vmatpush1.msra.mxu0 0.0
    %2640 = vmatprep.subr.mxu0 0.0
    %2641 = vmatpush1.msra.mxu0 0.0
    %2642 = vmatprep.subr.mxu0 0.0
    %2643 = vmatpush1.msra.mxu0 0.0
    %2644 = vmatprep.subr.mxu0 0.0
    %2645 = vmatpush1.msra.mxu0 0.0
    %2646 = vmatprep.subr.mxu0 0.0
    %2647 = vmatpush1.msra.mxu0 0.0
    %2648 = vmatprep.subr.mxu0 0.0
    %2649 = vmatpush1.msra.mxu0 0.0
    %2650 = vmatprep.subr.mxu0 0.0
    %2651 = vmatpush1.msra.mxu0 0.0
    %2652 = vmatprep.subr.mxu0 0.0
    %2653 = vmatpush1.msra.mxu0 0.0
    %2654 = vmatprep.subr.mxu0 0.0
    %2655 = vmatpush1.msra.mxu0 0.0
    %2656 = vmatprep.subr.mxu0 0.0
    %2657 = vmatpush1.msra.mxu0 0.0
    %2658 = vmatprep.subr.mxu0 0.0
    %2659 = vmatpush1.msra.mxu0 0.0
    %2660 = vmatprep.subr.mxu0 0.0
    %2661 = vmatpush1.msra.mxu0 0.0
    %2662 = vmatprep.subr.mxu0 0.0
    %2663 = vmatpush1.msra.mxu0 0.0
    %2664 = vmatprep.subr.mxu0 0.0
    %2665 = vmatpush1.msra.mxu0 0.0
    %2666 = vmatprep.subr.mxu0 0.0
    %2667 = vmatpush1.msra.mxu0 0.0
    %2668 = vmatprep.subr.mxu0 0.0
    %2669 = vmatpush1.msra.mxu0 0.0
    %2670 = vmatprep.subr.mxu0 0.0
    %2671 = vmatpush1.msra.mxu0 0.0
    %2672 = vmatprep.subr.mxu0 0.0
    %2673 = vmatpush1.msra.mxu0 0.0
    %2674 = vmatprep.mubr.f32.mxu0 0.0
    %2675 = vmatmul.mubr.f32.gmra.mrb[0].mxu0 %v401
    %v2676 = vpop.f32.mrb[0].mxu0
    %v2677 = vadd.f32 0.0, %v2676
    %v2678 = vpop.f32.mrb[0].mxu0
    %2679 = vmatprep.mubr.f32.mxu0 0.0
    %2680 = vmatmul.mubr.f32.gmra.mrb[0].mxu0 %v404
    %v2681 = vpop.f32.mrb[0].mxu0
    %v2682 = vadd.f32 0.0, %v2681
    %v2683 = vpop.f32.mrb[0].mxu0
    %2684 = vmatprep.mubr.f32.mxu0 0.0
    %2685 = vmatmul.mubr.f32.gmra.mrb[0].mxu0 %v407
    %v2686 = vpop.f32.mrb[0].mxu0
    %v2687 = vadd.f32 0.0, %v2686
    %v2688 = vpop.f32.mrb[0].mxu0
    %2689 = vmatprep.mubr.f32.mxu0 0.0
    %2690 = vmatmul.mubr.f32.gmra.mrb[0].mxu0 %v410
    %v2691 = vpop.f32.mrb[0].mxu0
    %v2692 = vadd.f32 0.0, %v2691
    %v2693 = vpop.f32.mrb[0].mxu0
    %2694 = vdwg.mxu0
    %v2695 = vmul.f32 %v2677, 0.00390625
    %v2696 = vmul.f32 %v2682, 0.00390625
    %v2697 = vmul.f32 %v2687, 0.00390625
    %v2698 = vmul.f32 %v2692, 0.00390625
    %v2699 = vand.u32 2147483647, %v2695
    %v2700 = vand.u32 2147483647, %v2696
    %v2701 = vand.u32 2147483647, %v2697
    %v2702 = vand.u32 2147483647, %v2698
    %v2703 = vmax.f32 %v2699, %v2701
    %v2704 = vmax.f32 %v2700, %v2702
    %v2705 = vmin.f32 %v2699, %v2701
    %v2706 = vmin.f32 %v2700, %v2702
    %vm2707 = vcmp.eq.f32.partialorder %v2703, 0.0
    %vm2708 = vcmp.eq.f32.partialorder %v2704, 0.0
    %v2709 = vsel %vm2707, 1.0, %v2703
    %v2710 = vsel %vm2708, 1.0, %v2704
    %v2711 = vrcp.pop %v2709
    %v2712 = vmul.f32 %v2705, %v2711
    %v2713 = vrcp.pop %v2710
    %v2714 = vmul.f32 %v2706, %v2713
    %vm2715 = vcmp.gt.f32.partialorder %v2712, 0.41421357
    %vm2716 = vcmp.gt.f32.partialorder %v2714, 0.41421357
    %v2717 = vsub.f32 %v2712, 1.0
    %v2718 = vsub.f32 %v2714, 1.0
    %v2719 = vadd.f32 %v2712, 1.0
    %v2720 = vadd.f32 %v2714, 1.0
    %v2721 = vrcp.pop %v2719
    %v2722 = vmul.f32 %v2717, %v2721
    %v2723 = vrcp.pop %v2720
    %v2724 = vmul.f32 %v2718, %v2723
    %v2725 = vsel %vm2715, %v2722, %v2712
    %v2726 = vsel %vm2716, %v2724, %v2714
    %v2727 = vsel %vm2715, 0.7853982, 0.0
    %v2728 = vsel %vm2716, 0.7853982, 0.0
    %v2729 = vmul.f32 %v2725, %v2725
    %v2730 = vmul.f32 %v2726, %v2726
    %v2731 = vmul.f32 %v2729, 0.080537446
    %v2732 = vmul.f32 %v2730, 0.080537446
    %v2733 = vsub.f32 %v2731, 0.13877685
    %v2734 = vsub.f32 %v2732, 0.13877685
    %v2735 = vmul.f32 %v2733, %v2729
    %v2736 = vmul.f32 %v2734, %v2730
    %v2737 = vadd.f32 %v2735, 0.19977711
    %v2738 = vadd.f32 %v2736, 0.19977711
    %v2739 = vmul.f32 %v2737, %v2729
    %v2740 = vmul.f32 %v2738, %v2730
    %v2741 = vsub.f32 %v2739, 0.3333295
    %v2742 = vsub.f32 %v2740, 0.3333295
    %v2743 = vmul.f32 %v2741, %v2729
    %v2744 = vmul.f32 %v2742, %v2730
    %v2745 = vmul.f32 %v2743, %v2725
    %v2746 = vmul.f32 %v2744, %v2726
    %v2747 = vadd.f32 %v2745, %v2725
    %v2748 = vadd.f32 %v2746, %v2726
    %v2749 = vadd.f32 %v2727, %v2747
    %v2750 = vadd.f32 %v2728, %v2748
    %vm2751 = vcmp.gt.f32.partialorder %v2701, %v2699
    %vm2752 = vcmp.gt.f32.partialorder %v2702, %v2700
    %v2753 = vsub.f32 1.5707964, %v2749
    %v2754 = vsub.f32 1.5707964, %v2750
    %v2755 = vsel %vm2751, %v2753, %v2749
    %v2756 = vsel %vm2752, %v2754, %v2750
    %vm2757 = vcmp.lt.f32.partialorder %v2695, 0.0
    %vm2758 = vcmp.lt.f32.partialorder %v2696, 0.0
    %v2759 = vsub.f32 3.1415927, %v2755
    %v2760 = vsub.f32 3.1415927, %v2756
    %v2761 = vsel %vm2757, %v2759, %v2755
    %v2762 = vsel %vm2758, %v2760, %v2756
    %v2763 = vsel %vm2707, 0.0, %v2761
    %v2764 = vsel %vm2708, 0.0, %v2762
    %v2765 = vmul.f32 %v2763, 0.31830987
    %v2766 = vmul.f32 %v2764, 0.31830987
    %v2767 = vmul.f32 %v1426, %v2765
    %v2768 = vmul.f32 %v1426, %v2766
    %v2769 = vstv %s1423
    %v2770 = vmul.f32 %v2769, %v2321
    %v2771 = vmul.f32 %v2769, %v2322
    %v2772 = vadd.f32 %v2767, %v2770
    %v2773 = vadd.f32 %v2768, %v2771
    %2774 = vmatprep.subr.mxu0 0.0
    %2775 = vmatpush1.msra.mxu0 %v2772
    %2776 = vmatprep.subr.mxu0 0.0
    %2777 = vmatpush1.msra.mxu0 %v2773
    %2778 = vmatprep.subr.mxu0 0.0
    %2779 = vmatpush1.msra.mxu0 0.0
    %2780 = vmatprep.subr.mxu0 0.0
    %2781 = vmatpush1.msra.mxu0 0.0
    %2782 = vmatprep.subr.mxu0 0.0
    %2783 = vmatpush1.msra.mxu0 0.0
    %2784 = vmatprep.subr.mxu0 0.0
    %2785 = vmatpush1.msra.mxu0 0.0
    %2786 = vmatprep.subr.mxu0 0.0
    %2787 = vmatpush1.msra.mxu0 0.0
    %2788 = vmatprep.subr.mxu0 0.0
    %2789 = vmatpush1.msra.mxu0 0.0
    %2790 = vmatprep.subr.mxu0 0.0
    %2791 = vmatpush1.msra.mxu0 0.0
    %2792 = vmatprep.subr.mxu0 0.0
    %2793 = vmatpush1.msra.mxu0 0.0
    %2794 = vmatprep.subr.mxu0 0.0
    %2795 = vmatpush1.msra.mxu0 0.0
    %2796 = vmatprep.subr.mxu0 0.0
    %2797 = vmatpush1.msra.mxu0 0.0
    %2798 = vmatprep.subr.mxu0 0.0
    %2799 = vmatpush1.msra.mxu0 0.0
    %2800 = vmatprep.subr.mxu0 0.0
    %2801 = vmatpush1.msra.mxu0 0.0
    %2802 = vmatprep.subr.mxu0 0.0
    %2803 = vmatpush1.msra.mxu0 0.0
    %2804 = vmatprep.subr.mxu0 0.0
    %2805 = vmatpush1.msra.mxu0 0.0
    %2806 = vmatprep.subr.mxu0 0.0
    %2807 = vmatpush1.msra.mxu0 0.0
    %2808 = vmatprep.subr.mxu0 0.0
    %2809 = vmatpush1.msra.mxu0 0.0
    %2810 = vmatprep.subr.mxu0 0.0
    %2811 = vmatpush1.msra.mxu0 0.0
    %2812 = vmatprep.subr.mxu0 0.0
    %2813 = vmatpush1.msra.mxu0 0.0
    %2814 = vmatprep.subr.mxu0 0.0
    %2815 = vmatpush1.msra.mxu0 0.0
    %2816 = vmatprep.subr.mxu0 0.0
    %2817 = vmatpush1.msra.mxu0 0.0
    %2818 = vmatprep.subr.mxu0 0.0
    %2819 = vmatpush1.msra.mxu0 0.0
    %2820 = vmatprep.subr.mxu0 0.0
    %2821 = vmatpush1.msra.mxu0 0.0
    %2822 = vmatprep.subr.mxu0 0.0
    %2823 = vmatpush1.msra.mxu0 0.0
    %2824 = vmatprep.subr.mxu0 0.0
    %2825 = vmatpush1.msra.mxu0 0.0
    %2826 = vmatprep.subr.mxu0 0.0
    %2827 = vmatpush1.msra.mxu0 0.0
    %2828 = vmatprep.subr.mxu0 0.0
    %2829 = vmatpush1.msra.mxu0 0.0
    %2830 = vmatprep.subr.mxu0 0.0
    %2831 = vmatpush1.msra.mxu0 0.0
    %2832 = vmatprep.subr.mxu0 0.0
    %2833 = vmatpush1.msra.mxu0 0.0
    %2834 = vmatprep.subr.mxu0 0.0
    %2835 = vmatpush1.msra.mxu0 0.0
    %2836 = vmatprep.subr.mxu0 0.0
    %2837 = vmatpush1.msra.mxu0 0.0
    %2838 = vmatprep.mubr.f32.mxu0 0.0
    %2839 = vmatmul.mubr.f32.gmra.mrb[0].mxu0 %v76
    %v2840 = vpop.f32.mrb[0].mxu0
    %v2841 = vadd.f32 0.0, %v2840
    %v2842 = vpop.f32.mrb[0].mxu0
    %2843 = vmatprep.mubr.f32.mxu0 0.0
    %2844 = vmatmul.mubr.f32.gmra.mrb[0].mxu0 %v79
    %v2845 = vpop.f32.mrb[0].mxu0
    %v2846 = vadd.f32 0.0, %v2845
    %v2847 = vpop.f32.mrb[0].mxu0
    %2848 = vmatprep.mubr.f32.mxu0 0.0
    %2849 = vmatmul.mubr.f32.gmra.mrb[0].mxu0 %v82
    %v2850 = vpop.f32.mrb[0].mxu0
    %v2851 = vadd.f32 0.0, %v2850
    %v2852 = vpop.f32.mrb[0].mxu0
    %2853 = vmatprep.mubr.f32.mxu0 0.0
    %2854 = vmatmul.mubr.f32.gmra.mrb[0].mxu0 %v85
    %v2855 = vpop.f32.mrb[0].mxu0
    %v2856 = vadd.f32 0.0, %v2855
    %v2857 = vpop.f32.mrb[0].mxu0
    %2858 = vdwg.mxu0
    %2861 = vrot.lane.b32.xlu0 %v2851, 32
    %v2862 = vpop.permute.xlu0 %2861
    %2863 = vrot.lane.b32.xlu0 %v2856, 32
    %v2864 = vpop.permute.xlu0 %2863
    %v2867 = vsel %vm180, %v2841, %v2862
    %v2868 = vsel %vm180, %v2846, %v2864
    %v2870 = vsel %vm191, %v2867, 0
    %v2873 = vsel %vm191, %v2868, 0
    %2875 = vmatprep.subr.mxu0 0.0
    %2876 = vmatpush1.msra.mxu0 %v183
    %2877 = vmatprep.subr.mxu0 0.0
    %2878 = vmatpush1.msra.mxu0 %v184
    %2879 = vmatprep.subr.mxu0 0.0
    %2880 = vmatpush1.msra.mxu0 %v185
    %2881 = vmatprep.subr.mxu0 0.0
    %2882 = vmatpush1.msra.mxu0 %v186
    %2883 = vmatprep.subr.mxu0 0.0
    %2884 = vmatpush1.msra.mxu0 %v187
    %2885 = vmatprep.subr.mxu0 0.0
    %2886 = vmatpush1.msra.mxu0 %v188
    %2887 = vmatprep.subr.mxu0 0.0
    %2888 = vmatpush1.msra.mxu0 %v189
    %2889 = vmatprep.subr.mxu0 0.0
    %2890 = vmatpush1.msra.mxu0 %v190
    %2891 = vmatprep.subr.mxu0 0.0
    %2892 = vmatpush1.msra.mxu0 0.0
    %2893 = vmatprep.subr.mxu0 0.0
    %2894 = vmatpush1.msra.mxu0 0.0
    %2895 = vmatprep.subr.mxu0 0.0
    %2896 = vmatpush1.msra.mxu0 0.0
    %2897 = vmatprep.subr.mxu0 0.0
    %2898 = vmatpush1.msra.mxu0 0.0
    %2899 = vmatprep.subr.mxu0 0.0
    %2900 = vmatpush1.msra.mxu0 0.0
    %2901 = vmatprep.subr.mxu0 0.0
    %2902 = vmatpush1.msra.mxu0 0.0
    %2903 = vmatprep.subr.mxu0 0.0
    %2904 = vmatpush1.msra.mxu0 0.0
    %2905 = vmatprep.subr.mxu0 0.0
    %2906 = vmatpush1.msra.mxu0 0.0
    %2907 = vmatprep.subr.mxu0 0.0
    %2908 = vmatpush1.msra.mxu0 0.0
    %2909 = vmatprep.subr.mxu0 0.0
    %2910 = vmatpush1.msra.mxu0 0.0
    %2911 = vmatprep.subr.mxu0 0.0
    %2912 = vmatpush1.msra.mxu0 0.0
    %2913 = vmatprep.subr.mxu0 0.0
    %2914 = vmatpush1.msra.mxu0 0.0
    %2915 = vmatprep.subr.mxu0 0.0
    %2916 = vmatpush1.msra.mxu0 0.0
    %2917 = vmatprep.subr.mxu0 0.0
    %2918 = vmatpush1.msra.mxu0 0.0
    %2919 = vmatprep.subr.mxu0 0.0
    %2920 = vmatpush1.msra.mxu0 0.0
    %2921 = vmatprep.subr.mxu0 0.0
    %2922 = vmatpush1.msra.mxu0 0.0
    %2923 = vmatprep.subr.mxu0 0.0
    %2924 = vmatpush1.msra.mxu0 0.0
    %2925 = vmatprep.subr.mxu0 0.0
    %2926 = vmatpush1.msra.mxu0 0.0
    %2927 = vmatprep.subr.mxu0 0.0
    %2928 = vmatpush1.msra.mxu0 0.0
    %2929 = vmatprep.subr.mxu0 0.0
    %2930 = vmatpush1.msra.mxu0 0.0
    %2931 = vmatprep.subr.mxu0 0.0
    %2932 = vmatpush1.msra.mxu0 0.0
    %2933 = vmatprep.subr.mxu0 0.0
    %2934 = vmatpush1.msra.mxu0 0.0
    %2935 = vmatprep.subr.mxu0 0.0
    %2936 = vmatpush1.msra.mxu0 0.0
    %2937 = vmatprep.subr.mxu0 0.0
    %2938 = vmatpush1.msra.mxu0 0.0
    %2939 = vmatprep.mubr.f32.mxu0 0.0
    %2940 = vmatmul.mubr.f32.gmra.mrb[0].mxu0 %v2870
    %v2941 = vpop.f32.mrb[0].mxu0
    %v2942 = vadd.f32 0.0, %v2941
    %v2943 = vpop.f32.mrb[0].mxu0
    %2944 = vmatprep.mubr.f32.mxu0 0.0
    %2945 = vmatmul.mubr.f32.gmra.mrb[0].mxu0 %v2873
    %v2946 = vpop.f32.mrb[0].mxu0
    %v2947 = vadd.f32 0.0, %v2946
    %v2948 = vpop.f32.mrb[0].mxu0
    %2949 = vdwg.mxu0
    %v2950 = vld [vmem:[%s4] sm:$0xff]
    %v2951 = vld [vmem:[%s4 + $0x8] sm:$0xff]
    %v2952 = vmul.f32 %v1426, %v2950
    %v2953 = vmul.f32 %v1426, %v2951
    %v2954 = vadd.f32 %v2769, %v2952
    %v2955 = vadd.f32 %v2769, %v2953
    %v2956 = vrcp.pop %v2954
    %v2957 = vmul.f32 %v2942, %v2956
    %v2958 = vrcp.pop %v2955
    %v2959 = vmul.f32 %v2947, %v2958
    %v2961 = vsel %vm191, %v2957, 0
    %v2964 = vsel %vm191, %v2959, 0
    %2966 = vmatprep.subr.mxu0 0.0
    %2967 = vmatpush1.msra.mxu0 %v299
    %2968 = vmatprep.subr.mxu0 0.0
    %2969 = vmatpush1.msra.mxu0 %v300
    %2970 = vmatprep.subr.mxu0 0.0
    %2971 = vmatpush1.msra.mxu0 %v301
    %2972 = vmatprep.subr.mxu0 0.0
    %2973 = vmatpush1.msra.mxu0 %v302
    %2974 = vmatprep.subr.mxu0 0.0
    %2975 = vmatpush1.msra.mxu0 %v303
    %2976 = vmatprep.subr.mxu0 0.0
    %2977 = vmatpush1.msra.mxu0 %v304
    %2978 = vmatprep.subr.mxu0 0.0
    %2979 = vmatpush1.msra.mxu0 %v305
    %2980 = vmatprep.subr.mxu0 0.0
    %2981 = vmatpush1.msra.mxu0 %v306
    %2982 = vmatprep.subr.mxu0 0.0
    %2983 = vmatpush1.msra.mxu0 0.0
    %2984 = vmatprep.subr.mxu0 0.0
    %2985 = vmatpush1.msra.mxu0 0.0
    %2986 = vmatprep.subr.mxu0 0.0
    %2987 = vmatpush1.msra.mxu0 0.0
    %2988 = vmatprep.subr.mxu0 0.0
    %2989 = vmatpush1.msra.mxu0 0.0
    %2990 = vmatprep.subr.mxu0 0.0
    %2991 = vmatpush1.msra.mxu0 0.0
    %2992 = vmatprep.subr.mxu0 0.0
    %2993 = vmatpush1.msra.mxu0 0.0
    %2994 = vmatprep.subr.mxu0 0.0
    %2995 = vmatpush1.msra.mxu0 0.0
    %2996 = vmatprep.subr.mxu0 0.0
    %2997 = vmatpush1.msra.mxu0 0.0
    %2998 = vmatprep.subr.mxu0 0.0
    %2999 = vmatpush1.msra.mxu0 0.0
    %3000 = vmatprep.subr.mxu0 0.0
    %3001 = vmatpush1.msra.mxu0 0.0
    %3002 = vmatprep.subr.mxu0 0.0
    %3003 = vmatpush1.msra.mxu0 0.0
    %3004 = vmatprep.subr.mxu0 0.0
    %3005 = vmatpush1.msra.mxu0 0.0
    %3006 = vmatprep.subr.mxu0 0.0
    %3007 = vmatpush1.msra.mxu0 0.0
    %3008 = vmatprep.subr.mxu0 0.0
    %3009 = vmatpush1.msra.mxu0 0.0
    %3010 = vmatprep.subr.mxu0 0.0
    %3011 = vmatpush1.msra.mxu0 0.0
    %3012 = vmatprep.subr.mxu0 0.0
    %3013 = vmatpush1.msra.mxu0 0.0
    %3014 = vmatprep.subr.mxu0 0.0
    %3015 = vmatpush1.msra.mxu0 0.0
    %3016 = vmatprep.subr.mxu0 0.0
    %3017 = vmatpush1.msra.mxu0 0.0
    %3018 = vmatprep.subr.mxu0 0.0
    %3019 = vmatpush1.msra.mxu0 0.0
    %3020 = vmatprep.subr.mxu0 0.0
    %3021 = vmatpush1.msra.mxu0 0.0
    %3022 = vmatprep.subr.mxu0 0.0
    %3023 = vmatpush1.msra.mxu0 0.0
    %3024 = vmatprep.subr.mxu0 0.0
    %3025 = vmatpush1.msra.mxu0 0.0
    %3026 = vmatprep.subr.mxu0 0.0
    %3027 = vmatpush1.msra.mxu0 0.0
    %3028 = vmatprep.subr.mxu0 0.0
    %3029 = vmatpush1.msra.mxu0 0.0
    %3030 = vmatprep.mubr.f32.mxu0 0.0
    %3031 = vmatmul.mubr.f32.gmra.mrb[0].mxu0 %v2961
    %v3032 = vpop.f32.mrb[0].mxu0
    %v3033 = vadd.f32 0.0, %v3032
    %v3034 = vpop.f32.mrb[0].mxu0
    %3035 = vmatprep.mubr.f32.mxu0 0.0
    %3036 = vmatmul.mubr.f32.gmra.mrb[0].mxu0 %v2964
    %v3037 = vpop.f32.mrb[0].mxu0
    %v3038 = vadd.f32 0.0, %v3037
    %v3039 = vpop.f32.mrb[0].mxu0
    %3040 = vdwg.mxu0
    %3043 = vrot.lane.b32.xlu0 %v3033, 96
    %v3044 = vpop.permute.xlu0 %3043
    %3045 = vrot.lane.b32.xlu0 %v3038, 96
    %v3046 = vpop.permute.xlu0 %3045
    %3049 = vmatprep.subr.mxu0 0.0
    %3050 = vmatpush1.msra.mxu0 %v3033
    %3051 = vmatprep.subr.mxu0 0.0
    %3052 = vmatpush1.msra.mxu0 %v3038
    %3053 = vmatprep.subr.mxu0 0.0
    %3054 = vmatpush1.msra.mxu0 %v3044
    %3055 = vmatprep.subr.mxu0 0.0
    %3056 = vmatpush1.msra.mxu0 %v3046
    %3057 = vmatprep.subr.mxu0 0.0
    %3058 = vmatpush1.msra.mxu0 0.0
    %3059 = vmatprep.subr.mxu0 0.0
    %3060 = vmatpush1.msra.mxu0 0.0
    %3061 = vmatprep.subr.mxu0 0.0
    %3062 = vmatpush1.msra.mxu0 0.0
    %3063 = vmatprep.subr.mxu0 0.0
    %3064 = vmatpush1.msra.mxu0 0.0
    %3065 = vmatprep.subr.mxu0 0.0
    %3066 = vmatpush1.msra.mxu0 0.0
    %3067 = vmatprep.subr.mxu0 0.0
    %3068 = vmatpush1.msra.mxu0 0.0
    %3069 = vmatprep.subr.mxu0 0.0
    %3070 = vmatpush1.msra.mxu0 0.0
    %3071 = vmatprep.subr.mxu0 0.0
    %3072 = vmatpush1.msra.mxu0 0.0
    %3073 = vmatprep.subr.mxu0 0.0
    %3074 = vmatpush1.msra.mxu0 0.0
    %3075 = vmatprep.subr.mxu0 0.0
    %3076 = vmatpush1.msra.mxu0 0.0
    %3077 = vmatprep.subr.mxu0 0.0
    %3078 = vmatpush1.msra.mxu0 0.0
    %3079 = vmatprep.subr.mxu0 0.0
    %3080 = vmatpush1.msra.mxu0 0.0
    %3081 = vmatprep.subr.mxu0 0.0
    %3082 = vmatpush1.msra.mxu0 0.0
    %3083 = vmatprep.subr.mxu0 0.0
    %3084 = vmatpush1.msra.mxu0 0.0
    %3085 = vmatprep.subr.mxu0 0.0
    %3086 = vmatpush1.msra.mxu0 0.0
    %3087 = vmatprep.subr.mxu0 0.0
    %3088 = vmatpush1.msra.mxu0 0.0
    %3089 = vmatprep.subr.mxu0 0.0
    %3090 = vmatpush1.msra.mxu0 0.0
    %3091 = vmatprep.subr.mxu0 0.0
    %3092 = vmatpush1.msra.mxu0 0.0
    %3093 = vmatprep.subr.mxu0 0.0
    %3094 = vmatpush1.msra.mxu0 0.0
    %3095 = vmatprep.subr.mxu0 0.0
    %3096 = vmatpush1.msra.mxu0 0.0
    %3097 = vmatprep.subr.mxu0 0.0
    %3098 = vmatpush1.msra.mxu0 0.0
    %3099 = vmatprep.subr.mxu0 0.0
    %3100 = vmatpush1.msra.mxu0 0.0
    %3101 = vmatprep.subr.mxu0 0.0
    %3102 = vmatpush1.msra.mxu0 0.0
    %3103 = vmatprep.subr.mxu0 0.0
    %3104 = vmatpush1.msra.mxu0 0.0
    %3105 = vmatprep.subr.mxu0 0.0
    %3106 = vmatpush1.msra.mxu0 0.0
    %3107 = vmatprep.subr.mxu0 0.0
    %3108 = vmatpush1.msra.mxu0 0.0
    %3109 = vmatprep.subr.mxu0 0.0
    %3110 = vmatpush1.msra.mxu0 0.0
    %3111 = vmatprep.subr.mxu0 0.0
    %3112 = vmatpush1.msra.mxu0 0.0
    %3113 = vmatprep.mubr.f32.mxu0 0.0
    %3114 = vmatmul.mubr.f32.gmra.mrb[0].mxu0 %v401
    %v3115 = vpop.f32.mrb[0].mxu0
    %v3116 = vadd.f32 0.0, %v3115
    %v3117 = vpop.f32.mrb[0].mxu0
    %3118 = vmatprep.mubr.f32.mxu0 0.0
    %3119 = vmatmul.mubr.f32.gmra.mrb[0].mxu0 %v404
    %v3120 = vpop.f32.mrb[0].mxu0
    %v3121 = vadd.f32 0.0, %v3120
    %v3122 = vpop.f32.mrb[0].mxu0
    %3123 = vmatprep.mubr.f32.mxu0 0.0
    %3124 = vmatmul.mubr.f32.gmra.mrb[0].mxu0 %v407
    %v3125 = vpop.f32.mrb[0].mxu0
    %v3126 = vadd.f32 0.0, %v3125
    %v3127 = vpop.f32.mrb[0].mxu0
    %3128 = vmatprep.mubr.f32.mxu0 0.0
    %3129 = vmatmul.mubr.f32.gmra.mrb[0].mxu0 %v410
    %v3130 = vpop.f32.mrb[0].mxu0
    %v3131 = vadd.f32 0.0, %v3130
    %v3132 = vpop.f32.mrb[0].mxu0
    %3133 = vdwg.mxu0
    %v3134 = vmul.f32 %v3116, 0.00390625
    %v3135 = vmul.f32 %v3121, 0.00390625
    %v3136 = vmul.f32 %v3126, 0.00390625
    %v3137 = vmul.f32 %v3131, 0.00390625
    %v3138 = vmul.f32 %v3134, %v3134
    %v3139 = vmul.f32 %v3135, %v3135
    %v3140 = vmul.f32 %v3136, %v3136
    %v3141 = vmul.f32 %v3137, %v3137
    %v3142 = vadd.f32 %v3138, %v3140
    %v3143 = vadd.f32 %v3139, %v3141
    %v3144 = vrsqrt.pop %v3142
    %v3145 = vmul.f32 %v3142, %v3144
    %vm3146 = vcmp.eq.f32.partialorder %v3142, inf
    %v3147 = vsel %vm3146, %v3142, %v3145
    %vm3148 = vcmp.eq.f32.partialorder %v3142, 0.0
    %v3149 = vand.u32 %v3142, 2147483648
    %v3150 = vsel %vm3148, %v3149, %v3147
    %v3151 = vrsqrt.pop %v3143
    %v3152 = vmul.f32 %v3143, %v3151
    %vm3153 = vcmp.eq.f32.partialorder %v3143, inf
    %v3154 = vsel %vm3153, %v3143, %v3152
    %vm3155 = vcmp.eq.f32.partialorder %v3143, 0.0
    %v3156 = vand.u32 %v3143, 2147483648
    %v3157 = vsel %vm3155, %v3156, %v3154
    %v3158 = vsel %vm74, %v3150, -inf
    %3159 = vmax.xlane.f32.xlu0 %v3158
    %v3160 = vpop.xlane.xlu0 %3159
    %v3161 = vsel %vm74, %v3157, -inf
    %3162 = vmax.xlane.f32.xlu0 %v3161
    %v3163 = vpop.xlane.xlu0 %3162
    %v3164 = vmax.f32 %v3160, %v3163
    %v3165 = vrot.slane %v3164, 4
    %v3166 = vmax.f32 %v3164, %v3165
    %v3167 = vrot.slane %v3166, 2
    %v3168 = vmax.f32 %v3166, %v3167
    %v3169 = vrot.slane %v3168, 1
    %v3170 = vmax.f32 %v3168, %v3169
    %v3171 = vrcp.pop %v3170
    %v3172 = vmul.f32 1.0, %v3171
    %v3173 = vsel %vm1402, %v3150, -inf
    %3174 = vmax.xlane.f32.xlu0 %v3173
    %v3175 = vpop.xlane.xlu0 %3174
    %v3176 = vsel %vm1402, %v3157, -inf
    %3177 = vmax.xlane.f32.xlu0 %v3176
    %v3178 = vpop.xlane.xlu0 %3177
    %v3179 = vmax.f32 %v3175, %v3178
    %v3180 = vrot.slane %v3179, 4
    %v3181 = vmax.f32 %v3179, %v3180
    %v3182 = vrot.slane %v3181, 2
    %v3183 = vmax.f32 %v3181, %v3182
    %v3184 = vrot.slane %v3183, 1
    %v3185 = vmax.f32 %v3183, %v3184
    %v3186 = vrcp.pop %v3185
    %v3187 = vmul.f32 1.0, %v3186
    %v3188 = vsel %vm1418, %v3172, %v3187
    %v3189 = vmul.f32 %v3150, %v3188
    %v3190 = vmul.f32 %v3157, %v3188
    %v3191 = vmul.f32 %v3189, 6.2831855
    %v3192 = vmul.f32 %v3190, 6.2831855
    %v3193 = vsub.f32 %v3191, 3.1415927
    %v3194 = vsub.f32 %v3192, 3.1415927
    %v3195 = vand.u32 2147483647, %v3193
    %vm3196 = vcmp.le.f32.partialorder %v3195, 0.7853982
    %vm3197 = vcmp.lt.s32.totalorder %v3193, 0
    %v3198 = vand.u32 %v3193, 2139095040
    %v3199 = vshrl.u32 %v3198, 23
    %v3200 = vsub.s32 %v3199, 127
    %v3201 = vand.u32 2147483647, %v3193
    %v3202 = vand.u32 %v3201, 8388607
    %v3203 = vor.u32 %v3202, 8388608
    %v3204 = vsub.s32 0, %v3203
    %v3205 = vadd.s32 %v3200, 1
    %vm3206 = vcmp.gt.s32.totalorder %v3205, 0
    %v3207 = vsel %vm3206, %v3205, 0
    %v3208 = vshrl.u32 %v3207, 5
    %v3209 = vand.u32 %v3207, 31
    %v3210 = vsub.s32 32, %v3209
    %v3211 = vshrl.u32 683565275, %v3210
    %v3212 = vshll.u32 683565275, %v3209
    %v3213 = vshrl.u32 2475754826, %v3210
    %v3214 = vor.u32 %v3212, %v3213
    %v3215 = vshll.u32 2475754826, %v3209
    %v3216 = vshrl.u32 2131351028, %v3210
    %v3217 = vor.u32 %v3215, %v3216
    %v3218 = vshll.u32 2131351028, %v3209
    %v3219 = vshrl.u32 2102212464, %v3210
    %v3220 = vor.u32 %v3218, %v3219
    %v3221 = vshll.u32 2102212464, %v3209
    %v3222 = vshrl.u32 920167782, %v3210
    %v3223 = vor.u32 %v3221, %v3222
    %v3224 = vshll.u32 920167782, %v3209
    %v3225 = vshrl.u32 1326507024, %v3210
    %v3226 = vor.u32 %v3224, %v3225
    %vm3227 = vcmp.lt.s32.totalorder %v3208, 1
    %vm3228 = vcmp.lt.s32.totalorder %v3208, 2
    %vm3229 = vcmp.lt.s32.totalorder %v3208, 3
    %vm3230 = vcmp.lt.s32.totalorder %v3208, 4
    %v3231 = vsel %vm3227, %v3211, %v3214
    %v3232 = vsel %vm3230, %v3220, 2102212464
    %v3233 = vsel %vm3229, %v3217, %v3232
    %v3234 = vsel %vm3228, %v3231, %v3233
    %v3235 = vsel %vm3227, %v3214, %v3217
    %v3236 = vsel %vm3230, %v3223, 920167782
    %v3237 = vsel %vm3229, %v3220, %v3236
    %v3238 = vsel %vm3228, %v3235, %v3237
    %v3239 = vsel %vm3227, %v3217, %v3220
    %v3240 = vsel %vm3230, %v3226, 1326507024
    %v3241 = vsel %vm3229, %v3223, %v3240
    %v3242 = vsel %vm3228, %v3239, %v3241
    %v3243 = vshll.u32 %v3203, 8
    %v3244 = vmul.u32.u64.compose %v3243, %v3242
    %v3245 = vextract.low.u32 %v3244
    %v3246 = vextract.high.u32 %v3244
    %v3247 = vmul.u32.u64.compose %v3243, %v3238
    %v3248 = vextract.low.u32 %v3247
    %v3249 = vextract.high.u32 %v3247
    %v3250 = vmul.u32 %v3243, %v3234
    %v3251 = vadd.s32 %v3246, %v3248
    %vm3252 = vc.u32 %v3246, %v3248
    %v3253 = vadd.s32 %v3249, 1
    %v3254 = vsel %vm3252, %v3253, %v3249
    %v3255 = vadd.s32 %v3250, %v3254
    %v3256 = vadd.s32 %v3255, 536870912
    %v3257 = vshrl.u32 %v3256, 30
    %v3258 = vshll.u32 %v3257, 30
    %v3259 = vsub.s32 %v3255, %v3258
    %vm3260 = vcmp.lt.s32.totalorder %v3259, 0
    %v3261 = vsub.s32 0, %v3259
    %v3262 = vsel %vm3260, %v3261, %v3259
    %v3263 = vclz %v3262
    %v3264 = vsub.s32 %v3263, 2
    %vm3265 = vcmp.gt.s32.totalorder 0, %v3264
    %v3266 = vsel %vm3265, 0, %v3264
    %v3267 = vsub.s32 32, %v3266
    %v3268 = vshll.u32 %v3259, %v3266
    %v3269 = vshrl.u32 %v3251, %v3267
    %v3270 = vor.u32 %v3268, %v3269
    %v3271 = vsub.s32 4294967266, %v3266
    %v3272 = vadd.s32 %v3271, 127
    %v3273 = vshll.u32 %v3272, 23
    %v3274 = vor.u32 4788187, %v3273
    %v3275 = vand.u32 2147483647, %v3274
    %v3277 = vcvt.s32.f32 %v3270
    %v3278 = vmul.f32 %v3277, %v3275
    %v3279 = vxor.u32 %v3278, 2147483648
    %v3280 = vsel %vm3197, %v3279, %v3278
    %v3281 = vsub.s32 4, %v3257
    %v3282 = vsel %vm3197, %v3281, %v3257
    %v3283 = vsel %vm3196, %v3193, %v3280
    %v3284 = vsel %vm3196, 0, %v3282
    %v3285 = vcosq.f32.pop %v3283
    %v3286 = vsinq.f32.pop %v3283
    %vm3287 = vweird.f32 %v3193
    %v3288 = vand.u32 %v3284, 3
    %vm3289 = vcmp.lt.s32.totalorder %v3288, 2
    %vm3290 = vcmp.eq.s32.totalorder %v3288, 0
    %v3291 = vxor.u32 %v3286, 2147483648
    %v3292 = vsel %vm3290, %v3285, %v3291
    %vm3293 = vcmp.eq.s32.totalorder %v3288, 2
    %v3294 = vxor.u32 %v3285, 2147483648
    %v3295 = vsel %vm3293, %v3294, %v3286
    %v3296 = vsel %vm3289, %v3292, %v3295
    %v3297 = vsel %vm3287, nan, %v3296
    %v3298 = vand.u32 2147483647, %v3194
    %vm3299 = vcmp.le.f32.partialorder %v3298, 0.7853982
    %vm3300 = vcmp.lt.s32.totalorder %v3194, 0
    %v3301 = vand.u32 %v3194, 2139095040
    %v3302 = vshrl.u32 %v3301, 23
    %v3303 = vsub.s32 %v3302, 127
    %v3304 = vand.u32 2147483647, %v3194
    %v3305 = vand.u32 %v3304, 8388607
    %v3306 = vor.u32 %v3305, 8388608
    %v3307 = vsub.s32 0, %v3306
    %v3308 = vadd.s32 %v3303, 1
    %vm3309 = vcmp.gt.s32.totalorder %v3308, 0
    %v3310 = vsel %vm3309, %v3308, 0
    %v3311 = vshrl.u32 %v3310, 5
    %v3312 = vand.u32 %v3310, 31
    %v3313 = vsub.s32 32, %v3312
    %v3314 = vshrl.u32 683565275, %v3313
    %v3315 = vshll.u32 683565275, %v3312
    %v3316 = vshrl.u32 2475754826, %v3313
    %v3317 = vor.u32 %v3315, %v3316
    %v3318 = vshll.u32 2475754826, %v3312
    %v3319 = vshrl.u32 2131351028, %v3313
    %v3320 = vor.u32 %v3318, %v3319
    %v3321 = vshll.u32 2131351028, %v3312
    %v3322 = vshrl.u32 2102212464, %v3313
    %v3323 = vor.u32 %v3321, %v3322
    %v3324 = vshll.u32 2102212464, %v3312
    %v3325 = vshrl.u32 920167782, %v3313
    %v3326 = vor.u32 %v3324, %v3325
    %v3327 = vshll.u32 920167782, %v3312
    %v3328 = vshrl.u32 1326507024, %v3313
    %v3329 = vor.u32 %v3327, %v3328
    %vm3330 = vcmp.lt.s32.totalorder %v3311, 1
    %vm3331 = vcmp.lt.s32.totalorder %v3311, 2
    %vm3332 = vcmp.lt.s32.totalorder %v3311, 3
    %vm3333 = vcmp.lt.s32.totalorder %v3311, 4
    %v3334 = vsel %vm3330, %v3314, %v3317
    %v3335 = vsel %vm3333, %v3323, 2102212464
    %v3336 = vsel %vm3332, %v3320, %v3335
    %v3337 = vsel %vm3331, %v3334, %v3336
    %v3338 = vsel %vm3330, %v3317, %v3320
    %v3339 = vsel %vm3333, %v3326, 920167782
    %v3340 = vsel %vm3332, %v3323, %v3339
    %v3341 = vsel %vm3331, %v3338, %v3340
    %v3342 = vsel %vm3330, %v3320, %v3323
    %v3343 = vsel %vm3333, %v3329, 1326507024
    %v3344 = vsel %vm3332, %v3326, %v3343
    %v3345 = vsel %vm3331, %v3342, %v3344
    %v3346 = vshll.u32 %v3306, 8
    %v3347 = vmul.u32.u64.compose %v3346, %v3345
    %v3348 = vextract.low.u32 %v3347
    %v3349 = vextract.high.u32 %v3347
    %v3350 = vmul.u32.u64.compose %v3346, %v3341
    %v3351 = vextract.low.u32 %v3350
    %v3352 = vextract.high.u32 %v3350
    %v3353 = vmul.u32 %v3346, %v3337
    %v3354 = vadd.s32 %v3349, %v3351
    %vm3355 = vc.u32 %v3349, %v3351
    %v3356 = vadd.s32 %v3352, 1
    %v3357 = vsel %vm3355, %v3356, %v3352
    %v3358 = vadd.s32 %v3353, %v3357
    %v3359 = vadd.s32 %v3358, 536870912
    %v3360 = vshrl.u32 %v3359, 30
    %v3361 = vshll.u32 %v3360, 30
    %v3362 = vsub.s32 %v3358, %v3361
    %vm3363 = vcmp.lt.s32.totalorder %v3362, 0
    %v3364 = vsub.s32 0, %v3362
    %v3365 = vsel %vm3363, %v3364, %v3362
    %v3366 = vclz %v3365
    %v3367 = vsub.s32 %v3366, 2
    %vm3368 = vcmp.gt.s32.totalorder 0, %v3367
    %v3369 = vsel %vm3368, 0, %v3367
    %v3370 = vsub.s32 32, %v3369
    %v3371 = vshll.u32 %v3362, %v3369
    %v3372 = vshrl.u32 %v3354, %v3370
    %v3373 = vor.u32 %v3371, %v3372
    %v3374 = vsub.s32 4294967266, %v3369
    %v3375 = vadd.s32 %v3374, 127
    %v3376 = vshll.u32 %v3375, 23
    %v3377 = vor.u32 4788187, %v3376
    %v3378 = vand.u32 2147483647, %v3377
    %v3380 = vcvt.s32.f32 %v3373
    %v3381 = vmul.f32 %v3380, %v3378
    %v3382 = vxor.u32 %v3381, 2147483648
    %v3383 = vsel %vm3300, %v3382, %v3381
    %v3384 = vsub.s32 4, %v3360
    %v3385 = vsel %vm3300, %v3384, %v3360
    %v3386 = vsel %vm3299, %v3194, %v3383
    %v3387 = vsel %vm3299, 0, %v3385
    %v3388 = vcosq.f32.pop %v3386
    %v3389 = vsinq.f32.pop %v3386
    %vm3390 = vweird.f32 %v3194
    %v3391 = vand.u32 %v3387, 3
    %vm3392 = vcmp.lt.s32.totalorder %v3391, 2
    %vm3393 = vcmp.eq.s32.totalorder %v3391, 0
    %v3394 = vxor.u32 %v3389, 2147483648
    %v3395 = vsel %vm3393, %v3388, %v3394
    %vm3396 = vcmp.eq.s32.totalorder %v3391, 2
    %v3397 = vxor.u32 %v3388, 2147483648
    %v3398 = vsel %vm3396, %v3397, %v3389
    %v3399 = vsel %vm3392, %v3395, %v3398
    %v3400 = vsel %vm3390, nan, %v3399
    %v3401 = vand.u32 2147483647, %v3193
    %vm3402 = vcmp.le.f32.partialorder %v3401, 0.7853982
    %vm3403 = vcmp.lt.s32.totalorder %v3193, 0
    %v3404 = vand.u32 %v3193, 2139095040
    %v3405 = vshrl.u32 %v3404, 23
    %v3406 = vsub.s32 %v3405, 127
    %v3407 = vand.u32 2147483647, %v3193
    %v3408 = vand.u32 %v3407, 8388607
    %v3409 = vor.u32 %v3408, 8388608
    %v3410 = vsub.s32 0, %v3409
    %v3411 = vadd.s32 %v3406, 1
    %vm3412 = vcmp.gt.s32.totalorder %v3411, 0
    %v3413 = vsel %vm3412, %v3411, 0
    %v3414 = vshrl.u32 %v3413, 5
    %v3415 = vand.u32 %v3413, 31
    %v3416 = vsub.s32 32, %v3415
    %v3417 = vshrl.u32 683565275, %v3416
    %v3418 = vshll.u32 683565275, %v3415
    %v3419 = vshrl.u32 2475754826, %v3416
    %v3420 = vor.u32 %v3418, %v3419
    %v3421 = vshll.u32 2475754826, %v3415
    %v3422 = vshrl.u32 2131351028, %v3416
    %v3423 = vor.u32 %v3421, %v3422
    %v3424 = vshll.u32 2131351028, %v3415
    %v3425 = vshrl.u32 2102212464, %v3416
    %v3426 = vor.u32 %v3424, %v3425
    %v3427 = vshll.u32 2102212464, %v3415
    %v3428 = vshrl.u32 920167782, %v3416
    %v3429 = vor.u32 %v3427, %v3428
    %v3430 = vshll.u32 920167782, %v3415
    %v3431 = vshrl.u32 1326507024, %v3416
    %v3432 = vor.u32 %v3430, %v3431
    %vm3433 = vcmp.lt.s32.totalorder %v3414, 1
    %vm3434 = vcmp.lt.s32.totalorder %v3414, 2
    %vm3435 = vcmp.lt.s32.totalorder %v3414, 3
    %vm3436 = vcmp.lt.s32.totalorder %v3414, 4
    %v3437 = vsel %vm3433, %v3417, %v3420
    %v3438 = vsel %vm3436, %v3426, 2102212464
    %v3439 = vsel %vm3435, %v3423, %v3438
    %v3440 = vsel %vm3434, %v3437, %v3439
    %v3441 = vsel %vm3433, %v3420, %v3423
    %v3442 = vsel %vm3436, %v3429, 920167782
    %v3443 = vsel %vm3435, %v3426, %v3442
    %v3444 = vsel %vm3434, %v3441, %v3443
    %v3445 = vsel %vm3433, %v3423, %v3426
    %v3446 = vsel %vm3436, %v3432, 1326507024
    %v3447 = vsel %vm3435, %v3429, %v3446
    %v3448 = vsel %vm3434, %v3445, %v3447
    %v3449 = vshll.u32 %v3409, 8
    %v3450 = vmul.u32.u64.compose %v3449, %v3448
    %v3451 = vextract.low.u32 %v3450
    %v3452 = vextract.high.u32 %v3450
    %v3453 = vmul.u32.u64.compose %v3449, %v3444
    %v3454 = vextract.low.u32 %v3453
    %v3455 = vextract.high.u32 %v3453
    %v3456 = vmul.u32 %v3449, %v3440
    %v3457 = vadd.s32 %v3452, %v3454
    %vm3458 = vc.u32 %v3452, %v3454
    %v3459 = vadd.s32 %v3455, 1
    %v3460 = vsel %vm3458, %v3459, %v3455
    %v3461 = vadd.s32 %v3456, %v3460
    %v3462 = vadd.s32 %v3461, 536870912
    %v3463 = vshrl.u32 %v3462, 30
    %v3464 = vshll.u32 %v3463, 30
    %v3465 = vsub.s32 %v3461, %v3464
    %vm3466 = vcmp.lt.s32.totalorder %v3465, 0
    %v3467 = vsub.s32 0, %v3465
    %v3468 = vsel %vm3466, %v3467, %v3465
    %v3469 = vclz %v3468
    %v3470 = vsub.s32 %v3469, 2
    %vm3471 = vcmp.gt.s32.totalorder 0, %v3470
    %v3472 = vsel %vm3471, 0, %v3470
    %v3473 = vsub.s32 32, %v3472
    %v3474 = vshll.u32 %v3465, %v3472
    %v3475 = vshrl.u32 %v3457, %v3473
    %v3476 = vor.u32 %v3474, %v3475
    %v3477 = vsub.s32 4294967266, %v3472
    %v3478 = vadd.s32 %v3477, 127
    %v3479 = vshll.u32 %v3478, 23
    %v3480 = vor.u32 4788187, %v3479
    %v3481 = vand.u32 2147483647, %v3480
    %v3483 = vcvt.s32.f32 %v3476
    %v3484 = vmul.f32 %v3483, %v3481
    %v3485 = vxor.u32 %v3484, 2147483648
    %v3486 = vsel %vm3403, %v3485, %v3484
    %v3487 = vsub.s32 4, %v3463
    %v3488 = vsel %vm3403, %v3487, %v3463
    %v3489 = vsel %vm3402, %v3193, %v3486
    %v3490 = vsel %vm3402, 0, %v3488
    %v3491 = vcosq.f32.pop %v3489
    %v3492 = vsinq.f32.pop %v3489
    %vm3493 = vweird.f32 %v3193
    %v3494 = vadd.s32 %v3490, 3
    %v3495 = vand.u32 %v3494, 3
    %vm3496 = vcmp.lt.s32.totalorder %v3495, 2
    %vm3497 = vcmp.eq.s32.totalorder %v3495, 0
    %v3498 = vxor.u32 %v3492, 2147483648
    %v3499 = vsel %vm3497, %v3491, %v3498
    %vm3500 = vcmp.eq.s32.totalorder %v3495, 2
    %v3501 = vxor.u32 %v3491, 2147483648
    %v3502 = vsel %vm3500, %v3501, %v3492
    %v3503 = vsel %vm3496, %v3499, %v3502
    %v3504 = vsel %vm3493, nan, %v3503
    %v3505 = vand.u32 2147483647, %v3194
    %vm3506 = vcmp.le.f32.partialorder %v3505, 0.7853982
    %vm3507 = vcmp.lt.s32.totalorder %v3194, 0
    %v3508 = vand.u32 %v3194, 2139095040
    %v3509 = vshrl.u32 %v3508, 23
    %v3510 = vsub.s32 %v3509, 127
    %v3511 = vand.u32 2147483647, %v3194
    %v3512 = vand.u32 %v3511, 8388607
    %v3513 = vor.u32 %v3512, 8388608
    %v3514 = vsub.s32 0, %v3513
    %v3515 = vadd.s32 %v3510, 1
    %vm3516 = vcmp.gt.s32.totalorder %v3515, 0
    %v3517 = vsel %vm3516, %v3515, 0
    %v3518 = vshrl.u32 %v3517, 5
    %v3519 = vand.u32 %v3517, 31
    %v3520 = vsub.s32 32, %v3519
    %v3521 = vshrl.u32 683565275, %v3520
    %v3522 = vshll.u32 683565275, %v3519
    %v3523 = vshrl.u32 2475754826, %v3520
    %v3524 = vor.u32 %v3522, %v3523
    %v3525 = vshll.u32 2475754826, %v3519
    %v3526 = vshrl.u32 2131351028, %v3520
    %v3527 = vor.u32 %v3525, %v3526
    %v3528 = vshll.u32 2131351028, %v3519
    %v3529 = vshrl.u32 2102212464, %v3520
    %v3530 = vor.u32 %v3528, %v3529
    %v3531 = vshll.u32 2102212464, %v3519
    %v3532 = vshrl.u32 920167782, %v3520
    %v3533 = vor.u32 %v3531, %v3532
    %v3534 = vshll.u32 920167782, %v3519
    %v3535 = vshrl.u32 1326507024, %v3520
    %v3536 = vor.u32 %v3534, %v3535
    %vm3537 = vcmp.lt.s32.totalorder %v3518, 1
    %vm3538 = vcmp.lt.s32.totalorder %v3518, 2
    %vm3539 = vcmp.lt.s32.totalorder %v3518, 3
    %vm3540 = vcmp.lt.s32.totalorder %v3518, 4
    %v3541 = vsel %vm3537, %v3521, %v3524
    %v3542 = vsel %vm3540, %v3530, 2102212464
    %v3543 = vsel %vm3539, %v3527, %v3542
    %v3544 = vsel %vm3538, %v3541, %v3543
    %v3545 = vsel %vm3537, %v3524, %v3527
    %v3546 = vsel %vm3540, %v3533, 920167782
    %v3547 = vsel %vm3539, %v3530, %v3546
    %v3548 = vsel %vm3538, %v3545, %v3547
    %v3549 = vsel %vm3537, %v3527, %v3530
    %v3550 = vsel %vm3540, %v3536, 1326507024
    %v3551 = vsel %vm3539, %v3533, %v3550
    %v3552 = vsel %vm3538, %v3549, %v3551
    %v3553 = vshll.u32 %v3513, 8
    %v3554 = vmul.u32.u64.compose %v3553, %v3552
    %v3555 = vextract.low.u32 %v3554
    %v3556 = vextract.high.u32 %v3554
    %v3557 = vmul.u32.u64.compose %v3553, %v3548
    %v3558 = vextract.low.u32 %v3557
    %v3559 = vextract.high.u32 %v3557
    %v3560 = vmul.u32 %v3553, %v3544
    %v3561 = vadd.s32 %v3556, %v3558
    %vm3562 = vc.u32 %v3556, %v3558
    %v3563 = vadd.s32 %v3559, 1
    %v3564 = vsel %vm3562, %v3563, %v3559
    %v3565 = vadd.s32 %v3560, %v3564
    %v3566 = vadd.s32 %v3565, 536870912
    %v3567 = vshrl.u32 %v3566, 30
    %v3568 = vshll.u32 %v3567, 30
    %v3569 = vsub.s32 %v3565, %v3568
    %vm3570 = vcmp.lt.s32.totalorder %v3569, 0
    %v3571 = vsub.s32 0, %v3569
    %v3572 = vsel %vm3570, %v3571, %v3569
    %v3573 = vclz %v3572
    %v3574 = vsub.s32 %v3573, 2
    %vm3575 = vcmp.gt.s32.totalorder 0, %v3574
    %v3576 = vsel %vm3575, 0, %v3574
    %v3577 = vsub.s32 32, %v3576
    %v3578 = vshll.u32 %v3569, %v3576
    %v3579 = vshrl.u32 %v3561, %v3577
    %v3580 = vor.u32 %v3578, %v3579
    %v3581 = vsub.s32 4294967266, %v3576
    %v3582 = vadd.s32 %v3581, 127
    %v3583 = vshll.u32 %v3582, 23
    %v3584 = vor.u32 4788187, %v3583
    %v3585 = vand.u32 2147483647, %v3584
    %v3587 = vcvt.s32.f32 %v3580
    %v3588 = vmul.f32 %v3587, %v3585
    %v3589 = vxor.u32 %v3588, 2147483648
    %v3590 = vsel %vm3507, %v3589, %v3588
    %v3591 = vsub.s32 4, %v3567
    %v3592 = vsel %vm3507, %v3591, %v3567
    %v3593 = vsel %vm3506, %v3194, %v3590
    %v3594 = vsel %vm3506, 0, %v3592
    %v3595 = vcosq.f32.pop %v3593
    %v3596 = vsinq.f32.pop %v3593
    %vm3597 = vweird.f32 %v3194
    %v3598 = vadd.s32 %v3594, 3
    %v3599 = vand.u32 %v3598, 3
    %vm3600 = vcmp.lt.s32.totalorder %v3599, 2
    %vm3601 = vcmp.eq.s32.totalorder %v3599, 0
    %v3602 = vxor.u32 %v3596, 2147483648
    %v3603 = vsel %vm3601, %v3595, %v3602
    %vm3604 = vcmp.eq.s32.totalorder %v3599, 2
    %v3605 = vxor.u32 %v3595, 2147483648
    %v3606 = vsel %vm3604, %v3605, %v3596
    %v3607 = vsel %vm3600, %v3603, %v3606
    %v3608 = vsel %vm3597, nan, %v3607
    %3609 = vmatprep.subr.mxu0 0.0
    %3610 = vmatpush1.msra.mxu0 %v3297
    %3611 = vmatprep.subr.mxu0 0.0
    %3612 = vmatpush1.msra.mxu0 %v3400
    %3613 = vmatprep.subr.mxu0 0.0
    %3614 = vmatpush1.msra.mxu0 %v3504
    %3615 = vmatprep.subr.mxu0 0.0
    %3616 = vmatpush1.msra.mxu0 %v3608
    %3617 = vmatprep.subr.mxu0 0.0
    %3618 = vmatpush1.msra.mxu0 0.0
    %3619 = vmatprep.subr.mxu0 0.0
    %3620 = vmatpush1.msra.mxu0 0.0
    %3621 = vmatprep.subr.mxu0 0.0
    %3622 = vmatpush1.msra.mxu0 0.0
    %3623 = vmatprep.subr.mxu0 0.0
    %3624 = vmatpush1.msra.mxu0 0.0
    %3625 = vmatprep.subr.mxu0 0.0
    %3626 = vmatpush1.msra.mxu0 0.0
    %3627 = vmatprep.subr.mxu0 0.0
    %3628 = vmatpush1.msra.mxu0 0.0
    %3629 = vmatprep.subr.mxu0 0.0
    %3630 = vmatpush1.msra.mxu0 0.0
    %3631 = vmatprep.subr.mxu0 0.0
    %3632 = vmatpush1.msra.mxu0 0.0
    %3633 = vmatprep.subr.mxu0 0.0
    %3634 = vmatpush1.msra.mxu0 0.0
    %3635 = vmatprep.subr.mxu0 0.0
    %3636 = vmatpush1.msra.mxu0 0.0
    %3637 = vmatprep.subr.mxu0 0.0
    %3638 = vmatpush1.msra.mxu0 0.0
    %3639 = vmatprep.subr.mxu0 0.0
    %3640 = vmatpush1.msra.mxu0 0.0
    %3641 = vmatprep.subr.mxu0 0.0
    %3642 = vmatpush1.msra.mxu0 0.0
    %3643 = vmatprep.subr.mxu0 0.0
    %3644 = vmatpush1.msra.mxu0 0.0
    %3645 = vmatprep.subr.mxu0 0.0
    %3646 = vmatpush1.msra.mxu0 0.0
    %3647 = vmatprep.subr.mxu0 0.0
    %3648 = vmatpush1.msra.mxu0 0.0
    %3649 = vmatprep.subr.mxu0 0.0
    %3650 = vmatpush1.msra.mxu0 0.0
    %3651 = vmatprep.subr.mxu0 0.0
    %3652 = vmatpush1.msra.mxu0 0.0
    %3653 = vmatprep.subr.mxu0 0.0
    %3654 = vmatpush1.msra.mxu0 0.0
    %3655 = vmatprep.subr.mxu0 0.0
    %3656 = vmatpush1.msra.mxu0 0.0
    %3657 = vmatprep.subr.mxu0 0.0
    %3658 = vmatpush1.msra.mxu0 0.0
    %3659 = vmatprep.subr.mxu0 0.0
    %3660 = vmatpush1.msra.mxu0 0.0
    %3661 = vmatprep.subr.mxu0 0.0
    %3662 = vmatpush1.msra.mxu0 0.0
    %3663 = vmatprep.subr.mxu0 0.0
    %3664 = vmatpush1.msra.mxu0 0.0
    %3665 = vmatprep.subr.mxu0 0.0
    %3666 = vmatpush1.msra.mxu0 0.0
    %3667 = vmatprep.subr.mxu0 0.0
    %3668 = vmatpush1.msra.mxu0 0.0
    %3669 = vmatprep.subr.mxu0 0.0
    %3670 = vmatpush1.msra.mxu0 0.0
    %3671 = vmatprep.subr.mxu0 0.0
    %3672 = vmatpush1.msra.mxu0 0.0
    %3673 = vmatprep.mubr.f32.mxu0 0.0
    %3674 = vmatmul.mubr.f32.gmra.mrb[0].mxu0 %v992
    %v3675 = vpop.f32.mrb[0].mxu0
    %v3676 = vadd.f32 0.0, %v3675
    %v3677 = vpop.f32.mrb[0].mxu0
    %3678 = vmatprep.mubr.f32.mxu0 0.0
    %3679 = vmatmul.mubr.f32.gmra.mrb[0].mxu0 %v995
    %v3680 = vpop.f32.mrb[0].mxu0
    %v3681 = vadd.f32 0.0, %v3680
    %v3682 = vpop.f32.mrb[0].mxu0
    %3683 = vmatprep.mubr.f32.mxu0 0.0
    %3684 = vmatmul.mubr.f32.gmra.mrb[0].mxu0 %v998
    %v3685 = vpop.f32.mrb[0].mxu0
    %v3686 = vadd.f32 0.0, %v3685
    %v3687 = vpop.f32.mrb[0].mxu0
    %3688 = vmatprep.mubr.f32.mxu0 0.0
    %3689 = vmatmul.mubr.f32.gmra.mrb[0].mxu0 %v1001
    %v3690 = vpop.f32.mrb[0].mxu0
    %v3691 = vadd.f32 0.0, %v3690
    %v3692 = vpop.f32.mrb[0].mxu0
    %3693 = vdwg.mxu0
    %3696 = vrot.lane.b32.xlu0 %v3686, 32
    %v3697 = vpop.permute.xlu0 %3696
    %3698 = vrot.lane.b32.xlu0 %v3691, 32
    %v3699 = vpop.permute.xlu0 %3698
    %v3702 = vsel %vm180, %v3676, %v3697
    %v3703 = vsel %vm180, %v3681, %v3699
    %v3705 = vsel %vm191, %v3702, 0
    %v3708 = vsel %vm191, %v3703, 0
    %3710 = vmatprep.subr.mxu0 0.0
    %3711 = vmatpush1.msra.mxu0 %v183
    %3712 = vmatprep.subr.mxu0 0.0
    %3713 = vmatpush1.msra.mxu0 %v184
    %3714 = vmatprep.subr.mxu0 0.0
    %3715 = vmatpush1.msra.mxu0 %v185
    %3716 = vmatprep.subr.mxu0 0.0
    %3717 = vmatpush1.msra.mxu0 %v186
    %3718 = vmatprep.subr.mxu0 0.0
    %3719 = vmatpush1.msra.mxu0 %v187
    %3720 = vmatprep.subr.mxu0 0.0
    %3721 = vmatpush1.msra.mxu0 %v188
    %3722 = vmatprep.subr.mxu0 0.0
    %3723 = vmatpush1.msra.mxu0 %v189
    %3724 = vmatprep.subr.mxu0 0.0
    %3725 = vmatpush1.msra.mxu0 %v190
    %3726 = vmatprep.subr.mxu0 0.0
    %3727 = vmatpush1.msra.mxu0 0.0
    %3728 = vmatprep.subr.mxu0 0.0
    %3729 = vmatpush1.msra.mxu0 0.0
    %3730 = vmatprep.subr.mxu0 0.0
    %3731 = vmatpush1.msra.mxu0 0.0
    %3732 = vmatprep.subr.mxu0 0.0
    %3733 = vmatpush1.msra.mxu0 0.0
    %3734 = vmatprep.subr.mxu0 0.0
    %3735 = vmatpush1.msra.mxu0 0.0
    %3736 = vmatprep.subr.mxu0 0.0
    %3737 = vmatpush1.msra.mxu0 0.0
    %3738 = vmatprep.subr.mxu0 0.0
    %3739 = vmatpush1.msra.mxu0 0.0
    %3740 = vmatprep.subr.mxu0 0.0
    %3741 = vmatpush1.msra.mxu0 0.0
    %3742 = vmatprep.subr.mxu0 0.0
    %3743 = vmatpush1.msra.mxu0 0.0
    %3744 = vmatprep.subr.mxu0 0.0
    %3745 = vmatpush1.msra.mxu0 0.0
    %3746 = vmatprep.subr.mxu0 0.0
    %3747 = vmatpush1.msra.mxu0 0.0
    %3748 = vmatprep.subr.mxu0 0.0
    %3749 = vmatpush1.msra.mxu0 0.0
    %3750 = vmatprep.subr.mxu0 0.0
    %3751 = vmatpush1.msra.mxu0 0.0
    %3752 = vmatprep.subr.mxu0 0.0
    %3753 = vmatpush1.msra.mxu0 0.0
    %3754 = vmatprep.subr.mxu0 0.0
    %3755 = vmatpush1.msra.mxu0 0.0
    %3756 = vmatprep.subr.mxu0 0.0
    %3757 = vmatpush1.msra.mxu0 0.0
    %3758 = vmatprep.subr.mxu0 0.0
    %3759 = vmatpush1.msra.mxu0 0.0
    %3760 = vmatprep.subr.mxu0 0.0
    %3761 = vmatpush1.msra.mxu0 0.0
    %3762 = vmatprep.subr.mxu0 0.0
    %3763 = vmatpush1.msra.mxu0 0.0
    %3764 = vmatprep.subr.mxu0 0.0
    %3765 = vmatpush1.msra.mxu0 0.0
    %3766 = vmatprep.subr.mxu0 0.0
    %3767 = vmatpush1.msra.mxu0 0.0
    %3768 = vmatprep.subr.mxu0 0.0
    %3769 = vmatpush1.msra.mxu0 0.0
    %3770 = vmatprep.subr.mxu0 0.0
    %3771 = vmatpush1.msra.mxu0 0.0
    %3772 = vmatprep.subr.mxu0 0.0
    %3773 = vmatpush1.msra.mxu0 0.0
    %3774 = vmatprep.mubr.f32.mxu0 0.0
    %3775 = vmatmul.mubr.f32.gmra.mrb[0].mxu0 %v3705
    %v3776 = vpop.f32.mrb[0].mxu0
    %v3777 = vadd.f32 0.0, %v3776
    %v3778 = vpop.f32.mrb[0].mxu0
    %3779 = vmatprep.mubr.f32.mxu0 0.0
    %3780 = vmatmul.mubr.f32.gmra.mrb[0].mxu0 %v3708
    %v3781 = vpop.f32.mrb[0].mxu0
    %v3782 = vadd.f32 0.0, %v3781
    %v3783 = vpop.f32.mrb[0].mxu0
    %3784 = vdwg.mxu0
    %v3785 = vmul.f32 %v3777, %v273
    %v3786 = vmul.f32 %v3782, %v274
    %3789 = vrot.lane.b32.xlu0 %v3777, 96
    %v3790 = vpop.permute.xlu0 %3789
    %3791 = vrot.lane.b32.xlu0 %v3782, 96
    %v3792 = vpop.permute.xlu0 %3791
    %3795 = vrot.lane.b32.xlu0 %v3777, 32
    %v3796 = vpop.permute.xlu0 %3795
    %3797 = vrot.lane.b32.xlu0 %v3782, 32
    %v3798 = vpop.permute.xlu0 %3797
    %v3801 = vsel %vm180, %v3790, %v3796
    %v3802 = vsel %vm180, %v3792, %v3798
    %v3803 = vmul.f32 %v3801, %v293
    %v3804 = vmul.f32 %v3802, %v294
    %v3805 = vadd.f32 %v3785, %v3803
    %v3806 = vadd.f32 %v3786, %v3804
    %v3808 = vsel %vm191, %v3805, 0
    %v3811 = vsel %vm191, %v3806, 0
    %3813 = vmatprep.subr.mxu0 0.0
    %3814 = vmatpush1.msra.mxu0 %v299
    %3815 = vmatprep.subr.mxu0 0.0
    %3816 = vmatpush1.msra.mxu0 %v300
    %3817 = vmatprep.subr.mxu0 0.0
    %3818 = vmatpush1.msra.mxu0 %v301
    %3819 = vmatprep.subr.mxu0 0.0
    %3820 = vmatpush1.msra.mxu0 %v302
    %3821 = vmatprep.subr.mxu0 0.0
    %3822 = vmatpush1.msra.mxu0 %v303
    %3823 = vmatprep.subr.mxu0 0.0
    %3824 = vmatpush1.msra.mxu0 %v304
    %3825 = vmatprep.subr.mxu0 0.0
    %3826 = vmatpush1.msra.mxu0 %v305
    %3827 = vmatprep.subr.mxu0 0.0
    %3828 = vmatpush1.msra.mxu0 %v306
    %3829 = vmatprep.subr.mxu0 0.0
    %3830 = vmatpush1.msra.mxu0 0.0
    %3831 = vmatprep.subr.mxu0 0.0
    %3832 = vmatpush1.msra.mxu0 0.0
    %3833 = vmatprep.subr.mxu0 0.0
    %3834 = vmatpush1.msra.mxu0 0.0
    %3835 = vmatprep.subr.mxu0 0.0
    %3836 = vmatpush1.msra.mxu0 0.0
    %3837 = vmatprep.subr.mxu0 0.0
    %3838 = vmatpush1.msra.mxu0 0.0
    %3839 = vmatprep.subr.mxu0 0.0
    %3840 = vmatpush1.msra.mxu0 0.0
    %3841 = vmatprep.subr.mxu0 0.0
    %3842 = vmatpush1.msra.mxu0 0.0
    %3843 = vmatprep.subr.mxu0 0.0
    %3844 = vmatpush1.msra.mxu0 0.0
    %3845 = vmatprep.subr.mxu0 0.0
    %3846 = vmatpush1.msra.mxu0 0.0
    %3847 = vmatprep.subr.mxu0 0.0
    %3848 = vmatpush1.msra.mxu0 0.0
    %3849 = vmatprep.subr.mxu0 0.0
    %3850 = vmatpush1.msra.mxu0 0.0
    %3851 = vmatprep.subr.mxu0 0.0
    %3852 = vmatpush1.msra.mxu0 0.0
    %3853 = vmatprep.subr.mxu0 0.0
    %3854 = vmatpush1.msra.mxu0 0.0
    %3855 = vmatprep.subr.mxu0 0.0
    %3856 = vmatpush1.msra.mxu0 0.0
    %3857 = vmatprep.subr.mxu0 0.0
    %3858 = vmatpush1.msra.mxu0 0.0
    %3859 = vmatprep.subr.mxu0 0.0
    %3860 = vmatpush1.msra.mxu0 0.0
    %3861 = vmatprep.subr.mxu0 0.0
    %3862 = vmatpush1.msra.mxu0 0.0
    %3863 = vmatprep.subr.mxu0 0.0
    %3864 = vmatpush1.msra.mxu0 0.0
    %3865 = vmatprep.subr.mxu0 0.0
    %3866 = vmatpush1.msra.mxu0 0.0
    %3867 = vmatprep.subr.mxu0 0.0
    %3868 = vmatpush1.msra.mxu0 0.0
    %3869 = vmatprep.subr.mxu0 0.0
    %3870 = vmatpush1.msra.mxu0 0.0
    %3871 = vmatprep.subr.mxu0 0.0
    %3872 = vmatpush1.msra.mxu0 0.0
    %3873 = vmatprep.subr.mxu0 0.0
    %3874 = vmatpush1.msra.mxu0 0.0
    %3875 = vmatprep.subr.mxu0 0.0
    %3876 = vmatpush1.msra.mxu0 0.0
    %3877 = vmatprep.mubr.f32.mxu0 0.0
    %3878 = vmatmul.mubr.f32.gmra.mrb[0].mxu0 %v3808
    %v3879 = vpop.f32.mrb[0].mxu0
    %v3880 = vadd.f32 0.0, %v3879
    %v3881 = vpop.f32.mrb[0].mxu0
    %3882 = vmatprep.mubr.f32.mxu0 0.0
    %3883 = vmatmul.mubr.f32.gmra.mrb[0].mxu0 %v3811
    %v3884 = vpop.f32.mrb[0].mxu0
    %v3885 = vadd.f32 0.0, %v3884
    %v3886 = vpop.f32.mrb[0].mxu0
    %3887 = vdwg.mxu0
    %3890 = vrot.lane.b32.xlu0 %v3880, 96
    %v3891 = vpop.permute.xlu0 %3890
    %3892 = vrot.lane.b32.xlu0 %v3885, 96
    %v3893 = vpop.permute.xlu0 %3892
    %3896 = vmatprep.subr.mxu0 0.0
    %3897 = vmatpush1.msra.mxu0 %v3880
    %3898 = vmatprep.subr.mxu0 0.0
    %3899 = vmatpush1.msra.mxu0 %v3885
    %3900 = vmatprep.subr.mxu0 0.0
    %3901 = vmatpush1.msra.mxu0 %v3891
    %3902 = vmatprep.subr.mxu0 0.0
    %3903 = vmatpush1.msra.mxu0 %v3893
    %3904 = vmatprep.subr.mxu0 0.0
    %3905 = vmatpush1.msra.mxu0 0.0
    %3906 = vmatprep.subr.mxu0 0.0
    %3907 = vmatpush1.msra.mxu0 0.0
    %3908 = vmatprep.subr.mxu0 0.0
    %3909 = vmatpush1.msra.mxu0 0.0
    %3910 = vmatprep.subr.mxu0 0.0
    %3911 = vmatpush1.msra.mxu0 0.0
    %3912 = vmatprep.subr.mxu0 0.0
    %3913 = vmatpush1.msra.mxu0 0.0
    %3914 = vmatprep.subr.mxu0 0.0
    %3915 = vmatpush1.msra.mxu0 0.0
    %3916 = vmatprep.subr.mxu0 0.0
    %3917 = vmatpush1.msra.mxu0 0.0
    %3918 = vmatprep.subr.mxu0 0.0
    %3919 = vmatpush1.msra.mxu0 0.0
    %3920 = vmatprep.subr.mxu0 0.0
    %3921 = vmatpush1.msra.mxu0 0.0
    %3922 = vmatprep.subr.mxu0 0.0
    %3923 = vmatpush1.msra.mxu0 0.0
    %3924 = vmatprep.subr.mxu0 0.0
    %3925 = vmatpush1.msra.mxu0 0.0
    %3926 = vmatprep.subr.mxu0 0.0
    %3927 = vmatpush1.msra.mxu0 0.0
    %3928 = vmatprep.subr.mxu0 0.0
    %3929 = vmatpush1.msra.mxu0 0.0
    %3930 = vmatprep.subr.mxu0 0.0
    %3931 = vmatpush1.msra.mxu0 0.0
    %3932 = vmatprep.subr.mxu0 0.0
    %3933 = vmatpush1.msra.mxu0 0.0
    %3934 = vmatprep.subr.mxu0 0.0
    %3935 = vmatpush1.msra.mxu0 0.0
    %3936 = vmatprep.subr.mxu0 0.0
    %3937 = vmatpush1.msra.mxu0 0.0
    %3938 = vmatprep.subr.mxu0 0.0
    %3939 = vmatpush1.msra.mxu0 0.0
    %3940 = vmatprep.subr.mxu0 0.0
    %3941 = vmatpush1.msra.mxu0 0.0
    %3942 = vmatprep.subr.mxu0 0.0
    %3943 = vmatpush1.msra.mxu0 0.0
    %3944 = vmatprep.subr.mxu0 0.0
    %3945 = vmatpush1.msra.mxu0 0.0
    %3946 = vmatprep.subr.mxu0 0.0
    %3947 = vmatpush1.msra.mxu0 0.0
    %3948 = vmatprep.subr.mxu0 0.0
    %3949 = vmatpush1.msra.mxu0 0.0
    %3950 = vmatprep.subr.mxu0 0.0
    %3951 = vmatpush1.msra.mxu0 0.0
    %3952 = vmatprep.subr.mxu0 0.0
    %3953 = vmatpush1.msra.mxu0 0.0
    %3954 = vmatprep.subr.mxu0 0.0
    %3955 = vmatpush1.msra.mxu0 0.0
    %3956 = vmatprep.subr.mxu0 0.0
    %3957 = vmatpush1.msra.mxu0 0.0
    %3958 = vmatprep.subr.mxu0 0.0
    %3959 = vmatpush1.msra.mxu0 0.0
    %3960 = vmatprep.mubr.f32.mxu0 0.0
    %3961 = vmatmul.mubr.f32.gmra.mrb[0].mxu0 %v401
    %v3962 = vpop.f32.mrb[0].mxu0
    %v3963 = vadd.f32 0.0, %v3962
    %v3964 = vpop.f32.mrb[0].mxu0
    %3965 = vmatprep.mubr.f32.mxu0 0.0
    %3966 = vmatmul.mubr.f32.gmra.mrb[0].mxu0 %v404
    %v3967 = vpop.f32.mrb[0].mxu0
    %v3968 = vadd.f32 0.0, %v3967
    %v3969 = vpop.f32.mrb[0].mxu0
    %3970 = vmatprep.mubr.f32.mxu0 0.0
    %3971 = vmatmul.mubr.f32.gmra.mrb[0].mxu0 %v407
    %v3972 = vpop.f32.mrb[0].mxu0
    %v3973 = vadd.f32 0.0, %v3972
    %v3974 = vpop.f32.mrb[0].mxu0
    %3975 = vmatprep.mubr.f32.mxu0 0.0
    %3976 = vmatmul.mubr.f32.gmra.mrb[0].mxu0 %v410
    %v3977 = vpop.f32.mrb[0].mxu0
    %v3978 = vadd.f32 0.0, %v3977
    %v3979 = vpop.f32.mrb[0].mxu0
    %3980 = vdwg.mxu0
    %v3981 = vmul.f32 %v3963, 0.00390625
    %v3982 = vmul.f32 %v3968, 0.00390625
    %v3983 = vmul.f32 %v3973, 0.00390625
    %v3984 = vmul.f32 %v3978, 0.00390625
    %v3985 = vmul.f32 %v3981, %v3981
    %v3986 = vmul.f32 %v3982, %v3982
    %v3987 = vmul.f32 %v3983, %v3983
    %v3988 = vmul.f32 %v3984, %v3984
    %v3989 = vadd.f32 %v3985, %v3987
    %v3990 = vadd.f32 %v3986, %v3988
    %v3991 = vsel %vm74, %v3989, -inf
    %3992 = vmax.xlane.f32.xlu0 %v3991
    %v3993 = vpop.xlane.xlu0 %3992
    %v3994 = vsel %vm74, %v3990, -inf
    %3995 = vmax.xlane.f32.xlu0 %v3994
    %v3996 = vpop.xlane.xlu0 %3995
    %v3997 = vmax.f32 %v3993, %v3996
    %v3998 = vrot.slane %v3997, 4
    %v3999 = vmax.f32 %v3997, %v3998
    %v4000 = vrot.slane %v3999, 2
    %v4001 = vmax.f32 %v3999, %v4000
    %v4002 = vrot.slane %v4001, 1
    %v4003 = vmax.f32 %v4001, %v4002
    %v4004 = vrcp.pop %v4003
    %v4005 = vmul.f32 1.0, %v4004
    %v4006 = vsel %vm1402, %v3989, -inf
    %4007 = vmax.xlane.f32.xlu0 %v4006
    %v4008 = vpop.xlane.xlu0 %4007
    %v4009 = vsel %vm1402, %v3990, -inf
    %4010 = vmax.xlane.f32.xlu0 %v4009
    %v4011 = vpop.xlane.xlu0 %4010
    %v4012 = vmax.f32 %v4008, %v4011
    %v4013 = vrot.slane %v4012, 4
    %v4014 = vmax.f32 %v4012, %v4013
    %v4015 = vrot.slane %v4014, 2
    %v4016 = vmax.f32 %v4014, %v4015
    %v4017 = vrot.slane %v4016, 1
    %v4018 = vmax.f32 %v4016, %v4017
    %v4019 = vrcp.pop %v4018
    %v4020 = vmul.f32 1.0, %v4019
    %v4021 = vsel %vm1418, %v4005, %v4020
    %v4022 = vmul.f32 %v3989, %v4021
    %v4023 = vmul.f32 %v3990, %v4021
    %v4024 = vsub.f32 %v2319, %v4022
    %v4025 = vsub.f32 %v2320, %v4023
    %v4026 = vsub.f32 %v2321, %v3189
    %v4027 = vsub.f32 %v2322, %v3190
    %s4028 = sld [smem:[#allocation2 + $0x1]]
    %s4029 = sld [smem:[#allocation4 + $0x1]]
    %v4030 = vsub.f32 %v3189, %v4026
    %v4031 = vsub.f32 %v3190, %v4027
    %v4032 = vsub.f32 %v4022, %v4024
    %v4033 = vsub.f32 %v4023, %v4025
    %v4034 = vsub.f32 50.000004, %v4032
    %v4035 = vsub.f32 50.000004, %v4033
    %v4036 = vstv %s4028
    %v4037 = vmul.f32 %v4036, %v4034
    %v4038 = vmul.f32 %v4036, %v4035
    %v4039 = vadd.f32 %v68, %v4037
    %v4040 = vadd.f32 %v69, %v4038
    %v4041 = vadd.f32 %v4039, %v66
    %v4042 = vadd.f32 %v4040, %v67
    %v4043 = vmul.f32 %v4041, 1.9287424e-22
    %v4044 = vmul.f32 %v4042, 1.9287424e-22
    %v4045 = vsub.f32 %v4039, %v4043
    %v4046 = vsub.f32 %v4040, %v4044
    %vm4047 = vcmp.lt.f32.partialorder %v4045, 0.0
    %vm4048 = vcmp.lt.f32.partialorder %v4046, 0.0
    %v4049 = vsel %vm4047, 50.000004, 1e-05
    %v4050 = vsel %vm4048, 50.000004, 1e-05
    %vm4051 = vcmp.gt.f32.partialorder %v4045, 0.0
    %vm4052 = vcmp.gt.f32.partialorder %v4046, 0.0
    %v4053 = vsel %vm4051, 50.000004, 100.0
    %v4054 = vsel %vm4052, 50.000004, 100.0
    %v4055 = vadd.f32 %v4049, %v4053
    %v4056 = vadd.f32 %v4050, %v4054
    %v4057 = vmul.f32 %v4055, 0.5
    %v4058 = vmul.f32 %v4056, 0.5
    %v4059 = vsub.f32 0.0, %v4057
    %v4060 = vsub.f32 0.0, %v4058
    %v4061 = vmul.f32 %v4059, 1.442695
    %v4062 = vpow.pop %v4061
    %v4063 = vmul.f32 %v4060, 1.442695
    %v4064 = vpow.pop %v4063
    %v4065 = vsub.f32 %v4057, %v4032
    %v4066 = vsub.f32 %v4058, %v4033
    %v4067 = vmul.f32 %v4036, %v4065
    %v4068 = vmul.f32 %v4036, %v4066
    %v4069 = vadd.f32 %v68, %v4067
    %v4070 = vadd.f32 %v69, %v4068
    %v4071 = vadd.f32 %v4069, %v66
    %v4072 = vadd.f32 %v4070, %v67
    %v4073 = vmul.f32 %v4071, %v4062
    %v4074 = vmul.f32 %v4072, %v4064
    %v4075 = vsub.f32 %v4069, %v4073
    %v4076 = vsub.f32 %v4070, %v4074
    %vm4077 = vcmp.lt.f32.partialorder %v4075, 0.0
    %vm4078 = vcmp.lt.f32.partialorder %v4076, 0.0
    %v4079 = vsel %vm4077, %v4057, %v4049
    %v4080 = vsel %vm4078, %v4058, %v4050
    %vm4081 = vcmp.gt.f32.partialorder %v4075, 0.0
    %vm4082 = vcmp.gt.f32.partialorder %v4076, 0.0
    %v4083 = vsel %vm4081, %v4057, %v4053
    %v4084 = vsel %vm4082, %v4058, %v4054
    %v4085 = vadd.f32 %v4079, %v4083
    %v4086 = vadd.f32 %v4080, %v4084
    %v4087 = vmul.f32 %v4085, 0.5
    %v4088 = vmul.f32 %v4086, 0.5
    %v4089 = vsub.f32 0.0, %v4087
    %v4090 = vsub.f32 0.0, %v4088
    %v4091 = vmul.f32 %v4089, 1.442695
    %v4092 = vpow.pop %v4091
    %v4093 = vmul.f32 %v4090, 1.442695
    %v4094 = vpow.pop %v4093
    %v4095 = vsub.f32 %v4087, %v4032
    %v4096 = vsub.f32 %v4088, %v4033
    %v4097 = vmul.f32 %v4036, %v4095
    %v4098 = vmul.f32 %v4036, %v4096
    %v4099 = vadd.f32 %v68, %v4097
    %v4100 = vadd.f32 %v69, %v4098
    %v4101 = vadd.f32 %v4099, %v66
    %v4102 = vadd.f32 %v4100, %v67
    %v4103 = vmul.f32 %v4101, %v4092
    %v4104 = vmul.f32 %v4102, %v4094
    %v4105 = vsub.f32 %v4099, %v4103
    %v4106 = vsub.f32 %v4100, %v4104
    %vm4107 = vcmp.lt.f32.partialorder %v4105, 0.0
    %vm4108 = vcmp.lt.f32.partialorder %v4106, 0.0
    %v4109 = vsel %vm4107, %v4087, %v4079
    %v4110 = vsel %vm4108, %v4088, %v4080
    %vm4111 = vcmp.gt.f32.partialorder %v4105, 0.0
    %vm4112 = vcmp.gt.f32.partialorder %v4106, 0.0
    %v4113 = vsel %vm4111, %v4087, %v4083
    %v4114 = vsel %vm4112, %v4088, %v4084
    %v4115 = vadd.f32 %v4109, %v4113
    %v4116 = vadd.f32 %v4110, %v4114
    %v4117 = vmul.f32 %v4115, 0.5
    %v4118 = vmul.f32 %v4116, 0.5
    %v4119 = vsub.f32 0.0, %v4117
    %v4120 = vsub.f32 0.0, %v4118
    %v4121 = vmul.f32 %v4119, 1.442695
    %v4122 = vpow.pop %v4121
    %v4123 = vmul.f32 %v4120, 1.442695
    %v4124 = vpow.pop %v4123
    %v4125 = vsub.f32 %v4117, %v4032
    %v4126 = vsub.f32 %v4118, %v4033
    %v4127 = vmul.f32 %v4036, %v4125
    %v4128 = vmul.f32 %v4036, %v4126
    %v4129 = vadd.f32 %v68, %v4127
    %v4130 = vadd.f32 %v69, %v4128
    %v4131 = vadd.f32 %v4129, %v66
    %v4132 = vadd.f32 %v4130, %v67
    %v4133 = vmul.f32 %v4131, %v4122
    %v4134 = vmul.f32 %v4132, %v4124
    %v4135 = vsub.f32 %v4129, %v4133
    %v4136 = vsub.f32 %v4130, %v4134
    %vm4137 = vcmp.lt.f32.partialorder %v4135, 0.0
    %vm4138 = vcmp.lt.f32.partialorder %v4136, 0.0
    %v4139 = vsel %vm4137, %v4117, %v4109
    %v4140 = vsel %vm4138, %v4118, %v4110
    %vm4141 = vcmp.gt.f32.partialorder %v4135, 0.0
    %vm4142 = vcmp.gt.f32.partialorder %v4136, 0.0
    %v4143 = vsel %vm4141, %v4117, %v4113
    %v4144 = vsel %vm4142, %v4118, %v4114
    %v4145 = vadd.f32 %v4139, %v4143
    %v4146 = vadd.f32 %v4140, %v4144
    %v4147 = vmul.f32 %v4145, 0.5
    %v4148 = vmul.f32 %v4146, 0.5
    %v4149 = vsub.f32 0.0, %v4147
    %v4150 = vsub.f32 0.0, %v4148
    %v4151 = vmul.f32 %v4149, 1.442695
    %v4152 = vpow.pop %v4151
    %v4153 = vmul.f32 %v4150, 1.442695
    %v4154 = vpow.pop %v4153
    %v4155 = vsub.f32 %v4147, %v4032
    %v4156 = vsub.f32 %v4148, %v4033
    %v4157 = vmul.f32 %v4036, %v4155
    %v4158 = vmul.f32 %v4036, %v4156
    %v4159 = vadd.f32 %v68, %v4157
    %v4160 = vadd.f32 %v69, %v4158
    %v4161 = vadd.f32 %v4159, %v66
    %v4162 = vadd.f32 %v4160, %v67
    %v4163 = vmul.f32 %v4161, %v4152
    %v4164 = vmul.f32 %v4162, %v4154
    %v4165 = vsub.f32 %v4159, %v4163
    %v4166 = vsub.f32 %v4160, %v4164
    %vm4167 = vcmp.lt.f32.partialorder %v4165, 0.0
    %vm4168 = vcmp.lt.f32.partialorder %v4166, 0.0
    %v4169 = vsel %vm4167, %v4147, %v4139
    %v4170 = vsel %vm4168, %v4148, %v4140
    %vm4171 = vcmp.gt.f32.partialorder %v4165, 0.0
    %vm4172 = vcmp.gt.f32.partialorder %v4166, 0.0
    %v4173 = vsel %vm4171, %v4147, %v4143
    %v4174 = vsel %vm4172, %v4148, %v4144
    %v4175 = vadd.f32 %v4169, %v4173
    %v4176 = vadd.f32 %v4170, %v4174
    %v4177 = vmul.f32 %v4175, 0.5
    %v4178 = vmul.f32 %v4176, 0.5
    %v4179 = vsub.f32 0.0, %v4177
    %v4180 = vsub.f32 0.0, %v4178
    %v4181 = vmul.f32 %v4179, 1.442695
    %v4182 = vpow.pop %v4181
    %v4183 = vmul.f32 %v4180, 1.442695
    %v4184 = vpow.pop %v4183
    %v4185 = vsub.f32 %v4177, %v4032
    %v4186 = vsub.f32 %v4178, %v4033
    %v4187 = vmul.f32 %v4036, %v4185
    %v4188 = vmul.f32 %v4036, %v4186
    %v4189 = vadd.f32 %v68, %v4187
    %v4190 = vadd.f32 %v69, %v4188
    %v4191 = vadd.f32 %v4189, %v66
    %v4192 = vadd.f32 %v4190, %v67
    %v4193 = vmul.f32 %v4191, %v4182
    %v4194 = vmul.f32 %v4192, %v4184
    %v4195 = vsub.f32 %v4189, %v4193
    %v4196 = vsub.f32 %v4190, %v4194
    %vm4197 = vcmp.lt.f32.partialorder %v4195, 0.0
    %vm4198 = vcmp.lt.f32.partialorder %v4196, 0.0
    %v4199 = vsel %vm4197, %v4177, %v4169
    %v4200 = vsel %vm4198, %v4178, %v4170
    %vm4201 = vcmp.gt.f32.partialorder %v4195, 0.0
    %vm4202 = vcmp.gt.f32.partialorder %v4196, 0.0
    %v4203 = vsel %vm4201, %v4177, %v4173
    %v4204 = vsel %vm4202, %v4178, %v4174
    %v4205 = vadd.f32 %v4199, %v4203
    %v4206 = vadd.f32 %v4200, %v4204
    %v4207 = vmul.f32 %v4205, 0.5
    %v4208 = vmul.f32 %v4206, 0.5
    %v4209 = vsub.f32 0.0, %v4207
    %v4210 = vsub.f32 0.0, %v4208
    %v4211 = vmul.f32 %v4209, 1.442695
    %v4212 = vpow.pop %v4211
    %v4213 = vmul.f32 %v4210, 1.442695
    %v4214 = vpow.pop %v4213
    %v4215 = vsub.f32 %v4207, %v4032
    %v4216 = vsub.f32 %v4208, %v4033
    %v4217 = vmul.f32 %v4036, %v4215
    %v4218 = vmul.f32 %v4036, %v4216
    %v4219 = vadd.f32 %v68, %v4217
    %v4220 = vadd.f32 %v69, %v4218
    %v4221 = vadd.f32 %v4219, %v66
    %v4222 = vadd.f32 %v4220, %v67
    %v4223 = vmul.f32 %v4221, %v4212
    %v4224 = vmul.f32 %v4222, %v4214
    %v4225 = vsub.f32 %v4219, %v4223
    %v4226 = vsub.f32 %v4220, %v4224
    %vm4227 = vcmp.lt.f32.partialorder %v4225, 0.0
    %vm4228 = vcmp.lt.f32.partialorder %v4226, 0.0
    %v4229 = vsel %vm4227, %v4207, %v4199
    %v4230 = vsel %vm4228, %v4208, %v4200
    %vm4231 = vcmp.gt.f32.partialorder %v4225, 0.0
    %vm4232 = vcmp.gt.f32.partialorder %v4226, 0.0
    %v4233 = vsel %vm4231, %v4207, %v4203
    %v4234 = vsel %vm4232, %v4208, %v4204
    %v4235 = vadd.f32 %v4229, %v4233
    %v4236 = vadd.f32 %v4230, %v4234
    %v4237 = vmul.f32 %v4235, 0.5
    %v4238 = vmul.f32 %v4236, 0.5
    %v4239 = vsub.f32 0.0, %v4237
    %v4240 = vsub.f32 0.0, %v4238
    %v4241 = vmul.f32 %v4239, 1.442695
    %v4242 = vpow.pop %v4241
    %v4243 = vmul.f32 %v4240, 1.442695
    %v4244 = vpow.pop %v4243
    %v4245 = vsub.f32 %v4237, %v4032
    %v4246 = vsub.f32 %v4238, %v4033
    %v4247 = vmul.f32 %v4036, %v4245
    %v4248 = vmul.f32 %v4036, %v4246
    %v4249 = vadd.f32 %v68, %v4247
    %v4250 = vadd.f32 %v69, %v4248
    %v4251 = vadd.f32 %v4249, %v66
    %v4252 = vadd.f32 %v4250, %v67
    %v4253 = vmul.f32 %v4251, %v4242
    %v4254 = vmul.f32 %v4252, %v4244
    %v4255 = vsub.f32 %v4249, %v4253
    %v4256 = vsub.f32 %v4250, %v4254
    %vm4257 = vcmp.lt.f32.partialorder %v4255, 0.0
    %vm4258 = vcmp.lt.f32.partialorder %v4256, 0.0
    %v4259 = vsel %vm4257, %v4237, %v4229
    %v4260 = vsel %vm4258, %v4238, %v4230
    %vm4261 = vcmp.gt.f32.partialorder %v4255, 0.0
    %vm4262 = vcmp.gt.f32.partialorder %v4256, 0.0
    %v4263 = vsel %vm4261, %v4237, %v4233
    %v4264 = vsel %vm4262, %v4238, %v4234
    %v4265 = vadd.f32 %v4259, %v4263
    %v4266 = vadd.f32 %v4260, %v4264
    %v4267 = vmul.f32 %v4265, 0.5
    %v4268 = vmul.f32 %v4266, 0.5
    %v4269 = vsub.f32 0.0, %v4267
    %v4270 = vsub.f32 0.0, %v4268
    %v4271 = vmul.f32 %v4269, 1.442695
    %v4272 = vpow.pop %v4271
    %v4273 = vmul.f32 %v4270, 1.442695
    %v4274 = vpow.pop %v4273
    %v4275 = vsub.f32 %v4267, %v4032
    %v4276 = vsub.f32 %v4268, %v4033
    %v4277 = vmul.f32 %v4036, %v4275
    %v4278 = vmul.f32 %v4036, %v4276
    %v4279 = vadd.f32 %v68, %v4277
    %v4280 = vadd.f32 %v69, %v4278
    %v4281 = vadd.f32 %v4279, %v66
    %v4282 = vadd.f32 %v4280, %v67
    %v4283 = vmul.f32 %v4281, %v4272
    %v4284 = vmul.f32 %v4282, %v4274
    %v4285 = vsub.f32 %v4279, %v4283
    %v4286 = vsub.f32 %v4280, %v4284
    %vm4287 = vcmp.lt.f32.partialorder %v4285, 0.0
    %vm4288 = vcmp.lt.f32.partialorder %v4286, 0.0
    %v4289 = vsel %vm4287, %v4267, %v4259
    %v4290 = vsel %vm4288, %v4268, %v4260
    %vm4291 = vcmp.gt.f32.partialorder %v4285, 0.0
    %vm4292 = vcmp.gt.f32.partialorder %v4286, 0.0
    %v4293 = vsel %vm4291, %v4267, %v4263
    %v4294 = vsel %vm4292, %v4268, %v4264
    %v4295 = vadd.f32 %v4289, %v4293
    %v4296 = vadd.f32 %v4290, %v4294
    %v4297 = vmul.f32 %v4295, 0.5
    %v4298 = vmul.f32 %v4296, 0.5
    %v4299 = vsub.f32 0.0, %v4297
    %v4300 = vsub.f32 0.0, %v4298
    %v4301 = vmul.f32 %v4299, 1.442695
    %v4302 = vpow.pop %v4301
    %v4303 = vmul.f32 %v4300, 1.442695
    %v4304 = vpow.pop %v4303
    %v4305 = vsub.f32 %v4297, %v4032
    %v4306 = vsub.f32 %v4298, %v4033
    %v4307 = vmul.f32 %v4036, %v4305
    %v4308 = vmul.f32 %v4036, %v4306
    %v4309 = vadd.f32 %v68, %v4307
    %v4310 = vadd.f32 %v69, %v4308
    %v4311 = vadd.f32 %v4309, %v66
    %v4312 = vadd.f32 %v4310, %v67
    %v4313 = vmul.f32 %v4311, %v4302
    %v4314 = vmul.f32 %v4312, %v4304
    %v4315 = vsub.f32 %v4309, %v4313
    %v4316 = vsub.f32 %v4310, %v4314
    %vm4317 = vcmp.lt.f32.partialorder %v4315, 0.0
    %vm4318 = vcmp.lt.f32.partialorder %v4316, 0.0
    %v4319 = vsel %vm4317, %v4297, %v4289
    %v4320 = vsel %vm4318, %v4298, %v4290
    %vm4321 = vcmp.gt.f32.partialorder %v4315, 0.0
    %vm4322 = vcmp.gt.f32.partialorder %v4316, 0.0
    %v4323 = vsel %vm4321, %v4297, %v4293
    %v4324 = vsel %vm4322, %v4298, %v4294
    %v4325 = vadd.f32 %v4319, %v4323
    %v4326 = vadd.f32 %v4320, %v4324
    %v4327 = vmul.f32 %v4325, 0.5
    %v4328 = vmul.f32 %v4326, 0.5
    %v4329 = vsub.f32 0.0, %v4327
    %v4330 = vsub.f32 0.0, %v4328
    %v4331 = vmul.f32 %v4329, 1.442695
    %v4332 = vpow.pop %v4331
    %v4333 = vmul.f32 %v4330, 1.442695
    %v4334 = vpow.pop %v4333
    %v4335 = vsub.f32 %v4327, %v4032
    %v4336 = vsub.f32 %v4328, %v4033
    %v4337 = vmul.f32 %v4036, %v4335
    %v4338 = vmul.f32 %v4036, %v4336
    %v4339 = vadd.f32 %v68, %v4337
    %v4340 = vadd.f32 %v69, %v4338
    %v4341 = vadd.f32 %v4339, %v66
    %v4342 = vadd.f32 %v4340, %v67
    %v4343 = vmul.f32 %v4341, %v4332
    %v4344 = vmul.f32 %v4342, %v4334
    %v4345 = vsub.f32 %v4339, %v4343
    %v4346 = vsub.f32 %v4340, %v4344
    %vm4347 = vcmp.lt.f32.partialorder %v4345, 0.0
    %vm4348 = vcmp.lt.f32.partialorder %v4346, 0.0
    %v4349 = vsel %vm4347, %v4327, %v4319
    %v4350 = vsel %vm4348, %v4328, %v4320
    %vm4351 = vcmp.gt.f32.partialorder %v4345, 0.0
    %vm4352 = vcmp.gt.f32.partialorder %v4346, 0.0
    %v4353 = vsel %vm4351, %v4327, %v4323
    %v4354 = vsel %vm4352, %v4328, %v4324
    %v4355 = vadd.f32 %v4349, %v4353
    %v4356 = vadd.f32 %v4350, %v4354
    %v4357 = vmul.f32 %v4355, 0.5
    %v4358 = vmul.f32 %v4356, 0.5
    %v4359 = vsub.f32 0.0, %v4357
    %v4360 = vsub.f32 0.0, %v4358
    %v4361 = vmul.f32 %v4359, 1.442695
    %v4362 = vpow.pop %v4361
    %v4363 = vmul.f32 %v4360, 1.442695
    %v4364 = vpow.pop %v4363
    %v4365 = vsub.f32 %v4357, %v4032
    %v4366 = vsub.f32 %v4358, %v4033
    %v4367 = vmul.f32 %v4036, %v4365
    %v4368 = vmul.f32 %v4036, %v4366
    %v4369 = vadd.f32 %v68, %v4367
    %v4370 = vadd.f32 %v69, %v4368
    %v4371 = vadd.f32 %v4369, %v66
    %v4372 = vadd.f32 %v4370, %v67
    %v4373 = vmul.f32 %v4371, %v4362
    %v4374 = vmul.f32 %v4372, %v4364
    %v4375 = vsub.f32 %v4369, %v4373
    %v4376 = vsub.f32 %v4370, %v4374
    %vm4377 = vcmp.lt.f32.partialorder %v4375, 0.0
    %vm4378 = vcmp.lt.f32.partialorder %v4376, 0.0
    %v4379 = vsel %vm4377, %v4357, %v4349
    %v4380 = vsel %vm4378, %v4358, %v4350
    %vm4381 = vcmp.gt.f32.partialorder %v4375, 0.0
    %vm4382 = vcmp.gt.f32.partialorder %v4376, 0.0
    %v4383 = vsel %vm4381, %v4357, %v4353
    %v4384 = vsel %vm4382, %v4358, %v4354
    %v4385 = vadd.f32 %v4379, %v4383
    %v4386 = vadd.f32 %v4380, %v4384
    %v4387 = vmul.f32 %v4385, 0.5
    %v4388 = vmul.f32 %v4386, 0.5
    %v4389 = vsub.f32 0.0, %v4387
    %v4390 = vsub.f32 0.0, %v4388
    %v4391 = vmul.f32 %v4389, 1.442695
    %v4392 = vpow.pop %v4391
    %v4393 = vmul.f32 %v4390, 1.442695
    %v4394 = vpow.pop %v4393
    %v4395 = vsub.f32 %v4387, %v4032
    %v4396 = vsub.f32 %v4388, %v4033
    %v4397 = vmul.f32 %v4036, %v4395
    %v4398 = vmul.f32 %v4036, %v4396
    %v4399 = vadd.f32 %v68, %v4397
    %v4400 = vadd.f32 %v69, %v4398
    %v4401 = vadd.f32 %v4399, %v66
    %v4402 = vadd.f32 %v4400, %v67
    %v4403 = vmul.f32 %v4401, %v4392
    %v4404 = vmul.f32 %v4402, %v4394
    %v4405 = vsub.f32 %v4399, %v4403
    %v4406 = vsub.f32 %v4400, %v4404
    %vm4407 = vcmp.lt.f32.partialorder %v4405, 0.0
    %vm4408 = vcmp.lt.f32.partialorder %v4406, 0.0
    %v4409 = vsel %vm4407, %v4387, %v4379
    %v4410 = vsel %vm4408, %v4388, %v4380
    %vm4411 = vcmp.gt.f32.partialorder %v4405, 0.0
    %vm4412 = vcmp.gt.f32.partialorder %v4406, 0.0
    %v4413 = vsel %vm4411, %v4387, %v4383
    %v4414 = vsel %vm4412, %v4388, %v4384
    %v4415 = vadd.f32 %v4409, %v4413
    %v4416 = vadd.f32 %v4410, %v4414
    %v4417 = vmul.f32 %v4415, 0.5
    %v4418 = vmul.f32 %v4416, 0.5
    %v4419 = vsub.f32 0.0, %v4417
    %v4420 = vsub.f32 0.0, %v4418
    %v4421 = vmul.f32 %v4419, 1.442695
    %v4422 = vpow.pop %v4421
    %v4423 = vmul.f32 %v4420, 1.442695
    %v4424 = vpow.pop %v4423
    %v4425 = vsub.f32 %v4417, %v4032
    %v4426 = vsub.f32 %v4418, %v4033
    %v4427 = vmul.f32 %v4036, %v4425
    %v4428 = vmul.f32 %v4036, %v4426
    %v4429 = vadd.f32 %v68, %v4427
    %v4430 = vadd.f32 %v69, %v4428
    %v4431 = vadd.f32 %v4429, %v66
    %v4432 = vadd.f32 %v4430, %v67
    %v4433 = vmul.f32 %v4431, %v4422
    %v4434 = vmul.f32 %v4432, %v4424
    %v4435 = vsub.f32 %v4429, %v4433
    %v4436 = vsub.f32 %v4430, %v4434
    %vm4437 = vcmp.lt.f32.partialorder %v4435, 0.0
    %vm4438 = vcmp.lt.f32.partialorder %v4436, 0.0
    %v4439 = vsel %vm4437, %v4417, %v4409
    %v4440 = vsel %vm4438, %v4418, %v4410
    %vm4441 = vcmp.gt.f32.partialorder %v4435, 0.0
    %vm4442 = vcmp.gt.f32.partialorder %v4436, 0.0
    %v4443 = vsel %vm4441, %v4417, %v4413
    %v4444 = vsel %vm4442, %v4418, %v4414
    %v4445 = vadd.f32 %v4439, %v4443
    %v4446 = vadd.f32 %v4440, %v4444
    %v4447 = vmul.f32 %v4445, 0.5
    %v4448 = vmul.f32 %v4446, 0.5
    %v4449 = vsub.f32 0.0, %v4447
    %v4450 = vsub.f32 0.0, %v4448
    %v4451 = vmul.f32 %v4449, 1.442695
    %v4452 = vpow.pop %v4451
    %v4453 = vmul.f32 %v4450, 1.442695
    %v4454 = vpow.pop %v4453
    %v4455 = vsub.f32 %v4447, %v4032
    %v4456 = vsub.f32 %v4448, %v4033
    %v4457 = vmul.f32 %v4036, %v4455
    %v4458 = vmul.f32 %v4036, %v4456
    %v4459 = vadd.f32 %v68, %v4457
    %v4460 = vadd.f32 %v69, %v4458
    %v4461 = vadd.f32 %v4459, %v66
    %v4462 = vadd.f32 %v4460, %v67
    %v4463 = vmul.f32 %v4461, %v4452
    %v4464 = vmul.f32 %v4462, %v4454
    %v4465 = vsub.f32 %v4459, %v4463
    %v4466 = vsub.f32 %v4460, %v4464
    %vm4467 = vcmp.lt.f32.partialorder %v4465, 0.0
    %vm4468 = vcmp.lt.f32.partialorder %v4466, 0.0
    %v4469 = vsel %vm4467, %v4447, %v4439
    %v4470 = vsel %vm4468, %v4448, %v4440
    %vm4471 = vcmp.gt.f32.partialorder %v4465, 0.0
    %vm4472 = vcmp.gt.f32.partialorder %v4466, 0.0
    %v4473 = vsel %vm4471, %v4447, %v4443
    %v4474 = vsel %vm4472, %v4448, %v4444
    %v4475 = vadd.f32 %v4469, %v4473
    %v4476 = vadd.f32 %v4470, %v4474
    %v4477 = vmul.f32 %v4475, 0.5
    %v4478 = vmul.f32 %v4476, 0.5
    %v4479 = vsub.f32 0.0, %v4477
    %v4480 = vsub.f32 0.0, %v4478
    %v4481 = vmul.f32 %v4479, 1.442695
    %v4482 = vpow.pop %v4481
    %v4483 = vmul.f32 %v4480, 1.442695
    %v4484 = vpow.pop %v4483
    %v4485 = vsub.f32 %v4477, %v4032
    %v4486 = vsub.f32 %v4478, %v4033
    %v4487 = vmul.f32 %v4036, %v4485
    %v4488 = vmul.f32 %v4036, %v4486
    %v4489 = vadd.f32 %v68, %v4487
    %v4490 = vadd.f32 %v69, %v4488
    %v4491 = vadd.f32 %v4489, %v66
    %v4492 = vadd.f32 %v4490, %v67
    %v4493 = vmul.f32 %v4491, %v4482
    %v4494 = vmul.f32 %v4492, %v4484
    %v4495 = vsub.f32 %v4489, %v4493
    %v4496 = vsub.f32 %v4490, %v4494
    %vm4497 = vcmp.lt.f32.partialorder %v4495, 0.0
    %vm4498 = vcmp.lt.f32.partialorder %v4496, 0.0
    %v4499 = vsel %vm4497, %v4477, %v4469
    %v4500 = vsel %vm4498, %v4478, %v4470
    %vm4501 = vcmp.gt.f32.partialorder %v4495, 0.0
    %vm4502 = vcmp.gt.f32.partialorder %v4496, 0.0
    %v4503 = vsel %vm4501, %v4477, %v4473
    %v4504 = vsel %vm4502, %v4478, %v4474
    %v4505 = vadd.f32 %v4499, %v4503
    %v4506 = vadd.f32 %v4500, %v4504
    %v4507 = vmul.f32 %v4505, 0.5
    %v4508 = vmul.f32 %v4506, 0.5
    %v4509 = vsub.f32 0.0, %v4507
    %v4510 = vsub.f32 0.0, %v4508
    %v4511 = vmul.f32 %v4509, 1.442695
    %v4512 = vpow.pop %v4511
    %v4513 = vmul.f32 %v4510, 1.442695
    %v4514 = vpow.pop %v4513
    %v4515 = vsub.f32 %v4507, %v4032
    %v4516 = vsub.f32 %v4508, %v4033
    %v4517 = vmul.f32 %v4036, %v4515
    %v4518 = vmul.f32 %v4036, %v4516
    %v4519 = vadd.f32 %v68, %v4517
    %v4520 = vadd.f32 %v69, %v4518
    %v4521 = vadd.f32 %v4519, %v66
    %v4522 = vadd.f32 %v4520, %v67
    %v4523 = vmul.f32 %v4521, %v4512
    %v4524 = vmul.f32 %v4522, %v4514
    %v4525 = vsub.f32 %v4519, %v4523
    %v4526 = vsub.f32 %v4520, %v4524
    %vm4527 = vcmp.lt.f32.partialorder %v4525, 0.0
    %vm4528 = vcmp.lt.f32.partialorder %v4526, 0.0
    %v4529 = vsel %vm4527, %v4507, %v4499
    %v4530 = vsel %vm4528, %v4508, %v4500
    %vm4531 = vcmp.gt.f32.partialorder %v4525, 0.0
    %vm4532 = vcmp.gt.f32.partialorder %v4526, 0.0
    %v4533 = vsel %vm4531, %v4507, %v4503
    %v4534 = vsel %vm4532, %v4508, %v4504
    %v4535 = vadd.f32 %v4529, %v4533
    %v4536 = vadd.f32 %v4530, %v4534
    %v4537 = vmul.f32 %v4535, 0.5
    %v4538 = vmul.f32 %v4536, 0.5
    %v4539 = vsub.f32 0.0, %v4537
    %v4540 = vsub.f32 0.0, %v4538
    %v4541 = vmul.f32 %v4539, 1.442695
    %v4542 = vpow.pop %v4541
    %v4543 = vmul.f32 %v4540, 1.442695
    %v4544 = vpow.pop %v4543
    %v4545 = vsub.f32 %v4537, %v4032
    %v4546 = vsub.f32 %v4538, %v4033
    %v4547 = vmul.f32 %v4036, %v4545
    %v4548 = vmul.f32 %v4036, %v4546
    %v4549 = vadd.f32 %v68, %v4547
    %v4550 = vadd.f32 %v69, %v4548
    %v4551 = vadd.f32 %v4549, %v66
    %v4552 = vadd.f32 %v4550, %v67
    %v4553 = vmul.f32 %v4551, %v4542
    %v4554 = vmul.f32 %v4552, %v4544
    %v4555 = vsub.f32 %v4549, %v4553
    %v4556 = vsub.f32 %v4550, %v4554
    %vm4557 = vcmp.lt.f32.partialorder %v4555, 0.0
    %vm4558 = vcmp.lt.f32.partialorder %v4556, 0.0
    %v4559 = vsel %vm4557, %v4537, %v4529
    %v4560 = vsel %vm4558, %v4538, %v4530
    %vm4561 = vcmp.gt.f32.partialorder %v4555, 0.0
    %vm4562 = vcmp.gt.f32.partialorder %v4556, 0.0
    %v4563 = vsel %vm4561, %v4537, %v4533
    %v4564 = vsel %vm4562, %v4538, %v4534
    %v4565 = vadd.f32 %v4559, %v4563
    %v4566 = vadd.f32 %v4560, %v4564
    %v4567 = vmul.f32 %v4565, 0.5
    %v4568 = vmul.f32 %v4566, 0.5
    %v4569 = vsub.f32 0.0, %v4567
    %v4570 = vsub.f32 0.0, %v4568
    %v4571 = vmul.f32 %v4569, 1.442695
    %v4572 = vpow.pop %v4571
    %v4573 = vmul.f32 %v4570, 1.442695
    %v4574 = vpow.pop %v4573
    %v4575 = vsub.f32 %v4567, %v4032
    %v4576 = vsub.f32 %v4568, %v4033
    %v4577 = vmul.f32 %v4036, %v4575
    %v4578 = vmul.f32 %v4036, %v4576
    %v4579 = vadd.f32 %v68, %v4577
    %v4580 = vadd.f32 %v69, %v4578
    %v4581 = vadd.f32 %v4579, %v66
    %v4582 = vadd.f32 %v4580, %v67
    %v4583 = vmul.f32 %v4581, %v4572
    %v4584 = vmul.f32 %v4582, %v4574
    %v4585 = vsub.f32 %v4579, %v4583
    %v4586 = vsub.f32 %v4580, %v4584
    %vm4587 = vcmp.lt.f32.partialorder %v4585, 0.0
    %vm4588 = vcmp.lt.f32.partialorder %v4586, 0.0
    %v4589 = vsel %vm4587, %v4567, %v4559
    %v4590 = vsel %vm4588, %v4568, %v4560
    %vm4591 = vcmp.gt.f32.partialorder %v4585, 0.0
    %vm4592 = vcmp.gt.f32.partialorder %v4586, 0.0
    %v4593 = vsel %vm4591, %v4567, %v4563
    %v4594 = vsel %vm4592, %v4568, %v4564
    %v4595 = vadd.f32 %v4589, %v4593
    %v4596 = vadd.f32 %v4590, %v4594
    %v4597 = vmul.f32 %v4595, 0.5
    %v4598 = vmul.f32 %v4596, 0.5
    %v4599 = vsub.f32 0.0, %v4597
    %v4600 = vsub.f32 0.0, %v4598
    %v4601 = vmul.f32 %v4599, 1.442695
    %v4602 = vpow.pop %v4601
    %v4603 = vmul.f32 %v4600, 1.442695
    %v4604 = vpow.pop %v4603
    %v4605 = vsub.f32 %v4597, %v4032
    %v4606 = vsub.f32 %v4598, %v4033
    %v4607 = vmul.f32 %v4036, %v4605
    %v4608 = vmul.f32 %v4036, %v4606
    %v4609 = vadd.f32 %v68, %v4607
    %v4610 = vadd.f32 %v69, %v4608
    %v4611 = vadd.f32 %v4609, %v66
    %v4612 = vadd.f32 %v4610, %v67
    %v4613 = vmul.f32 %v4611, %v4602
    %v4614 = vmul.f32 %v4612, %v4604
    %v4615 = vsub.f32 %v4609, %v4613
    %v4616 = vsub.f32 %v4610, %v4614
    %vm4617 = vcmp.lt.f32.partialorder %v4615, 0.0
    %vm4618 = vcmp.lt.f32.partialorder %v4616, 0.0
    %v4619 = vsel %vm4617, %v4597, %v4589
    %v4620 = vsel %vm4618, %v4598, %v4590
    %vm4621 = vcmp.gt.f32.partialorder %v4615, 0.0
    %vm4622 = vcmp.gt.f32.partialorder %v4616, 0.0
    %v4623 = vsel %vm4621, %v4597, %v4593
    %v4624 = vsel %vm4622, %v4598, %v4594
    %v4625 = vadd.f32 %v4619, %v4623
    %v4626 = vadd.f32 %v4620, %v4624
    %v4627 = vmul.f32 %v4625, 0.5
    %v4628 = vmul.f32 %v4626, 0.5
    %v4629 = vsub.f32 0.0, %v4627
    %v4630 = vsub.f32 0.0, %v4628
    %v4631 = vmul.f32 %v4629, 1.442695
    %v4632 = vpow.pop %v4631
    %v4633 = vmul.f32 %v4630, 1.442695
    %v4634 = vpow.pop %v4633
    %v4635 = vsub.f32 %v4627, %v4032
    %v4636 = vsub.f32 %v4628, %v4033
    %v4637 = vmul.f32 %v4036, %v4635
    %v4638 = vmul.f32 %v4036, %v4636
    %v4639 = vadd.f32 %v68, %v4637
    %v4640 = vadd.f32 %v69, %v4638
    %v4641 = vadd.f32 %v4639, %v66
    %v4642 = vadd.f32 %v4640, %v67
    %v4643 = vmul.f32 %v4641, %v4632
    %v4644 = vmul.f32 %v4642, %v4634
    %v4645 = vsub.f32 %v4639, %v4643
    %v4646 = vsub.f32 %v4640, %v4644
    %vm4647 = vcmp.lt.f32.partialorder %v4645, 0.0
    %vm4648 = vcmp.lt.f32.partialorder %v4646, 0.0
    %v4649 = vsel %vm4647, %v4627, %v4619
    %v4650 = vsel %vm4648, %v4628, %v4620
    %vm4651 = vcmp.gt.f32.partialorder %v4645, 0.0
    %vm4652 = vcmp.gt.f32.partialorder %v4646, 0.0
    %v4653 = vsel %vm4651, %v4627, %v4623
    %v4654 = vsel %vm4652, %v4628, %v4624
    %v4655 = vadd.f32 %v4649, %v4653
    %v4656 = vadd.f32 %v4650, %v4654
    %v4657 = vmul.f32 %v4655, 0.5
    %v4658 = vmul.f32 %v4656, 0.5
    %v4659 = vsub.f32 0.0, %v4657
    %v4660 = vsub.f32 0.0, %v4658
    %v4661 = vmul.f32 %v4659, 1.442695
    %v4662 = vpow.pop %v4661
    %v4663 = vmul.f32 %v4660, 1.442695
    %v4664 = vpow.pop %v4663
    %v4665 = vsub.f32 %v4657, %v4032
    %v4666 = vsub.f32 %v4658, %v4033
    %v4667 = vmul.f32 %v4036, %v4665
    %v4668 = vmul.f32 %v4036, %v4666
    %v4669 = vadd.f32 %v68, %v4667
    %v4670 = vadd.f32 %v69, %v4668
    %v4671 = vadd.f32 %v4669, %v66
    %v4672 = vadd.f32 %v4670, %v67
    %v4673 = vmul.f32 %v4671, %v4662
    %v4674 = vmul.f32 %v4672, %v4664
    %v4675 = vsub.f32 %v4669, %v4673
    %v4676 = vsub.f32 %v4670, %v4674
    %vm4677 = vcmp.lt.f32.partialorder %v4675, 0.0
    %vm4678 = vcmp.lt.f32.partialorder %v4676, 0.0
    %v4679 = vsel %vm4677, %v4657, %v4649
    %v4680 = vsel %vm4678, %v4658, %v4650
    %vm4681 = vcmp.gt.f32.partialorder %v4675, 0.0
    %vm4682 = vcmp.gt.f32.partialorder %v4676, 0.0
    %v4683 = vsel %vm4681, %v4657, %v4653
    %v4684 = vsel %vm4682, %v4658, %v4654
    %v4685 = vadd.f32 %v4679, %v4683
    %v4686 = vadd.f32 %v4680, %v4684
    %v4687 = vmul.f32 %v4685, 0.5
    %v4688 = vmul.f32 %v4686, 0.5
    %v4689 = vsub.f32 0.0, %v4687
    %v4690 = vsub.f32 0.0, %v4688
    %v4691 = vmul.f32 %v4689, 1.442695
    %v4692 = vpow.pop %v4691
    %v4693 = vmul.f32 %v4690, 1.442695
    %v4694 = vpow.pop %v4693
    %v4695 = vsub.f32 %v4687, %v4032
    %v4696 = vsub.f32 %v4688, %v4033
    %v4697 = vmul.f32 %v4036, %v4695
    %v4698 = vmul.f32 %v4036, %v4696
    %v4699 = vadd.f32 %v68, %v4697
    %v4700 = vadd.f32 %v69, %v4698
    %v4701 = vadd.f32 %v4699, %v66
    %v4702 = vadd.f32 %v4700, %v67
    %v4703 = vmul.f32 %v4701, %v4692
    %v4704 = vmul.f32 %v4702, %v4694
    %v4705 = vsub.f32 %v4699, %v4703
    %v4706 = vsub.f32 %v4700, %v4704
    %vm4707 = vcmp.lt.f32.partialorder %v4705, 0.0
    %vm4708 = vcmp.lt.f32.partialorder %v4706, 0.0
    %v4709 = vsel %vm4707, %v4687, %v4679
    %v4710 = vsel %vm4708, %v4688, %v4680
    %vm4711 = vcmp.gt.f32.partialorder %v4705, 0.0
    %vm4712 = vcmp.gt.f32.partialorder %v4706, 0.0
    %v4713 = vsel %vm4711, %v4687, %v4683
    %v4714 = vsel %vm4712, %v4688, %v4684
    %v4715 = vadd.f32 %v4709, %v4713
    %v4716 = vadd.f32 %v4710, %v4714
    %v4717 = vmul.f32 %v4715, 0.5
    %v4718 = vmul.f32 %v4716, 0.5
    %v4719 = vsub.f32 0.0, %v4717
    %v4720 = vsub.f32 0.0, %v4718
    %v4721 = vmul.f32 %v4719, 1.442695
    %v4722 = vpow.pop %v4721
    %v4723 = vmul.f32 %v4720, 1.442695
    %v4724 = vpow.pop %v4723
    %v4725 = vsub.f32 %v4717, %v4032
    %v4726 = vsub.f32 %v4718, %v4033
    %v4727 = vmul.f32 %v4036, %v4725
    %v4728 = vmul.f32 %v4036, %v4726
    %v4729 = vadd.f32 %v68, %v4727
    %v4730 = vadd.f32 %v69, %v4728
    %v4731 = vadd.f32 %v4729, %v66
    %v4732 = vadd.f32 %v4730, %v67
    %v4733 = vmul.f32 %v4731, %v4722
    %v4734 = vmul.f32 %v4732, %v4724
    %v4735 = vsub.f32 %v4729, %v4733
    %v4736 = vsub.f32 %v4730, %v4734
    %vm4737 = vcmp.lt.f32.partialorder %v4735, 0.0
    %vm4738 = vcmp.lt.f32.partialorder %v4736, 0.0
    %v4739 = vsel %vm4737, %v4717, %v4709
    %v4740 = vsel %vm4738, %v4718, %v4710
    %vm4741 = vcmp.gt.f32.partialorder %v4735, 0.0
    %vm4742 = vcmp.gt.f32.partialorder %v4736, 0.0
    %v4743 = vsel %vm4741, %v4717, %v4713
    %v4744 = vsel %vm4742, %v4718, %v4714
    %v4745 = vadd.f32 %v4739, %v4743
    %v4746 = vadd.f32 %v4740, %v4744
    %v4747 = vmul.f32 %v4745, 0.5
    %v4748 = vmul.f32 %v4746, 0.5
    %v4749 = vsub.f32 0.0, %v4747
    %v4750 = vsub.f32 0.0, %v4748
    %v4751 = vmul.f32 %v4749, 1.442695
    %v4752 = vpow.pop %v4751
    %v4753 = vmul.f32 %v4750, 1.442695
    %v4754 = vpow.pop %v4753
    %v4755 = vsub.f32 %v4747, %v4032
    %v4756 = vsub.f32 %v4748, %v4033
    %v4757 = vmul.f32 %v4036, %v4755
    %v4758 = vmul.f32 %v4036, %v4756
    %v4759 = vadd.f32 %v68, %v4757
    %v4760 = vadd.f32 %v69, %v4758
    %v4761 = vadd.f32 %v4759, %v66
    %v4762 = vadd.f32 %v4760, %v67
    %v4763 = vmul.f32 %v4761, %v4752
    %v4764 = vmul.f32 %v4762, %v4754
    %v4765 = vsub.f32 %v4759, %v4763
    %v4766 = vsub.f32 %v4760, %v4764
    %vm4767 = vcmp.lt.f32.partialorder %v4765, 0.0
    %vm4768 = vcmp.lt.f32.partialorder %v4766, 0.0
    %v4769 = vsel %vm4767, %v4747, %v4739
    %v4770 = vsel %vm4768, %v4748, %v4740
    %vm4771 = vcmp.gt.f32.partialorder %v4765, 0.0
    %vm4772 = vcmp.gt.f32.partialorder %v4766, 0.0
    %v4773 = vsel %vm4771, %v4747, %v4743
    %v4774 = vsel %vm4772, %v4748, %v4744
    %v4775 = vadd.f32 %v4769, %v4773
    %v4776 = vadd.f32 %v4770, %v4774
    %v4777 = vmul.f32 %v4775, 0.5
    %v4778 = vmul.f32 %v4776, 0.5
    %v4779 = vsub.f32 0.0, %v4777
    %v4780 = vsub.f32 0.0, %v4778
    %v4781 = vmul.f32 %v4779, 1.442695
    %v4782 = vpow.pop %v4781
    %v4783 = vmul.f32 %v4780, 1.442695
    %v4784 = vpow.pop %v4783
    %v4785 = vsub.f32 %v4777, %v4032
    %v4786 = vsub.f32 %v4778, %v4033
    %v4787 = vmul.f32 %v4036, %v4785
    %v4788 = vmul.f32 %v4036, %v4786
    %v4789 = vadd.f32 %v68, %v4787
    %v4790 = vadd.f32 %v69, %v4788
    %v4791 = vadd.f32 %v4789, %v66
    %v4792 = vadd.f32 %v4790, %v67
    %v4793 = vmul.f32 %v4791, %v4782
    %v4794 = vmul.f32 %v4792, %v4784
    %v4795 = vsub.f32 %v4789, %v4793
    %v4796 = vsub.f32 %v4790, %v4794
    %vm4797 = vcmp.lt.f32.partialorder %v4795, 0.0
    %vm4798 = vcmp.lt.f32.partialorder %v4796, 0.0
    %v4799 = vsel %vm4797, %v4777, %v4769
    %v4800 = vsel %vm4798, %v4778, %v4770
    %vm4801 = vcmp.gt.f32.partialorder %v4795, 0.0
    %vm4802 = vcmp.gt.f32.partialorder %v4796, 0.0
    %v4803 = vsel %vm4801, %v4777, %v4773
    %v4804 = vsel %vm4802, %v4778, %v4774
    %v4805 = vadd.f32 %v4799, %v4803
    %v4806 = vadd.f32 %v4800, %v4804
    %v4807 = vmul.f32 %v4805, 0.5
    %v4808 = vmul.f32 %v4806, 0.5
    %v4809 = vsub.f32 0.0, %v4807
    %v4810 = vsub.f32 0.0, %v4808
    %v4811 = vmul.f32 %v4809, 1.442695
    %v4812 = vpow.pop %v4811
    %v4813 = vmul.f32 %v4810, 1.442695
    %v4814 = vpow.pop %v4813
    %v4815 = vsub.f32 %v4807, %v4032
    %v4816 = vsub.f32 %v4808, %v4033
    %v4817 = vmul.f32 %v4036, %v4815
    %v4818 = vmul.f32 %v4036, %v4816
    %v4819 = vadd.f32 %v68, %v4817
    %v4820 = vadd.f32 %v69, %v4818
    %v4821 = vadd.f32 %v4819, %v66
    %v4822 = vadd.f32 %v4820, %v67
    %v4823 = vmul.f32 %v4821, %v4812
    %v4824 = vmul.f32 %v4822, %v4814
    %v4825 = vsub.f32 %v4819, %v4823
    %v4826 = vsub.f32 %v4820, %v4824
    %vm4827 = vcmp.lt.f32.partialorder %v4825, 0.0
    %vm4828 = vcmp.lt.f32.partialorder %v4826, 0.0
    %v4829 = vsel %vm4827, %v4807, %v4799
    %v4830 = vsel %vm4828, %v4808, %v4800
    %vm4831 = vcmp.gt.f32.partialorder %v4825, 0.0
    %vm4832 = vcmp.gt.f32.partialorder %v4826, 0.0
    %v4833 = vsel %vm4831, %v4807, %v4803
    %v4834 = vsel %vm4832, %v4808, %v4804
    %v4835 = vadd.f32 %v4829, %v4833
    %v4836 = vadd.f32 %v4830, %v4834
    %v4837 = vmul.f32 %v4835, 0.5
    %v4838 = vmul.f32 %v4836, 0.5
    %v4839 = vsub.f32 0.0, %v4837
    %v4840 = vsub.f32 0.0, %v4838
    %v4841 = vmul.f32 %v4839, 1.442695
    %v4842 = vpow.pop %v4841
    %v4843 = vmul.f32 %v4840, 1.442695
    %v4844 = vpow.pop %v4843
    %v4845 = vsub.f32 %v4837, %v4032
    %v4846 = vsub.f32 %v4838, %v4033
    %v4847 = vmul.f32 %v4036, %v4845
    %v4848 = vmul.f32 %v4036, %v4846
    %v4849 = vadd.f32 %v68, %v4847
    %v4850 = vadd.f32 %v69, %v4848
    %v4851 = vadd.f32 %v4849, %v66
    %v4852 = vadd.f32 %v4850, %v67
    %v4853 = vmul.f32 %v4851, %v4842
    %v4854 = vmul.f32 %v4852, %v4844
    %v4855 = vsub.f32 %v4849, %v4853
    %v4856 = vsub.f32 %v4850, %v4854
    %vm4857 = vcmp.lt.f32.partialorder %v4855, 0.0
    %vm4858 = vcmp.lt.f32.partialorder %v4856, 0.0
    %v4859 = vsel %vm4857, %v4837, %v4829
    %v4860 = vsel %vm4858, %v4838, %v4830
    %vm4861 = vcmp.gt.f32.partialorder %v4855, 0.0
    %vm4862 = vcmp.gt.f32.partialorder %v4856, 0.0
    %v4863 = vsel %vm4861, %v4837, %v4833
    %v4864 = vsel %vm4862, %v4838, %v4834
    %v4865 = vadd.f32 %v4859, %v4863
    %v4866 = vadd.f32 %v4860, %v4864
    %v4867 = vmul.f32 %v4865, 0.5
    %v4868 = vmul.f32 %v4866, 0.5
    %v4869 = vsub.f32 0.0, %v4867
    %v4870 = vsub.f32 0.0, %v4868
    %v4871 = vmul.f32 %v4869, 1.442695
    %v4872 = vpow.pop %v4871
    %v4873 = vmul.f32 %v4870, 1.442695
    %v4874 = vpow.pop %v4873
    %v4875 = vsub.f32 %v4867, %v4032
    %v4876 = vsub.f32 %v4868, %v4033
    %v4877 = vmul.f32 %v4036, %v4875
    %v4878 = vmul.f32 %v4036, %v4876
    %v4879 = vadd.f32 %v68, %v4877
    %v4880 = vadd.f32 %v69, %v4878
    %v4881 = vadd.f32 %v4879, %v66
    %v4882 = vadd.f32 %v4880, %v67
    %v4883 = vmul.f32 %v4881, %v4872
    %v4884 = vmul.f32 %v4882, %v4874
    %v4885 = vsub.f32 %v4879, %v4883
    %v4886 = vsub.f32 %v4880, %v4884
    %vm4887 = vcmp.lt.f32.partialorder %v4885, 0.0
    %vm4888 = vcmp.lt.f32.partialorder %v4886, 0.0
    %v4889 = vsel %vm4887, %v4867, %v4859
    %v4890 = vsel %vm4888, %v4868, %v4860
    %vm4891 = vcmp.gt.f32.partialorder %v4885, 0.0
    %vm4892 = vcmp.gt.f32.partialorder %v4886, 0.0
    %v4893 = vsel %vm4891, %v4867, %v4863
    %v4894 = vsel %vm4892, %v4868, %v4864
    %v4895 = vadd.f32 %v4889, %v4893
    %v4896 = vadd.f32 %v4890, %v4894
    %v4897 = vmul.f32 %v4895, 0.5
    %v4898 = vmul.f32 %v4896, 0.5
    %v4899 = vsub.f32 0.0, %v4897
    %v4900 = vsub.f32 0.0, %v4898
    %v4901 = vmul.f32 %v4899, 1.442695
    %v4902 = vpow.pop %v4901
    %v4903 = vmul.f32 %v4900, 1.442695
    %v4904 = vpow.pop %v4903
    %v4905 = vsub.f32 %v4897, %v4032
    %v4906 = vsub.f32 %v4898, %v4033
    %v4907 = vmul.f32 %v4036, %v4905
    %v4908 = vmul.f32 %v4036, %v4906
    %v4909 = vadd.f32 %v68, %v4907
    %v4910 = vadd.f32 %v69, %v4908
    %v4911 = vadd.f32 %v4909, %v66
    %v4912 = vadd.f32 %v4910, %v67
    %v4913 = vmul.f32 %v4911, %v4902
    %v4914 = vmul.f32 %v4912, %v4904
    %v4915 = vsub.f32 %v4909, %v4913
    %v4916 = vsub.f32 %v4910, %v4914
    %vm4917 = vcmp.lt.f32.partialorder %v4915, 0.0
    %vm4918 = vcmp.lt.f32.partialorder %v4916, 0.0
    %v4919 = vsel %vm4917, %v4897, %v4889
    %v4920 = vsel %vm4918, %v4898, %v4890
    %vm4921 = vcmp.gt.f32.partialorder %v4915, 0.0
    %vm4922 = vcmp.gt.f32.partialorder %v4916, 0.0
    %v4923 = vsel %vm4921, %v4897, %v4893
    %v4924 = vsel %vm4922, %v4898, %v4894
    %v4925 = vadd.f32 %v4919, %v4923
    %v4926 = vadd.f32 %v4920, %v4924
    %v4927 = vmul.f32 %v4925, 0.5
    %v4928 = vmul.f32 %v4926, 0.5
    %v4929 = vadd.f32 %v4927, %v4024
    %v4930 = vadd.f32 %v4928, %v4025
    %v4931 = vadd.f32 %v4030, %v4026
    %v4932 = vadd.f32 %v4031, %v4027
    %4933 = vmatprep.subr.mxu0 0.0
    %4934 = vmatpush1.msra.mxu0 %v4929
    %4935 = vmatprep.subr.mxu0 0.0
    %4936 = vmatpush1.msra.mxu0 %v4930
    %4937 = vmatprep.subr.mxu0 0.0
    %4938 = vmatpush1.msra.mxu0 0.0
    %4939 = vmatprep.subr.mxu0 0.0
    %4940 = vmatpush1.msra.mxu0 0.0
    %4941 = vmatprep.subr.mxu0 0.0
    %4942 = vmatpush1.msra.mxu0 0.0
    %4943 = vmatprep.subr.mxu0 0.0
    %4944 = vmatpush1.msra.mxu0 0.0
    %4945 = vmatprep.subr.mxu0 0.0
    %4946 = vmatpush1.msra.mxu0 0.0
    %4947 = vmatprep.subr.mxu0 0.0
    %4948 = vmatpush1.msra.mxu0 0.0
    %4949 = vmatprep.subr.mxu0 0.0
    %4950 = vmatpush1.msra.mxu0 0.0
    %4951 = vmatprep.subr.mxu0 0.0
    %4952 = vmatpush1.msra.mxu0 0.0
    %4953 = vmatprep.subr.mxu0 0.0
    %4954 = vmatpush1.msra.mxu0 0.0
    %4955 = vmatprep.subr.mxu0 0.0
    %4956 = vmatpush1.msra.mxu0 0.0
    %4957 = vmatprep.subr.mxu0 0.0
    %4958 = vmatpush1.msra.mxu0 0.0
    %4959 = vmatprep.subr.mxu0 0.0
    %4960 = vmatpush1.msra.mxu0 0.0
    %4961 = vmatprep.subr.mxu0 0.0
    %4962 = vmatpush1.msra.mxu0 0.0
    %4963 = vmatprep.subr.mxu0 0.0
    %4964 = vmatpush1.msra.mxu0 0.0
    %4965 = vmatprep.subr.mxu0 0.0
    %4966 = vmatpush1.msra.mxu0 0.0
    %4967 = vmatprep.subr.mxu0 0.0
    %4968 = vmatpush1.msra.mxu0 0.0
    %4969 = vmatprep.subr.mxu0 0.0
    %4970 = vmatpush1.msra.mxu0 0.0
    %4971 = vmatprep.subr.mxu0 0.0
    %4972 = vmatpush1.msra.mxu0 0.0
    %4973 = vmatprep.subr.mxu0 0.0
    %4974 = vmatpush1.msra.mxu0 0.0
    %4975 = vmatprep.subr.mxu0 0.0
    %4976 = vmatpush1.msra.mxu0 0.0
    %4977 = vmatprep.subr.mxu0 0.0
    %4978 = vmatpush1.msra.mxu0 0.0
    %4979 = vmatprep.subr.mxu0 0.0
    %4980 = vmatpush1.msra.mxu0 0.0
    %4981 = vmatprep.subr.mxu0 0.0
    %4982 = vmatpush1.msra.mxu0 0.0
    %4983 = vmatprep.subr.mxu0 0.0
    %4984 = vmatpush1.msra.mxu0 0.0
    %4985 = vmatprep.subr.mxu0 0.0
    %4986 = vmatpush1.msra.mxu0 0.0
    %4987 = vmatprep.subr.mxu0 0.0
    %4988 = vmatpush1.msra.mxu0 0.0
    %4989 = vmatprep.subr.mxu0 0.0
    %4990 = vmatpush1.msra.mxu0 0.0
    %4991 = vmatprep.subr.mxu0 0.0
    %4992 = vmatpush1.msra.mxu0 0.0
    %4993 = vmatprep.subr.mxu0 0.0
    %4994 = vmatpush1.msra.mxu0 0.0
    %4995 = vmatprep.subr.mxu0 0.0
    %4996 = vmatpush1.msra.mxu0 0.0
    %4997 = vmatprep.mubr.f32.mxu0 0.0
    %4998 = vmatmul.mubr.f32.gmra.mrb[0].mxu0 %v76
    %v4999 = vpop.f32.mrb[0].mxu0
    %v5000 = vadd.f32 0.0, %v4999
    %v5001 = vpop.f32.mrb[0].mxu0
    %5002 = vmatprep.mubr.f32.mxu0 0.0
    %5003 = vmatmul.mubr.f32.gmra.mrb[0].mxu0 %v79
    %v5004 = vpop.f32.mrb[0].mxu0
    %v5005 = vadd.f32 0.0, %v5004
    %v5006 = vpop.f32.mrb[0].mxu0
    %5007 = vmatprep.mubr.f32.mxu0 0.0
    %5008 = vmatmul.mubr.f32.gmra.mrb[0].mxu0 %v82
    %v5009 = vpop.f32.mrb[0].mxu0
    %v5010 = vadd.f32 0.0, %v5009
    %v5011 = vpop.f32.mrb[0].mxu0
    %5012 = vmatprep.mubr.f32.mxu0 0.0
    %5013 = vmatmul.mubr.f32.gmra.mrb[0].mxu0 %v85
    %v5014 = vpop.f32.mrb[0].mxu0
    %v5015 = vadd.f32 0.0, %v5014
    %v5016 = vpop.f32.mrb[0].mxu0
    %5017 = vdwg.mxu0
    %5020 = vrot.lane.b32.xlu0 %v5010, 32
    %v5021 = vpop.permute.xlu0 %5020
    %5022 = vrot.lane.b32.xlu0 %v5015, 32
    %v5023 = vpop.permute.xlu0 %5022
    %v5026 = vsel %vm180, %v5000, %v5021
    %v5027 = vsel %vm180, %v5005, %v5023
    %v5029 = vsel %vm191, %v5026, 0
    %v5032 = vsel %vm191, %v5027, 0
    %5034 = vmatprep.subr.mxu0 0.0
    %5035 = vmatpush1.msra.mxu0 %v183
    %5036 = vmatprep.subr.mxu0 0.0
    %5037 = vmatpush1.msra.mxu0 %v184
    %5038 = vmatprep.subr.mxu0 0.0
    %5039 = vmatpush1.msra.mxu0 %v185
    %5040 = vmatprep.subr.mxu0 0.0
    %5041 = vmatpush1.msra.mxu0 %v186
    %5042 = vmatprep.subr.mxu0 0.0
    %5043 = vmatpush1.msra.mxu0 %v187
    %5044 = vmatprep.subr.mxu0 0.0
    %5045 = vmatpush1.msra.mxu0 %v188
    %5046 = vmatprep.subr.mxu0 0.0
    %5047 = vmatpush1.msra.mxu0 %v189
    %5048 = vmatprep.subr.mxu0 0.0
    %5049 = vmatpush1.msra.mxu0 %v190
    %5050 = vmatprep.subr.mxu0 0.0
    %5051 = vmatpush1.msra.mxu0 0.0
    %5052 = vmatprep.subr.mxu0 0.0
    %5053 = vmatpush1.msra.mxu0 0.0
    %5054 = vmatprep.subr.mxu0 0.0
    %5055 = vmatpush1.msra.mxu0 0.0
    %5056 = vmatprep.subr.mxu0 0.0
    %5057 = vmatpush1.msra.mxu0 0.0
    %5058 = vmatprep.subr.mxu0 0.0
    %5059 = vmatpush1.msra.mxu0 0.0
    %5060 = vmatprep.subr.mxu0 0.0
    %5061 = vmatpush1.msra.mxu0 0.0
    %5062 = vmatprep.subr.mxu0 0.0
    %5063 = vmatpush1.msra.mxu0 0.0
    %5064 = vmatprep.subr.mxu0 0.0
    %5065 = vmatpush1.msra.mxu0 0.0
    %5066 = vmatprep.subr.mxu0 0.0
    %5067 = vmatpush1.msra.mxu0 0.0
    %5068 = vmatprep.subr.mxu0 0.0
    %5069 = vmatpush1.msra.mxu0 0.0
    %5070 = vmatprep.subr.mxu0 0.0
    %5071 = vmatpush1.msra.mxu0 0.0
    %5072 = vmatprep.subr.mxu0 0.0
    %5073 = vmatpush1.msra.mxu0 0.0
    %5074 = vmatprep.subr.mxu0 0.0
    %5075 = vmatpush1.msra.mxu0 0.0
    %5076 = vmatprep.subr.mxu0 0.0
    %5077 = vmatpush1.msra.mxu0 0.0
    %5078 = vmatprep.subr.mxu0 0.0
    %5079 = vmatpush1.msra.mxu0 0.0
    %5080 = vmatprep.subr.mxu0 0.0
    %5081 = vmatpush1.msra.mxu0 0.0
    %5082 = vmatprep.subr.mxu0 0.0
    %5083 = vmatpush1.msra.mxu0 0.0
    %5084 = vmatprep.subr.mxu0 0.0
    %5085 = vmatpush1.msra.mxu0 0.0
    %5086 = vmatprep.subr.mxu0 0.0
    %5087 = vmatpush1.msra.mxu0 0.0
    %5088 = vmatprep.subr.mxu0 0.0
    %5089 = vmatpush1.msra.mxu0 0.0
    %5090 = vmatprep.subr.mxu0 0.0
    %5091 = vmatpush1.msra.mxu0 0.0
    %5092 = vmatprep.subr.mxu0 0.0
    %5093 = vmatpush1.msra.mxu0 0.0
    %5094 = vmatprep.subr.mxu0 0.0
    %5095 = vmatpush1.msra.mxu0 0.0
    %5096 = vmatprep.subr.mxu0 0.0
    %5097 = vmatpush1.msra.mxu0 0.0
    %5098 = vmatprep.mubr.f32.mxu0 0.0
    %5099 = vmatmul.mubr.f32.gmra.mrb[0].mxu0 %v5029
    %v5100 = vpop.f32.mrb[0].mxu0
    %v5101 = vadd.f32 0.0, %v5100
    %v5102 = vpop.f32.mrb[0].mxu0
    %5103 = vmatprep.mubr.f32.mxu0 0.0
    %5104 = vmatmul.mubr.f32.gmra.mrb[0].mxu0 %v5032
    %v5105 = vpop.f32.mrb[0].mxu0
    %v5106 = vadd.f32 0.0, %v5105
    %v5107 = vpop.f32.mrb[0].mxu0
    %5108 = vdwg.mxu0
    %v5109 = vmul.f32 %v5101, %v273
    %v5110 = vmul.f32 %v5106, %v274
    %5113 = vrot.lane.b32.xlu0 %v5101, 96
    %v5114 = vpop.permute.xlu0 %5113
    %5115 = vrot.lane.b32.xlu0 %v5106, 96
    %v5116 = vpop.permute.xlu0 %5115
    %5119 = vrot.lane.b32.xlu0 %v5101, 32
    %v5120 = vpop.permute.xlu0 %5119
    %5121 = vrot.lane.b32.xlu0 %v5106, 32
    %v5122 = vpop.permute.xlu0 %5121
    %v5125 = vsel %vm180, %v5114, %v5120
    %v5126 = vsel %vm180, %v5116, %v5122
    %v5127 = vmul.f32 %v5125, %v293
    %v5128 = vmul.f32 %v5126, %v294
    %v5129 = vsub.f32 %v5109, %v5127
    %v5130 = vsub.f32 %v5110, %v5128
    %v5132 = vsel %vm191, %v5129, 0
    %v5135 = vsel %vm191, %v5130, 0
    %5137 = vmatprep.subr.mxu0 0.0
    %5138 = vmatpush1.msra.mxu0 %v299
    %5139 = vmatprep.subr.mxu0 0.0
    %5140 = vmatpush1.msra.mxu0 %v300
    %5141 = vmatprep.subr.mxu0 0.0
    %5142 = vmatpush1.msra.mxu0 %v301
    %5143 = vmatprep.subr.mxu0 0.0
    %5144 = vmatpush1.msra.mxu0 %v302
    %5145 = vmatprep.subr.mxu0 0.0
    %5146 = vmatpush1.msra.mxu0 %v303
    %5147 = vmatprep.subr.mxu0 0.0
    %5148 = vmatpush1.msra.mxu0 %v304
    %5149 = vmatprep.subr.mxu0 0.0
    %5150 = vmatpush1.msra.mxu0 %v305
    %5151 = vmatprep.subr.mxu0 0.0
    %5152 = vmatpush1.msra.mxu0 %v306
    %5153 = vmatprep.subr.mxu0 0.0
    %5154 = vmatpush1.msra.mxu0 0.0
    %5155 = vmatprep.subr.mxu0 0.0
    %5156 = vmatpush1.msra.mxu0 0.0
    %5157 = vmatprep.subr.mxu0 0.0
    %5158 = vmatpush1.msra.mxu0 0.0
    %5159 = vmatprep.subr.mxu0 0.0
    %5160 = vmatpush1.msra.mxu0 0.0
    %5161 = vmatprep.subr.mxu0 0.0
    %5162 = vmatpush1.msra.mxu0 0.0
    %5163 = vmatprep.subr.mxu0 0.0
    %5164 = vmatpush1.msra.mxu0 0.0
    %5165 = vmatprep.subr.mxu0 0.0
    %5166 = vmatpush1.msra.mxu0 0.0
    %5167 = vmatprep.subr.mxu0 0.0
    %5168 = vmatpush1.msra.mxu0 0.0
    %5169 = vmatprep.subr.mxu0 0.0
    %5170 = vmatpush1.msra.mxu0 0.0
    %5171 = vmatprep.subr.mxu0 0.0
    %5172 = vmatpush1.msra.mxu0 0.0
    %5173 = vmatprep.subr.mxu0 0.0
    %5174 = vmatpush1.msra.mxu0 0.0
    %5175 = vmatprep.subr.mxu0 0.0
    %5176 = vmatpush1.msra.mxu0 0.0
    %5177 = vmatprep.subr.mxu0 0.0
    %5178 = vmatpush1.msra.mxu0 0.0
    %5179 = vmatprep.subr.mxu0 0.0
    %5180 = vmatpush1.msra.mxu0 0.0
    %5181 = vmatprep.subr.mxu0 0.0
    %5182 = vmatpush1.msra.mxu0 0.0
    %5183 = vmatprep.subr.mxu0 0.0
    %5184 = vmatpush1.msra.mxu0 0.0
    %5185 = vmatprep.subr.mxu0 0.0
    %5186 = vmatpush1.msra.mxu0 0.0
    %5187 = vmatprep.subr.mxu0 0.0
    %5188 = vmatpush1.msra.mxu0 0.0
    %5189 = vmatprep.subr.mxu0 0.0
    %5190 = vmatpush1.msra.mxu0 0.0
    %5191 = vmatprep.subr.mxu0 0.0
    %5192 = vmatpush1.msra.mxu0 0.0
    %5193 = vmatprep.subr.mxu0 0.0
    %5194 = vmatpush1.msra.mxu0 0.0
    %5195 = vmatprep.subr.mxu0 0.0
    %5196 = vmatpush1.msra.mxu0 0.0
    %5197 = vmatprep.subr.mxu0 0.0
    %5198 = vmatpush1.msra.mxu0 0.0
    %5199 = vmatprep.subr.mxu0 0.0
    %5200 = vmatpush1.msra.mxu0 0.0
    %5201 = vmatprep.mubr.f32.mxu0 0.0
    %5202 = vmatmul.mubr.f32.gmra.mrb[0].mxu0 %v5132
    %v5203 = vpop.f32.mrb[0].mxu0
    %v5204 = vadd.f32 0.0, %v5203
    %v5205 = vpop.f32.mrb[0].mxu0
    %5206 = vmatprep.mubr.f32.mxu0 0.0
    %5207 = vmatmul.mubr.f32.gmra.mrb[0].mxu0 %v5135
    %v5208 = vpop.f32.mrb[0].mxu0
    %v5209 = vadd.f32 0.0, %v5208
    %v5210 = vpop.f32.mrb[0].mxu0
    %5211 = vdwg.mxu0
    %5214 = vrot.lane.b32.xlu0 %v5204, 96
    %v5215 = vpop.permute.xlu0 %5214
    %5216 = vrot.lane.b32.xlu0 %v5209, 96
    %v5217 = vpop.permute.xlu0 %5216
    %5220 = vmatprep.subr.mxu0 0.0
    %5221 = vmatpush1.msra.mxu0 %v5204
    %5222 = vmatprep.subr.mxu0 0.0
    %5223 = vmatpush1.msra.mxu0 %v5209
    %5224 = vmatprep.subr.mxu0 0.0
    %5225 = vmatpush1.msra.mxu0 %v5215
    %5226 = vmatprep.subr.mxu0 0.0
    %5227 = vmatpush1.msra.mxu0 %v5217
    %5228 = vmatprep.subr.mxu0 0.0
    %5229 = vmatpush1.msra.mxu0 0.0
    %5230 = vmatprep.subr.mxu0 0.0
    %5231 = vmatpush1.msra.mxu0 0.0
    %5232 = vmatprep.subr.mxu0 0.0
    %5233 = vmatpush1.msra.mxu0 0.0
    %5234 = vmatprep.subr.mxu0 0.0
    %5235 = vmatpush1.msra.mxu0 0.0
    %5236 = vmatprep.subr.mxu0 0.0
    %5237 = vmatpush1.msra.mxu0 0.0
    %5238 = vmatprep.subr.mxu0 0.0
    %5239 = vmatpush1.msra.mxu0 0.0
    %5240 = vmatprep.subr.mxu0 0.0
    %5241 = vmatpush1.msra.mxu0 0.0
    %5242 = vmatprep.subr.mxu0 0.0
    %5243 = vmatpush1.msra.mxu0 0.0
    %5244 = vmatprep.subr.mxu0 0.0
    %5245 = vmatpush1.msra.mxu0 0.0
    %5246 = vmatprep.subr.mxu0 0.0
    %5247 = vmatpush1.msra.mxu0 0.0
    %5248 = vmatprep.subr.mxu0 0.0
    %5249 = vmatpush1.msra.mxu0 0.0
    %5250 = vmatprep.subr.mxu0 0.0
    %5251 = vmatpush1.msra.mxu0 0.0
    %5252 = vmatprep.subr.mxu0 0.0
    %5253 = vmatpush1.msra.mxu0 0.0
    %5254 = vmatprep.subr.mxu0 0.0
    %5255 = vmatpush1.msra.mxu0 0.0
    %5256 = vmatprep.subr.mxu0 0.0
    %5257 = vmatpush1.msra.mxu0 0.0
    %5258 = vmatprep.subr.mxu0 0.0
    %5259 = vmatpush1.msra.mxu0 0.0
    %5260 = vmatprep.subr.mxu0 0.0
    %5261 = vmatpush1.msra.mxu0 0.0
    %5262 = vmatprep.subr.mxu0 0.0
    %5263 = vmatpush1.msra.mxu0 0.0
    %5264 = vmatprep.subr.mxu0 0.0
    %5265 = vmatpush1.msra.mxu0 0.0
    %5266 = vmatprep.subr.mxu0 0.0
    %5267 = vmatpush1.msra.mxu0 0.0
    %5268 = vmatprep.subr.mxu0 0.0
    %5269 = vmatpush1.msra.mxu0 0.0
    %5270 = vmatprep.subr.mxu0 0.0
    %5271 = vmatpush1.msra.mxu0 0.0
    %5272 = vmatprep.subr.mxu0 0.0
    %5273 = vmatpush1.msra.mxu0 0.0
    %5274 = vmatprep.subr.mxu0 0.0
    %5275 = vmatpush1.msra.mxu0 0.0
    %5276 = vmatprep.subr.mxu0 0.0
    %5277 = vmatpush1.msra.mxu0 0.0
    %5278 = vmatprep.subr.mxu0 0.0
    %5279 = vmatpush1.msra.mxu0 0.0
    %5280 = vmatprep.subr.mxu0 0.0
    %5281 = vmatpush1.msra.mxu0 0.0
    %5282 = vmatprep.subr.mxu0 0.0
    %5283 = vmatpush1.msra.mxu0 0.0
    %5284 = vmatprep.mubr.f32.mxu0 0.0
    %5285 = vmatmul.mubr.f32.gmra.mrb[0].mxu0 %v401
    %v5286 = vpop.f32.mrb[0].mxu0
    %v5287 = vadd.f32 0.0, %v5286
    %v5288 = vpop.f32.mrb[0].mxu0
    %5289 = vmatprep.mubr.f32.mxu0 0.0
    %5290 = vmatmul.mubr.f32.gmra.mrb[0].mxu0 %v404
    %v5291 = vpop.f32.mrb[0].mxu0
    %v5292 = vadd.f32 0.0, %v5291
    %v5293 = vpop.f32.mrb[0].mxu0
    %5294 = vmatprep.mubr.f32.mxu0 0.0
    %5295 = vmatmul.mubr.f32.gmra.mrb[0].mxu0 %v407
    %v5296 = vpop.f32.mrb[0].mxu0
    %v5297 = vadd.f32 0.0, %v5296
    %v5298 = vpop.f32.mrb[0].mxu0
    %5299 = vmatprep.mubr.f32.mxu0 0.0
    %5300 = vmatmul.mubr.f32.gmra.mrb[0].mxu0 %v410
    %v5301 = vpop.f32.mrb[0].mxu0
    %v5302 = vadd.f32 0.0, %v5301
    %v5303 = vpop.f32.mrb[0].mxu0
    %5304 = vdwg.mxu0
    %v5305 = vmul.f32 %v5287, 0.00390625
    %v5306 = vmul.f32 %v5292, 0.00390625
    %v5307 = vmul.f32 %v5297, 0.00390625
    %v5308 = vmul.f32 %v5302, 0.00390625
    %v5309 = vand.u32 2147483647, %v5305
    %v5310 = vand.u32 2147483647, %v5306
    %v5311 = vand.u32 2147483647, %v5307
    %v5312 = vand.u32 2147483647, %v5308
    %v5313 = vmax.f32 %v5309, %v5311
    %v5314 = vmax.f32 %v5310, %v5312
    %v5315 = vmin.f32 %v5309, %v5311
    %v5316 = vmin.f32 %v5310, %v5312
    %vm5317 = vcmp.eq.f32.partialorder %v5313, 0.0
    %vm5318 = vcmp.eq.f32.partialorder %v5314, 0.0
    %v5319 = vsel %vm5317, 1.0, %v5313
    %v5320 = vsel %vm5318, 1.0, %v5314
    %v5321 = vrcp.pop %v5319
    %v5322 = vmul.f32 %v5315, %v5321
    %v5323 = vrcp.pop %v5320
    %v5324 = vmul.f32 %v5316, %v5323
    %vm5325 = vcmp.gt.f32.partialorder %v5322, 0.41421357
    %vm5326 = vcmp.gt.f32.partialorder %v5324, 0.41421357
    %v5327 = vsub.f32 %v5322, 1.0
    %v5328 = vsub.f32 %v5324, 1.0
    %v5329 = vadd.f32 %v5322, 1.0
    %v5330 = vadd.f32 %v5324, 1.0
    %v5331 = vrcp.pop %v5329
    %v5332 = vmul.f32 %v5327, %v5331
    %v5333 = vrcp.pop %v5330
    %v5334 = vmul.f32 %v5328, %v5333
    %v5335 = vsel %vm5325, %v5332, %v5322
    %v5336 = vsel %vm5326, %v5334, %v5324
    %v5337 = vsel %vm5325, 0.7853982, 0.0
    %v5338 = vsel %vm5326, 0.7853982, 0.0
    %v5339 = vmul.f32 %v5335, %v5335
    %v5340 = vmul.f32 %v5336, %v5336
    %v5341 = vmul.f32 %v5339, 0.080537446
    %v5342 = vmul.f32 %v5340, 0.080537446
    %v5343 = vsub.f32 %v5341, 0.13877685
    %v5344 = vsub.f32 %v5342, 0.13877685
    %v5345 = vmul.f32 %v5343, %v5339
    %v5346 = vmul.f32 %v5344, %v5340
    %v5347 = vadd.f32 %v5345, 0.19977711
    %v5348 = vadd.f32 %v5346, 0.19977711
    %v5349 = vmul.f32 %v5347, %v5339
    %v5350 = vmul.f32 %v5348, %v5340
    %v5351 = vsub.f32 %v5349, 0.3333295
    %v5352 = vsub.f32 %v5350, 0.3333295
    %v5353 = vmul.f32 %v5351, %v5339
    %v5354 = vmul.f32 %v5352, %v5340
    %v5355 = vmul.f32 %v5353, %v5335
    %v5356 = vmul.f32 %v5354, %v5336
    %v5357 = vadd.f32 %v5355, %v5335
    %v5358 = vadd.f32 %v5356, %v5336
    %v5359 = vadd.f32 %v5337, %v5357
    %v5360 = vadd.f32 %v5338, %v5358
    %vm5361 = vcmp.gt.f32.partialorder %v5311, %v5309
    %vm5362 = vcmp.gt.f32.partialorder %v5312, %v5310
    %v5363 = vsub.f32 1.5707964, %v5359
    %v5364 = vsub.f32 1.5707964, %v5360
    %v5365 = vsel %vm5361, %v5363, %v5359
    %v5366 = vsel %vm5362, %v5364, %v5360
    %vm5367 = vcmp.lt.f32.partialorder %v5305, 0.0
    %vm5368 = vcmp.lt.f32.partialorder %v5306, 0.0
    %v5369 = vsub.f32 3.1415927, %v5365
    %v5370 = vsub.f32 3.1415927, %v5366
    %v5371 = vsel %vm5367, %v5369, %v5365
    %v5372 = vsel %vm5368, %v5370, %v5366
    %v5373 = vsel %vm5317, 0.0, %v5371
    %v5374 = vsel %vm5318, 0.0, %v5372
    %v5375 = vmul.f32 %v5373, 0.31830987
    %v5376 = vmul.f32 %v5374, 0.31830987
    %v5377 = vmul.f32 %v4036, %v5375
    %v5378 = vmul.f32 %v4036, %v5376
    %v5379 = vstv %s4029
    %v5380 = vmul.f32 %v5379, %v4931
    %v5381 = vmul.f32 %v5379, %v4932
    %v5382 = vadd.f32 %v5377, %v5380
    %v5383 = vadd.f32 %v5378, %v5381
    %5384 = vmatprep.subr.mxu0 0.0
    %5385 = vmatpush1.msra.mxu0 %v5382
    %5386 = vmatprep.subr.mxu0 0.0
    %5387 = vmatpush1.msra.mxu0 %v5383
    %5388 = vmatprep.subr.mxu0 0.0
    %5389 = vmatpush1.msra.mxu0 0.0
    %5390 = vmatprep.subr.mxu0 0.0
    %5391 = vmatpush1.msra.mxu0 0.0
    %5392 = vmatprep.subr.mxu0 0.0
    %5393 = vmatpush1.msra.mxu0 0.0
    %5394 = vmatprep.subr.mxu0 0.0
    %5395 = vmatpush1.msra.mxu0 0.0
    %5396 = vmatprep.subr.mxu0 0.0
    %5397 = vmatpush1.msra.mxu0 0.0
    %5398 = vmatprep.subr.mxu0 0.0
    %5399 = vmatpush1.msra.mxu0 0.0
    %5400 = vmatprep.subr.mxu0 0.0
    %5401 = vmatpush1.msra.mxu0 0.0
    %5402 = vmatprep.subr.mxu0 0.0
    %5403 = vmatpush1.msra.mxu0 0.0
    %5404 = vmatprep.subr.mxu0 0.0
    %5405 = vmatpush1.msra.mxu0 0.0
    %5406 = vmatprep.subr.mxu0 0.0
    %5407 = vmatpush1.msra.mxu0 0.0
    %5408 = vmatprep.subr.mxu0 0.0
    %5409 = vmatpush1.msra.mxu0 0.0
    %5410 = vmatprep.subr.mxu0 0.0
    %5411 = vmatpush1.msra.mxu0 0.0
    %5412 = vmatprep.subr.mxu0 0.0
    %5413 = vmatpush1.msra.mxu0 0.0
    %5414 = vmatprep.subr.mxu0 0.0
    %5415 = vmatpush1.msra.mxu0 0.0
    %5416 = vmatprep.subr.mxu0 0.0
    %5417 = vmatpush1.msra.mxu0 0.0
    %5418 = vmatprep.subr.mxu0 0.0
    %5419 = vmatpush1.msra.mxu0 0.0
    %5420 = vmatprep.subr.mxu0 0.0
    %5421 = vmatpush1.msra.mxu0 0.0
    %5422 = vmatprep.subr.mxu0 0.0
    %5423 = vmatpush1.msra.mxu0 0.0
    %5424 = vmatprep.subr.mxu0 0.0
    %5425 = vmatpush1.msra.mxu0 0.0
    %5426 = vmatprep.subr.mxu0 0.0
    %5427 = vmatpush1.msra.mxu0 0.0
    %5428 = vmatprep.subr.mxu0 0.0
    %5429 = vmatpush1.msra.mxu0 0.0
    %5430 = vmatprep.subr.mxu0 0.0
    %5431 = vmatpush1.msra.mxu0 0.0
    %5432 = vmatprep.subr.mxu0 0.0
    %5433 = vmatpush1.msra.mxu0 0.0
    %5434 = vmatprep.subr.mxu0 0.0
    %5435 = vmatpush1.msra.mxu0 0.0
    %5436 = vmatprep.subr.mxu0 0.0
    %5437 = vmatpush1.msra.mxu0 0.0
    %5438 = vmatprep.subr.mxu0 0.0
    %5439 = vmatpush1.msra.mxu0 0.0
    %5440 = vmatprep.subr.mxu0 0.0
    %5441 = vmatpush1.msra.mxu0 0.0
    %5442 = vmatprep.subr.mxu0 0.0
    %5443 = vmatpush1.msra.mxu0 0.0
    %5444 = vmatprep.subr.mxu0 0.0
    %5445 = vmatpush1.msra.mxu0 0.0
    %5446 = vmatprep.subr.mxu0 0.0
    %5447 = vmatpush1.msra.mxu0 0.0
    %5448 = vmatprep.mubr.f32.mxu0 0.0
    %5449 = vmatmul.mubr.f32.gmra.mrb[0].mxu0 %v76
    %v5450 = vpop.f32.mrb[0].mxu0
    %v5451 = vadd.f32 0.0, %v5450
    %v5452 = vpop.f32.mrb[0].mxu0
    %5453 = vmatprep.mubr.f32.mxu0 0.0
    %5454 = vmatmul.mubr.f32.gmra.mrb[0].mxu0 %v79
    %v5455 = vpop.f32.mrb[0].mxu0
    %v5456 = vadd.f32 0.0, %v5455
    %v5457 = vpop.f32.mrb[0].mxu0
    %5458 = vmatprep.mubr.f32.mxu0 0.0
    %5459 = vmatmul.mubr.f32.gmra.mrb[0].mxu0 %v82
    %v5460 = vpop.f32.mrb[0].mxu0
    %v5461 = vadd.f32 0.0, %v5460
    %v5462 = vpop.f32.mrb[0].mxu0
    %5463 = vmatprep.mubr.f32.mxu0 0.0
    %5464 = vmatmul.mubr.f32.gmra.mrb[0].mxu0 %v85
    %v5465 = vpop.f32.mrb[0].mxu0
    %v5466 = vadd.f32 0.0, %v5465
    %v5467 = vpop.f32.mrb[0].mxu0
    %5468 = vdwg.mxu0
    %5471 = vrot.lane.b32.xlu0 %v5461, 32
    %v5472 = vpop.permute.xlu0 %5471
    %5473 = vrot.lane.b32.xlu0 %v5466, 32
    %v5474 = vpop.permute.xlu0 %5473
    %v5477 = vsel %vm180, %v5451, %v5472
    %v5478 = vsel %vm180, %v5456, %v5474
    %v5480 = vsel %vm191, %v5477, 0
    %v5483 = vsel %vm191, %v5478, 0
    %5485 = vmatprep.subr.mxu0 0.0
    %5486 = vmatpush1.msra.mxu0 %v183
    %5487 = vmatprep.subr.mxu0 0.0
    %5488 = vmatpush1.msra.mxu0 %v184
    %5489 = vmatprep.subr.mxu0 0.0
    %5490 = vmatpush1.msra.mxu0 %v185
    %5491 = vmatprep.subr.mxu0 0.0
    %5492 = vmatpush1.msra.mxu0 %v186
    %5493 = vmatprep.subr.mxu0 0.0
    %5494 = vmatpush1.msra.mxu0 %v187
    %5495 = vmatprep.subr.mxu0 0.0
    %5496 = vmatpush1.msra.mxu0 %v188
    %5497 = vmatprep.subr.mxu0 0.0
    %5498 = vmatpush1.msra.mxu0 %v189
    %5499 = vmatprep.subr.mxu0 0.0
    %5500 = vmatpush1.msra.mxu0 %v190
    %5501 = vmatprep.subr.mxu0 0.0
    %5502 = vmatpush1.msra.mxu0 0.0
    %5503 = vmatprep.subr.mxu0 0.0
    %5504 = vmatpush1.msra.mxu0 0.0
    %5505 = vmatprep.subr.mxu0 0.0
    %5506 = vmatpush1.msra.mxu0 0.0
    %5507 = vmatprep.subr.mxu0 0.0
    %5508 = vmatpush1.msra.mxu0 0.0
    %5509 = vmatprep.subr.mxu0 0.0
    %5510 = vmatpush1.msra.mxu0 0.0
    %5511 = vmatprep.subr.mxu0 0.0
    %5512 = vmatpush1.msra.mxu0 0.0
    %5513 = vmatprep.subr.mxu0 0.0
    %5514 = vmatpush1.msra.mxu0 0.0
    %5515 = vmatprep.subr.mxu0 0.0
    %5516 = vmatpush1.msra.mxu0 0.0
    %5517 = vmatprep.subr.mxu0 0.0
    %5518 = vmatpush1.msra.mxu0 0.0
    %5519 = vmatprep.subr.mxu0 0.0
    %5520 = vmatpush1.msra.mxu0 0.0
    %5521 = vmatprep.subr.mxu0 0.0
    %5522 = vmatpush1.msra.mxu0 0.0
    %5523 = vmatprep.subr.mxu0 0.0
    %5524 = vmatpush1.msra.mxu0 0.0
    %5525 = vmatprep.subr.mxu0 0.0
    %5526 = vmatpush1.msra.mxu0 0.0
    %5527 = vmatprep.subr.mxu0 0.0
    %5528 = vmatpush1.msra.mxu0 0.0
    %5529 = vmatprep.subr.mxu0 0.0
    %5530 = vmatpush1.msra.mxu0 0.0
    %5531 = vmatprep.subr.mxu0 0.0
    %5532 = vmatpush1.msra.mxu0 0.0
    %5533 = vmatprep.subr.mxu0 0.0
    %5534 = vmatpush1.msra.mxu0 0.0
    %5535 = vmatprep.subr.mxu0 0.0
    %5536 = vmatpush1.msra.mxu0 0.0
    %5537 = vmatprep.subr.mxu0 0.0
    %5538 = vmatpush1.msra.mxu0 0.0
    %5539 = vmatprep.subr.mxu0 0.0
    %5540 = vmatpush1.msra.mxu0 0.0
    %5541 = vmatprep.subr.mxu0 0.0
    %5542 = vmatpush1.msra.mxu0 0.0
    %5543 = vmatprep.subr.mxu0 0.0
    %5544 = vmatpush1.msra.mxu0 0.0
    %5545 = vmatprep.subr.mxu0 0.0
    %5546 = vmatpush1.msra.mxu0 0.0
    %5547 = vmatprep.subr.mxu0 0.0
    %5548 = vmatpush1.msra.mxu0 0.0
    %5549 = vmatprep.mubr.f32.mxu0 0.0
    %5550 = vmatmul.mubr.f32.gmra.mrb[0].mxu0 %v5480
    %v5551 = vpop.f32.mrb[0].mxu0
    %v5552 = vadd.f32 0.0, %v5551
    %v5553 = vpop.f32.mrb[0].mxu0
    %5554 = vmatprep.mubr.f32.mxu0 0.0
    %5555 = vmatmul.mubr.f32.gmra.mrb[0].mxu0 %v5483
    %v5556 = vpop.f32.mrb[0].mxu0
    %v5557 = vadd.f32 0.0, %v5556
    %v5558 = vpop.f32.mrb[0].mxu0
    %5559 = vdwg.mxu0
    %v5560 = vmul.f32 %v4036, %v2950
    %v5561 = vmul.f32 %v4036, %v2951
    %v5562 = vadd.f32 %v5379, %v5560
    %v5563 = vadd.f32 %v5379, %v5561
    %v5564 = vrcp.pop %v5562
    %v5565 = vmul.f32 %v5552, %v5564
    %v5566 = vrcp.pop %v5563
    %v5567 = vmul.f32 %v5557, %v5566
    %v5569 = vsel %vm191, %v5565, 0
    %v5572 = vsel %vm191, %v5567, 0
    %5574 = vmatprep.subr.mxu0 0.0
    %5575 = vmatpush1.msra.mxu0 %v299
    %5576 = vmatprep.subr.mxu0 0.0
    %5577 = vmatpush1.msra.mxu0 %v300
    %5578 = vmatprep.subr.mxu0 0.0
    %5579 = vmatpush1.msra.mxu0 %v301
    %5580 = vmatprep.subr.mxu0 0.0
    %5581 = vmatpush1.msra.mxu0 %v302
    %5582 = vmatprep.subr.mxu0 0.0
    %5583 = vmatpush1.msra.mxu0 %v303
    %5584 = vmatprep.subr.mxu0 0.0
    %5585 = vmatpush1.msra.mxu0 %v304
    %5586 = vmatprep.subr.mxu0 0.0
    %5587 = vmatpush1.msra.mxu0 %v305
    %5588 = vmatprep.subr.mxu0 0.0
    %5589 = vmatpush1.msra.mxu0 %v306
    %5590 = vmatprep.subr.mxu0 0.0
    %5591 = vmatpush1.msra.mxu0 0.0
    %5592 = vmatprep.subr.mxu0 0.0
    %5593 = vmatpush1.msra.mxu0 0.0
    %5594 = vmatprep.subr.mxu0 0.0
    %5595 = vmatpush1.msra.mxu0 0.0
    %5596 = vmatprep.subr.mxu0 0.0
    %5597 = vmatpush1.msra.mxu0 0.0
    %5598 = vmatprep.subr.mxu0 0.0
    %5599 = vmatpush1.msra.mxu0 0.0
    %5600 = vmatprep.subr.mxu0 0.0
    %5601 = vmatpush1.msra.mxu0 0.0
    %5602 = vmatprep.subr.mxu0 0.0
    %5603 = vmatpush1.msra.mxu0 0.0
    %5604 = vmatprep.subr.mxu0 0.0
    %5605 = vmatpush1.msra.mxu0 0.0
    %5606 = vmatprep.subr.mxu0 0.0
    %5607 = vmatpush1.msra.mxu0 0.0
    %5608 = vmatprep.subr.mxu0 0.0
    %5609 = vmatpush1.msra.mxu0 0.0
    %5610 = vmatprep.subr.mxu0 0.0
    %5611 = vmatpush1.msra.mxu0 0.0
    %5612 = vmatprep.subr.mxu0 0.0
    %5613 = vmatpush1.msra.mxu0 0.0
    %5614 = vmatprep.subr.mxu0 0.0
    %5615 = vmatpush1.msra.mxu0 0.0
    %5616 = vmatprep.subr.mxu0 0.0
    %5617 = vmatpush1.msra.mxu0 0.0
    %5618 = vmatprep.subr.mxu0 0.0
    %5619 = vmatpush1.msra.mxu0 0.0
    %5620 = vmatprep.subr.mxu0 0.0
    %5621 = vmatpush1.msra.mxu0 0.0
    %5622 = vmatprep.subr.mxu0 0.0
    %5623 = vmatpush1.msra.mxu0 0.0
    %5624 = vmatprep.subr.mxu0 0.0
    %5625 = vmatpush1.msra.mxu0 0.0
    %5626 = vmatprep.subr.mxu0 0.0
    %5627 = vmatpush1.msra.mxu0 0.0
    %5628 = vmatprep.subr.mxu0 0.0
    %5629 = vmatpush1.msra.mxu0 0.0
    %5630 = vmatprep.subr.mxu0 0.0
    %5631 = vmatpush1.msra.mxu0 0.0
    %5632 = vmatprep.subr.mxu0 0.0
    %5633 = vmatpush1.msra.mxu0 0.0
    %5634 = vmatprep.subr.mxu0 0.0
    %5635 = vmatpush1.msra.mxu0 0.0
    %5636 = vmatprep.subr.mxu0 0.0
    %5637 = vmatpush1.msra.mxu0 0.0
    %5638 = vmatprep.mubr.f32.mxu0 0.0
    %5639 = vmatmul.mubr.f32.gmra.mrb[0].mxu0 %v5569
    %v5640 = vpop.f32.mrb[0].mxu0
    %v5641 = vadd.f32 0.0, %v5640
    %v5642 = vpop.f32.mrb[0].mxu0
    %5643 = vmatprep.mubr.f32.mxu0 0.0
    %5644 = vmatmul.mubr.f32.gmra.mrb[0].mxu0 %v5572
    %v5645 = vpop.f32.mrb[0].mxu0
    %v5646 = vadd.f32 0.0, %v5645
    %v5647 = vpop.f32.mrb[0].mxu0
    %5648 = vdwg.mxu0
    %5651 = vrot.lane.b32.xlu0 %v5641, 96
    %v5652 = vpop.permute.xlu0 %5651
    %5653 = vrot.lane.b32.xlu0 %v5646, 96
    %v5654 = vpop.permute.xlu0 %5653
    %5657 = vmatprep.subr.mxu0 0.0
    %5658 = vmatpush1.msra.mxu0 %v5641
    %5659 = vmatprep.subr.mxu0 0.0
    %5660 = vmatpush1.msra.mxu0 %v5646
    %5661 = vmatprep.subr.mxu0 0.0
    %5662 = vmatpush1.msra.mxu0 %v5652
    %5663 = vmatprep.subr.mxu0 0.0
    %5664 = vmatpush1.msra.mxu0 %v5654
    %5665 = vmatprep.subr.mxu0 0.0
    %5666 = vmatpush1.msra.mxu0 0.0
    %5667 = vmatprep.subr.mxu0 0.0
    %5668 = vmatpush1.msra.mxu0 0.0
    %5669 = vmatprep.subr.mxu0 0.0
    %5670 = vmatpush1.msra.mxu0 0.0
    %5671 = vmatprep.subr.mxu0 0.0
    %5672 = vmatpush1.msra.mxu0 0.0
    %5673 = vmatprep.subr.mxu0 0.0
    %5674 = vmatpush1.msra.mxu0 0.0
    %5675 = vmatprep.subr.mxu0 0.0
    %5676 = vmatpush1.msra.mxu0 0.0
    %5677 = vmatprep.subr.mxu0 0.0
    %5678 = vmatpush1.msra.mxu0 0.0
    %5679 = vmatprep.subr.mxu0 0.0
    %5680 = vmatpush1.msra.mxu0 0.0
    %5681 = vmatprep.subr.mxu0 0.0
    %5682 = vmatpush1.msra.mxu0 0.0
    %5683 = vmatprep.subr.mxu0 0.0
    %5684 = vmatpush1.msra.mxu0 0.0
    %5685 = vmatprep.subr.mxu0 0.0
    %5686 = vmatpush1.msra.mxu0 0.0
    %5687 = vmatprep.subr.mxu0 0.0
    %5688 = vmatpush1.msra.mxu0 0.0
    %5689 = vmatprep.subr.mxu0 0.0
    %5690 = vmatpush1.msra.mxu0 0.0
    %5691 = vmatprep.subr.mxu0 0.0
    %5692 = vmatpush1.msra.mxu0 0.0
    %5693 = vmatprep.subr.mxu0 0.0
    %5694 = vmatpush1.msra.mxu0 0.0
    %5695 = vmatprep.subr.mxu0 0.0
    %5696 = vmatpush1.msra.mxu0 0.0
    %5697 = vmatprep.subr.mxu0 0.0
    %5698 = vmatpush1.msra.mxu0 0.0
    %5699 = vmatprep.subr.mxu0 0.0
    %5700 = vmatpush1.msra.mxu0 0.0
    %5701 = vmatprep.subr.mxu0 0.0
    %5702 = vmatpush1.msra.mxu0 0.0
    %5703 = vmatprep.subr.mxu0 0.0
    %5704 = vmatpush1.msra.mxu0 0.0
    %5705 = vmatprep.subr.mxu0 0.0
    %5706 = vmatpush1.msra.mxu0 0.0
    %5707 = vmatprep.subr.mxu0 0.0
    %5708 = vmatpush1.msra.mxu0 0.0
    %5709 = vmatprep.subr.mxu0 0.0
    %5710 = vmatpush1.msra.mxu0 0.0
    %5711 = vmatprep.subr.mxu0 0.0
    %5712 = vmatpush1.msra.mxu0 0.0
    %5713 = vmatprep.subr.mxu0 0.0
    %5714 = vmatpush1.msra.mxu0 0.0
    %5715 = vmatprep.subr.mxu0 0.0
    %5716 = vmatpush1.msra.mxu0 0.0
    %5717 = vmatprep.subr.mxu0 0.0
    %5718 = vmatpush1.msra.mxu0 0.0
    %5719 = vmatprep.subr.mxu0 0.0
    %5720 = vmatpush1.msra.mxu0 0.0
    %5721 = vmatprep.mubr.f32.mxu0 0.0
    %5722 = vmatmul.mubr.f32.gmra.mrb[0].mxu0 %v401
    %v5723 = vpop.f32.mrb[0].mxu0
    %v5724 = vadd.f32 0.0, %v5723
    %v5725 = vpop.f32.mrb[0].mxu0
    %5726 = vmatprep.mubr.f32.mxu0 0.0
    %5727 = vmatmul.mubr.f32.gmra.mrb[0].mxu0 %v404
    %v5728 = vpop.f32.mrb[0].mxu0
    %v5729 = vadd.f32 0.0, %v5728
    %v5730 = vpop.f32.mrb[0].mxu0
    %5731 = vmatprep.mubr.f32.mxu0 0.0
    %5732 = vmatmul.mubr.f32.gmra.mrb[0].mxu0 %v407
    %v5733 = vpop.f32.mrb[0].mxu0
    %v5734 = vadd.f32 0.0, %v5733
    %v5735 = vpop.f32.mrb[0].mxu0
    %5736 = vmatprep.mubr.f32.mxu0 0.0
    %5737 = vmatmul.mubr.f32.gmra.mrb[0].mxu0 %v410
    %v5738 = vpop.f32.mrb[0].mxu0
    %v5739 = vadd.f32 0.0, %v5738
    %v5740 = vpop.f32.mrb[0].mxu0
    %5741 = vdwg.mxu0
    %v5742 = vmul.f32 %v5724, 0.00390625
    %v5743 = vmul.f32 %v5729, 0.00390625
    %v5744 = vmul.f32 %v5734, 0.00390625
    %v5745 = vmul.f32 %v5739, 0.00390625
    %v5746 = vmul.f32 %v5742, %v5742
    %v5747 = vmul.f32 %v5743, %v5743
    %v5748 = vmul.f32 %v5744, %v5744
    %v5749 = vmul.f32 %v5745, %v5745
    %v5750 = vadd.f32 %v5746, %v5748
    %v5751 = vadd.f32 %v5747, %v5749
    %v5752 = vrsqrt.pop %v5750
    %v5753 = vmul.f32 %v5750, %v5752
    %vm5754 = vcmp.eq.f32.partialorder %v5750, inf
    %v5755 = vsel %vm5754, %v5750, %v5753
    %vm5756 = vcmp.eq.f32.partialorder %v5750, 0.0
    %v5757 = vand.u32 %v5750, 2147483648
    %v5758 = vsel %vm5756, %v5757, %v5755
    %v5759 = vrsqrt.pop %v5751
    %v5760 = vmul.f32 %v5751, %v5759
    %vm5761 = vcmp.eq.f32.partialorder %v5751, inf
    %v5762 = vsel %vm5761, %v5751, %v5760
    %vm5763 = vcmp.eq.f32.partialorder %v5751, 0.0
    %v5764 = vand.u32 %v5751, 2147483648
    %v5765 = vsel %vm5763, %v5764, %v5762
    %v5766 = vsel %vm74, %v5758, -inf
    %5767 = vmax.xlane.f32.xlu0 %v5766
    %v5768 = vpop.xlane.xlu0 %5767
    %v5769 = vsel %vm74, %v5765, -inf
    %5770 = vmax.xlane.f32.xlu0 %v5769
    %v5771 = vpop.xlane.xlu0 %5770
    %v5772 = vmax.f32 %v5768, %v5771
    %v5773 = vrot.slane %v5772, 4
    %v5774 = vmax.f32 %v5772, %v5773
    %v5775 = vrot.slane %v5774, 2
    %v5776 = vmax.f32 %v5774, %v5775
    %v5777 = vrot.slane %v5776, 1
    %v5778 = vmax.f32 %v5776, %v5777
    %v5779 = vrcp.pop %v5778
    %v5780 = vmul.f32 1.0, %v5779
    %v5781 = vsel %vm1402, %v5758, -inf
    %5782 = vmax.xlane.f32.xlu0 %v5781
    %v5783 = vpop.xlane.xlu0 %5782
    %v5784 = vsel %vm1402, %v5765, -inf
    %5785 = vmax.xlane.f32.xlu0 %v5784
    %v5786 = vpop.xlane.xlu0 %5785
    %v5787 = vmax.f32 %v5783, %v5786
    %v5788 = vrot.slane %v5787, 4
    %v5789 = vmax.f32 %v5787, %v5788
    %v5790 = vrot.slane %v5789, 2
    %v5791 = vmax.f32 %v5789, %v5790
    %v5792 = vrot.slane %v5791, 1
    %v5793 = vmax.f32 %v5791, %v5792
    %v5794 = vrcp.pop %v5793
    %v5795 = vmul.f32 1.0, %v5794
    %v5796 = vsel %vm1418, %v5780, %v5795
    %v5797 = vmul.f32 %v5758, %v5796
    %v5798 = vmul.f32 %v5765, %v5796
    %v5799 = vsel %vm180, %v5797, 0.0
    %5800 = vadd.xlane.f32.xlu0 %v5799
    %v5801 = vpop.xlane.xlu0 %5800
    %v5802 = vsel %vm180, %v5798, 0.0
    %5803 = vadd.xlane.f32.xlu0 %v5802
    %v5804 = vpop.xlane.xlu0 %5803
    %v5805 = vadd.f32 %v5801, %v5804
    %v5806 = vrot.slane %v5805, 4
    %v5807 = vadd.f32 %v5805, %v5806
    %v5808 = vrot.slane %v5807, 2
    %v5809 = vadd.f32 %v5807, %v5808
    %v5810 = vrot.slane %v5809, 1
    %v5811 = vadd.f32 %v5809, %v5810
    %v5812 = vmul.f32 %v5811, 0.001953125
    %v5813 = vsub.f32 %v5797, %v5812
    %v5814 = vsub.f32 %v5798, %v5812
    %v5815 = vmul.f32 %v5813, %v5813
    %v5816 = vmul.f32 %v5814, %v5814
    %v5817 = vsel %vm180, %v5815, 0.0
    %5818 = vadd.xlane.f32.xlu0 %v5817
    %v5819 = vpop.xlane.xlu0 %5818
    %v5820 = vsel %vm180, %v5816, 0.0
    %5821 = vadd.xlane.f32.xlu0 %v5820
    %v5822 = vpop.xlane.xlu0 %5821
    %v5823 = vadd.f32 %v5819, %v5822
    %v5824 = vrot.slane %v5823, 4
    %v5825 = vadd.f32 %v5823, %v5824
    %v5826 = vrot.slane %v5825, 2
    %v5827 = vadd.f32 %v5825, %v5826
    %v5828 = vrot.slane %v5827, 1
    %v5829 = vadd.f32 %v5827, %v5828
    %v5830 = vmul.f32 %v5829, 0.001953125
    %v5831 = vadd.f32 %v5830, 1e-05
    %v5832 = vrsqrt.pop %v5831
    %v5833 = vmul.f32 %v5813, %v5832
    %v5834 = vmul.f32 %v5814, %v5832
    %vm5835 = vcmp.ge.f32.partialorder %v5833, 0.0
    %vm5836 = vcmp.ge.f32.partialorder %v5834, 0.0
    %v5837 = vmul.f32 %v5833, 0.01
    %v5838 = vmul.f32 %v5834, 0.01
    %v5839 = vsel %vm5835, %v5833, %v5837
    %v5840 = vsel %vm5836, %v5834, %v5838
    %5841 = vst.msk [vmem:[%s12] sm:$0xff] %vm180, %v5839
    %5842 = vst.msk [vmem:[%s12 + $0x8] sm:$0xff] %vm180, %v5840
    // Predicated region
    $region58: #{plphasenet_forward.1} parent=1 // pred_check
      _
    $region59: #{plphasenet_forward.1} parent=1 // pred_check_branch
      %5844 = sbr.rel (0) target = $region61
    $region60: #{plphasenet_forward.1} parent=1 // pred_region
      _
    $region61: #{plphasenet_forward.1} parent=1 // pred_fallthru
      _
    // Predicated region
    $region62: #{plphasenet_forward.1} parent=1 // pred_check
      _
    $region63: #{plphasenet_forward.1} parent=1 // pred_check_branch
      %5846 = sbr.rel (0) target = $region65
    $region64: #{plphasenet_forward.1} parent=1 // pred_region
      _
    $region65: #{plphasenet_forward.1} parent=1 // pred_fallthru
      _
    %5847 = vsyncpa [#allocation3], 1
    %5848 = vsyncpa [#allocation5], 1

</llo_original>
